<compile_context>
chip_gen: v7x
topology: tpu7x:2x2x1
jax: 0.10.0
libtpu: 0.0.40
codegen_flags: <defaults>
</compile_context>

<pallas_src>
import functools

import jax
import jax.numpy as jnp
import numpy as np
from jax.experimental import pallas as pl
from jax.experimental.pallas import tpu as pltpu


def _round_up(a, b):
    return (a + b - 1) // b * b


# ---------------------------------------------------------------------------
# Kernel
# ---------------------------------------------------------------------------
def _vgg_head_kernel(lo_ref, fr_ref, x_ref, cw3_ref, s2_ref, mask_ref,
                     w1_ref, b1_ref, w2_ref, b2_ref, wh_ref, bh_ref,
                     out_ref, pad1_ref, pad2_ref,
                     *, H, H2, Wp):
    """One batch element per grid step.

    pad1/pad2 are flat padded activation buffers of shape ((H2+2)*Wp, 3*Cin)
    bf16, row pitch Wp (multiple of 16).  Lane block dxb holds the activation
    shifted by (dxb - 1) pixels in x, so a 3x3 conv is 3 dots with K = 3*Cin,
    one per dy, each reading the aligned slab [dy*Wp, dy*Wp + H2*Wp).
    """
    C1 = 512                      # conv1 input channels
    C2 = 256                      # conv1 output / conv2 input channels
    R = H2 * Wp                   # flat conv-output rows (incl. junk cols)
    f32 = jnp.float32

    # --- per-step halo zeroing: scratch has no cross-step state, so the batch
    # --- grid axis can be "parallel" (megacore-sharded on v7x).
    z1 = jnp.zeros((Wp, 3 * C1), pad1_ref.dtype)
    pad1_ref[pl.ds(0, Wp), :] = z1
    pad1_ref[pl.ds((H2 + 1) * Wp, Wp), :] = z1
    z2 = jnp.zeros((Wp, 3 * C2), pad2_ref.dtype)
    pad2_ref[pl.ds(0, Wp), :] = z2
    pad2_ref[pl.ds((H2 + 1) * Wp, Wp), :] = z2

    # --- bilinear x2 upsample (align_corners=True) fused with the dx-im2col
    # --- store: cw3 = [shift_down(cw); cw; shift_up(cw)], so one matmul per
    # --- output row produces all three dx channel blocks (rows >= W2 are zero,
    # --- so the junk columns are rewritten with zeros every step).
    cw3 = cw3_ref[...]                                   # (3*Wp, W) bf16
    last_row = H - 1

    def up_body(i, carry):
        lo = lo_ref[i]
        hi = jnp.minimum(lo + 1, last_row)
        fr = fr_ref[i]
        a = x_ref[0, lo].astype(f32)                     # (W, C1)
        b = x_ref[0, hi].astype(f32)
        row = (a + (b - a) * fr).astype(jnp.bfloat16)    # (W, C1)
        u3 = jnp.dot(cw3, row, preferred_element_type=f32)   # (3*Wp, C1)
        u3 = u3.astype(pad1_ref.dtype)
        base = pl.multiple_of((i + 1) * Wp, 16)
        pad1_ref[pl.ds(base, Wp), 0:C1] = u3[0:Wp, :]                   # dx=0
        pad1_ref[pl.ds(base, Wp), C1:2 * C1] = u3[Wp:2 * Wp, :]         # dx=1
        pad1_ref[pl.ds(base, Wp), 2 * C1:3 * C1] = u3[2 * Wp:3 * Wp, :] # dx=2
        return carry

    jax.lax.fori_loop(0, H2, up_body, 0)

    # --- 3x3 conv + bias + ReLU: dx folded into K, so only 3 dots and 2
    # --- accumulator adds per conv; every slab read starts at dy*Wp (aligned).
    def conv3x3_relu(pad_ref, w_ref, b_ref):
        acc = jnp.dot(pad_ref[pl.ds(0, R), :], w_ref[0],
                      preferred_element_type=f32)
        acc = acc + jnp.dot(pad_ref[pl.ds(Wp, R), :], w_ref[1],
                            preferred_element_type=f32)
        acc = acc + jnp.dot(pad_ref[pl.ds(2 * Wp, R), :], w_ref[2],
                            preferred_element_type=f32)
        return jnp.maximum(acc + b_ref[...], 0.0)

    # conv1 512->256.  Mask the junk columns so pad2's shifted dx blocks see
    # true zero padding at the left/right image edges.
    h1 = conv3x3_relu(pad1_ref, w1_ref, b1_ref) * mask_ref[...]   # (R, C2) f32
    pad2_ref[pl.ds(Wp, R), C2:2 * C2] = h1.astype(pad2_ref.dtype)

    # Build pad2's dx=0 / dx=2 blocks per row-block with a 0/1 shift matrix
    # (exact in bf16); all loads/stores stay 16-row aligned.
    s2 = s2_ref[...]                                     # (2*Wp, Wp) bf16

    def p2_body(m, carry):
        base = pl.multiple_of((m + 1) * Wp, 16)
        v = pad2_ref[pl.ds(base, Wp), C2:2 * C2]         # (Wp, C2) bf16
        vs = jnp.dot(s2, v, preferred_element_type=f32).astype(pad2_ref.dtype)
        pad2_ref[pl.ds(base, Wp), 0:C2] = vs[0:Wp, :]               # dx=0
        pad2_ref[pl.ds(base, Wp), 2 * C2:3 * C2] = vs[Wp:2 * Wp, :] # dx=2
        return carry

    jax.lax.fori_loop(0, H2, p2_body, 0)

    # conv2 256->128.
    h2 = conv3x3_relu(pad2_ref, w2_ref, b2_ref)          # (R, 128) f32

    # --- fused 1x1 heads, lane-dense (2, R) output; contract the channel axis
    # --- directly (no materialized (R,128) transpose).
    z = jax.lax.dot_general(
        wh_ref[...], h2.astype(jnp.bfloat16),
        dimension_numbers=(((1,), (1,)), ((), ())),
        preferred_element_type=f32) + bh_ref[...]        # (2, R)

    pred = jnp.abs(z[0:1, :])
    lv = z[1:2, :]
    # numerically-stable softplus: max(x,0) + log(1 + exp(-|x|))
    logvar = jnp.maximum(lv, 0.0) + jnp.log(1.0 + jnp.exp(-jnp.abs(lv)))
    out_ref[0, 0:1, :] = pred
    out_ref[0, 1:2, :] = logvar


# ---------------------------------------------------------------------------
# Host-side helpers (glue)
# ---------------------------------------------------------------------------
def _bilinear_matrix_np(n_in, n_out):
    """1-D bilinear interpolation matrix, align_corners=True."""
    scale = 0.0 if n_out == 1 else (n_in - 1) / (n_out - 1)
    m = np.zeros((n_out, n_in), np.float32)
    for i in range(n_out):
        c = i * scale
        lo = min(int(np.floor(c)), n_in - 1)
        hi = min(lo + 1, n_in - 1)
        fr = c - lo
        m[i, lo] += 1.0 - fr
        m[i, hi] += fr
    return m


def _bilinear_taps_np(n_in, n_out):
    """(lo, frac) tables for the 2-tap height pass (align_corners=True)."""
    scale = 0.0 if n_out == 1 else (n_in - 1) / (n_out - 1)
    lo = np.zeros((n_out,), np.int32)
    fr = np.zeros((n_out,), np.float32)
    for i in range(n_out):
        c = i * scale
        l = min(int(np.floor(c)), n_in - 1)
        lo[i] = l
        fr[i] = c - l
    return lo, fr


def _vmem_limit_bytes():
    try:
        cap = int(pltpu.get_tpu_info().vmem_capacity_bytes)
    except Exception:
        cap = 64 * 1024 * 1024
    return max(cap - 8 * 1024 * 1024, 16 * 1024 * 1024)


def vgg_extended_forward(x_nchw, params, aleatoric=False):
    """x_nchw: (N, 512, H, W) float32 feature map (output of `features`)."""
    N, C, H, W = x_nchw.shape
    assert C == 512, "reg_layer expects a 512-channel feature map"
    H2, W2 = 2 * H, 2 * W
    Wp = _round_up(W2 + 1, 16)       # row pitch: >=1 junk column, 16-aligned
    R = H2 * Wp                      # flat conv-output rows (incl. junk cols)
    RPAD = (H2 + 2) * Wp             # flat padded-buffer rows

    # NCHW -> NHWC, bf16 for the MXU.
    x = jnp.transpose(x_nchw, (0, 2, 3, 1)).astype(jnp.bfloat16)

    # Height-pass taps (SMEM tables) and width-pass interpolation matrix with
    # the dx=0/1/2 shifts folded in.
    lo_np, fr_np = _bilinear_taps_np(H, H2)
    cw = np.zeros((Wp, W), np.float32)
    cw[:W2] = _bilinear_matrix_np(W, W2)
    cw_dn = np.zeros_like(cw)
    cw_dn[1:] = cw[:-1]
    cw_up = np.zeros_like(cw)
    cw_up[:-1] = cw[1:]
    cw3 = np.concatenate([cw_dn, cw, cw_up], axis=0)        # (3*Wp, W)

    # 0/1 row-shift matrices for pad2's dx blocks (exact in bf16).
    s_dn = np.zeros((Wp, Wp), np.float32)
    s_dn[np.arange(1, Wp), np.arange(Wp - 1)] = 1.0
    s_up = np.zeros((Wp, Wp), np.float32)
    s_up[np.arange(Wp - 1), np.arange(1, Wp)] = 1.0
    s2 = np.concatenate([s_dn, s_up], axis=0)               # (2*Wp, Wp)

    # Junk-column mask for conv1's output (x % Wp < W2).
    mask = (np.arange(R) % Wp < W2).astype(np.float32).reshape(R, 1)

    lo_idx = jnp.asarray(lo_np)                     # (H2,) i32 -> SMEM
    frac = jnp.asarray(fr_np)                       # (H2,) f32 -> SMEM
    cw3 = jnp.asarray(cw3, dtype=jnp.bfloat16)
    s2 = jnp.asarray(s2, dtype=jnp.bfloat16)
    mask = jnp.asarray(mask)

    # PyTorch OIHW -> per-ky (3*Cin, Cout) matrices (kx folded into K), bf16.
    w1 = jnp.transpose(params["w1"], (2, 3, 1, 0)).reshape(3, 3 * 512, 256)
    w1 = w1.astype(jnp.bfloat16)
    w2 = jnp.transpose(params["w2"], (2, 3, 1, 0)).reshape(3, 3 * 256, 128)
    w2 = w2.astype(jnp.bfloat16)
    b1 = params["b1"].reshape(1, 256).astype(jnp.float32)
    b2 = params["b2"].reshape(1, 128).astype(jnp.float32)
    # Fuse the two 1x1 heads (pred, logvar) into one (2, 128) matrix.
    wh = jnp.stack([params["wp"][0, :, 0, 0],
                    params["wlv"][0, :, 0, 0]], axis=0).astype(jnp.bfloat16)
    bh = jnp.stack([params["bp"][0], params["blv"][0]]).reshape(2, 1)
    bh = bh.astype(jnp.float32)

    kernel = functools.partial(_vgg_head_kernel, H=H, H2=H2, Wp=Wp)

    smem_spec = pl.BlockSpec(memory_space=pltpu.MemorySpace.SMEM)
    grid_spec = pltpu.PrefetchScalarGridSpec(
        num_scalar_prefetch=0,
        grid=(N,),
        in_specs=[
            smem_spec,                                             # lo table
            smem_spec,                                             # frac table
            pl.BlockSpec((1, H, W, 512), lambda n: (n, 0, 0, 0)),  # x
            pl.BlockSpec(cw3.shape, lambda n: (0, 0)),
            pl.BlockSpec(s2.shape, lambda n: (0, 0)),
            pl.BlockSpec(mask.shape, lambda n: (0, 0)),
            pl.BlockSpec(w1.shape, lambda n: (0, 0, 0)),
            pl.BlockSpec(b1.shape, lambda n: (0, 0)),
            pl.BlockSpec(w2.shape, lambda n: (0, 0, 0)),
            pl.BlockSpec(b2.shape, lambda n: (0, 0)),
            pl.BlockSpec(wh.shape, lambda n: (0, 0)),
            pl.BlockSpec(bh.shape, lambda n: (0, 0)),
        ],
        out_specs=pl.BlockSpec((1, 2, R), lambda n: (n, 0, 0)),
        scratch_shapes=[
            pltpu.VMEM((RPAD, 3 * 512), jnp.bfloat16),  # pad1: upsample im2col
            pltpu.VMEM((RPAD, 3 * 256), jnp.bfloat16),  # pad2: conv1-out im2col
        ],
    )

    out = pl.pallas_call(
        kernel,
        out_shape=jax.ShapeDtypeStruct((N, 2, R), jnp.float32),
        grid_spec=grid_spec,
        compiler_params=pltpu.CompilerParams(
            # Scratch is fully rewritten every step -> the batch axis can be
            # sharded across TensorCores.
            dimension_semantics=("parallel",),
            vmem_limit_bytes=_vmem_limit_bytes(),
        ),
    )(lo_idx, frac, x, cw3, s2, mask, w1, b1, w2, b2, wh, bh)

    # (N, 2, H2*Wp) -> (N, 2, H2, Wp) -> drop junk columns -> NCHW heads.
    out = out.reshape(N, 2, H2, Wp)[:, :, :, :W2]
    pred = out[:, 0:1]
    logvar = out[:, 1:2]
    if aleatoric:
        return pred, logvar
    return pred


# ---------------------------------------------------------------------------
# Pure-JAX reference (for correctness check)
# ---------------------------------------------------------------------------
def reference_forward(x_nchw, params):
    N, C, H, W = x_nchw.shape
    H2, W2 = 2 * H, 2 * W
    up_mat = jnp.asarray(np.kron(_bilinear_matrix_np(H, H2),
                                 _bilinear_matrix_np(W, W2)))
    x = jnp.transpose(x_nchw, (0, 2, 3, 1)).astype(jnp.float32)
    xu = jnp.einsum("ok,nkc->noc", up_mat,
                    x.reshape(N, H * W, C)).reshape(N, H2, W2, C)

    def conv(h, w_oihw, b):
        w = jnp.transpose(w_oihw, (2, 3, 1, 0))
        y = jax.lax.conv_general_dilated(
            h, w, (1, 1), "SAME",
            dimension_numbers=("NHWC", "HWIO", "NHWC"))
        return y + b

    h = jax.nn.relu(conv(xu, params["w1"], params["b1"]))
    h = jax.nn.relu(conv(h, params["w2"], params["b2"]))
    pred = jnp.abs(conv(h, params["wp"], params["bp"]))
    logvar = jax.nn.softplus(conv(h, params["wlv"], params["blv"]))
    return (jnp.transpose(pred, (0, 3, 1, 2)),
            jnp.transpose(logvar, (0, 3, 1, 2)))


# ---------------------------------------------------------------------------
# Main
# ---------------------------------------------------------------------------
if __name__ == "__main__":
    key = jax.random.PRNGKey(0)
    ks = jax.random.split(key, 9)

    def conv_w(k, cout, cin, kh, kw):
        return jax.random.normal(k, (cout, cin, kh, kw), jnp.float32) * 0.05

    params = {
        "w1": conv_w(ks[0], 256, 512, 3, 3),
        "b1": jax.random.normal(ks[1], (256,), jnp.float32) * 0.05,
        "w2": conv_w(ks[2], 128, 256, 3, 3),
        "b2": jax.random.normal(ks[3], (128,), jnp.float32) * 0.05,
        "wp": conv_w(ks[4], 1, 128, 1, 1),
        "bp": jax.random.normal(ks[5], (1,), jnp.float32) * 0.05,
        "wlv": conv_w(ks[6], 1, 128, 1, 1),
        "blv": jax.random.normal(ks[7], (1,), jnp.float32) * 0.05,
    }

    # Small synthetic 512-channel feature map (output of the injected VGG19
    # `features` backbone): batch=2, spatial=4x4.
    x = jax.random.normal(ks[8], (2, 512, 4, 4), jnp.float32) * 0.1

    pred, logvar = vgg_extended_forward(x, params, aleatoric=True)
    pred, logvar = jax.block_until_ready((pred, logvar))

    pred_ref, logvar_ref = reference_forward(x, params)
    # bf16 matmul inputs vs f32 reference -> loose tolerances.
    np.testing.assert_allclose(np.asarray(pred), np.asarray(pred_ref),
                               rtol=5e-2, atol=3e-2)
    np.testing.assert_allclose(np.asarray(logvar), np.asarray(logvar_ref),
                               rtol=5e-2, atol=3e-2)

    print("KERNEL_OK")
</pallas_src>

<mosaic_0001>
module attributes {stable_mosaic.version = 11 : i64} {
  func.func @_vgg_head_kernel(%arg0: i32, %arg1: memref<8xi32, #tpu.memory_space<smem>>, %arg2: memref<8xf32, #tpu.memory_space<smem>>, %arg3: memref<1x4x4x512xbf16, #tpu.memory_space<vmem>>, %arg4: memref<48x4xbf16, #tpu.memory_space<vmem>>, %arg5: memref<32x16xbf16, #tpu.memory_space<vmem>>, %arg6: memref<128x1xf32, #tpu.memory_space<vmem>>, %arg7: memref<3x1536x256xbf16, #tpu.memory_space<vmem>>, %arg8: memref<1x256xf32, #tpu.memory_space<vmem>>, %arg9: memref<3x768x128xbf16, #tpu.memory_space<vmem>>, %arg10: memref<1x128xf32, #tpu.memory_space<vmem>>, %arg11: memref<2x128xbf16, #tpu.memory_space<vmem>>, %arg12: memref<2x1xf32, #tpu.memory_space<vmem>>, %arg13: memref<1x2x128xf32, #tpu.memory_space<vmem>>, %arg14: memref<160x1536xbf16, #tpu.memory_space<vmem>>, %arg15: memref<160x768xbf16, #tpu.memory_space<vmem>>) attributes {dimension_semantics = [#tpu.dimension_semantics<parallel>], iteration_bounds = array<i64: 2>, scalar_prefetch = 0 : i64, scratch_operands = 2 : i64, tpu.core_type = #tpu.core_type<tc>, window_params = [{transform_indices = @transform_0, window_bounds = array<i64: 8>}, {transform_indices = @transform_1, window_bounds = array<i64: 8>}, {transform_indices = @transform_2, window_bounds = array<i64: 1, 4, 4, 512>}, {pipeline_mode = #tpu.pipeline_mode<synchronous>, transform_indices = @transform_3, window_bounds = array<i64: 48, 4>}, {pipeline_mode = #tpu.pipeline_mode<synchronous>, transform_indices = @transform_4, window_bounds = array<i64: 32, 16>}, {pipeline_mode = #tpu.pipeline_mode<synchronous>, transform_indices = @transform_5, window_bounds = array<i64: 128, 1>}, {pipeline_mode = #tpu.pipeline_mode<synchronous>, transform_indices = @transform_6, window_bounds = array<i64: 3, 1536, 256>}, {pipeline_mode = #tpu.pipeline_mode<synchronous>, transform_indices = @transform_7, window_bounds = array<i64: 1, 256>}, {pipeline_mode = #tpu.pipeline_mode<synchronous>, transform_indices = @transform_8, window_bounds = array<i64: 3, 768, 128>}, {pipeline_mode = #tpu.pipeline_mode<synchronous>, transform_indices = @transform_9, window_bounds = array<i64: 1, 128>}, {pipeline_mode = #tpu.pipeline_mode<synchronous>, transform_indices = @transform_10, window_bounds = array<i64: 2, 128>}, {pipeline_mode = #tpu.pipeline_mode<synchronous>, transform_indices = @transform_11, window_bounds = array<i64: 2, 1>}, {transform_indices = @transform_12, window_bounds = array<i64: 1, 2, 128>}]} {
    %cst = arith.constant 0.000000e+00 : bf16
    %0 = vector.broadcast %cst : bf16 to vector<16x1536xbf16>
    %c0 = arith.constant 0 : index
    %c0_0 = arith.constant 0 : index
    %1 = vector.load %arg14[%c0, %c0_0] : memref<160x1536xbf16, #tpu.memory_space<vmem>>, vector<16x1536xbf16>
    tpu.vector_store %arg14[%c0, %c0_0], %0 {strides = array<i32>} : memref<160x1536xbf16, #tpu.memory_space<vmem>>, vector<16x1536xbf16>,
    %c144 = arith.constant 144 : index
    %c0_1 = arith.constant 0 : index
    %2 = vector.load %arg14[%c144, %c0_1] : memref<160x1536xbf16, #tpu.memory_space<vmem>>, vector<16x1536xbf16>
    tpu.vector_store %arg14[%c144, %c0_1], %0 {strides = array<i32>} : memref<160x1536xbf16, #tpu.memory_space<vmem>>, vector<16x1536xbf16>,
    %cst_2 = arith.constant 0.000000e+00 : bf16
    %3 = vector.broadcast %cst_2 : bf16 to vector<16x768xbf16>
    %c0_3 = arith.constant 0 : index
    %c0_4 = arith.constant 0 : index
    %4 = vector.load %arg15[%c0_3, %c0_4] : memref<160x768xbf16, #tpu.memory_space<vmem>>, vector<16x768xbf16>
    tpu.vector_store %arg15[%c0_3, %c0_4], %3 {strides = array<i32>} : memref<160x768xbf16, #tpu.memory_space<vmem>>, vector<16x768xbf16>,
    %c144_5 = arith.constant 144 : index
    %c0_6 = arith.constant 0 : index
    %5 = vector.load %arg15[%c144_5, %c0_6] : memref<160x768xbf16, #tpu.memory_space<vmem>>, vector<16x768xbf16>
    tpu.vector_store %arg15[%c144_5, %c0_6], %3 {strides = array<i32>} : memref<160x768xbf16, #tpu.memory_space<vmem>>, vector<16x768xbf16>,
    %c0_7 = arith.constant 0 : index
    %c0_8 = arith.constant 0 : index
    %6 = vector.load %arg4[%c0_7, %c0_8] : memref<48x4xbf16, #tpu.memory_space<vmem>>, vector<48x4xbf16>
    %c0_i32 = arith.constant 0 : i32
    %c8_i32 = arith.constant 8 : i32
    %7 = arith.addi %c0_i32, %c8_i32 : i32
    %c1_i32 = arith.constant 1 : i32
    scf.for %arg16 = %c0_i32 to %7 step %c1_i32  : i32 {
      %78 = arith.index_cast %arg16 : i32 to index
      %79 = memref.load %arg1[%78] : memref<8xi32, #tpu.memory_space<smem>>
      %c1_i32_71 = arith.constant 1 : i32
      %80 = arith.addi %79, %c1_i32_71 : i32
      %c3_i32 = arith.constant 3 : i32
      %81 = arith.minsi %80, %c3_i32 : i32
      %82 = arith.index_cast %arg16 : i32 to index
      %83 = memref.load %arg2[%82] : memref<8xf32, #tpu.memory_space<smem>>
      %c0_72 = arith.constant 0 : index
      %84 = arith.index_cast %79 : i32 to index
      %c0_73 = arith.constant 0 : index
      %c0_74 = arith.constant 0 : index
      %85 = vector.load %arg3[%c0_72, %84, %c0_73, %c0_74] : memref<1x4x4x512xbf16, #tpu.memory_space<vmem>>, vector<1x1x4x512xbf16>
      %86 = vector.shape_cast %85 : vector<1x1x4x512xbf16> to vector<4x512xbf16>
      %87 = arith.extf %86 : vector<4x512xbf16> to vector<4x512xf32>
      %c0_75 = arith.constant 0 : index
      %88 = arith.index_cast %81 : i32 to index
      %c0_76 = arith.constant 0 : index
      %c0_77 = arith.constant 0 : index
      %89 = vector.load %arg3[%c0_75, %88, %c0_76, %c0_77] : memref<1x4x4x512xbf16, #tpu.memory_space<vmem>>, vector<1x1x4x512xbf16>
      %90 = vector.shape_cast %89 : vector<1x1x4x512xbf16> to vector<4x512xbf16>
      %91 = arith.extf %90 : vector<4x512xbf16> to vector<4x512xf32>
      %92 = arith.subf %91, %87 : vector<4x512xf32>
      %93 = vector.broadcast %83 : f32 to vector<4x512xf32>
      %94 = arith.mulf %92, %93 : vector<4x512xf32>
      %95 = arith.addf %87, %94 : vector<4x512xf32>
      %96 = arith.truncf %95 : vector<4x512xf32> to vector<4x512xbf16>
      %cst_78 = arith.constant dense<0.000000e+00> : vector<48x512xf32>
      %97 = tpu.matmul %6, %96, %cst_78 {dimension_numbers = #tpu.dot_dimension_numbers<[1], [0], [0], [1], [0, 0, 1, 1], [], []>} : vector<48x4xbf16>, vector<4x512xbf16>, vector<48x512xf32> -> vector<48x512xf32>
      %98 = arith.truncf %97 : vector<48x512xf32> to vector<48x512xbf16>
      %c1_i32_79 = arith.constant 1 : i32
      %99 = arith.addi %arg16, %c1_i32_79 : i32
      %c16_i32 = arith.constant 16 : i32
      %100 = arith.muli %99, %c16_i32 : i32
      %101 = tpu.assume_multiple %100, 16 : i32
      %102 = vector.extract_strided_slice %98 {offsets = [0, 0], sizes = [16, 512], strides = [1, 1]} : vector<48x512xbf16> to vector<16x512xbf16>
      %103 = arith.index_cast %101 : i32 to index
      %c0_80 = arith.constant 0 : index
      %104 = vector.load %arg14[%103, %c0_80] : memref<160x1536xbf16, #tpu.memory_space<vmem>>, vector<16x512xbf16>
      tpu.vector_store %arg14[%103, %c0_80], %102 {strides = array<i32>} : memref<160x1536xbf16, #tpu.memory_space<vmem>>, vector<16x512xbf16>,
      %105 = vector.extract_strided_slice %98 {offsets = [16, 0], sizes = [16, 512], strides = [1, 1]} : vector<48x512xbf16> to vector<16x512xbf16>
      %106 = arith.index_cast %101 : i32 to index
      %c512 = arith.constant 512 : index
      %107 = vector.load %arg14[%106, %c512] : memref<160x1536xbf16, #tpu.memory_space<vmem>>, vector<16x512xbf16>
      tpu.vector_store %arg14[%106, %c512], %105 {strides = array<i32>} : memref<160x1536xbf16, #tpu.memory_space<vmem>>, vector<16x512xbf16>,
      %108 = vector.extract_strided_slice %98 {offsets = [32, 0], sizes = [16, 512], strides = [1, 1]} : vector<48x512xbf16> to vector<16x512xbf16>
      %109 = arith.index_cast %101 : i32 to index
      %c1024 = arith.constant 1024 : index
      %110 = vector.load %arg14[%109, %c1024] : memref<160x1536xbf16, #tpu.memory_space<vmem>>, vector<16x512xbf16>
      tpu.vector_store %arg14[%109, %c1024], %108 {strides = array<i32>} : memref<160x1536xbf16, #tpu.memory_space<vmem>>, vector<16x512xbf16>,
    }
    %c8_i32_9 = arith.constant 8 : i32
    %c0_10 = arith.constant 0 : index
    %c0_11 = arith.constant 0 : index
    %8 = vector.load %arg14[%c0_10, %c0_11] : memref<160x1536xbf16, #tpu.memory_space<vmem>>, vector<128x1536xbf16>
    %c0_12 = arith.constant 0 : index
    %c0_13 = arith.constant 0 : index
    %c0_14 = arith.constant 0 : index
    %9 = vector.load %arg7[%c0_12, %c0_13, %c0_14] : memref<3x1536x256xbf16, #tpu.memory_space<vmem>>, vector<1x1536x256xbf16>
    %10 = vector.shape_cast %9 : vector<1x1536x256xbf16> to vector<1536x256xbf16>
    %cst_15 = arith.constant dense<0.000000e+00> : vector<128x256xf32>
    %11 = tpu.matmul %8, %10, %cst_15 {dimension_numbers = #tpu.dot_dimension_numbers<[1], [0], [0], [1], [0, 0, 1, 1], [], []>} : vector<128x1536xbf16>, vector<1536x256xbf16>, vector<128x256xf32> -> vector<128x256xf32>
    %c16 = arith.constant 16 : index
    %c0_16 = arith.constant 0 : index
    %12 = vector.load %arg14[%c16, %c0_16] : memref<160x1536xbf16, #tpu.memory_space<vmem>>, vector<128x1536xbf16>
    %c1 = arith.constant 1 : index
    %c0_17 = arith.constant 0 : index
    %c0_18 = arith.constant 0 : index
    %13 = vector.load %arg7[%c1, %c0_17, %c0_18] : memref<3x1536x256xbf16, #tpu.memory_space<vmem>>, vector<1x1536x256xbf16>
    %14 = vector.shape_cast %13 : vector<1x1536x256xbf16> to vector<1536x256xbf16>
    %cst_19 = arith.constant dense<0.000000e+00> : vector<128x256xf32>
    %15 = tpu.matmul %12, %14, %cst_19 {dimension_numbers = #tpu.dot_dimension_numbers<[1], [0], [0], [1], [0, 0, 1, 1], [], []>} : vector<128x1536xbf16>, vector<1536x256xbf16>, vector<128x256xf32> -> vector<128x256xf32>
    %16 = arith.addf %11, %15 : vector<128x256xf32>
    %c32 = arith.constant 32 : index
    %c0_20 = arith.constant 0 : index
    %17 = vector.load %arg14[%c32, %c0_20] : memref<160x1536xbf16, #tpu.memory_space<vmem>>, vector<128x1536xbf16>
    %c2 = arith.constant 2 : index
    %c0_21 = arith.constant 0 : index
    %c0_22 = arith.constant 0 : index
    %18 = vector.load %arg7[%c2, %c0_21, %c0_22] : memref<3x1536x256xbf16, #tpu.memory_space<vmem>>, vector<1x1536x256xbf16>
    %19 = vector.shape_cast %18 : vector<1x1536x256xbf16> to vector<1536x256xbf16>
    %cst_23 = arith.constant dense<0.000000e+00> : vector<128x256xf32>
    %20 = tpu.matmul %17, %19, %cst_23 {dimension_numbers = #tpu.dot_dimension_numbers<[1], [0], [0], [1], [0, 0, 1, 1], [], []>} : vector<128x1536xbf16>, vector<1536x256xbf16>, vector<128x256xf32> -> vector<128x256xf32>
    %21 = arith.addf %16, %20 : vector<128x256xf32>
    %c0_24 = arith.constant 0 : index
    %c0_25 = arith.constant 0 : index
    %22 = vector.load %arg8[%c0_24, %c0_25] : memref<1x256xf32, #tpu.memory_space<vmem>>, vector<1x256xf32>
    %23 = vector.broadcast %22 : vector<1x256xf32> to vector<128x256xf32>
    %24 = arith.addf %21, %23 : vector<128x256xf32>
    %cst_26 = arith.constant 0.000000e+00 : f32
    %25 = vector.broadcast %cst_26 : f32 to vector<128x256xf32>
    %26 = arith.maximumf %24, %25 : vector<128x256xf32>
    %c0_27 = arith.constant 0 : index
    %c0_28 = arith.constant 0 : index
    %27 = vector.load %arg6[%c0_27, %c0_28] : memref<128x1xf32, #tpu.memory_space<vmem>>, vector<128x1xf32>
    %28 = vector.broadcast %27 : vector<128x1xf32> to vector<128x256xf32>
    %29 = arith.mulf %26, %28 : vector<128x256xf32>
    %30 = arith.truncf %29 : vector<128x256xf32> to vector<128x256xbf16>
    %c16_29 = arith.constant 16 : index
    %c256 = arith.constant 256 : index
    %31 = vector.load %arg15[%c16_29, %c256] : memref<160x768xbf16, #tpu.memory_space<vmem>>, vector<128x256xbf16>
    tpu.vector_store %arg15[%c16_29, %c256], %30 {strides = array<i32>} : memref<160x768xbf16, #tpu.memory_space<vmem>>, vector<128x256xbf16>,
    %c0_30 = arith.constant 0 : index
    %c0_31 = arith.constant 0 : index
    %32 = vector.load %arg5[%c0_30, %c0_31] : memref<32x16xbf16, #tpu.memory_space<vmem>>, vector<32x16xbf16>
    %c0_i32_32 = arith.constant 0 : i32
    %c8_i32_33 = arith.constant 8 : i32
    %33 = arith.addi %c0_i32_32, %c8_i32_33 : i32
    %c1_i32_34 = arith.constant 1 : i32
    scf.for %arg16 = %c0_i32_32 to %33 step %c1_i32_34  : i32 {
      %c1_i32_71 = arith.constant 1 : i32
      %78 = arith.addi %arg16, %c1_i32_71 : i32
      %c16_i32 = arith.constant 16 : i32
      %79 = arith.muli %78, %c16_i32 : i32
      %80 = tpu.assume_multiple %79, 16 : i32
      %81 = arith.index_cast %80 : i32 to index
      %c256_72 = arith.constant 256 : index
      %82 = vector.load %arg15[%81, %c256_72] : memref<160x768xbf16, #tpu.memory_space<vmem>>, vector<16x256xbf16>
      %cst_73 = arith.constant dense<0.000000e+00> : vector<32x256xf32>
      %83 = tpu.matmul %32, %82, %cst_73 {dimension_numbers = #tpu.dot_dimension_numbers<[1], [0], [0], [1], [0, 0, 1, 1], [], []>} : vector<32x16xbf16>, vector<16x256xbf16>, vector<32x256xf32> -> vector<32x256xf32>
      %84 = arith.truncf %83 : vector<32x256xf32> to vector<32x256xbf16>
      %85 = vector.extract_strided_slice %84 {offsets = [0, 0], sizes = [16, 256], strides = [1, 1]} : vector<32x256xbf16> to vector<16x256xbf16>
      %86 = arith.index_cast %80 : i32 to index
      %c0_74 = arith.constant 0 : index
      %87 = vector.load %arg15[%86, %c0_74] : memref<160x768xbf16, #tpu.memory_space<vmem>>, vector<16x256xbf16>
      tpu.vector_store %arg15[%86, %c0_74], %85 {strides = array<i32>} : memref<160x768xbf16, #tpu.memory_space<vmem>>, vector<16x256xbf16>,
      %88 = vector.extract_strided_slice %84 {offsets = [16, 0], sizes = [16, 256], strides = [1, 1]} : vector<32x256xbf16> to vector<16x256xbf16>
      %89 = arith.index_cast %80 : i32 to index
      %c512 = arith.constant 512 : index
      %90 = vector.load %arg15[%89, %c512] : memref<160x768xbf16, #tpu.memory_space<vmem>>, vector<16x256xbf16>
      tpu.vector_store %arg15[%89, %c512], %88 {strides = array<i32>} : memref<160x768xbf16, #tpu.memory_space<vmem>>, vector<16x256xbf16>,
    }
    %c8_i32_35 = arith.constant 8 : i32
    %c0_36 = arith.constant 0 : index
    %c0_37 = arith.constant 0 : index
    %34 = vector.load %arg15[%c0_36, %c0_37] : memref<160x768xbf16, #tpu.memory_space<vmem>>, vector<128x768xbf16>
    %c0_38 = arith.constant 0 : index
    %c0_39 = arith.constant 0 : index
    %c0_40 = arith.constant 0 : index
    %35 = vector.load %arg9[%c0_38, %c0_39, %c0_40] : memref<3x768x128xbf16, #tpu.memory_space<vmem>>, vector<1x768x128xbf16>
    %36 = vector.shape_cast %35 : vector<1x768x128xbf16> to vector<768x128xbf16>
    %cst_41 = arith.constant dense<0.000000e+00> : vector<128x128xf32>
    %37 = tpu.matmul %34, %36, %cst_41 {dimension_numbers = #tpu.dot_dimension_numbers<[1], [0], [0], [1], [0, 0, 1, 1], [], []>} : vector<128x768xbf16>, vector<768x128xbf16>, vector<128x128xf32> -> vector<128x128xf32>
    %c16_42 = arith.constant 16 : index
    %c0_43 = arith.constant 0 : index
    %38 = vector.load %arg15[%c16_42, %c0_43] : memref<160x768xbf16, #tpu.memory_space<vmem>>, vector<128x768xbf16>
    %c1_44 = arith.constant 1 : index
    %c0_45 = arith.constant 0 : index
    %c0_46 = arith.constant 0 : index
    %39 = vector.load %arg9[%c1_44, %c0_45, %c0_46] : memref<3x768x128xbf16, #tpu.memory_space<vmem>>, vector<1x768x128xbf16>
    %40 = vector.shape_cast %39 : vector<1x768x128xbf16> to vector<768x128xbf16>
    %cst_47 = arith.constant dense<0.000000e+00> : vector<128x128xf32>
    %41 = tpu.matmul %38, %40, %cst_47 {dimension_numbers = #tpu.dot_dimension_numbers<[1], [0], [0], [1], [0, 0, 1, 1], [], []>} : vector<128x768xbf16>, vector<768x128xbf16>, vector<128x128xf32> -> vector<128x128xf32>
    %42 = arith.addf %37, %41 : vector<128x128xf32>
    %c32_48 = arith.constant 32 : index
    %c0_49 = arith.constant 0 : index
    %43 = vector.load %arg15[%c32_48, %c0_49] : memref<160x768xbf16, #tpu.memory_space<vmem>>, vector<128x768xbf16>
    %c2_50 = arith.constant 2 : index
    %c0_51 = arith.constant 0 : index
    %c0_52 = arith.constant 0 : index
    %44 = vector.load %arg9[%c2_50, %c0_51, %c0_52] : memref<3x768x128xbf16, #tpu.memory_space<vmem>>, vector<1x768x128xbf16>
    %45 = vector.shape_cast %44 : vector<1x768x128xbf16> to vector<768x128xbf16>
    %cst_53 = arith.constant dense<0.000000e+00> : vector<128x128xf32>
    %46 = tpu.matmul %43, %45, %cst_53 {dimension_numbers = #tpu.dot_dimension_numbers<[1], [0], [0], [1], [0, 0, 1, 1], [], []>} : vector<128x768xbf16>, vector<768x128xbf16>, vector<128x128xf32> -> vector<128x128xf32>
    %47 = arith.addf %42, %46 : vector<128x128xf32>
    %c0_54 = arith.constant 0 : index
    %c0_55 = arith.constant 0 : index
    %48 = vector.load %arg10[%c0_54, %c0_55] : memref<1x128xf32, #tpu.memory_space<vmem>>, vector<1x128xf32>
    %49 = vector.broadcast %48 : vector<1x128xf32> to vector<128x128xf32>
    %50 = arith.addf %47, %49 : vector<128x128xf32>
    %cst_56 = arith.constant 0.000000e+00 : f32
    %51 = vector.broadcast %cst_56 : f32 to vector<128x128xf32>
    %52 = arith.maximumf %50, %51 : vector<128x128xf32>
    %c0_57 = arith.constant 0 : index
    %c0_58 = arith.constant 0 : index
    %53 = vector.load %arg11[%c0_57, %c0_58] : memref<2x128xbf16, #tpu.memory_space<vmem>>, vector<2x128xbf16>
    %54 = arith.truncf %52 : vector<128x128xf32> to vector<128x128xbf16>
    %cst_59 = arith.constant dense<0.000000e+00> : vector<2x128xf32>
    %55 = tpu.matmul %53, %54, %cst_59 {dimension_numbers = #tpu.dot_dimension_numbers<[1], [1], [0], [0], [0, 0, 1, 0], [], []>} : vector<2x128xbf16>, vector<128x128xbf16>, vector<2x128xf32> -> vector<2x128xf32>
    %c0_60 = arith.constant 0 : index
    %c0_61 = arith.constant 0 : index
    %56 = vector.load %arg12[%c0_60, %c0_61] : memref<2x1xf32, #tpu.memory_space<vmem>>, vector<2x1xf32>
    %57 = vector.broadcast %56 : vector<2x1xf32> to vector<2x128xf32>
    %58 = arith.addf %55, %57 : vector<2x128xf32>
    %59 = vector.extract_strided_slice %58 {offsets = [0, 0], sizes = [1, 128], strides = [1, 1]} : vector<2x128xf32> to vector<1x128xf32>
    %60 = math.absf %59 : vector<1x128xf32>
    %61 = vector.extract_strided_slice %58 {offsets = [1, 0], sizes = [1, 128], strides = [1, 1]} : vector<2x128xf32> to vector<1x128xf32>
    %cst_62 = arith.constant 0.000000e+00 : f32
    %62 = vector.broadcast %cst_62 : f32 to vector<1x128xf32>
    %63 = arith.maximumf %61, %62 : vector<1x128xf32>
    %64 = math.absf %61 : vector<1x128xf32>
    %cst_63 = arith.constant 0.000000e+00 : f32
    %65 = vector.broadcast %cst_63 : f32 to vector<1x128xf32>
    %66 = arith.subf %65, %64 : vector<1x128xf32>
    %67 = math.exp %66 : vector<1x128xf32>
    %cst_64 = arith.constant 1.000000e+00 : f32
    %68 = vector.broadcast %cst_64 : f32 to vector<1x128xf32>
    %69 = arith.addf %68, %67 : vector<1x128xf32>
    %70 = math.log %69 : vector<1x128xf32>
    %71 = arith.addf %63, %70 : vector<1x128xf32>
    %c0_65 = arith.constant 0 : index
    %c0_66 = arith.constant 0 : index
    %c0_67 = arith.constant 0 : index
    %72 = vector.load %arg13[%c0_65, %c0_66, %c0_67] : memref<1x2x128xf32, #tpu.memory_space<vmem>>, vector<1x1x128xf32>
    %73 = vector.shape_cast %72 : vector<1x1x128xf32> to vector<1x128xf32>
    %74 = vector.shape_cast %60 : vector<1x128xf32> to vector<1x1x128xf32>
    tpu.vector_store %arg13[%c0_65, %c0_66, %c0_67], %74 {strides = array<i32>} : memref<1x2x128xf32, #tpu.memory_space<vmem>>, vector<1x1x128xf32>,
    %c0_68 = arith.constant 0 : index
    %c1_69 = arith.constant 1 : index
    %c0_70 = arith.constant 0 : index
    %75 = vector.load %arg13[%c0_68, %c1_69, %c0_70] : memref<1x2x128xf32, #tpu.memory_space<vmem>>, vector<1x1x128xf32>
    %76 = vector.shape_cast %75 : vector<1x1x128xf32> to vector<1x128xf32>
    %77 = vector.shape_cast %71 : vector<1x128xf32> to vector<1x1x128xf32>
    tpu.vector_store %arg13[%c0_68, %c1_69, %c0_70], %77 {strides = array<i32>} : memref<1x2x128xf32, #tpu.memory_space<vmem>>, vector<1x1x128xf32>,
    return
  }
  func.func @transform_0(%arg0: i32) -> i32 {
    %c0_i32 = arith.constant 0 : i32
    %c0_i32_0 = arith.constant 0 : i32
    return %c0_i32 : i32
  }
  func.func @transform_1(%arg0: i32) -> i32 {
    %c0_i32 = arith.constant 0 : i32
    %c0_i32_0 = arith.constant 0 : i32
    return %c0_i32 : i32
  }
  func.func @transform_2(%arg0: i32) -> (i32, i32, i32, i32) {
    %c0_i32 = arith.constant 0 : i32
    %c0_i32_0 = arith.constant 0 : i32
    %c0_i32_1 = arith.constant 0 : i32
    %c0_i32_2 = arith.constant 0 : i32
    return %arg0, %c0_i32, %c0_i32_0, %c0_i32_1 : i32, i32, i32, i32
  }
  func.func @transform_3(%arg0: i32) -> (i32, i32) {
    %c0_i32 = arith.constant 0 : i32
    %c0_i32_0 = arith.constant 0 : i32
    %c0_i32_1 = arith.constant 0 : i32
    return %c0_i32, %c0_i32_0 : i32, i32
  }
  func.func @transform_4(%arg0: i32) -> (i32, i32) {
    %c0_i32 = arith.constant 0 : i32
    %c0_i32_0 = arith.constant 0 : i32
    %c0_i32_1 = arith.constant 0 : i32
    return %c0_i32, %c0_i32_0 : i32, i32
  }
  func.func @transform_5(%arg0: i32) -> (i32, i32) {
    %c0_i32 = arith.constant 0 : i32
    %c0_i32_0 = arith.constant 0 : i32
    %c0_i32_1 = arith.constant 0 : i32
    return %c0_i32, %c0_i32_0 : i32, i32
  }
  func.func @transform_6(%arg0: i32) -> (i32, i32, i32) {
    %c0_i32 = arith.constant 0 : i32
    %c0_i32_0 = arith.constant 0 : i32
    %c0_i32_1 = arith.constant 0 : i32
    %c0_i32_2 = arith.constant 0 : i32
    return %c0_i32, %c0_i32_0, %c0_i32_1 : i32, i32, i32
  }
  func.func @transform_7(%arg0: i32) -> (i32, i32) {
    %c0_i32 = arith.constant 0 : i32
    %c0_i32_0 = arith.constant 0 : i32
    %c0_i32_1 = arith.constant 0 : i32
    return %c0_i32, %c0_i32_0 : i32, i32
  }
  func.func @transform_8(%arg0: i32) -> (i32, i32, i32) {
    %c0_i32 = arith.constant 0 : i32
    %c0_i32_0 = arith.constant 0 : i32
    %c0_i32_1 = arith.constant 0 : i32
    %c0_i32_2 = arith.constant 0 : i32
    return %c0_i32, %c0_i32_0, %c0_i32_1 : i32, i32, i32
  }
  func.func @transform_9(%arg0: i32) -> (i32, i32) {
    %c0_i32 = arith.constant 0 : i32
    %c0_i32_0 = arith.constant 0 : i32
    %c0_i32_1 = arith.constant 0 : i32
    return %c0_i32, %c0_i32_0 : i32, i32
  }
  func.func @transform_10(%arg0: i32) -> (i32, i32) {
    %c0_i32 = arith.constant 0 : i32
    %c0_i32_0 = arith.constant 0 : i32
    %c0_i32_1 = arith.constant 0 : i32
    return %c0_i32, %c0_i32_0 : i32, i32
  }
  func.func @transform_11(%arg0: i32) -> (i32, i32) {
    %c0_i32 = arith.constant 0 : i32
    %c0_i32_0 = arith.constant 0 : i32
    %c0_i32_1 = arith.constant 0 : i32
    return %c0_i32, %c0_i32_0 : i32, i32
  }
  func.func @transform_12(%arg0: i32) -> (i32, i32, i32) {
    %c0_i32 = arith.constant 0 : i32
    %c0_i32_0 = arith.constant 0 : i32
    %c0_i32_1 = arith.constant 0 : i32
    return %arg0, %c0_i32, %c0_i32_0 : i32, i32, i32
  }
}

</mosaic_0001>

<llo_original>
// kernel: tpu_custom_call.1
$region0: #{tpu_custom_call.1}
  #allocation0 [shape = 'u32[]', space=smem, size = 0x4, offset = 0x4, fixed_abs, tag = 'smem constant byte address 0x4 - core index']
  #allocation1 [shape = 'u32[144,128]{1,0:T(1,128)}', space=vmem, size = 0x12000, scoped, tag = 'internal scratch']
  #allocation2 [shape = 'bf16[160,1536]{1,0:T(16,128)(2,1)}', space=vmem, size = 0x78000, scoped, tag = 'scratch operand']
  #allocation3 [shape = 'bf16[160,768]{1,0:T(16,128)(2,1)}', space=vmem, size = 0x3c000, scoped, tag = 'scratch operand']
  %s0 = inlined_call_operand.hbm [shape: s32[8], index: 0, kind: input, shape index: {}]
  %s1 = inlined_call_operand.hbm [shape: f32[8], index: 1, kind: input, shape index: {}]
  %s2 = inlined_call_operand.hbm [shape: bf16[2,4,4,512], index: 2, kind: input, shape index: {}]
  %s3 = inlined_call_operand.vmem [shape: bf16[48,4], index: 3, kind: input, shape index: {}]
  %s4 = inlined_call_operand.vmem [shape: bf16[32,16], index: 4, kind: input, shape index: {}]
  %s5 = inlined_call_operand.vmem [shape: f32[128,1], index: 5, kind: input, shape index: {}]
  %s6 = inlined_call_operand.hbm [shape: bf16[3,1536,256], index: 6, kind: input, shape index: {}]
  %s7 = inlined_call_operand.hbm [shape: f32[1,256], index: 7, kind: input, shape index: {}]
  %s8 = inlined_call_operand.hbm [shape: bf16[3,768,128], index: 8, kind: input, shape index: {}]
  %s9 = inlined_call_operand.hbm [shape: f32[1,128], index: 9, kind: input, shape index: {}]
  %s10 = inlined_call_operand.hbm [shape: bf16[2,128], index: 10, kind: input, shape index: {}]
  %s11 = inlined_call_operand.vmem [shape: f32[2,1], index: 11, kind: input, shape index: {}]
  %s12 = inlined_call_operand.hbm [shape: f32[2,2,128], index: 12, kind: output, shape index: {}]
  %s13 = sld [smem:[#allocation0]]
  $region127: #{tpu_custom_call.1} parent=0
    _
  %s15 = ssub.s32 1, %s13
  %s16 = scalar_select 0, %s15, %s13
  $region1: #{tpu_custom_call.1} parent=0
    #allocation4 [shape = 'u8[512]{0}', space=smem, size = 0x200, scoped, tag = 'input window, operand 0, single buffered']
    #allocation5 [shape = 's32[2]{0}', space=sflag, size = 0x8, scoped, tag = 'scoped memory for tpu_custom_call.1']
    #allocation6 [shape = 's32[2]{0}', space=sflag, size = 0x8, scoped, tag = 'scoped memory for tpu_custom_call.1']
    #allocation7 [shape = 's32[2]{0}', space=sflag, size = 0x8, scoped, tag = 'scoped memory for tpu_custom_call.1']
    #allocation8 [shape = 'u8[512]{0}', space=smem, size = 0x200, scoped, tag = 'input window, operand 1, single buffered']
    #allocation9 [shape = 's32[1]{0}', space=sflag, size = 0x4, scoped, tag = 'scoped memory for tpu_custom_call.1']
    #allocation10 [shape = 'u8[32768]{0}', space=vmem, size = 0x8000, scoped, tag = 'input window, operand 2']
    #allocation11 [shape = 'u8[2359296]{0}', space=vmem, size = 0x240000, scoped, tag = 'input window, operand 6, single buffered']
    #allocation12 [shape = 's32[1]{0}', space=sflag, size = 0x4, scoped, tag = 'scoped memory for tpu_custom_call.1']
    #allocation13 [shape = 'u8[1024]{0}', space=vmem, size = 0x400, scoped, tag = 'input window, operand 7, single buffered']
    #allocation14 [shape = 'u8[589824]{0}', space=vmem, size = 0x90000, scoped, tag = 'input window, operand 8, single buffered']
    #allocation15 [shape = 's32[1]{0}', space=sflag, size = 0x4, scoped, tag = 'scoped memory for tpu_custom_call.1']
    #allocation16 [shape = 'u8[512]{0}', space=vmem, size = 0x400, scoped, tag = 'input window, operand 9, single buffered']
    #allocation17 [shape = 'u8[512]{0}', space=vmem, size = 0x400, scoped, tag = 'input window, operand 10, single buffered']
    #allocation18 [shape = 's32[1]{0}', space=sflag, size = 0x4, scoped, tag = 'scoped memory for tpu_custom_call.1']
    #allocation19 [shape = 'u8[2048]{0}', space=vmem, size = 0x800, scoped, tag = 'output window, operand 0']
    %17 = vsyncpa [#allocation7], 0
    %18 = vsyncpa [#allocation9], 0
    %19 = vsyncpa [#allocation5], 0
    %s20 = scalar_lea.sflag [#allocation5], 1
    %21 = vsyncpa %s20, 0
    %22 = vsyncpa [#allocation12], 0
    %23 = vsyncpa [#allocation15], 0
    %24 = vsyncpa [#allocation18], 0
    %25 = vsyncpa [#allocation6], 0
    %s26 = scalar_lea.sflag [#allocation6], 1
    %27 = vsyncpa %s26, 0
    loop: start=0, step=1, limit=4
    $region2: #{tpu_custom_call.1} parent=1 // loop_pre_header
      _
    $region3: #{tpu_custom_call.1} parent=1 // loop_header
      %s29 = sphi 0, %s33
      %p30 = scmp.ge.s32.totalorder %s29, 4
      %s37 = sphi 0, %s37
      %s39 = sphi 0, %s37
      %s40 = sphi 0, %s39
      %s54 = sphi 0, %s40
      %s58 = sphi 0, %s58
      %s60 = sphi 0, %s58
      %s61 = sphi 0, %s60
      %s75 = sphi 0, %s61
      %s81 = sphi 0, %s83
      %s84 = sphi 0, %s81
      %s85 = sphi 0, %s84
      %s101 = sphi 0, %s85
      %s105 = sphi 0, %s105
      %s107 = sphi 0, %s105
      %s108 = sphi 0, %s107
      %s122 = sphi 0, %s108
      %s126 = sphi 0, %s126
      %s128 = sphi 0, %s126
      %s129 = sphi 0, %s128
      %s143 = sphi 0, %s129
      %s147 = sphi 0, %s147
      %s149 = sphi 0, %s147
      %s150 = sphi 0, %s149
      %s164 = sphi 0, %s150
      %s168 = sphi 0, %s168
      %s170 = sphi 0, %s168
      %s171 = sphi 0, %s170
      %s185 = sphi 0, %s171
      %s189 = sphi 0, %s189
      %s191 = sphi 0, %s189
      %s192 = sphi 0, %s191
      %s206 = sphi 0, %s192
      %s210 = sphi 0, %s210
      %s212 = sphi 0, %s210
      %s213 = sphi 0, %s212
      %s227 = sphi 0, %s213
      %s231 = sphi 0, %s231
      %s233 = sphi 0, %s231
      %s234 = sphi 0, %s233
      %s248 = sphi 0, %s234
      %s252 = sphi 0, %s252
      %s254 = sphi 0, %s252
      %s255 = sphi 0, %s254
      %s269 = sphi 0, %s255
      %s273 = sphi 0, %s273
      %s275 = sphi 0, %s273
      %s276 = sphi 0, %s275
      %s290 = sphi 0, %s276
      %s296 = sphi 0, %s298
      %s299 = sphi 0, %s296
      %s300 = sphi 0, %s299
      %s316 = sphi 0, %s300
    $region4: #{tpu_custom_call.1} parent=1 // loop_header_branch
      %32 = sbr.rel (%p30) target = $region8
    $region5: #{tpu_custom_call.1} parent=1 // loop_body
      %s34 = ssub.s32 %s29, 1
      %s35 = ssub.s32 %s29, 2
      %s36 = sadd.s32 %s29, 1
      %s38 = sadd.s32 %s37, 1
      %p41 = scmp.eq.s32.totalorder %s29, 1
      %p42 = scmp.ne.s32.totalorder %s37, %s39
      %p43 = scmp.eq.s32.totalorder %s29, 0
      %p44 = por %p42, %p43
      %p45 = scmp.ne.s32.totalorder %s37, %s39
      %p46 = scmp.eq.s32.totalorder %s34, 1
      %p47 = por %p45, %p46
      %p48 = scmp.ne.s32.totalorder %s39, %s40
      %p49 = scmp.eq.s32.totalorder %s34, 0
      %p50 = por %p48, %p49
      %p51 = scmp.ne.s32.totalorder %s39, %s40
      %p52 = scmp.eq.s32.totalorder %s35, 1
      %p53 = por %p51, %p52
      %p55 = scmp.ne.s32.totalorder %s40, %s54
      %p56 = scmp.eq.s32.totalorder %s35, 0
      %p57 = por %p55, %p56
      %s59 = sadd.s32 %s58, 1
      %p62 = scmp.eq.s32.totalorder %s29, 1
      %p63 = scmp.ne.s32.totalorder %s58, %s60
      %p64 = scmp.eq.s32.totalorder %s29, 0
      %p65 = por %p63, %p64
      %p66 = scmp.ne.s32.totalorder %s58, %s60
      %p67 = scmp.eq.s32.totalorder %s34, 1
      %p68 = por %p66, %p67
      %p69 = scmp.ne.s32.totalorder %s60, %s61
      %p70 = scmp.eq.s32.totalorder %s34, 0
      %p71 = por %p69, %p70
      %p72 = scmp.ne.s32.totalorder %s60, %s61
      %p73 = scmp.eq.s32.totalorder %s35, 1
      %p74 = por %p72, %p73
      %p76 = scmp.ne.s32.totalorder %s61, %s75
      %p77 = scmp.eq.s32.totalorder %s35, 0
      %p78 = por %p76, %p77
      %s79 = ssub.s32 %s29, %s36
      %p80 = scmp.eq.s32.totalorder %s79, 0
      %s82 = sadd.s32 %s81, 1
      %s83 = scalar_select %p80, %s81, %s82
      %p86 = pneg %p80
      %p87 = scmp.eq.s32.totalorder %s29, 1
      %p88 = por %p86, %p87
      %p89 = scmp.ne.s32.totalorder %s81, %s84
      %p90 = scmp.eq.s32.totalorder %s29, 0
      %p91 = por %p89, %p90
      %p92 = scmp.ne.s32.totalorder %s81, %s84
      %p93 = scmp.eq.s32.totalorder %s34, 1
      %p94 = por %p92, %p93
      %p95 = scmp.ne.s32.totalorder %s84, %s85
      %p96 = scmp.eq.s32.totalorder %s34, 0
      %p97 = por %p95, %p96
      %p98 = scmp.ne.s32.totalorder %s84, %s85
      %p99 = scmp.eq.s32.totalorder %s35, 1
      %p100 = por %p98, %p99
      %p102 = scmp.ne.s32.totalorder %s85, %s101
      %p103 = scmp.eq.s32.totalorder %s35, 0
      %p104 = por %p102, %p103
      %s106 = sadd.s32 %s105, 1
      %p109 = scmp.eq.s32.totalorder %s29, 1
      %p110 = scmp.ne.s32.totalorder %s105, %s107
      %p111 = scmp.eq.s32.totalorder %s29, 0
      %p112 = por %p110, %p111
      %p113 = scmp.ne.s32.totalorder %s105, %s107
      %p114 = scmp.eq.s32.totalorder %s34, 1
      %p115 = por %p113, %p114
      %p116 = scmp.ne.s32.totalorder %s107, %s108
      %p117 = scmp.eq.s32.totalorder %s34, 0
      %p118 = por %p116, %p117
      %p119 = scmp.ne.s32.totalorder %s107, %s108
      %p120 = scmp.eq.s32.totalorder %s35, 1
      %p121 = por %p119, %p120
      %p123 = scmp.ne.s32.totalorder %s108, %s122
      %p124 = scmp.eq.s32.totalorder %s35, 0
      %p125 = por %p123, %p124
      %s127 = sadd.s32 %s126, 1
      %p130 = scmp.eq.s32.totalorder %s29, 1
      %p131 = scmp.ne.s32.totalorder %s126, %s128
      %p132 = scmp.eq.s32.totalorder %s29, 0
      %p133 = por %p131, %p132
      %p134 = scmp.ne.s32.totalorder %s126, %s128
      %p135 = scmp.eq.s32.totalorder %s34, 1
      %p136 = por %p134, %p135
      %p137 = scmp.ne.s32.totalorder %s128, %s129
      %p138 = scmp.eq.s32.totalorder %s34, 0
      %p139 = por %p137, %p138
      %p140 = scmp.ne.s32.totalorder %s128, %s129
      %p141 = scmp.eq.s32.totalorder %s35, 1
      %p142 = por %p140, %p141
      %p144 = scmp.ne.s32.totalorder %s129, %s143
      %p145 = scmp.eq.s32.totalorder %s35, 0
      %p146 = por %p144, %p145
      %s148 = sadd.s32 %s147, 1
      %p151 = scmp.eq.s32.totalorder %s29, 1
      %p152 = scmp.ne.s32.totalorder %s147, %s149
      %p153 = scmp.eq.s32.totalorder %s29, 0
      %p154 = por %p152, %p153
      %p155 = scmp.ne.s32.totalorder %s147, %s149
      %p156 = scmp.eq.s32.totalorder %s34, 1
      %p157 = por %p155, %p156
      %p158 = scmp.ne.s32.totalorder %s149, %s150
      %p159 = scmp.eq.s32.totalorder %s34, 0
      %p160 = por %p158, %p159
      %p161 = scmp.ne.s32.totalorder %s149, %s150
      %p162 = scmp.eq.s32.totalorder %s35, 1
      %p163 = por %p161, %p162
      %p165 = scmp.ne.s32.totalorder %s150, %s164
      %p166 = scmp.eq.s32.totalorder %s35, 0
      %p167 = por %p165, %p166
      %s169 = sadd.s32 %s168, 1
      %p172 = scmp.eq.s32.totalorder %s29, 1
      %p173 = scmp.ne.s32.totalorder %s168, %s170
      %p174 = scmp.eq.s32.totalorder %s29, 0
      %p175 = por %p173, %p174
      %p176 = scmp.ne.s32.totalorder %s168, %s170
      %p177 = scmp.eq.s32.totalorder %s34, 1
      %p178 = por %p176, %p177
      %p179 = scmp.ne.s32.totalorder %s170, %s171
      %p180 = scmp.eq.s32.totalorder %s34, 0
      %p181 = por %p179, %p180
      %p182 = scmp.ne.s32.totalorder %s170, %s171
      %p183 = scmp.eq.s32.totalorder %s35, 1
      %p184 = por %p182, %p183
      %p186 = scmp.ne.s32.totalorder %s171, %s185
      %p187 = scmp.eq.s32.totalorder %s35, 0
      %p188 = por %p186, %p187
      %s190 = sadd.s32 %s189, 1
      %p193 = scmp.eq.s32.totalorder %s29, 1
      %p194 = scmp.ne.s32.totalorder %s189, %s191
      %p195 = scmp.eq.s32.totalorder %s29, 0
      %p196 = por %p194, %p195
      %p197 = scmp.ne.s32.totalorder %s189, %s191
      %p198 = scmp.eq.s32.totalorder %s34, 1
      %p199 = por %p197, %p198
      %p200 = scmp.ne.s32.totalorder %s191, %s192
      %p201 = scmp.eq.s32.totalorder %s34, 0
      %p202 = por %p200, %p201
      %p203 = scmp.ne.s32.totalorder %s191, %s192
      %p204 = scmp.eq.s32.totalorder %s35, 1
      %p205 = por %p203, %p204
      %p207 = scmp.ne.s32.totalorder %s192, %s206
      %p208 = scmp.eq.s32.totalorder %s35, 0
      %p209 = por %p207, %p208
      %s211 = sadd.s32 %s210, 1
      %p214 = scmp.eq.s32.totalorder %s29, 1
      %p215 = scmp.ne.s32.totalorder %s210, %s212
      %p216 = scmp.eq.s32.totalorder %s29, 0
      %p217 = por %p215, %p216
      %p218 = scmp.ne.s32.totalorder %s210, %s212
      %p219 = scmp.eq.s32.totalorder %s34, 1
      %p220 = por %p218, %p219
      %p221 = scmp.ne.s32.totalorder %s212, %s213
      %p222 = scmp.eq.s32.totalorder %s34, 0
      %p223 = por %p221, %p222
      %p224 = scmp.ne.s32.totalorder %s212, %s213
      %p225 = scmp.eq.s32.totalorder %s35, 1
      %p226 = por %p224, %p225
      %p228 = scmp.ne.s32.totalorder %s213, %s227
      %p229 = scmp.eq.s32.totalorder %s35, 0
      %p230 = por %p228, %p229
      %s232 = sadd.s32 %s231, 1
      %p235 = scmp.eq.s32.totalorder %s29, 1
      %p236 = scmp.ne.s32.totalorder %s231, %s233
      %p237 = scmp.eq.s32.totalorder %s29, 0
      %p238 = por %p236, %p237
      %p239 = scmp.ne.s32.totalorder %s231, %s233
      %p240 = scmp.eq.s32.totalorder %s34, 1
      %p241 = por %p239, %p240
      %p242 = scmp.ne.s32.totalorder %s233, %s234
      %p243 = scmp.eq.s32.totalorder %s34, 0
      %p244 = por %p242, %p243
      %p245 = scmp.ne.s32.totalorder %s233, %s234
      %p246 = scmp.eq.s32.totalorder %s35, 1
      %p247 = por %p245, %p246
      %p249 = scmp.ne.s32.totalorder %s234, %s248
      %p250 = scmp.eq.s32.totalorder %s35, 0
      %p251 = por %p249, %p250
      %s253 = sadd.s32 %s252, 1
      %p256 = scmp.eq.s32.totalorder %s29, 1
      %p257 = scmp.ne.s32.totalorder %s252, %s254
      %p258 = scmp.eq.s32.totalorder %s29, 0
      %p259 = por %p257, %p258
      %p260 = scmp.ne.s32.totalorder %s252, %s254
      %p261 = scmp.eq.s32.totalorder %s34, 1
      %p262 = por %p260, %p261
      %p263 = scmp.ne.s32.totalorder %s254, %s255
      %p264 = scmp.eq.s32.totalorder %s34, 0
      %p265 = por %p263, %p264
      %p266 = scmp.ne.s32.totalorder %s254, %s255
      %p267 = scmp.eq.s32.totalorder %s35, 1
      %p268 = por %p266, %p267
      %p270 = scmp.ne.s32.totalorder %s255, %s269
      %p271 = scmp.eq.s32.totalorder %s35, 0
      %p272 = por %p270, %p271
      %s274 = sadd.s32 %s273, 1
      %p277 = scmp.eq.s32.totalorder %s29, 1
      %p278 = scmp.ne.s32.totalorder %s273, %s275
      %p279 = scmp.eq.s32.totalorder %s29, 0
      %p280 = por %p278, %p279
      %p281 = scmp.ne.s32.totalorder %s273, %s275
      %p282 = scmp.eq.s32.totalorder %s34, 1
      %p283 = por %p281, %p282
      %p284 = scmp.ne.s32.totalorder %s275, %s276
      %p285 = scmp.eq.s32.totalorder %s34, 0
      %p286 = por %p284, %p285
      %p287 = scmp.ne.s32.totalorder %s275, %s276
      %p288 = scmp.eq.s32.totalorder %s35, 1
      %p289 = por %p287, %p288
      %p291 = scmp.ne.s32.totalorder %s276, %s290
      %p292 = scmp.eq.s32.totalorder %s35, 0
      %p293 = por %p291, %p292
      %s294 = ssub.s32 %s29, %s36
      %p295 = scmp.eq.s32.totalorder %s294, 0
      %s297 = sadd.s32 %s296, 1
      %s298 = scalar_select %p295, %s296, %s297
      %p301 = pneg %p295
      %p302 = scmp.eq.s32.totalorder %s29, 1
      %p303 = por %p301, %p302
      %p304 = scmp.ne.s32.totalorder %s296, %s299
      %p305 = scmp.eq.s32.totalorder %s29, 0
      %p306 = por %p304, %p305
      %p307 = scmp.ne.s32.totalorder %s296, %s299
      %p308 = scmp.eq.s32.totalorder %s34, 1
      %p309 = por %p307, %p308
      %p310 = scmp.ne.s32.totalorder %s299, %s300
      %p311 = scmp.eq.s32.totalorder %s34, 0
      %p312 = por %p310, %p311
      %p313 = scmp.ne.s32.totalorder %s299, %s300
      %p314 = scmp.eq.s32.totalorder %s35, 1
      %p315 = por %p313, %p314
      %p317 = scmp.ne.s32.totalorder %s300, %s316
      %p318 = scmp.eq.s32.totalorder %s35, 0
      %p319 = por %p317, %p318
      %p320 = scmp.le.s32.totalorder 1, %s29
      %p321 = scmp.lt.s32.totalorder %s29, 3
      %p322 = pnand %p320, %p321
      %p323 = pneg %p322
      // Predicated region
      $region9: #{tpu_custom_call.1} parent=5 // pred_check
        _
      $region10: #{tpu_custom_call.1} parent=5 // pred_check_branch
        %325 = sbr.rel (%p322) target = $region12
      $region11: #{tpu_custom_call.1} parent=5 // pred_region
        %s326 = ssub.s32 %s29, 1
        // Predicated region
        $region13: #{tpu_custom_call.1} parent=11 // pred_check
          %p327 = pneg %p50
        $region14: #{tpu_custom_call.1} parent=11 // pred_check_branch
          %329 = sbr.rel (%p327) target = $region16
        $region15: #{tpu_custom_call.1} parent=11 // pred_region
          %s331 = ssub.s32 16, 16
          %332 = vsyncadd [#allocation7], %s331
          %335 = dma.hbm_to_smem %s0, 16, [#allocation4], [#allocation7]
        $region16: #{tpu_custom_call.1} parent=11 // pred_fallthru
          _
        // Predicated region
        $region17: #{tpu_custom_call.1} parent=11 // pred_check
          %p336 = pneg %p71
        $region18: #{tpu_custom_call.1} parent=11 // pred_check_branch
          %338 = sbr.rel (%p336) target = $region20
        $region19: #{tpu_custom_call.1} parent=11 // pred_region
          %s340 = ssub.s32 16, 16
          %341 = vsyncadd [#allocation9], %s340
          %344 = dma.hbm_to_smem %s1, 16, [#allocation8], [#allocation9]
        $region20: #{tpu_custom_call.1} parent=11 // pred_fallthru
          _
        // Predicated region
        $region21: #{tpu_custom_call.1} parent=11 // pred_check
          %p345 = pneg %p118
        $region22: #{tpu_custom_call.1} parent=11 // pred_check_branch
          %347 = sbr.rel (%p345) target = $region24
        $region23: #{tpu_custom_call.1} parent=11 // pred_region
          _
        $region24: #{tpu_custom_call.1} parent=11 // pred_fallthru
          _
        // Predicated region
        $region25: #{tpu_custom_call.1} parent=11 // pred_check
          %p348 = pneg %p139
        $region26: #{tpu_custom_call.1} parent=11 // pred_check_branch
          %350 = sbr.rel (%p348) target = $region28
        $region27: #{tpu_custom_call.1} parent=11 // pred_region
          _
        $region28: #{tpu_custom_call.1} parent=11 // pred_fallthru
          _
        // Predicated region
        $region29: #{tpu_custom_call.1} parent=11 // pred_check
          %p351 = pneg %p160
        $region30: #{tpu_custom_call.1} parent=11 // pred_check_branch
          %353 = sbr.rel (%p351) target = $region32
        $region31: #{tpu_custom_call.1} parent=11 // pred_region
          _
        $region32: #{tpu_custom_call.1} parent=11 // pred_fallthru
          _
        // Predicated region
        $region33: #{tpu_custom_call.1} parent=11 // pred_check
          %p354 = pneg %p181
        $region34: #{tpu_custom_call.1} parent=11 // pred_check_branch
          %356 = sbr.rel (%p354) target = $region36
        $region35: #{tpu_custom_call.1} parent=11 // pred_region
          %s358 = ssub.s32 73728, 73728
          %359 = vsyncadd [#allocation12], %s358
          %s360 = sshll.u32 [#allocation11], 4
          %s361 = int_to_ptr.vmem [resolvable:$true] %s360
          %366 = dma.hbm_to_vmem [thread:$0]  %s6, 73728, %s361, [#allocation12], 128, 128, 8
        $region36: #{tpu_custom_call.1} parent=11 // pred_fallthru
          _
        // Predicated region
        $region37: #{tpu_custom_call.1} parent=11 // pred_check
          %p367 = pneg %p202
        $region38: #{tpu_custom_call.1} parent=11 // pred_check_branch
          %369 = sbr.rel (%p367) target = $region40
        $region39: #{tpu_custom_call.1} parent=11 // pred_region
          %s371 = ssub.s32 32, 32
          %372 = vsyncadd [#allocation12], %s371
          %s374 = sshll.u32 [#allocation13], 4
          %s375 = int_to_ptr.vmem [resolvable:$true] %s374
          %377 = dma.hbm_to_vmem [thread:$0]  %s7, 32, %s375, [#allocation12]
        $region40: #{tpu_custom_call.1} parent=11 // pred_fallthru
          _
        // Predicated region
        $region41: #{tpu_custom_call.1} parent=11 // pred_check
          %p378 = pneg %p223
        $region42: #{tpu_custom_call.1} parent=11 // pred_check_branch
          %380 = sbr.rel (%p378) target = $region44
        $region43: #{tpu_custom_call.1} parent=11 // pred_region
          %s382 = ssub.s32 18432, 18432
          %383 = vsyncadd [#allocation15], %s382
          %s384 = sshll.u32 [#allocation14], 4
          %s385 = int_to_ptr.vmem [resolvable:$true] %s384
          %390 = dma.hbm_to_vmem [thread:$0]  %s8, 18432, %s385, [#allocation15], 64, 64, 4
        $region44: #{tpu_custom_call.1} parent=11 // pred_fallthru
          _
        // Predicated region
        $region45: #{tpu_custom_call.1} parent=11 // pred_check
          %p391 = pneg %p244
        $region46: #{tpu_custom_call.1} parent=11 // pred_check_branch
          %393 = sbr.rel (%p391) target = $region48
        $region47: #{tpu_custom_call.1} parent=11 // pred_region
          %s395 = ssub.s32 16, 16
          %396 = vsyncadd [#allocation15], %s395
          %s398 = sshll.u32 [#allocation16], 4
          %s399 = int_to_ptr.vmem [resolvable:$true] %s398
          %401 = dma.hbm_to_vmem [thread:$0]  %s9, 16, %s399, [#allocation15]
        $region48: #{tpu_custom_call.1} parent=11 // pred_fallthru
          _
        // Predicated region
        $region49: #{tpu_custom_call.1} parent=11 // pred_check
          %p402 = pneg %p265
        $region50: #{tpu_custom_call.1} parent=11 // pred_check_branch
          %404 = sbr.rel (%p402) target = $region52
        $region51: #{tpu_custom_call.1} parent=11 // pred_region
          %s406 = ssub.s32 16, 16
          %407 = vsyncadd [#allocation18], %s406
          %s409 = sshll.u32 [#allocation17], 4
          %s410 = int_to_ptr.vmem [resolvable:$true] %s409
          %412 = dma.hbm_to_vmem [thread:$0]  %s10, 16, %s410, [#allocation18]
        $region52: #{tpu_custom_call.1} parent=11 // pred_fallthru
          _
        // Predicated region
        $region53: #{tpu_custom_call.1} parent=11 // pred_check
          %p413 = pneg %p286
        $region54: #{tpu_custom_call.1} parent=11 // pred_check_branch
          %415 = sbr.rel (%p413) target = $region56
        $region55: #{tpu_custom_call.1} parent=11 // pred_region
          _
        $region56: #{tpu_custom_call.1} parent=11 // pred_fallthru
          _
      $region12: #{tpu_custom_call.1} parent=5 // pred_fallthru
        _
      %p416 = scmp.lt.s32.totalorder %s29, 2
      // Predicated region
      $region57: #{tpu_custom_call.1} parent=5 // pred_check
        %p417 = pneg %p416
      $region58: #{tpu_custom_call.1} parent=5 // pred_check_branch
        %419 = sbr.rel (%p417) target = $region60
      $region59: #{tpu_custom_call.1} parent=5 // pred_region
        // Predicated region
        $region61: #{tpu_custom_call.1} parent=59 // pred_check
          %p420 = pneg %p91
        $region62: #{tpu_custom_call.1} parent=59 // pred_check_branch
          %422 = sbr.rel (%p420) target = $region64
        $region63: #{tpu_custom_call.1} parent=59 // pred_region
          %s423 = sand.u32 %s81, 1
          %s424 = scalar_lea.sflag [#allocation5], %s423
          %s425 = sand.u32 %s81, 1
          %s426 = smul.addr %s425, 32
          %s427 = scalar_lea.vmem [#allocation10], %s426
          %s429 = ssub.s32 512, 512
          %430 = vsyncadd %s424, %s429
          %s431 = smul.addr %s29, 16
          %s432 = smul.addr %s431, 32
          %s433 = scalar_lea.hbm %s2, %s432
          %s434 = sshll.u32 %s427, 4
          %s435 = int_to_ptr.vmem [resolvable:$true] %s434
          %440 = dma.hbm_to_vmem [thread:$0]  %s433, 512, %s435, %s424, 128, 128, 8
        $region64: #{tpu_custom_call.1} parent=59 // pred_fallthru
          _
      $region60: #{tpu_custom_call.1} parent=5 // pred_fallthru
        _
      %p441 = scmp.le.s32.totalorder 1, %s29
      %p442 = scmp.lt.s32.totalorder %s29, 3
      %p443 = pnand %p441, %p442
      %p444 = pneg %p443
      // Predicated region
      $region65: #{tpu_custom_call.1} parent=5 // pred_check
        _
      $region66: #{tpu_custom_call.1} parent=5 // pred_check_branch
        %446 = sbr.rel (%p443) target = $region68
      $region67: #{tpu_custom_call.1} parent=5 // pred_region
        %s447 = ssub.s32 %s29, 1
        // Predicated region
        $region69: #{tpu_custom_call.1} parent=67 // pred_check
          %p448 = pneg %p50
        $region70: #{tpu_custom_call.1} parent=67 // pred_check_branch
          %450 = sbr.rel (%p448) target = $region72
        $region71: #{tpu_custom_call.1} parent=67 // pred_region
          %451 = dma.done [#allocation7], 16
        $region72: #{tpu_custom_call.1} parent=67 // pred_fallthru
          _
        // Predicated region
        $region73: #{tpu_custom_call.1} parent=67 // pred_check
          %p452 = pneg %p71
        $region74: #{tpu_custom_call.1} parent=67 // pred_check_branch
          %454 = sbr.rel (%p452) target = $region76
        $region75: #{tpu_custom_call.1} parent=67 // pred_region
          %455 = dma.done [#allocation9], 16
        $region76: #{tpu_custom_call.1} parent=67 // pred_fallthru
          _
        %s456 = sand.u32 %s84, 1
        %s457 = scalar_lea.sflag [#allocation5], %s456
        %s458 = sand.u32 %s84, 1
        %s459 = smul.addr %s458, 32
        %s460 = scalar_lea.vmem [#allocation10], %s459
        // Predicated region
        $region77: #{tpu_custom_call.1} parent=67 // pred_check
          %p461 = pneg %p97
        $region78: #{tpu_custom_call.1} parent=67 // pred_check_branch
          %463 = sbr.rel (%p461) target = $region80
        $region79: #{tpu_custom_call.1} parent=67 // pred_region
          %464 = dma.done %s457, 512
        $region80: #{tpu_custom_call.1} parent=67 // pred_fallthru
          _
        // Predicated region
        $region81: #{tpu_custom_call.1} parent=67 // pred_check
          %p465 = pneg %p181
        $region82: #{tpu_custom_call.1} parent=67 // pred_check_branch
          %467 = sbr.rel (%p465) target = $region84
        $region83: #{tpu_custom_call.1} parent=67 // pred_region
          %468 = dma.done [#allocation12], 73728
        $region84: #{tpu_custom_call.1} parent=67 // pred_fallthru
          _
        // Predicated region
        $region85: #{tpu_custom_call.1} parent=67 // pred_check
          %p469 = pneg %p202
        $region86: #{tpu_custom_call.1} parent=67 // pred_check_branch
          %471 = sbr.rel (%p469) target = $region88
        $region87: #{tpu_custom_call.1} parent=67 // pred_region
          %472 = dma.done [#allocation12], 32
        $region88: #{tpu_custom_call.1} parent=67 // pred_fallthru
          _
        // Predicated region
        $region89: #{tpu_custom_call.1} parent=67 // pred_check
          %p473 = pneg %p223
        $region90: #{tpu_custom_call.1} parent=67 // pred_check_branch
          %475 = sbr.rel (%p473) target = $region92
        $region91: #{tpu_custom_call.1} parent=67 // pred_region
          %476 = dma.done [#allocation15], 18432
        $region92: #{tpu_custom_call.1} parent=67 // pred_fallthru
          _
        // Predicated region
        $region93: #{tpu_custom_call.1} parent=67 // pred_check
          %p477 = pneg %p244
        $region94: #{tpu_custom_call.1} parent=67 // pred_check_branch
          %479 = sbr.rel (%p477) target = $region96
        $region95: #{tpu_custom_call.1} parent=67 // pred_region
          %480 = dma.done [#allocation15], 16
        $region96: #{tpu_custom_call.1} parent=67 // pred_fallthru
          _
        // Predicated region
        $region97: #{tpu_custom_call.1} parent=67 // pred_check
          %p481 = pneg %p265
        $region98: #{tpu_custom_call.1} parent=67 // pred_check_branch
          %483 = sbr.rel (%p481) target = $region100
        $region99: #{tpu_custom_call.1} parent=67 // pred_region
          %484 = dma.done [#allocation18], 16
        $region100: #{tpu_custom_call.1} parent=67 // pred_fallthru
          _
        %485 = sfence
        %p486 = pneg %p50
        %p487 = pneg %p47
        %p488 = pneg %p71
        %p489 = pneg %p68
        %s490 = sand.u32 %s84, 1
        %s491 = scalar_lea.sflag [#allocation5], %s490
        %s492 = sand.u32 %s84, 1
        %s493 = smul.addr %s492, 32
        %s494 = scalar_lea.vmem [#allocation10], %s493
        %p495 = pneg %p97
        %p496 = pneg %p94
        %p497 = pneg %p118
        %p498 = pneg %p115
        %p499 = pneg %p139
        %p500 = pneg %p136
        %p501 = pneg %p160
        %p502 = pneg %p157
        %p503 = pneg %p181
        %p504 = pneg %p178
        %p505 = pneg %p202
        %p506 = pneg %p199
        %p507 = pneg %p223
        %p508 = pneg %p220
        %p509 = pneg %p244
        %p510 = pneg %p241
        %p511 = pneg %p265
        %p512 = pneg %p262
        %p513 = pneg %p286
        %p514 = pneg %p283
        %p515 = pneg %p312
        %p516 = pneg %p309
        %s517 = sand.u32 %s299, 1
        %s518 = scalar_lea.sflag [#allocation6], %s517
        %s519 = sand.u32 %s299, 1
        %s520 = smul.addr %s519, 2
        %s521 = scalar_lea.vmem [#allocation19], %s520
        %523 = vst [vmem:[#allocation2] sm:$0xff] 0
        %524 = vst [vmem:[#allocation2 + $0x8] sm:$0xff] 0
        %525 = vst [vmem:[#allocation2 + $0x10] sm:$0xff] 0
        %526 = vst [vmem:[#allocation2 + $0x18] sm:$0xff] 0
        %527 = vst [vmem:[#allocation2 + $0x20] sm:$0xff] 0
        %528 = vst [vmem:[#allocation2 + $0x28] sm:$0xff] 0
        %529 = vst [vmem:[#allocation2 + $0x30] sm:$0xff] 0
        %530 = vst [vmem:[#allocation2 + $0x38] sm:$0xff] 0
        %531 = vst [vmem:[#allocation2 + $0x40] sm:$0xff] 0
        %532 = vst [vmem:[#allocation2 + $0x48] sm:$0xff] 0
        %533 = vst [vmem:[#allocation2 + $0x50] sm:$0xff] 0
        %534 = vst [vmem:[#allocation2 + $0x58] sm:$0xff] 0
        %535 = vst [vmem:[#allocation2 + $0x360] sm:$0xff] 0
        %536 = vst [vmem:[#allocation2 + $0x368] sm:$0xff] 0
        %537 = vst [vmem:[#allocation2 + $0x370] sm:$0xff] 0
        %538 = vst [vmem:[#allocation2 + $0x378] sm:$0xff] 0
        %539 = vst [vmem:[#allocation2 + $0x380] sm:$0xff] 0
        %540 = vst [vmem:[#allocation2 + $0x388] sm:$0xff] 0
        %541 = vst [vmem:[#allocation2 + $0x390] sm:$0xff] 0
        %542 = vst [vmem:[#allocation2 + $0x398] sm:$0xff] 0
        %543 = vst [vmem:[#allocation2 + $0x3a0] sm:$0xff] 0
        %544 = vst [vmem:[#allocation2 + $0x3a8] sm:$0xff] 0
        %545 = vst [vmem:[#allocation2 + $0x3b0] sm:$0xff] 0
        %546 = vst [vmem:[#allocation2 + $0x3b8] sm:$0xff] 0
        %547 = vst [vmem:[#allocation3] sm:$0xff] 0
        %548 = vst [vmem:[#allocation3 + $0x8] sm:$0xff] 0
        %549 = vst [vmem:[#allocation3 + $0x10] sm:$0xff] 0
        %550 = vst [vmem:[#allocation3 + $0x18] sm:$0xff] 0
        %551 = vst [vmem:[#allocation3 + $0x20] sm:$0xff] 0
        %552 = vst [vmem:[#allocation3 + $0x28] sm:$0xff] 0
        %553 = vst [vmem:[#allocation3 + $0x1b0] sm:$0xff] 0
        %554 = vst [vmem:[#allocation3 + $0x1b8] sm:$0xff] 0
        %555 = vst [vmem:[#allocation3 + $0x1c0] sm:$0xff] 0
        %556 = vst [vmem:[#allocation3 + $0x1c8] sm:$0xff] 0
        %557 = vst [vmem:[#allocation3 + $0x1d0] sm:$0xff] 0
        %558 = vst [vmem:[#allocation3 + $0x1d8] sm:$0xff] 0
        %v559 = vld [vmem:[%s3] sm:$0xf]
        %v560 = vld [vmem:[%s3 + $0x4] sm:$0xf]
        %v561 = vld [vmem:[%s3 + $0x8] sm:$0xf]
        %v562 = vld [vmem:[%s3 + $0xc] sm:$0xf]
        %v563 = vld [vmem:[%s3 + $0x10] sm:$0xf]
        %v564 = vld [vmem:[%s3 + $0x14] sm:$0xf]
        loop: start=0, step=1, limit=8
        $region101: #{tpu_custom_call.1} parent=67 // loop_pre_header
          _
        $region102: #{tpu_custom_call.1} parent=67 // loop_header
          %s566 = sphi 0, %s570
          %p567 = scmp.ge.s32.totalorder %s566, 8
        $region103: #{tpu_custom_call.1} parent=67 // loop_header_branch
          %569 = sbr.rel (%p567) target = $region107
        $region104: #{tpu_custom_call.1} parent=67 // loop_body
          %s571 = sld [smem:[#allocation4 + %s566]]
          %s572 = sadd.s32 %s571, 1
          %p573 = scmp.lt.s32.totalorder %s572, 3
          %s574 = scalar_select %p573, %s572, 3
          %s575 = sld [smem:[#allocation8 + %s566]]
          %s576 = smul.u32 %s571, 4
          %s577 = smul.addr %s576, 2
          %s578 = scalar_lea.vmem %s460, %s577 [#allocation10]
          %v579 = vld [vmem:[%s578] sm:$0xff]
          %v580 = vunpack.c.l.bf16 %v579
          %v581 = vunpack.c.h.bf16 %v579
          %s582 = smul.u32 %s574, 4
          %s583 = smul.addr %s582, 2
          %s584 = scalar_lea.vmem %s460, %s583 [#allocation10]
          %v585 = vld [vmem:[%s584] sm:$0xff]
          %v586 = vunpack.c.l.bf16 %v585
          %v587 = vunpack.c.h.bf16 %v585
          %v588 = vsub.f32 %v586, %v580
          %v589 = vsub.f32 %v587, %v581
          %v590 = vstv %s575
          %v591 = vmul.f32 %v588, %v590
          %v592 = vmul.f32 %v589, %v590
          %v593 = vadd.f32 %v580, %v591
          %v594 = vadd.f32 %v581, %v592
          %v597 = vcombine.high %v593, %v593
          %v598 = vcombine.high %v594, %v594
          %v601 = vpack.c.bf16 %v593, %v593
          %v602 = vpack.c.bf16 %v597, %v597
          %v603 = vpack.c.bf16 %v594, %v594
          %v604 = vpack.c.bf16 %v598, %v598
          %v611 = vunpack.c.l.b16 %v559
          %v612 = vunpack.c.l.b16 %v560
          %v613 = vunpack.c.l.b16 %v561
          %v614 = vunpack.c.l.b16 %v562
          %v615 = vunpack.c.l.b16 %v563
          %v616 = vunpack.c.l.b16 %v564
          %v617 = vpack.c.b16 %v612, %v611
          %v618 = vpack.c.b16 %v614, %v613
          %v619 = vpack.c.b16 %v616, %v615
          %vm620 = vcmask 31744
          %v622 = vsel %vm620, %v617, 0
          %v625 = vsel %vm620, %v618, 0
          %v628 = vsel %vm620, %v619, 0
          %vm630 = vcmask 1041408
          %v632 = vsel %vm630, %v601, 0
          %v635 = vsel %vm630, %v602, 0
          %v638 = vsel %vm630, %v603, 0
          %v641 = vsel %vm630, %v604, 0
          %643 = vmatprep.subr.bf16.mxu0 %v635
          %644 = vmatpush1.bf16.msra.mxu0 %v632
          %645 = vmatprep.subr.bf16.mxu0 0
          %646 = vmatpush1.bf16.msra.mxu0 0
          %647 = vmatprep.subr.bf16.mxu0 0
          %648 = vmatpush1.bf16.msra.mxu0 0
          %649 = vmatprep.subr.bf16.mxu0 0
          %650 = vmatpush1.bf16.msra.mxu0 0
          %651 = vmatprep.subr.bf16.mxu0 0
          %652 = vmatpush1.bf16.msra.mxu0 0
          %653 = vmatprep.subr.bf16.mxu0 0
          %654 = vmatpush1.bf16.msra.mxu0 0
          %655 = vmatprep.subr.bf16.mxu0 0
          %656 = vmatpush1.bf16.msra.mxu0 0
          %657 = vmatprep.subr.bf16.mxu0 0
          %658 = vmatpush1.bf16.msra.mxu0 0
          %659 = vmatprep.subr.bf16.mxu0 0
          %660 = vmatpush1.bf16.msra.mxu0 0
          %661 = vmatprep.subr.bf16.mxu0 0
          %662 = vmatpush1.bf16.msra.mxu0 0
          %663 = vmatprep.subr.bf16.mxu0 0
          %664 = vmatpush1.bf16.msra.mxu0 0
          %665 = vmatprep.subr.bf16.mxu0 0
          %666 = vmatpush1.bf16.msra.mxu0 0
          %667 = vmatprep.subr.bf16.mxu0 0
          %668 = vmatpush1.bf16.msra.mxu0 0
          %669 = vmatprep.subr.bf16.mxu0 0
          %670 = vmatpush1.bf16.msra.mxu0 0
          %671 = vmatprep.subr.bf16.mxu0 0
          %672 = vmatpush1.bf16.msra.mxu0 0
          %673 = vmatprep.subr.bf16.mxu0 0
          %674 = vmatpush1.bf16.msra.mxu0 0
          %675 = vmatprep.mubr.bf16.mxu0 0
          %676 = vmatmul.mubr.bf16.gmra.mrb[0].mxu0 %v622
          %v677 = vpop.f32.mrb[0].mxu0
          %v678 = vadd.f32 0.0, %v677
          %v679 = vpop.f32.mrb[0].mxu0
          %v680 = vadd.f32 0.0, %v679
          %v681 = vpop.f32.mrb[0].mxu0
          %v682 = vadd.f32 0.0, %v681
          %v683 = vpop.f32.mrb[0].mxu0
          %v684 = vadd.f32 0.0, %v683
          %685 = vmatprep.mubr.bf16.mxu0 0
          %686 = vmatmul.mubr.bf16.gmra.mrb[0].mxu0 %v625
          %v687 = vpop.f32.mrb[0].mxu0
          %v688 = vadd.f32 0.0, %v687
          %v689 = vpop.f32.mrb[0].mxu0
          %v690 = vadd.f32 0.0, %v689
          %v691 = vpop.f32.mrb[0].mxu0
          %v692 = vadd.f32 0.0, %v691
          %v693 = vpop.f32.mrb[0].mxu0
          %v694 = vadd.f32 0.0, %v693
          %695 = vmatprep.mubr.bf16.mxu0 0
          %696 = vmatmul.mubr.bf16.gmra.mrb[0].mxu0 %v628
          %v697 = vpop.f32.mrb[0].mxu0
          %v698 = vadd.f32 0.0, %v697
          %v699 = vpop.f32.mrb[0].mxu0
          %v700 = vadd.f32 0.0, %v699
          %v701 = vpop.f32.mrb[0].mxu0
          %v702 = vadd.f32 0.0, %v701
          %v703 = vpop.f32.mrb[0].mxu0
          %v704 = vadd.f32 0.0, %v703
          %705 = vdwg.mxu0
          %706 = vmatprep.subr.bf16.mxu0 %v641
          %707 = vmatpush1.bf16.msra.mxu0 %v638
          %708 = vmatprep.subr.bf16.mxu0 0
          %709 = vmatpush1.bf16.msra.mxu0 0
          %710 = vmatprep.subr.bf16.mxu0 0
          %711 = vmatpush1.bf16.msra.mxu0 0
          %712 = vmatprep.subr.bf16.mxu0 0
          %713 = vmatpush1.bf16.msra.mxu0 0
          %714 = vmatprep.subr.bf16.mxu0 0
          %715 = vmatpush1.bf16.msra.mxu0 0
          %716 = vmatprep.subr.bf16.mxu0 0
          %717 = vmatpush1.bf16.msra.mxu0 0
          %718 = vmatprep.subr.bf16.mxu0 0
          %719 = vmatpush1.bf16.msra.mxu0 0
          %720 = vmatprep.subr.bf16.mxu0 0
          %721 = vmatpush1.bf16.msra.mxu0 0
          %722 = vmatprep.subr.bf16.mxu0 0
          %723 = vmatpush1.bf16.msra.mxu0 0
          %724 = vmatprep.subr.bf16.mxu0 0
          %725 = vmatpush1.bf16.msra.mxu0 0
          %726 = vmatprep.subr.bf16.mxu0 0
          %727 = vmatpush1.bf16.msra.mxu0 0
          %728 = vmatprep.subr.bf16.mxu0 0
          %729 = vmatpush1.bf16.msra.mxu0 0
          %730 = vmatprep.subr.bf16.mxu0 0
          %731 = vmatpush1.bf16.msra.mxu0 0
          %732 = vmatprep.subr.bf16.mxu0 0
          %733 = vmatpush1.bf16.msra.mxu0 0
          %734 = vmatprep.subr.bf16.mxu0 0
          %735 = vmatpush1.bf16.msra.mxu0 0
          %736 = vmatprep.subr.bf16.mxu0 0
          %737 = vmatpush1.bf16.msra.mxu0 0
          %738 = vmatprep.mubr.bf16.mxu0 0
          %739 = vmatmul.mubr.bf16.gmra.mrb[0].mxu0 %v622
          %v740 = vpop.f32.mrb[0].mxu0
          %v741 = vadd.f32 0.0, %v740
          %v742 = vpop.f32.mrb[0].mxu0
          %v743 = vadd.f32 0.0, %v742
          %v744 = vpop.f32.mrb[0].mxu0
          %v745 = vadd.f32 0.0, %v744
          %v746 = vpop.f32.mrb[0].mxu0
          %v747 = vadd.f32 0.0, %v746
          %748 = vmatprep.mubr.bf16.mxu0 0
          %749 = vmatmul.mubr.bf16.gmra.mrb[0].mxu0 %v625
          %v750 = vpop.f32.mrb[0].mxu0
          %v751 = vadd.f32 0.0, %v750
          %v752 = vpop.f32.mrb[0].mxu0
          %v753 = vadd.f32 0.0, %v752
          %v754 = vpop.f32.mrb[0].mxu0
          %v755 = vadd.f32 0.0, %v754
          %v756 = vpop.f32.mrb[0].mxu0
          %v757 = vadd.f32 0.0, %v756
          %758 = vmatprep.mubr.bf16.mxu0 0
          %759 = vmatmul.mubr.bf16.gmra.mrb[0].mxu0 %v628
          %v760 = vpop.f32.mrb[0].mxu0
          %v761 = vadd.f32 0.0, %v760
          %v762 = vpop.f32.mrb[0].mxu0
          %v763 = vadd.f32 0.0, %v762
          %v764 = vpop.f32.mrb[0].mxu0
          %v765 = vadd.f32 0.0, %v764
          %v766 = vpop.f32.mrb[0].mxu0
          %v767 = vadd.f32 0.0, %v766
          %768 = vdwg.mxu0
          %v769 = vpack.c.bf16 %v682, %v678
          %v770 = vpack.c.bf16 %v684, %v680
          %v771 = vpack.c.bf16 %v745, %v741
          %v772 = vpack.c.bf16 %v747, %v743
          %v773 = vpack.c.bf16 %v692, %v688
          %v774 = vpack.c.bf16 %v694, %v690
          %v775 = vpack.c.bf16 %v755, %v751
          %v776 = vpack.c.bf16 %v757, %v753
          %v777 = vpack.c.bf16 %v702, %v698
          %v778 = vpack.c.bf16 %v704, %v700
          %v779 = vpack.c.bf16 %v765, %v761
          %v780 = vpack.c.bf16 %v767, %v763
          %s781 = sadd.s32 %s566, 1
          %s782 = smul.u32 %s781, 16
          %s783 = sshra.s32 %s782, 4
          %s784 = sand.u32 %s782, 15
          %s785 = smul.u32 %s783, 12
          %s786 = smul.addr %s785, 8
          %s787 = scalar_lea.vmem [#allocation2], %s786
          %788 = vst [vmem:[%s787] sm:$0xff] %v769
          %789 = vst [vmem:[%s787 + $0x8] sm:$0xff] %v770
          %790 = vst [vmem:[%s787 + $0x10] sm:$0xff] %v771
          %791 = vst [vmem:[%s787 + $0x18] sm:$0xff] %v772
          %792 = vst [vmem:[%s787 + $0x20] sm:$0xff] %v773
          %793 = vst [vmem:[%s787 + $0x28] sm:$0xff] %v774
          %794 = vst [vmem:[%s787 + $0x30] sm:$0xff] %v775
          %795 = vst [vmem:[%s787 + $0x38] sm:$0xff] %v776
          %796 = vst [vmem:[%s787 + $0x40] sm:$0xff] %v777
          %797 = vst [vmem:[%s787 + $0x48] sm:$0xff] %v778
          %798 = vst [vmem:[%s787 + $0x50] sm:$0xff] %v779
          %799 = vst [vmem:[%s787 + $0x58] sm:$0xff] %v780
        $region105: #{tpu_custom_call.1} parent=67 // loop_footer
          %s570 = sadd.s32 1, %s566
        $region106: #{tpu_custom_call.1} parent=67 // loop_footer_branch
          %565 = sbr.rel target = $region102
        $region107: #{tpu_custom_call.1} parent=67 // loop_exit
          _
        %v800 = vld [vmem:[#allocation2] sm:$0xff]
        %v801 = vld [vmem:[#allocation2 + $0x8] sm:$0xff]
        %v802 = vld [vmem:[#allocation2 + $0x10] sm:$0xff]
        %v803 = vld [vmem:[#allocation2 + $0x18] sm:$0xff]
        %v804 = vld [vmem:[#allocation2 + $0x20] sm:$0xff]
        %v805 = vld [vmem:[#allocation2 + $0x28] sm:$0xff]
        %v806 = vld [vmem:[#allocation2 + $0x30] sm:$0xff]
        %v807 = vld [vmem:[#allocation2 + $0x38] sm:$0xff]
        %v808 = vld [vmem:[#allocation2 + $0x40] sm:$0xff]
        %v809 = vld [vmem:[#allocation2 + $0x48] sm:$0xff]
        %v810 = vld [vmem:[#allocation2 + $0x50] sm:$0xff]
        %v811 = vld [vmem:[#allocation2 + $0x58] sm:$0xff]
        %v812 = vld [vmem:[#allocation2 + $0x60] sm:$0xff]
        %v813 = vld [vmem:[#allocation2 + $0x68] sm:$0xff]
        %v814 = vld [vmem:[#allocation2 + $0x70] sm:$0xff]
        %v815 = vld [vmem:[#allocation2 + $0x78] sm:$0xff]
        %v816 = vld [vmem:[#allocation2 + $0x80] sm:$0xff]
        %v817 = vld [vmem:[#allocation2 + $0x88] sm:$0xff]
        %v818 = vld [vmem:[#allocation2 + $0x90] sm:$0xff]
        %v819 = vld [vmem:[#allocation2 + $0x98] sm:$0xff]
        %v820 = vld [vmem:[#allocation2 + $0xa0] sm:$0xff]
        %v821 = vld [vmem:[#allocation2 + $0xa8] sm:$0xff]
        %v822 = vld [vmem:[#allocation2 + $0xb0] sm:$0xff]
        %v823 = vld [vmem:[#allocation2 + $0xb8] sm:$0xff]
        %v824 = vld [vmem:[#allocation2 + $0xc0] sm:$0xff]
        %v825 = vld [vmem:[#allocation2 + $0xc8] sm:$0xff]
        %v826 = vld [vmem:[#allocation2 + $0xd0] sm:$0xff]
        %v827 = vld [vmem:[#allocation2 + $0xd8] sm:$0xff]
        %v828 = vld [vmem:[#allocation2 + $0xe0] sm:$0xff]
        %v829 = vld [vmem:[#allocation2 + $0xe8] sm:$0xff]
        %v830 = vld [vmem:[#allocation2 + $0xf0] sm:$0xff]
        %v831 = vld [vmem:[#allocation2 + $0xf8] sm:$0xff]
        %v832 = vld [vmem:[#allocation2 + $0x100] sm:$0xff]
        %v833 = vld [vmem:[#allocation2 + $0x108] sm:$0xff]
        %v834 = vld [vmem:[#allocation2 + $0x110] sm:$0xff]
        %v835 = vld [vmem:[#allocation2 + $0x118] sm:$0xff]
        %v836 = vld [vmem:[#allocation2 + $0x120] sm:$0xff]
        %v837 = vld [vmem:[#allocation2 + $0x128] sm:$0xff]
        %v838 = vld [vmem:[#allocation2 + $0x130] sm:$0xff]
        %v839 = vld [vmem:[#allocation2 + $0x138] sm:$0xff]
        %v840 = vld [vmem:[#allocation2 + $0x140] sm:$0xff]
        %v841 = vld [vmem:[#allocation2 + $0x148] sm:$0xff]
        %v842 = vld [vmem:[#allocation2 + $0x150] sm:$0xff]
        %v843 = vld [vmem:[#allocation2 + $0x158] sm:$0xff]
        %v844 = vld [vmem:[#allocation2 + $0x160] sm:$0xff]
        %v845 = vld [vmem:[#allocation2 + $0x168] sm:$0xff]
        %v846 = vld [vmem:[#allocation2 + $0x170] sm:$0xff]
        %v847 = vld [vmem:[#allocation2 + $0x178] sm:$0xff]
        %v848 = vld [vmem:[#allocation2 + $0x180] sm:$0xff]
        %v849 = vld [vmem:[#allocation2 + $0x188] sm:$0xff]
        %v850 = vld [vmem:[#allocation2 + $0x190] sm:$0xff]
        %v851 = vld [vmem:[#allocation2 + $0x198] sm:$0xff]
        %v852 = vld [vmem:[#allocation2 + $0x1a0] sm:$0xff]
        %v853 = vld [vmem:[#allocation2 + $0x1a8] sm:$0xff]
        %v854 = vld [vmem:[#allocation2 + $0x1b0] sm:$0xff]
        %v855 = vld [vmem:[#allocation2 + $0x1b8] sm:$0xff]
        %v856 = vld [vmem:[#allocation2 + $0x1c0] sm:$0xff]
        %v857 = vld [vmem:[#allocation2 + $0x1c8] sm:$0xff]
        %v858 = vld [vmem:[#allocation2 + $0x1d0] sm:$0xff]
        %v859 = vld [vmem:[#allocation2 + $0x1d8] sm:$0xff]
        %v860 = vld [vmem:[#allocation2 + $0x1e0] sm:$0xff]
        %v861 = vld [vmem:[#allocation2 + $0x1e8] sm:$0xff]
        %v862 = vld [vmem:[#allocation2 + $0x1f0] sm:$0xff]
        %v863 = vld [vmem:[#allocation2 + $0x1f8] sm:$0xff]
        %v864 = vld [vmem:[#allocation2 + $0x200] sm:$0xff]
        %v865 = vld [vmem:[#allocation2 + $0x208] sm:$0xff]
        %v866 = vld [vmem:[#allocation2 + $0x210] sm:$0xff]
        %v867 = vld [vmem:[#allocation2 + $0x218] sm:$0xff]
        %v868 = vld [vmem:[#allocation2 + $0x220] sm:$0xff]
        %v869 = vld [vmem:[#allocation2 + $0x228] sm:$0xff]
        %v870 = vld [vmem:[#allocation2 + $0x230] sm:$0xff]
        %v871 = vld [vmem:[#allocation2 + $0x238] sm:$0xff]
        %v872 = vld [vmem:[#allocation2 + $0x240] sm:$0xff]
        %v873 = vld [vmem:[#allocation2 + $0x248] sm:$0xff]
        %v874 = vld [vmem:[#allocation2 + $0x250] sm:$0xff]
        %v875 = vld [vmem:[#allocation2 + $0x258] sm:$0xff]
        %v876 = vld [vmem:[#allocation2 + $0x260] sm:$0xff]
        %v877 = vld [vmem:[#allocation2 + $0x268] sm:$0xff]
        %v878 = vld [vmem:[#allocation2 + $0x270] sm:$0xff]
        %v879 = vld [vmem:[#allocation2 + $0x278] sm:$0xff]
        %v880 = vld [vmem:[#allocation2 + $0x280] sm:$0xff]
        %v881 = vld [vmem:[#allocation2 + $0x288] sm:$0xff]
        %v882 = vld [vmem:[#allocation2 + $0x290] sm:$0xff]
        %v883 = vld [vmem:[#allocation2 + $0x298] sm:$0xff]
        %v884 = vld [vmem:[#allocation2 + $0x2a0] sm:$0xff]
        %v885 = vld [vmem:[#allocation2 + $0x2a8] sm:$0xff]
        %v886 = vld [vmem:[#allocation2 + $0x2b0] sm:$0xff]
        %v887 = vld [vmem:[#allocation2 + $0x2b8] sm:$0xff]
        %v888 = vld [vmem:[#allocation2 + $0x2c0] sm:$0xff]
        %v889 = vld [vmem:[#allocation2 + $0x2c8] sm:$0xff]
        %v890 = vld [vmem:[#allocation2 + $0x2d0] sm:$0xff]
        %v891 = vld [vmem:[#allocation2 + $0x2d8] sm:$0xff]
        %v892 = vld [vmem:[#allocation2 + $0x2e0] sm:$0xff]
        %v893 = vld [vmem:[#allocation2 + $0x2e8] sm:$0xff]
        %v894 = vld [vmem:[#allocation2 + $0x2f0] sm:$0xff]
        %v895 = vld [vmem:[#allocation2 + $0x2f8] sm:$0xff]
        %v896 = vld [vmem:[#allocation11] sm:$0xff]
        %v897 = vld [vmem:[#allocation11 + $0x8] sm:$0xff]
        %v898 = vld [vmem:[#allocation11 + $0x10] sm:$0xff]
        %v899 = vld [vmem:[#allocation11 + $0x18] sm:$0xff]
        %v900 = vld [vmem:[#allocation11 + $0x20] sm:$0xff]
        %v901 = vld [vmem:[#allocation11 + $0x28] sm:$0xff]
        %v902 = vld [vmem:[#allocation11 + $0x30] sm:$0xff]
        %v903 = vld [vmem:[#allocation11 + $0x38] sm:$0xff]
        %v904 = vld [vmem:[#allocation11 + $0x40] sm:$0xff]
        %v905 = vld [vmem:[#allocation11 + $0x48] sm:$0xff]
        %v906 = vld [vmem:[#allocation11 + $0x50] sm:$0xff]
        %v907 = vld [vmem:[#allocation11 + $0x58] sm:$0xff]
        %v908 = vld [vmem:[#allocation11 + $0x60] sm:$0xff]
        %v909 = vld [vmem:[#allocation11 + $0x68] sm:$0xff]
        %v910 = vld [vmem:[#allocation11 + $0x70] sm:$0xff]
        %v911 = vld [vmem:[#allocation11 + $0x78] sm:$0xff]
        %v912 = vld [vmem:[#allocation11 + $0x80] sm:$0xff]
        %v913 = vld [vmem:[#allocation11 + $0x88] sm:$0xff]
        %v914 = vld [vmem:[#allocation11 + $0x90] sm:$0xff]
        %v915 = vld [vmem:[#allocation11 + $0x98] sm:$0xff]
        %v916 = vld [vmem:[#allocation11 + $0xa0] sm:$0xff]
        %v917 = vld [vmem:[#allocation11 + $0xa8] sm:$0xff]
        %v918 = vld [vmem:[#allocation11 + $0xb0] sm:$0xff]
        %v919 = vld [vmem:[#allocation11 + $0xb8] sm:$0xff]
        %v920 = vld [vmem:[#allocation11 + $0xc0] sm:$0xff]
        %v921 = vld [vmem:[#allocation11 + $0xc8] sm:$0xff]
        %v922 = vld [vmem:[#allocation11 + $0xd0] sm:$0xff]
        %v923 = vld [vmem:[#allocation11 + $0xd8] sm:$0xff]
        %v924 = vld [vmem:[#allocation11 + $0xe0] sm:$0xff]
        %v925 = vld [vmem:[#allocation11 + $0xe8] sm:$0xff]
        %v926 = vld [vmem:[#allocation11 + $0xf0] sm:$0xff]
        %v927 = vld [vmem:[#allocation11 + $0xf8] sm:$0xff]
        %v928 = vld [vmem:[#allocation11 + $0x100] sm:$0xff]
        %v929 = vld [vmem:[#allocation11 + $0x108] sm:$0xff]
        %v930 = vld [vmem:[#allocation11 + $0x110] sm:$0xff]
        %v931 = vld [vmem:[#allocation11 + $0x118] sm:$0xff]
        %v932 = vld [vmem:[#allocation11 + $0x120] sm:$0xff]
        %v933 = vld [vmem:[#allocation11 + $0x128] sm:$0xff]
        %v934 = vld [vmem:[#allocation11 + $0x130] sm:$0xff]
        %v935 = vld [vmem:[#allocation11 + $0x138] sm:$0xff]
        %v936 = vld [vmem:[#allocation11 + $0x140] sm:$0xff]
        %v937 = vld [vmem:[#allocation11 + $0x148] sm:$0xff]
        %v938 = vld [vmem:[#allocation11 + $0x150] sm:$0xff]
        %v939 = vld [vmem:[#allocation11 + $0x158] sm:$0xff]
        %v940 = vld [vmem:[#allocation11 + $0x160] sm:$0xff]
        %v941 = vld [vmem:[#allocation11 + $0x168] sm:$0xff]
        %v942 = vld [vmem:[#allocation11 + $0x170] sm:$0xff]
        %v943 = vld [vmem:[#allocation11 + $0x178] sm:$0xff]
        %v944 = vld [vmem:[#allocation11 + $0x180] sm:$0xff]
        %v945 = vld [vmem:[#allocation11 + $0x188] sm:$0xff]
        %v946 = vld [vmem:[#allocation11 + $0x190] sm:$0xff]
        %v947 = vld [vmem:[#allocation11 + $0x198] sm:$0xff]
        %v948 = vld [vmem:[#allocation11 + $0x1a0] sm:$0xff]
        %v949 = vld [vmem:[#allocation11 + $0x1a8] sm:$0xff]
        %v950 = vld [vmem:[#allocation11 + $0x1b0] sm:$0xff]
        %v951 = vld [vmem:[#allocation11 + $0x1b8] sm:$0xff]
        %v952 = vld [vmem:[#allocation11 + $0x1c0] sm:$0xff]
        %v953 = vld [vmem:[#allocation11 + $0x1c8] sm:$0xff]
        %v954 = vld [vmem:[#allocation11 + $0x1d0] sm:$0xff]
        %v955 = vld [vmem:[#allocation11 + $0x1d8] sm:$0xff]
        %v956 = vld [vmem:[#allocation11 + $0x1e0] sm:$0xff]
        %v957 = vld [vmem:[#allocation11 + $0x1e8] sm:$0xff]
        %v958 = vld [vmem:[#allocation11 + $0x1f0] sm:$0xff]
        %v959 = vld [vmem:[#allocation11 + $0x1f8] sm:$0xff]
        %v960 = vld [vmem:[#allocation11 + $0x200] sm:$0xff]
        %v961 = vld [vmem:[#allocation11 + $0x208] sm:$0xff]
        %v962 = vld [vmem:[#allocation11 + $0x210] sm:$0xff]
        %v963 = vld [vmem:[#allocation11 + $0x218] sm:$0xff]
        %v964 = vld [vmem:[#allocation11 + $0x220] sm:$0xff]
        %v965 = vld [vmem:[#allocation11 + $0x228] sm:$0xff]
        %v966 = vld [vmem:[#allocation11 + $0x230] sm:$0xff]
        %v967 = vld [vmem:[#allocation11 + $0x238] sm:$0xff]
        %v968 = vld [vmem:[#allocation11 + $0x240] sm:$0xff]
        %v969 = vld [vmem:[#allocation11 + $0x248] sm:$0xff]
        %v970 = vld [vmem:[#allocation11 + $0x250] sm:$0xff]
        %v971 = vld [vmem:[#allocation11 + $0x258] sm:$0xff]
        %v972 = vld [vmem:[#allocation11 + $0x260] sm:$0xff]
        %v973 = vld [vmem:[#allocation11 + $0x268] sm:$0xff]
        %v974 = vld [vmem:[#allocation11 + $0x270] sm:$0xff]
        %v975 = vld [vmem:[#allocation11 + $0x278] sm:$0xff]
        %v976 = vld [vmem:[#allocation11 + $0x280] sm:$0xff]
        %v977 = vld [vmem:[#allocation11 + $0x288] sm:$0xff]
        %v978 = vld [vmem:[#allocation11 + $0x290] sm:$0xff]
        %v979 = vld [vmem:[#allocation11 + $0x298] sm:$0xff]
        %v980 = vld [vmem:[#allocation11 + $0x2a0] sm:$0xff]
        %v981 = vld [vmem:[#allocation11 + $0x2a8] sm:$0xff]
        %v982 = vld [vmem:[#allocation11 + $0x2b0] sm:$0xff]
        %v983 = vld [vmem:[#allocation11 + $0x2b8] sm:$0xff]
        %v984 = vld [vmem:[#allocation11 + $0x2c0] sm:$0xff]
        %v985 = vld [vmem:[#allocation11 + $0x2c8] sm:$0xff]
        %v986 = vld [vmem:[#allocation11 + $0x2d0] sm:$0xff]
        %v987 = vld [vmem:[#allocation11 + $0x2d8] sm:$0xff]
        %v988 = vld [vmem:[#allocation11 + $0x2e0] sm:$0xff]
        %v989 = vld [vmem:[#allocation11 + $0x2e8] sm:$0xff]
        %v990 = vld [vmem:[#allocation11 + $0x2f0] sm:$0xff]
        %v991 = vld [vmem:[#allocation11 + $0x2f8] sm:$0xff]
        %v992 = vld [vmem:[#allocation11 + $0x300] sm:$0xff]
        %v993 = vld [vmem:[#allocation11 + $0x308] sm:$0xff]
        %v994 = vld [vmem:[#allocation11 + $0x310] sm:$0xff]
        %v995 = vld [vmem:[#allocation11 + $0x318] sm:$0xff]
        %v996 = vld [vmem:[#allocation11 + $0x320] sm:$0xff]
        %v997 = vld [vmem:[#allocation11 + $0x328] sm:$0xff]
        %v998 = vld [vmem:[#allocation11 + $0x330] sm:$0xff]
        %v999 = vld [vmem:[#allocation11 + $0x338] sm:$0xff]
        %v1000 = vld [vmem:[#allocation11 + $0x340] sm:$0xff]
        %v1001 = vld [vmem:[#allocation11 + $0x348] sm:$0xff]
        %v1002 = vld [vmem:[#allocation11 + $0x350] sm:$0xff]
        %v1003 = vld [vmem:[#allocation11 + $0x358] sm:$0xff]
        %v1004 = vld [vmem:[#allocation11 + $0x360] sm:$0xff]
        %v1005 = vld [vmem:[#allocation11 + $0x368] sm:$0xff]
        %v1006 = vld [vmem:[#allocation11 + $0x370] sm:$0xff]
        %v1007 = vld [vmem:[#allocation11 + $0x378] sm:$0xff]
        %v1008 = vld [vmem:[#allocation11 + $0x380] sm:$0xff]
        %v1009 = vld [vmem:[#allocation11 + $0x388] sm:$0xff]
        %v1010 = vld [vmem:[#allocation11 + $0x390] sm:$0xff]
        %v1011 = vld [vmem:[#allocation11 + $0x398] sm:$0xff]
        %v1012 = vld [vmem:[#allocation11 + $0x3a0] sm:$0xff]
        %v1013 = vld [vmem:[#allocation11 + $0x3a8] sm:$0xff]
        %v1014 = vld [vmem:[#allocation11 + $0x3b0] sm:$0xff]
        %v1015 = vld [vmem:[#allocation11 + $0x3b8] sm:$0xff]
        %v1016 = vld [vmem:[#allocation11 + $0x3c0] sm:$0xff]
        %v1017 = vld [vmem:[#allocation11 + $0x3c8] sm:$0xff]
        %v1018 = vld [vmem:[#allocation11 + $0x3d0] sm:$0xff]
        %v1019 = vld [vmem:[#allocation11 + $0x3d8] sm:$0xff]
        %v1020 = vld [vmem:[#allocation11 + $0x3e0] sm:$0xff]
        %v1021 = vld [vmem:[#allocation11 + $0x3e8] sm:$0xff]
        %v1022 = vld [vmem:[#allocation11 + $0x3f0] sm:$0xff]
        %v1023 = vld [vmem:[#allocation11 + $0x3f8] sm:$0xff]
        %v1024 = vld [vmem:[#allocation11 + $0x400] sm:$0xff]
        %v1025 = vld [vmem:[#allocation11 + $0x408] sm:$0xff]
        %v1026 = vld [vmem:[#allocation11 + $0x410] sm:$0xff]
        %v1027 = vld [vmem:[#allocation11 + $0x418] sm:$0xff]
        %v1028 = vld [vmem:[#allocation11 + $0x420] sm:$0xff]
        %v1029 = vld [vmem:[#allocation11 + $0x428] sm:$0xff]
        %v1030 = vld [vmem:[#allocation11 + $0x430] sm:$0xff]
        %v1031 = vld [vmem:[#allocation11 + $0x438] sm:$0xff]
        %v1032 = vld [vmem:[#allocation11 + $0x440] sm:$0xff]
        %v1033 = vld [vmem:[#allocation11 + $0x448] sm:$0xff]
        %v1034 = vld [vmem:[#allocation11 + $0x450] sm:$0xff]
        %v1035 = vld [vmem:[#allocation11 + $0x458] sm:$0xff]
        %v1036 = vld [vmem:[#allocation11 + $0x460] sm:$0xff]
        %v1037 = vld [vmem:[#allocation11 + $0x468] sm:$0xff]
        %v1038 = vld [vmem:[#allocation11 + $0x470] sm:$0xff]
        %v1039 = vld [vmem:[#allocation11 + $0x478] sm:$0xff]
        %v1040 = vld [vmem:[#allocation11 + $0x480] sm:$0xff]
        %v1041 = vld [vmem:[#allocation11 + $0x488] sm:$0xff]
        %v1042 = vld [vmem:[#allocation11 + $0x490] sm:$0xff]
        %v1043 = vld [vmem:[#allocation11 + $0x498] sm:$0xff]
        %v1044 = vld [vmem:[#allocation11 + $0x4a0] sm:$0xff]
        %v1045 = vld [vmem:[#allocation11 + $0x4a8] sm:$0xff]
        %v1046 = vld [vmem:[#allocation11 + $0x4b0] sm:$0xff]
        %v1047 = vld [vmem:[#allocation11 + $0x4b8] sm:$0xff]
        %v1048 = vld [vmem:[#allocation11 + $0x4c0] sm:$0xff]
        %v1049 = vld [vmem:[#allocation11 + $0x4c8] sm:$0xff]
        %v1050 = vld [vmem:[#allocation11 + $0x4d0] sm:$0xff]
        %v1051 = vld [vmem:[#allocation11 + $0x4d8] sm:$0xff]
        %v1052 = vld [vmem:[#allocation11 + $0x4e0] sm:$0xff]
        %v1053 = vld [vmem:[#allocation11 + $0x4e8] sm:$0xff]
        %v1054 = vld [vmem:[#allocation11 + $0x4f0] sm:$0xff]
        %v1055 = vld [vmem:[#allocation11 + $0x4f8] sm:$0xff]
        %v1056 = vld [vmem:[#allocation11 + $0x500] sm:$0xff]
        %v1057 = vld [vmem:[#allocation11 + $0x508] sm:$0xff]
        %v1058 = vld [vmem:[#allocation11 + $0x510] sm:$0xff]
        %v1059 = vld [vmem:[#allocation11 + $0x518] sm:$0xff]
        %v1060 = vld [vmem:[#allocation11 + $0x520] sm:$0xff]
        %v1061 = vld [vmem:[#allocation11 + $0x528] sm:$0xff]
        %v1062 = vld [vmem:[#allocation11 + $0x530] sm:$0xff]
        %v1063 = vld [vmem:[#allocation11 + $0x538] sm:$0xff]
        %v1064 = vld [vmem:[#allocation11 + $0x540] sm:$0xff]
        %v1065 = vld [vmem:[#allocation11 + $0x548] sm:$0xff]
        %v1066 = vld [vmem:[#allocation11 + $0x550] sm:$0xff]
        %v1067 = vld [vmem:[#allocation11 + $0x558] sm:$0xff]
        %v1068 = vld [vmem:[#allocation11 + $0x560] sm:$0xff]
        %v1069 = vld [vmem:[#allocation11 + $0x568] sm:$0xff]
        %v1070 = vld [vmem:[#allocation11 + $0x570] sm:$0xff]
        %v1071 = vld [vmem:[#allocation11 + $0x578] sm:$0xff]
        %v1072 = vld [vmem:[#allocation11 + $0x580] sm:$0xff]
        %v1073 = vld [vmem:[#allocation11 + $0x588] sm:$0xff]
        %v1074 = vld [vmem:[#allocation11 + $0x590] sm:$0xff]
        %v1075 = vld [vmem:[#allocation11 + $0x598] sm:$0xff]
        %v1076 = vld [vmem:[#allocation11 + $0x5a0] sm:$0xff]
        %v1077 = vld [vmem:[#allocation11 + $0x5a8] sm:$0xff]
        %v1078 = vld [vmem:[#allocation11 + $0x5b0] sm:$0xff]
        %v1079 = vld [vmem:[#allocation11 + $0x5b8] sm:$0xff]
        %v1080 = vld [vmem:[#allocation11 + $0x5c0] sm:$0xff]
        %v1081 = vld [vmem:[#allocation11 + $0x5c8] sm:$0xff]
        %v1082 = vld [vmem:[#allocation11 + $0x5d0] sm:$0xff]
        %v1083 = vld [vmem:[#allocation11 + $0x5d8] sm:$0xff]
        %v1084 = vld [vmem:[#allocation11 + $0x5e0] sm:$0xff]
        %v1085 = vld [vmem:[#allocation11 + $0x5e8] sm:$0xff]
        %v1086 = vld [vmem:[#allocation11 + $0x5f0] sm:$0xff]
        %v1087 = vld [vmem:[#allocation11 + $0x5f8] sm:$0xff]
        %v1088 = vld [vmem:[#allocation2 + $0x300] sm:$0xff]
        %v1089 = vld [vmem:[#allocation2 + $0x308] sm:$0xff]
        %v1090 = vld [vmem:[#allocation2 + $0x310] sm:$0xff]
        %v1091 = vld [vmem:[#allocation2 + $0x318] sm:$0xff]
        %v1092 = vld [vmem:[#allocation2 + $0x320] sm:$0xff]
        %v1093 = vld [vmem:[#allocation2 + $0x328] sm:$0xff]
        %v1094 = vld [vmem:[#allocation2 + $0x330] sm:$0xff]
        %v1095 = vld [vmem:[#allocation2 + $0x338] sm:$0xff]
        %v1096 = vld [vmem:[#allocation2 + $0x340] sm:$0xff]
        %v1097 = vld [vmem:[#allocation2 + $0x348] sm:$0xff]
        %v1098 = vld [vmem:[#allocation2 + $0x350] sm:$0xff]
        %v1099 = vld [vmem:[#allocation2 + $0x358] sm:$0xff]
        %s1100 = scalar_lea.vmem [#allocation11], 1536
        %v1101 = vld [vmem:[%s1100] sm:$0xff]
        %v1102 = vld [vmem:[%s1100 + $0x8] sm:$0xff]
        %v1103 = vld [vmem:[%s1100 + $0x10] sm:$0xff]
        %v1104 = vld [vmem:[%s1100 + $0x18] sm:$0xff]
        %v1105 = vld [vmem:[%s1100 + $0x20] sm:$0xff]
        %v1106 = vld [vmem:[%s1100 + $0x28] sm:$0xff]
        %v1107 = vld [vmem:[%s1100 + $0x30] sm:$0xff]
        %v1108 = vld [vmem:[%s1100 + $0x38] sm:$0xff]
        %v1109 = vld [vmem:[%s1100 + $0x40] sm:$0xff]
        %v1110 = vld [vmem:[%s1100 + $0x48] sm:$0xff]
        %v1111 = vld [vmem:[%s1100 + $0x50] sm:$0xff]
        %v1112 = vld [vmem:[%s1100 + $0x58] sm:$0xff]
        %v1113 = vld [vmem:[%s1100 + $0x60] sm:$0xff]
        %v1114 = vld [vmem:[%s1100 + $0x68] sm:$0xff]
        %v1115 = vld [vmem:[%s1100 + $0x70] sm:$0xff]
        %v1116 = vld [vmem:[%s1100 + $0x78] sm:$0xff]
        %v1117 = vld [vmem:[%s1100 + $0x80] sm:$0xff]
        %v1118 = vld [vmem:[%s1100 + $0x88] sm:$0xff]
        %v1119 = vld [vmem:[%s1100 + $0x90] sm:$0xff]
        %v1120 = vld [vmem:[%s1100 + $0x98] sm:$0xff]
        %v1121 = vld [vmem:[%s1100 + $0xa0] sm:$0xff]
        %v1122 = vld [vmem:[%s1100 + $0xa8] sm:$0xff]
        %v1123 = vld [vmem:[%s1100 + $0xb0] sm:$0xff]
        %v1124 = vld [vmem:[%s1100 + $0xb8] sm:$0xff]
        %v1125 = vld [vmem:[%s1100 + $0xc0] sm:$0xff]
        %v1126 = vld [vmem:[%s1100 + $0xc8] sm:$0xff]
        %v1127 = vld [vmem:[%s1100 + $0xd0] sm:$0xff]
        %v1128 = vld [vmem:[%s1100 + $0xd8] sm:$0xff]
        %v1129 = vld [vmem:[%s1100 + $0xe0] sm:$0xff]
        %v1130 = vld [vmem:[%s1100 + $0xe8] sm:$0xff]
        %v1131 = vld [vmem:[%s1100 + $0xf0] sm:$0xff]
        %v1132 = vld [vmem:[%s1100 + $0xf8] sm:$0xff]
        %v1133 = vld [vmem:[%s1100 + $0x100] sm:$0xff]
        %v1134 = vld [vmem:[%s1100 + $0x108] sm:$0xff]
        %v1135 = vld [vmem:[%s1100 + $0x110] sm:$0xff]
        %v1136 = vld [vmem:[%s1100 + $0x118] sm:$0xff]
        %v1137 = vld [vmem:[%s1100 + $0x120] sm:$0xff]
        %v1138 = vld [vmem:[%s1100 + $0x128] sm:$0xff]
        %v1139 = vld [vmem:[%s1100 + $0x130] sm:$0xff]
        %v1140 = vld [vmem:[%s1100 + $0x138] sm:$0xff]
        %v1141 = vld [vmem:[%s1100 + $0x140] sm:$0xff]
        %v1142 = vld [vmem:[%s1100 + $0x148] sm:$0xff]
        %v1143 = vld [vmem:[%s1100 + $0x150] sm:$0xff]
        %v1144 = vld [vmem:[%s1100 + $0x158] sm:$0xff]
        %v1145 = vld [vmem:[%s1100 + $0x160] sm:$0xff]
        %v1146 = vld [vmem:[%s1100 + $0x168] sm:$0xff]
        %v1147 = vld [vmem:[%s1100 + $0x170] sm:$0xff]
        %v1148 = vld [vmem:[%s1100 + $0x178] sm:$0xff]
        %v1149 = vld [vmem:[%s1100 + $0x180] sm:$0xff]
        %v1150 = vld [vmem:[%s1100 + $0x188] sm:$0xff]
        %v1151 = vld [vmem:[%s1100 + $0x190] sm:$0xff]
        %v1152 = vld [vmem:[%s1100 + $0x198] sm:$0xff]
        %v1153 = vld [vmem:[%s1100 + $0x1a0] sm:$0xff]
        %v1154 = vld [vmem:[%s1100 + $0x1a8] sm:$0xff]
        %v1155 = vld [vmem:[%s1100 + $0x1b0] sm:$0xff]
        %v1156 = vld [vmem:[%s1100 + $0x1b8] sm:$0xff]
        %v1157 = vld [vmem:[%s1100 + $0x1c0] sm:$0xff]
        %v1158 = vld [vmem:[%s1100 + $0x1c8] sm:$0xff]
        %v1159 = vld [vmem:[%s1100 + $0x1d0] sm:$0xff]
        %v1160 = vld [vmem:[%s1100 + $0x1d8] sm:$0xff]
        %v1161 = vld [vmem:[%s1100 + $0x1e0] sm:$0xff]
        %v1162 = vld [vmem:[%s1100 + $0x1e8] sm:$0xff]
        %v1163 = vld [vmem:[%s1100 + $0x1f0] sm:$0xff]
        %v1164 = vld [vmem:[%s1100 + $0x1f8] sm:$0xff]
        %v1165 = vld [vmem:[%s1100 + $0x200] sm:$0xff]
        %v1166 = vld [vmem:[%s1100 + $0x208] sm:$0xff]
        %v1167 = vld [vmem:[%s1100 + $0x210] sm:$0xff]
        %v1168 = vld [vmem:[%s1100 + $0x218] sm:$0xff]
        %v1169 = vld [vmem:[%s1100 + $0x220] sm:$0xff]
        %v1170 = vld [vmem:[%s1100 + $0x228] sm:$0xff]
        %v1171 = vld [vmem:[%s1100 + $0x230] sm:$0xff]
        %v1172 = vld [vmem:[%s1100 + $0x238] sm:$0xff]
        %v1173 = vld [vmem:[%s1100 + $0x240] sm:$0xff]
        %v1174 = vld [vmem:[%s1100 + $0x248] sm:$0xff]
        %v1175 = vld [vmem:[%s1100 + $0x250] sm:$0xff]
        %v1176 = vld [vmem:[%s1100 + $0x258] sm:$0xff]
        %v1177 = vld [vmem:[%s1100 + $0x260] sm:$0xff]
        %v1178 = vld [vmem:[%s1100 + $0x268] sm:$0xff]
        %v1179 = vld [vmem:[%s1100 + $0x270] sm:$0xff]
        %v1180 = vld [vmem:[%s1100 + $0x278] sm:$0xff]
        %v1181 = vld [vmem:[%s1100 + $0x280] sm:$0xff]
        %v1182 = vld [vmem:[%s1100 + $0x288] sm:$0xff]
        %v1183 = vld [vmem:[%s1100 + $0x290] sm:$0xff]
        %v1184 = vld [vmem:[%s1100 + $0x298] sm:$0xff]
        %v1185 = vld [vmem:[%s1100 + $0x2a0] sm:$0xff]
        %v1186 = vld [vmem:[%s1100 + $0x2a8] sm:$0xff]
        %v1187 = vld [vmem:[%s1100 + $0x2b0] sm:$0xff]
        %v1188 = vld [vmem:[%s1100 + $0x2b8] sm:$0xff]
        %v1189 = vld [vmem:[%s1100 + $0x2c0] sm:$0xff]
        %v1190 = vld [vmem:[%s1100 + $0x2c8] sm:$0xff]
        %v1191 = vld [vmem:[%s1100 + $0x2d0] sm:$0xff]
        %v1192 = vld [vmem:[%s1100 + $0x2d8] sm:$0xff]
        %v1193 = vld [vmem:[%s1100 + $0x2e0] sm:$0xff]
        %v1194 = vld [vmem:[%s1100 + $0x2e8] sm:$0xff]
        %v1195 = vld [vmem:[%s1100 + $0x2f0] sm:$0xff]
        %v1196 = vld [vmem:[%s1100 + $0x2f8] sm:$0xff]
        %v1197 = vld [vmem:[%s1100 + $0x300] sm:$0xff]
        %v1198 = vld [vmem:[%s1100 + $0x308] sm:$0xff]
        %v1199 = vld [vmem:[%s1100 + $0x310] sm:$0xff]
        %v1200 = vld [vmem:[%s1100 + $0x318] sm:$0xff]
        %v1201 = vld [vmem:[%s1100 + $0x320] sm:$0xff]
        %v1202 = vld [vmem:[%s1100 + $0x328] sm:$0xff]
        %v1203 = vld [vmem:[%s1100 + $0x330] sm:$0xff]
        %v1204 = vld [vmem:[%s1100 + $0x338] sm:$0xff]
        %v1205 = vld [vmem:[%s1100 + $0x340] sm:$0xff]
        %v1206 = vld [vmem:[%s1100 + $0x348] sm:$0xff]
        %v1207 = vld [vmem:[%s1100 + $0x350] sm:$0xff]
        %v1208 = vld [vmem:[%s1100 + $0x358] sm:$0xff]
        %v1209 = vld [vmem:[%s1100 + $0x360] sm:$0xff]
        %v1210 = vld [vmem:[%s1100 + $0x368] sm:$0xff]
        %v1211 = vld [vmem:[%s1100 + $0x370] sm:$0xff]
        %v1212 = vld [vmem:[%s1100 + $0x378] sm:$0xff]
        %v1213 = vld [vmem:[%s1100 + $0x380] sm:$0xff]
        %v1214 = vld [vmem:[%s1100 + $0x388] sm:$0xff]
        %v1215 = vld [vmem:[%s1100 + $0x390] sm:$0xff]
        %v1216 = vld [vmem:[%s1100 + $0x398] sm:$0xff]
        %v1217 = vld [vmem:[%s1100 + $0x3a0] sm:$0xff]
        %v1218 = vld [vmem:[%s1100 + $0x3a8] sm:$0xff]
        %v1219 = vld [vmem:[%s1100 + $0x3b0] sm:$0xff]
        %v1220 = vld [vmem:[%s1100 + $0x3b8] sm:$0xff]
        %v1221 = vld [vmem:[%s1100 + $0x3c0] sm:$0xff]
        %v1222 = vld [vmem:[%s1100 + $0x3c8] sm:$0xff]
        %v1223 = vld [vmem:[%s1100 + $0x3d0] sm:$0xff]
        %v1224 = vld [vmem:[%s1100 + $0x3d8] sm:$0xff]
        %v1225 = vld [vmem:[%s1100 + $0x3e0] sm:$0xff]
        %v1226 = vld [vmem:[%s1100 + $0x3e8] sm:$0xff]
        %v1227 = vld [vmem:[%s1100 + $0x3f0] sm:$0xff]
        %v1228 = vld [vmem:[%s1100 + $0x3f8] sm:$0xff]
        %v1229 = vld [vmem:[%s1100 + $0x400] sm:$0xff]
        %v1230 = vld [vmem:[%s1100 + $0x408] sm:$0xff]
        %v1231 = vld [vmem:[%s1100 + $0x410] sm:$0xff]
        %v1232 = vld [vmem:[%s1100 + $0x418] sm:$0xff]
        %v1233 = vld [vmem:[%s1100 + $0x420] sm:$0xff]
        %v1234 = vld [vmem:[%s1100 + $0x428] sm:$0xff]
        %v1235 = vld [vmem:[%s1100 + $0x430] sm:$0xff]
        %v1236 = vld [vmem:[%s1100 + $0x438] sm:$0xff]
        %v1237 = vld [vmem:[%s1100 + $0x440] sm:$0xff]
        %v1238 = vld [vmem:[%s1100 + $0x448] sm:$0xff]
        %v1239 = vld [vmem:[%s1100 + $0x450] sm:$0xff]
        %v1240 = vld [vmem:[%s1100 + $0x458] sm:$0xff]
        %v1241 = vld [vmem:[%s1100 + $0x460] sm:$0xff]
        %v1242 = vld [vmem:[%s1100 + $0x468] sm:$0xff]
        %v1243 = vld [vmem:[%s1100 + $0x470] sm:$0xff]
        %v1244 = vld [vmem:[%s1100 + $0x478] sm:$0xff]
        %v1245 = vld [vmem:[%s1100 + $0x480] sm:$0xff]
        %v1246 = vld [vmem:[%s1100 + $0x488] sm:$0xff]
        %v1247 = vld [vmem:[%s1100 + $0x490] sm:$0xff]
        %v1248 = vld [vmem:[%s1100 + $0x498] sm:$0xff]
        %v1249 = vld [vmem:[%s1100 + $0x4a0] sm:$0xff]
        %v1250 = vld [vmem:[%s1100 + $0x4a8] sm:$0xff]
        %v1251 = vld [vmem:[%s1100 + $0x4b0] sm:$0xff]
        %v1252 = vld [vmem:[%s1100 + $0x4b8] sm:$0xff]
        %v1253 = vld [vmem:[%s1100 + $0x4c0] sm:$0xff]
        %v1254 = vld [vmem:[%s1100 + $0x4c8] sm:$0xff]
        %v1255 = vld [vmem:[%s1100 + $0x4d0] sm:$0xff]
        %v1256 = vld [vmem:[%s1100 + $0x4d8] sm:$0xff]
        %v1257 = vld [vmem:[%s1100 + $0x4e0] sm:$0xff]
        %v1258 = vld [vmem:[%s1100 + $0x4e8] sm:$0xff]
        %v1259 = vld [vmem:[%s1100 + $0x4f0] sm:$0xff]
        %v1260 = vld [vmem:[%s1100 + $0x4f8] sm:$0xff]
        %v1261 = vld [vmem:[%s1100 + $0x500] sm:$0xff]
        %v1262 = vld [vmem:[%s1100 + $0x508] sm:$0xff]
        %v1263 = vld [vmem:[%s1100 + $0x510] sm:$0xff]
        %v1264 = vld [vmem:[%s1100 + $0x518] sm:$0xff]
        %v1265 = vld [vmem:[%s1100 + $0x520] sm:$0xff]
        %v1266 = vld [vmem:[%s1100 + $0x528] sm:$0xff]
        %v1267 = vld [vmem:[%s1100 + $0x530] sm:$0xff]
        %v1268 = vld [vmem:[%s1100 + $0x538] sm:$0xff]
        %v1269 = vld [vmem:[%s1100 + $0x540] sm:$0xff]
        %v1270 = vld [vmem:[%s1100 + $0x548] sm:$0xff]
        %v1271 = vld [vmem:[%s1100 + $0x550] sm:$0xff]
        %v1272 = vld [vmem:[%s1100 + $0x558] sm:$0xff]
        %v1273 = vld [vmem:[%s1100 + $0x560] sm:$0xff]
        %v1274 = vld [vmem:[%s1100 + $0x568] sm:$0xff]
        %v1275 = vld [vmem:[%s1100 + $0x570] sm:$0xff]
        %v1276 = vld [vmem:[%s1100 + $0x578] sm:$0xff]
        %v1277 = vld [vmem:[%s1100 + $0x580] sm:$0xff]
        %v1278 = vld [vmem:[%s1100 + $0x588] sm:$0xff]
        %v1279 = vld [vmem:[%s1100 + $0x590] sm:$0xff]
        %v1280 = vld [vmem:[%s1100 + $0x598] sm:$0xff]
        %v1281 = vld [vmem:[%s1100 + $0x5a0] sm:$0xff]
        %v1282 = vld [vmem:[%s1100 + $0x5a8] sm:$0xff]
        %v1283 = vld [vmem:[%s1100 + $0x5b0] sm:$0xff]
        %v1284 = vld [vmem:[%s1100 + $0x5b8] sm:$0xff]
        %v1285 = vld [vmem:[%s1100 + $0x5c0] sm:$0xff]
        %v1286 = vld [vmem:[%s1100 + $0x5c8] sm:$0xff]
        %v1287 = vld [vmem:[%s1100 + $0x5d0] sm:$0xff]
        %v1288 = vld [vmem:[%s1100 + $0x5d8] sm:$0xff]
        %v1289 = vld [vmem:[%s1100 + $0x5e0] sm:$0xff]
        %v1290 = vld [vmem:[%s1100 + $0x5e8] sm:$0xff]
        %v1291 = vld [vmem:[%s1100 + $0x5f0] sm:$0xff]
        %v1292 = vld [vmem:[%s1100 + $0x5f8] sm:$0xff]
        %v1485 = vunpack.c.l.b16 %v1101
        %v1486 = vunpack.c.h.b16 %v1101
        %v1487 = vunpack.c.l.b16 %v1102
        %v1488 = vunpack.c.h.b16 %v1102
        %v1489 = vunpack.c.l.b16 %v1103
        %v1490 = vunpack.c.h.b16 %v1103
        %v1491 = vunpack.c.l.b16 %v1104
        %v1492 = vunpack.c.h.b16 %v1104
        %v1493 = vunpack.c.l.b16 %v1105
        %v1494 = vunpack.c.h.b16 %v1105
        %v1495 = vunpack.c.l.b16 %v1106
        %v1496 = vunpack.c.h.b16 %v1106
        %v1497 = vunpack.c.l.b16 %v1107
        %v1498 = vunpack.c.h.b16 %v1107
        %v1499 = vunpack.c.l.b16 %v1108
        %v1500 = vunpack.c.h.b16 %v1108
        %v1501 = vunpack.c.l.b16 %v1109
        %v1502 = vunpack.c.h.b16 %v1109
        %v1503 = vunpack.c.l.b16 %v1110
        %v1504 = vunpack.c.h.b16 %v1110
        %v1505 = vunpack.c.l.b16 %v1111
        %v1506 = vunpack.c.h.b16 %v1111
        %v1507 = vunpack.c.l.b16 %v1112
        %v1508 = vunpack.c.h.b16 %v1112
        %v1509 = vunpack.c.l.b16 %v1113
        %v1510 = vunpack.c.h.b16 %v1113
        %v1511 = vunpack.c.l.b16 %v1114
        %v1512 = vunpack.c.h.b16 %v1114
        %v1513 = vunpack.c.l.b16 %v1115
        %v1514 = vunpack.c.h.b16 %v1115
        %v1515 = vunpack.c.l.b16 %v1116
        %v1516 = vunpack.c.h.b16 %v1116
        %v1517 = vunpack.c.l.b16 %v1117
        %v1518 = vunpack.c.h.b16 %v1117
        %v1519 = vunpack.c.l.b16 %v1118
        %v1520 = vunpack.c.h.b16 %v1118
        %v1521 = vunpack.c.l.b16 %v1119
        %v1522 = vunpack.c.h.b16 %v1119
        %v1523 = vunpack.c.l.b16 %v1120
        %v1524 = vunpack.c.h.b16 %v1120
        %v1525 = vunpack.c.l.b16 %v1121
        %v1526 = vunpack.c.h.b16 %v1121
        %v1527 = vunpack.c.l.b16 %v1122
        %v1528 = vunpack.c.h.b16 %v1122
        %v1529 = vunpack.c.l.b16 %v1123
        %v1530 = vunpack.c.h.b16 %v1123
        %v1531 = vunpack.c.l.b16 %v1124
        %v1532 = vunpack.c.h.b16 %v1124
        %v1533 = vunpack.c.l.b16 %v1125
        %v1534 = vunpack.c.h.b16 %v1125
        %v1535 = vunpack.c.l.b16 %v1126
        %v1536 = vunpack.c.h.b16 %v1126
        %v1537 = vunpack.c.l.b16 %v1127
        %v1538 = vunpack.c.h.b16 %v1127
        %v1539 = vunpack.c.l.b16 %v1128
        %v1540 = vunpack.c.h.b16 %v1128
        %v1541 = vunpack.c.l.b16 %v1129
        %v1542 = vunpack.c.h.b16 %v1129
        %v1543 = vunpack.c.l.b16 %v1130
        %v1544 = vunpack.c.h.b16 %v1130
        %v1545 = vunpack.c.l.b16 %v1131
        %v1546 = vunpack.c.h.b16 %v1131
        %v1547 = vunpack.c.l.b16 %v1132
        %v1548 = vunpack.c.h.b16 %v1132
        %v1549 = vunpack.c.l.b16 %v1133
        %v1550 = vunpack.c.h.b16 %v1133
        %v1551 = vunpack.c.l.b16 %v1134
        %v1552 = vunpack.c.h.b16 %v1134
        %v1553 = vunpack.c.l.b16 %v1135
        %v1554 = vunpack.c.h.b16 %v1135
        %v1555 = vunpack.c.l.b16 %v1136
        %v1556 = vunpack.c.h.b16 %v1136
        %v1557 = vunpack.c.l.b16 %v1137
        %v1558 = vunpack.c.h.b16 %v1137
        %v1559 = vunpack.c.l.b16 %v1138
        %v1560 = vunpack.c.h.b16 %v1138
        %v1561 = vunpack.c.l.b16 %v1139
        %v1562 = vunpack.c.h.b16 %v1139
        %v1563 = vunpack.c.l.b16 %v1140
        %v1564 = vunpack.c.h.b16 %v1140
        %v1565 = vunpack.c.l.b16 %v1141
        %v1566 = vunpack.c.h.b16 %v1141
        %v1567 = vunpack.c.l.b16 %v1142
        %v1568 = vunpack.c.h.b16 %v1142
        %v1569 = vunpack.c.l.b16 %v1143
        %v1570 = vunpack.c.h.b16 %v1143
        %v1571 = vunpack.c.l.b16 %v1144
        %v1572 = vunpack.c.h.b16 %v1144
        %v1573 = vunpack.c.l.b16 %v1145
        %v1574 = vunpack.c.h.b16 %v1145
        %v1575 = vunpack.c.l.b16 %v1146
        %v1576 = vunpack.c.h.b16 %v1146
        %v1577 = vunpack.c.l.b16 %v1147
        %v1578 = vunpack.c.h.b16 %v1147
        %v1579 = vunpack.c.l.b16 %v1148
        %v1580 = vunpack.c.h.b16 %v1148
        %v1581 = vunpack.c.l.b16 %v1149
        %v1582 = vunpack.c.h.b16 %v1149
        %v1583 = vunpack.c.l.b16 %v1150
        %v1584 = vunpack.c.h.b16 %v1150
        %v1585 = vunpack.c.l.b16 %v1151
        %v1586 = vunpack.c.h.b16 %v1151
        %v1587 = vunpack.c.l.b16 %v1152
        %v1588 = vunpack.c.h.b16 %v1152
        %v1589 = vunpack.c.l.b16 %v1153
        %v1590 = vunpack.c.h.b16 %v1153
        %v1591 = vunpack.c.l.b16 %v1154
        %v1592 = vunpack.c.h.b16 %v1154
        %v1593 = vunpack.c.l.b16 %v1155
        %v1594 = vunpack.c.h.b16 %v1155
        %v1595 = vunpack.c.l.b16 %v1156
        %v1596 = vunpack.c.h.b16 %v1156
        %v1597 = vunpack.c.l.b16 %v1157
        %v1598 = vunpack.c.h.b16 %v1157
        %v1599 = vunpack.c.l.b16 %v1158
        %v1600 = vunpack.c.h.b16 %v1158
        %v1601 = vunpack.c.l.b16 %v1159
        %v1602 = vunpack.c.h.b16 %v1159
        %v1603 = vunpack.c.l.b16 %v1160
        %v1604 = vunpack.c.h.b16 %v1160
        %v1605 = vunpack.c.l.b16 %v1161
        %v1606 = vunpack.c.h.b16 %v1161
        %v1607 = vunpack.c.l.b16 %v1162
        %v1608 = vunpack.c.h.b16 %v1162
        %v1609 = vunpack.c.l.b16 %v1163
        %v1610 = vunpack.c.h.b16 %v1163
        %v1611 = vunpack.c.l.b16 %v1164
        %v1612 = vunpack.c.h.b16 %v1164
        %v1613 = vunpack.c.l.b16 %v1165
        %v1614 = vunpack.c.h.b16 %v1165
        %v1615 = vunpack.c.l.b16 %v1166
        %v1616 = vunpack.c.h.b16 %v1166
        %v1617 = vunpack.c.l.b16 %v1167
        %v1618 = vunpack.c.h.b16 %v1167
        %v1619 = vunpack.c.l.b16 %v1168
        %v1620 = vunpack.c.h.b16 %v1168
        %v1621 = vunpack.c.l.b16 %v1169
        %v1622 = vunpack.c.h.b16 %v1169
        %v1623 = vunpack.c.l.b16 %v1170
        %v1624 = vunpack.c.h.b16 %v1170
        %v1625 = vunpack.c.l.b16 %v1171
        %v1626 = vunpack.c.h.b16 %v1171
        %v1627 = vunpack.c.l.b16 %v1172
        %v1628 = vunpack.c.h.b16 %v1172
        %v1629 = vunpack.c.l.b16 %v1173
        %v1630 = vunpack.c.h.b16 %v1173
        %v1631 = vunpack.c.l.b16 %v1174
        %v1632 = vunpack.c.h.b16 %v1174
        %v1633 = vunpack.c.l.b16 %v1175
        %v1634 = vunpack.c.h.b16 %v1175
        %v1635 = vunpack.c.l.b16 %v1176
        %v1636 = vunpack.c.h.b16 %v1176
        %v1637 = vunpack.c.l.b16 %v1177
        %v1638 = vunpack.c.h.b16 %v1177
        %v1639 = vunpack.c.l.b16 %v1178
        %v1640 = vunpack.c.h.b16 %v1178
        %v1641 = vunpack.c.l.b16 %v1179
        %v1642 = vunpack.c.h.b16 %v1179
        %v1643 = vunpack.c.l.b16 %v1180
        %v1644 = vunpack.c.h.b16 %v1180
        %v1645 = vunpack.c.l.b16 %v1181
        %v1646 = vunpack.c.h.b16 %v1181
        %v1647 = vunpack.c.l.b16 %v1182
        %v1648 = vunpack.c.h.b16 %v1182
        %v1649 = vunpack.c.l.b16 %v1183
        %v1650 = vunpack.c.h.b16 %v1183
        %v1651 = vunpack.c.l.b16 %v1184
        %v1652 = vunpack.c.h.b16 %v1184
        %v1653 = vunpack.c.l.b16 %v1185
        %v1654 = vunpack.c.h.b16 %v1185
        %v1655 = vunpack.c.l.b16 %v1186
        %v1656 = vunpack.c.h.b16 %v1186
        %v1657 = vunpack.c.l.b16 %v1187
        %v1658 = vunpack.c.h.b16 %v1187
        %v1659 = vunpack.c.l.b16 %v1188
        %v1660 = vunpack.c.h.b16 %v1188
        %v1661 = vunpack.c.l.b16 %v1189
        %v1662 = vunpack.c.h.b16 %v1189
        %v1663 = vunpack.c.l.b16 %v1190
        %v1664 = vunpack.c.h.b16 %v1190
        %v1665 = vunpack.c.l.b16 %v1191
        %v1666 = vunpack.c.h.b16 %v1191
        %v1667 = vunpack.c.l.b16 %v1192
        %v1668 = vunpack.c.h.b16 %v1192
        %v1669 = vunpack.c.l.b16 %v1193
        %v1670 = vunpack.c.h.b16 %v1193
        %v1671 = vunpack.c.l.b16 %v1194
        %v1672 = vunpack.c.h.b16 %v1194
        %v1673 = vunpack.c.l.b16 %v1195
        %v1674 = vunpack.c.h.b16 %v1195
        %v1675 = vunpack.c.l.b16 %v1196
        %v1676 = vunpack.c.h.b16 %v1196
        %v1677 = vunpack.c.l.b16 %v1197
        %v1678 = vunpack.c.h.b16 %v1197
        %v1679 = vunpack.c.l.b16 %v1198
        %v1680 = vunpack.c.h.b16 %v1198
        %v1681 = vunpack.c.l.b16 %v1199
        %v1682 = vunpack.c.h.b16 %v1199
        %v1683 = vunpack.c.l.b16 %v1200
        %v1684 = vunpack.c.h.b16 %v1200
        %v1685 = vunpack.c.l.b16 %v1201
        %v1686 = vunpack.c.h.b16 %v1201
        %v1687 = vunpack.c.l.b16 %v1202
        %v1688 = vunpack.c.h.b16 %v1202
        %v1689 = vunpack.c.l.b16 %v1203
        %v1690 = vunpack.c.h.b16 %v1203
        %v1691 = vunpack.c.l.b16 %v1204
        %v1692 = vunpack.c.h.b16 %v1204
        %v1693 = vunpack.c.l.b16 %v1205
        %v1694 = vunpack.c.h.b16 %v1205
        %v1695 = vunpack.c.l.b16 %v1206
        %v1696 = vunpack.c.h.b16 %v1206
        %v1697 = vunpack.c.l.b16 %v1207
        %v1698 = vunpack.c.h.b16 %v1207
        %v1699 = vunpack.c.l.b16 %v1208
        %v1700 = vunpack.c.h.b16 %v1208
        %v1701 = vunpack.c.l.b16 %v1209
        %v1702 = vunpack.c.h.b16 %v1209
        %v1703 = vunpack.c.l.b16 %v1210
        %v1704 = vunpack.c.h.b16 %v1210
        %v1705 = vunpack.c.l.b16 %v1211
        %v1706 = vunpack.c.h.b16 %v1211
        %v1707 = vunpack.c.l.b16 %v1212
        %v1708 = vunpack.c.h.b16 %v1212
        %v1709 = vunpack.c.l.b16 %v1213
        %v1710 = vunpack.c.h.b16 %v1213
        %v1711 = vunpack.c.l.b16 %v1214
        %v1712 = vunpack.c.h.b16 %v1214
        %v1713 = vunpack.c.l.b16 %v1215
        %v1714 = vunpack.c.h.b16 %v1215
        %v1715 = vunpack.c.l.b16 %v1216
        %v1716 = vunpack.c.h.b16 %v1216
        %v1717 = vunpack.c.l.b16 %v1217
        %v1718 = vunpack.c.h.b16 %v1217
        %v1719 = vunpack.c.l.b16 %v1218
        %v1720 = vunpack.c.h.b16 %v1218
        %v1721 = vunpack.c.l.b16 %v1219
        %v1722 = vunpack.c.h.b16 %v1219
        %v1723 = vunpack.c.l.b16 %v1220
        %v1724 = vunpack.c.h.b16 %v1220
        %v1725 = vunpack.c.l.b16 %v1221
        %v1726 = vunpack.c.h.b16 %v1221
        %v1727 = vunpack.c.l.b16 %v1222
        %v1728 = vunpack.c.h.b16 %v1222
        %v1729 = vunpack.c.l.b16 %v1223
        %v1730 = vunpack.c.h.b16 %v1223
        %v1731 = vunpack.c.l.b16 %v1224
        %v1732 = vunpack.c.h.b16 %v1224
        %v1733 = vunpack.c.l.b16 %v1225
        %v1734 = vunpack.c.h.b16 %v1225
        %v1735 = vunpack.c.l.b16 %v1226
        %v1736 = vunpack.c.h.b16 %v1226
        %v1737 = vunpack.c.l.b16 %v1227
        %v1738 = vunpack.c.h.b16 %v1227
        %v1739 = vunpack.c.l.b16 %v1228
        %v1740 = vunpack.c.h.b16 %v1228
        %v1741 = vunpack.c.l.b16 %v1229
        %v1742 = vunpack.c.h.b16 %v1229
        %v1743 = vunpack.c.l.b16 %v1230
        %v1744 = vunpack.c.h.b16 %v1230
        %v1745 = vunpack.c.l.b16 %v1231
        %v1746 = vunpack.c.h.b16 %v1231
        %v1747 = vunpack.c.l.b16 %v1232
        %v1748 = vunpack.c.h.b16 %v1232
        %v1749 = vunpack.c.l.b16 %v1233
        %v1750 = vunpack.c.h.b16 %v1233
        %v1751 = vunpack.c.l.b16 %v1234
        %v1752 = vunpack.c.h.b16 %v1234
        %v1753 = vunpack.c.l.b16 %v1235
        %v1754 = vunpack.c.h.b16 %v1235
        %v1755 = vunpack.c.l.b16 %v1236
        %v1756 = vunpack.c.h.b16 %v1236
        %v1757 = vunpack.c.l.b16 %v1237
        %v1758 = vunpack.c.h.b16 %v1237
        %v1759 = vunpack.c.l.b16 %v1238
        %v1760 = vunpack.c.h.b16 %v1238
        %v1761 = vunpack.c.l.b16 %v1239
        %v1762 = vunpack.c.h.b16 %v1239
        %v1763 = vunpack.c.l.b16 %v1240
        %v1764 = vunpack.c.h.b16 %v1240
        %v1765 = vunpack.c.l.b16 %v1241
        %v1766 = vunpack.c.h.b16 %v1241
        %v1767 = vunpack.c.l.b16 %v1242
        %v1768 = vunpack.c.h.b16 %v1242
        %v1769 = vunpack.c.l.b16 %v1243
        %v1770 = vunpack.c.h.b16 %v1243
        %v1771 = vunpack.c.l.b16 %v1244
        %v1772 = vunpack.c.h.b16 %v1244
        %v1773 = vunpack.c.l.b16 %v1245
        %v1774 = vunpack.c.h.b16 %v1245
        %v1775 = vunpack.c.l.b16 %v1246
        %v1776 = vunpack.c.h.b16 %v1246
        %v1777 = vunpack.c.l.b16 %v1247
        %v1778 = vunpack.c.h.b16 %v1247
        %v1779 = vunpack.c.l.b16 %v1248
        %v1780 = vunpack.c.h.b16 %v1248
        %v1781 = vunpack.c.l.b16 %v1249
        %v1782 = vunpack.c.h.b16 %v1249
        %v1783 = vunpack.c.l.b16 %v1250
        %v1784 = vunpack.c.h.b16 %v1250
        %v1785 = vunpack.c.l.b16 %v1251
        %v1786 = vunpack.c.h.b16 %v1251
        %v1787 = vunpack.c.l.b16 %v1252
        %v1788 = vunpack.c.h.b16 %v1252
        %v1789 = vunpack.c.l.b16 %v1253
        %v1790 = vunpack.c.h.b16 %v1253
        %v1791 = vunpack.c.l.b16 %v1254
        %v1792 = vunpack.c.h.b16 %v1254
        %v1793 = vunpack.c.l.b16 %v1255
        %v1794 = vunpack.c.h.b16 %v1255
        %v1795 = vunpack.c.l.b16 %v1256
        %v1796 = vunpack.c.h.b16 %v1256
        %v1797 = vunpack.c.l.b16 %v1257
        %v1798 = vunpack.c.h.b16 %v1257
        %v1799 = vunpack.c.l.b16 %v1258
        %v1800 = vunpack.c.h.b16 %v1258
        %v1801 = vunpack.c.l.b16 %v1259
        %v1802 = vunpack.c.h.b16 %v1259
        %v1803 = vunpack.c.l.b16 %v1260
        %v1804 = vunpack.c.h.b16 %v1260
        %v1805 = vunpack.c.l.b16 %v1261
        %v1806 = vunpack.c.h.b16 %v1261
        %v1807 = vunpack.c.l.b16 %v1262
        %v1808 = vunpack.c.h.b16 %v1262
        %v1809 = vunpack.c.l.b16 %v1263
        %v1810 = vunpack.c.h.b16 %v1263
        %v1811 = vunpack.c.l.b16 %v1264
        %v1812 = vunpack.c.h.b16 %v1264
        %v1813 = vunpack.c.l.b16 %v1265
        %v1814 = vunpack.c.h.b16 %v1265
        %v1815 = vunpack.c.l.b16 %v1266
        %v1816 = vunpack.c.h.b16 %v1266
        %v1817 = vunpack.c.l.b16 %v1267
        %v1818 = vunpack.c.h.b16 %v1267
        %v1819 = vunpack.c.l.b16 %v1268
        %v1820 = vunpack.c.h.b16 %v1268
        %v1821 = vunpack.c.l.b16 %v1269
        %v1822 = vunpack.c.h.b16 %v1269
        %v1823 = vunpack.c.l.b16 %v1270
        %v1824 = vunpack.c.h.b16 %v1270
        %v1825 = vunpack.c.l.b16 %v1271
        %v1826 = vunpack.c.h.b16 %v1271
        %v1827 = vunpack.c.l.b16 %v1272
        %v1828 = vunpack.c.h.b16 %v1272
        %v1829 = vunpack.c.l.b16 %v1273
        %v1830 = vunpack.c.h.b16 %v1273
        %v1831 = vunpack.c.l.b16 %v1274
        %v1832 = vunpack.c.h.b16 %v1274
        %v1833 = vunpack.c.l.b16 %v1275
        %v1834 = vunpack.c.h.b16 %v1275
        %v1835 = vunpack.c.l.b16 %v1276
        %v1836 = vunpack.c.h.b16 %v1276
        %v1837 = vunpack.c.l.b16 %v1277
        %v1838 = vunpack.c.h.b16 %v1277
        %v1839 = vunpack.c.l.b16 %v1278
        %v1840 = vunpack.c.h.b16 %v1278
        %v1841 = vunpack.c.l.b16 %v1279
        %v1842 = vunpack.c.h.b16 %v1279
        %v1843 = vunpack.c.l.b16 %v1280
        %v1844 = vunpack.c.h.b16 %v1280
        %v1845 = vunpack.c.l.b16 %v1281
        %v1846 = vunpack.c.h.b16 %v1281
        %v1847 = vunpack.c.l.b16 %v1282
        %v1848 = vunpack.c.h.b16 %v1282
        %v1849 = vunpack.c.l.b16 %v1283
        %v1850 = vunpack.c.h.b16 %v1283
        %v1851 = vunpack.c.l.b16 %v1284
        %v1852 = vunpack.c.h.b16 %v1284
        %v1853 = vunpack.c.l.b16 %v1285
        %v1854 = vunpack.c.h.b16 %v1285
        %v1855 = vunpack.c.l.b16 %v1286
        %v1856 = vunpack.c.h.b16 %v1286
        %v1857 = vunpack.c.l.b16 %v1287
        %v1858 = vunpack.c.h.b16 %v1287
        %v1859 = vunpack.c.l.b16 %v1288
        %v1860 = vunpack.c.h.b16 %v1288
        %v1861 = vunpack.c.l.b16 %v1289
        %v1862 = vunpack.c.h.b16 %v1289
        %v1863 = vunpack.c.l.b16 %v1290
        %v1864 = vunpack.c.h.b16 %v1290
        %v1865 = vunpack.c.l.b16 %v1291
        %v1866 = vunpack.c.h.b16 %v1291
        %v1867 = vunpack.c.l.b16 %v1292
        %v1868 = vunpack.c.h.b16 %v1292
        %v1869 = vpack.c.b16 %v1487, %v1485
        %v1870 = vpack.c.b16 %v1488, %v1486
        %v1871 = vpack.c.b16 %v1491, %v1489
        %v1872 = vpack.c.b16 %v1492, %v1490
        %v1873 = vpack.c.b16 %v1495, %v1493
        %v1874 = vpack.c.b16 %v1496, %v1494
        %v1875 = vpack.c.b16 %v1499, %v1497
        %v1876 = vpack.c.b16 %v1500, %v1498
        %v1877 = vpack.c.b16 %v1503, %v1501
        %v1878 = vpack.c.b16 %v1504, %v1502
        %v1879 = vpack.c.b16 %v1507, %v1505
        %v1880 = vpack.c.b16 %v1508, %v1506
        %v1881 = vpack.c.b16 %v1511, %v1509
        %v1882 = vpack.c.b16 %v1512, %v1510
        %v1883 = vpack.c.b16 %v1515, %v1513
        %v1884 = vpack.c.b16 %v1516, %v1514
        %v1885 = vpack.c.b16 %v1519, %v1517
        %v1886 = vpack.c.b16 %v1520, %v1518
        %v1887 = vpack.c.b16 %v1523, %v1521
        %v1888 = vpack.c.b16 %v1524, %v1522
        %v1889 = vpack.c.b16 %v1527, %v1525
        %v1890 = vpack.c.b16 %v1528, %v1526
        %v1891 = vpack.c.b16 %v1531, %v1529
        %v1892 = vpack.c.b16 %v1532, %v1530
        %v1893 = vpack.c.b16 %v1535, %v1533
        %v1894 = vpack.c.b16 %v1536, %v1534
        %v1895 = vpack.c.b16 %v1539, %v1537
        %v1896 = vpack.c.b16 %v1540, %v1538
        %v1897 = vpack.c.b16 %v1543, %v1541
        %v1898 = vpack.c.b16 %v1544, %v1542
        %v1899 = vpack.c.b16 %v1547, %v1545
        %v1900 = vpack.c.b16 %v1548, %v1546
        %v1901 = vpack.c.b16 %v1551, %v1549
        %v1902 = vpack.c.b16 %v1552, %v1550
        %v1903 = vpack.c.b16 %v1555, %v1553
        %v1904 = vpack.c.b16 %v1556, %v1554
        %v1905 = vpack.c.b16 %v1559, %v1557
        %v1906 = vpack.c.b16 %v1560, %v1558
        %v1907 = vpack.c.b16 %v1563, %v1561
        %v1908 = vpack.c.b16 %v1564, %v1562
        %v1909 = vpack.c.b16 %v1567, %v1565
        %v1910 = vpack.c.b16 %v1568, %v1566
        %v1911 = vpack.c.b16 %v1571, %v1569
        %v1912 = vpack.c.b16 %v1572, %v1570
        %v1913 = vpack.c.b16 %v1575, %v1573
        %v1914 = vpack.c.b16 %v1576, %v1574
        %v1915 = vpack.c.b16 %v1579, %v1577
        %v1916 = vpack.c.b16 %v1580, %v1578
        %v1917 = vpack.c.b16 %v1583, %v1581
        %v1918 = vpack.c.b16 %v1584, %v1582
        %v1919 = vpack.c.b16 %v1587, %v1585
        %v1920 = vpack.c.b16 %v1588, %v1586
        %v1921 = vpack.c.b16 %v1591, %v1589
        %v1922 = vpack.c.b16 %v1592, %v1590
        %v1923 = vpack.c.b16 %v1595, %v1593
        %v1924 = vpack.c.b16 %v1596, %v1594
        %v1925 = vpack.c.b16 %v1599, %v1597
        %v1926 = vpack.c.b16 %v1600, %v1598
        %v1927 = vpack.c.b16 %v1603, %v1601
        %v1928 = vpack.c.b16 %v1604, %v1602
        %v1929 = vpack.c.b16 %v1607, %v1605
        %v1930 = vpack.c.b16 %v1608, %v1606
        %v1931 = vpack.c.b16 %v1611, %v1609
        %v1932 = vpack.c.b16 %v1612, %v1610
        %v1933 = vpack.c.b16 %v1615, %v1613
        %v1934 = vpack.c.b16 %v1616, %v1614
        %v1935 = vpack.c.b16 %v1619, %v1617
        %v1936 = vpack.c.b16 %v1620, %v1618
        %v1937 = vpack.c.b16 %v1623, %v1621
        %v1938 = vpack.c.b16 %v1624, %v1622
        %v1939 = vpack.c.b16 %v1627, %v1625
        %v1940 = vpack.c.b16 %v1628, %v1626
        %v1941 = vpack.c.b16 %v1631, %v1629
        %v1942 = vpack.c.b16 %v1632, %v1630
        %v1943 = vpack.c.b16 %v1635, %v1633
        %v1944 = vpack.c.b16 %v1636, %v1634
        %v1945 = vpack.c.b16 %v1639, %v1637
        %v1946 = vpack.c.b16 %v1640, %v1638
        %v1947 = vpack.c.b16 %v1643, %v1641
        %v1948 = vpack.c.b16 %v1644, %v1642
        %v1949 = vpack.c.b16 %v1647, %v1645
        %v1950 = vpack.c.b16 %v1648, %v1646
        %v1951 = vpack.c.b16 %v1651, %v1649
        %v1952 = vpack.c.b16 %v1652, %v1650
        %v1953 = vpack.c.b16 %v1655, %v1653
        %v1954 = vpack.c.b16 %v1656, %v1654
        %v1955 = vpack.c.b16 %v1659, %v1657
        %v1956 = vpack.c.b16 %v1660, %v1658
        %v1957 = vpack.c.b16 %v1663, %v1661
        %v1958 = vpack.c.b16 %v1664, %v1662
        %v1959 = vpack.c.b16 %v1667, %v1665
        %v1960 = vpack.c.b16 %v1668, %v1666
        %v1961 = vpack.c.b16 %v1671, %v1669
        %v1962 = vpack.c.b16 %v1672, %v1670
        %v1963 = vpack.c.b16 %v1675, %v1673
        %v1964 = vpack.c.b16 %v1676, %v1674
        %v1965 = vpack.c.b16 %v1679, %v1677
        %v1966 = vpack.c.b16 %v1680, %v1678
        %v1967 = vpack.c.b16 %v1683, %v1681
        %v1968 = vpack.c.b16 %v1684, %v1682
        %v1969 = vpack.c.b16 %v1687, %v1685
        %v1970 = vpack.c.b16 %v1688, %v1686
        %v1971 = vpack.c.b16 %v1691, %v1689
        %v1972 = vpack.c.b16 %v1692, %v1690
        %v1973 = vpack.c.b16 %v1695, %v1693
        %v1974 = vpack.c.b16 %v1696, %v1694
        %v1975 = vpack.c.b16 %v1699, %v1697
        %v1976 = vpack.c.b16 %v1700, %v1698
        %v1977 = vpack.c.b16 %v1703, %v1701
        %v1978 = vpack.c.b16 %v1704, %v1702
        %v1979 = vpack.c.b16 %v1707, %v1705
        %v1980 = vpack.c.b16 %v1708, %v1706
        %v1981 = vpack.c.b16 %v1711, %v1709
        %v1982 = vpack.c.b16 %v1712, %v1710
        %v1983 = vpack.c.b16 %v1715, %v1713
        %v1984 = vpack.c.b16 %v1716, %v1714
        %v1985 = vpack.c.b16 %v1719, %v1717
        %v1986 = vpack.c.b16 %v1720, %v1718
        %v1987 = vpack.c.b16 %v1723, %v1721
        %v1988 = vpack.c.b16 %v1724, %v1722
        %v1989 = vpack.c.b16 %v1727, %v1725
        %v1990 = vpack.c.b16 %v1728, %v1726
        %v1991 = vpack.c.b16 %v1731, %v1729
        %v1992 = vpack.c.b16 %v1732, %v1730
        %v1993 = vpack.c.b16 %v1735, %v1733
        %v1994 = vpack.c.b16 %v1736, %v1734
        %v1995 = vpack.c.b16 %v1739, %v1737
        %v1996 = vpack.c.b16 %v1740, %v1738
        %v1997 = vpack.c.b16 %v1743, %v1741
        %v1998 = vpack.c.b16 %v1744, %v1742
        %v1999 = vpack.c.b16 %v1747, %v1745
        %v2000 = vpack.c.b16 %v1748, %v1746
        %v2001 = vpack.c.b16 %v1751, %v1749
        %v2002 = vpack.c.b16 %v1752, %v1750
        %v2003 = vpack.c.b16 %v1755, %v1753
        %v2004 = vpack.c.b16 %v1756, %v1754
        %v2005 = vpack.c.b16 %v1759, %v1757
        %v2006 = vpack.c.b16 %v1760, %v1758
        %v2007 = vpack.c.b16 %v1763, %v1761
        %v2008 = vpack.c.b16 %v1764, %v1762
        %v2009 = vpack.c.b16 %v1767, %v1765
        %v2010 = vpack.c.b16 %v1768, %v1766
        %v2011 = vpack.c.b16 %v1771, %v1769
        %v2012 = vpack.c.b16 %v1772, %v1770
        %v2013 = vpack.c.b16 %v1775, %v1773
        %v2014 = vpack.c.b16 %v1776, %v1774
        %v2015 = vpack.c.b16 %v1779, %v1777
        %v2016 = vpack.c.b16 %v1780, %v1778
        %v2017 = vpack.c.b16 %v1783, %v1781
        %v2018 = vpack.c.b16 %v1784, %v1782
        %v2019 = vpack.c.b16 %v1787, %v1785
        %v2020 = vpack.c.b16 %v1788, %v1786
        %v2021 = vpack.c.b16 %v1791, %v1789
        %v2022 = vpack.c.b16 %v1792, %v1790
        %v2023 = vpack.c.b16 %v1795, %v1793
        %v2024 = vpack.c.b16 %v1796, %v1794
        %v2025 = vpack.c.b16 %v1799, %v1797
        %v2026 = vpack.c.b16 %v1800, %v1798
        %v2027 = vpack.c.b16 %v1803, %v1801
        %v2028 = vpack.c.b16 %v1804, %v1802
        %v2029 = vpack.c.b16 %v1807, %v1805
        %v2030 = vpack.c.b16 %v1808, %v1806
        %v2031 = vpack.c.b16 %v1811, %v1809
        %v2032 = vpack.c.b16 %v1812, %v1810
        %v2033 = vpack.c.b16 %v1815, %v1813
        %v2034 = vpack.c.b16 %v1816, %v1814
        %v2035 = vpack.c.b16 %v1819, %v1817
        %v2036 = vpack.c.b16 %v1820, %v1818
        %v2037 = vpack.c.b16 %v1823, %v1821
        %v2038 = vpack.c.b16 %v1824, %v1822
        %v2039 = vpack.c.b16 %v1827, %v1825
        %v2040 = vpack.c.b16 %v1828, %v1826
        %v2041 = vpack.c.b16 %v1831, %v1829
        %v2042 = vpack.c.b16 %v1832, %v1830
        %v2043 = vpack.c.b16 %v1835, %v1833
        %v2044 = vpack.c.b16 %v1836, %v1834
        %v2045 = vpack.c.b16 %v1839, %v1837
        %v2046 = vpack.c.b16 %v1840, %v1838
        %v2047 = vpack.c.b16 %v1843, %v1841
        %v2048 = vpack.c.b16 %v1844, %v1842
        %v2049 = vpack.c.b16 %v1847, %v1845
        %v2050 = vpack.c.b16 %v1848, %v1846
        %v2051 = vpack.c.b16 %v1851, %v1849
        %v2052 = vpack.c.b16 %v1852, %v1850
        %v2053 = vpack.c.b16 %v1855, %v1853
        %v2054 = vpack.c.b16 %v1856, %v1854
        %v2055 = vpack.c.b16 %v1859, %v1857
        %v2056 = vpack.c.b16 %v1860, %v1858
        %v2057 = vpack.c.b16 %v1863, %v1861
        %v2058 = vpack.c.b16 %v1864, %v1862
        %v2059 = vpack.c.b16 %v1867, %v1865
        %v2060 = vpack.c.b16 %v1868, %v1866
        %2253 = vmatprep.subr.bf16.mxu0 %v1870
        %2254 = vmatpush1.bf16.msra.mxu0 %v1869
        %2255 = vmatprep.subr.bf16.mxu0 %v1872
        %2256 = vmatpush1.bf16.msra.mxu0 %v1871
        %2257 = vmatprep.subr.bf16.mxu0 %v1874
        %2258 = vmatpush1.bf16.msra.mxu0 %v1873
        %2259 = vmatprep.subr.bf16.mxu0 %v1876
        %2260 = vmatpush1.bf16.msra.mxu0 %v1875
        %2261 = vmatprep.subr.bf16.mxu0 %v1878
        %2262 = vmatpush1.bf16.msra.mxu0 %v1877
        %2263 = vmatprep.subr.bf16.mxu0 %v1880
        %2264 = vmatpush1.bf16.msra.mxu0 %v1879
        %2265 = vmatprep.subr.bf16.mxu0 %v1882
        %2266 = vmatpush1.bf16.msra.mxu0 %v1881
        %2267 = vmatprep.subr.bf16.mxu0 %v1884
        %2268 = vmatpush1.bf16.msra.mxu0 %v1883
        %2269 = vmatprep.subr.bf16.mxu0 %v1886
        %2270 = vmatpush1.bf16.msra.mxu0 %v1885
        %2271 = vmatprep.subr.bf16.mxu0 %v1888
        %2272 = vmatpush1.bf16.msra.mxu0 %v1887
        %2273 = vmatprep.subr.bf16.mxu0 %v1890
        %2274 = vmatpush1.bf16.msra.mxu0 %v1889
        %2275 = vmatprep.subr.bf16.mxu0 %v1892
        %2276 = vmatpush1.bf16.msra.mxu0 %v1891
        %2277 = vmatprep.subr.bf16.mxu0 %v1894
        %2278 = vmatpush1.bf16.msra.mxu0 %v1893
        %2279 = vmatprep.subr.bf16.mxu0 %v1896
        %2280 = vmatpush1.bf16.msra.mxu0 %v1895
        %2281 = vmatprep.subr.bf16.mxu0 %v1898
        %2282 = vmatpush1.bf16.msra.mxu0 %v1897
        %2283 = vmatprep.subr.bf16.mxu0 %v1900
        %2284 = vmatpush1.bf16.msra.mxu0 %v1899
        %2285 = vmatprep.mubr.bf16.mxu0 %v813
        %2286 = vmatmul.mubr.bf16.gmra.mrb[0].mxu0 %v812
        %v2287 = vpop.f32.mrb[0].mxu0
        %v2288 = vadd.f32 0.0, %v2287
        %v2289 = vpop.f32.mrb[0].mxu0
        %v2290 = vadd.f32 0.0, %v2289
        %v2291 = vpop.f32.mrb[0].mxu0
        %v2292 = vadd.f32 0.0, %v2291
        %v2293 = vpop.f32.mrb[0].mxu0
        %v2294 = vadd.f32 0.0, %v2293
        %2295 = vmatprep.mubr.bf16.mxu0 %v825
        %2296 = vmatmul.mubr.bf16.gmra.mrb[0].mxu0 %v824
        %v2297 = vpop.f32.mrb[0].mxu0
        %v2298 = vadd.f32 0.0, %v2297
        %v2299 = vpop.f32.mrb[0].mxu0
        %v2300 = vadd.f32 0.0, %v2299
        %v2301 = vpop.f32.mrb[0].mxu0
        %v2302 = vadd.f32 0.0, %v2301
        %v2303 = vpop.f32.mrb[0].mxu0
        %v2304 = vadd.f32 0.0, %v2303
        %2305 = vmatprep.mubr.bf16.mxu0 %v837
        %2306 = vmatmul.mubr.bf16.gmra.mrb[0].mxu0 %v836
        %v2307 = vpop.f32.mrb[0].mxu0
        %v2308 = vadd.f32 0.0, %v2307
        %v2309 = vpop.f32.mrb[0].mxu0
        %v2310 = vadd.f32 0.0, %v2309
        %v2311 = vpop.f32.mrb[0].mxu0
        %v2312 = vadd.f32 0.0, %v2311
        %v2313 = vpop.f32.mrb[0].mxu0
        %v2314 = vadd.f32 0.0, %v2313
        %2315 = vmatprep.mubr.bf16.mxu0 %v849
        %2316 = vmatmul.mubr.bf16.gmra.mrb[0].mxu0 %v848
        %v2317 = vpop.f32.mrb[0].mxu0
        %v2318 = vadd.f32 0.0, %v2317
        %v2319 = vpop.f32.mrb[0].mxu0
        %v2320 = vadd.f32 0.0, %v2319
        %v2321 = vpop.f32.mrb[0].mxu0
        %v2322 = vadd.f32 0.0, %v2321
        %v2323 = vpop.f32.mrb[0].mxu0
        %v2324 = vadd.f32 0.0, %v2323
        %2325 = vmatprep.mubr.bf16.mxu0 %v861
        %2326 = vmatmul.mubr.bf16.gmra.mrb[0].mxu0 %v860
        %v2327 = vpop.f32.mrb[0].mxu0
        %v2328 = vadd.f32 0.0, %v2327
        %v2329 = vpop.f32.mrb[0].mxu0
        %v2330 = vadd.f32 0.0, %v2329
        %v2331 = vpop.f32.mrb[0].mxu0
        %v2332 = vadd.f32 0.0, %v2331
        %v2333 = vpop.f32.mrb[0].mxu0
        %v2334 = vadd.f32 0.0, %v2333
        %2335 = vmatprep.mubr.bf16.mxu0 %v873
        %2336 = vmatmul.mubr.bf16.gmra.mrb[0].mxu0 %v872
        %v2337 = vpop.f32.mrb[0].mxu0
        %v2338 = vadd.f32 0.0, %v2337
        %v2339 = vpop.f32.mrb[0].mxu0
        %v2340 = vadd.f32 0.0, %v2339
        %v2341 = vpop.f32.mrb[0].mxu0
        %v2342 = vadd.f32 0.0, %v2341
        %v2343 = vpop.f32.mrb[0].mxu0
        %v2344 = vadd.f32 0.0, %v2343
        %2345 = vmatprep.mubr.bf16.mxu0 %v885
        %2346 = vmatmul.mubr.bf16.gmra.mrb[0].mxu0 %v884
        %v2347 = vpop.f32.mrb[0].mxu0
        %v2348 = vadd.f32 0.0, %v2347
        %v2349 = vpop.f32.mrb[0].mxu0
        %v2350 = vadd.f32 0.0, %v2349
        %v2351 = vpop.f32.mrb[0].mxu0
        %v2352 = vadd.f32 0.0, %v2351
        %v2353 = vpop.f32.mrb[0].mxu0
        %v2354 = vadd.f32 0.0, %v2353
        %2355 = vmatprep.mubr.bf16.mxu0 %v1089
        %2356 = vmatmul.mubr.bf16.gmra.mrb[0].mxu0 %v1088
        %v2357 = vpop.f32.mrb[0].mxu0
        %v2358 = vadd.f32 0.0, %v2357
        %v2359 = vpop.f32.mrb[0].mxu0
        %v2360 = vadd.f32 0.0, %v2359
        %v2361 = vpop.f32.mrb[0].mxu0
        %v2362 = vadd.f32 0.0, %v2361
        %v2363 = vpop.f32.mrb[0].mxu0
        %v2364 = vadd.f32 0.0, %v2363
        %2365 = vdwg.mxu0
        %2366 = vmatprep.subr.bf16.mxu0 %v1902
        %2367 = vmatpush1.bf16.msra.mxu0 %v1901
        %2368 = vmatprep.subr.bf16.mxu0 %v1904
        %2369 = vmatpush1.bf16.msra.mxu0 %v1903
        %2370 = vmatprep.subr.bf16.mxu0 %v1906
        %2371 = vmatpush1.bf16.msra.mxu0 %v1905
        %2372 = vmatprep.subr.bf16.mxu0 %v1908
        %2373 = vmatpush1.bf16.msra.mxu0 %v1907
        %2374 = vmatprep.subr.bf16.mxu0 %v1910
        %2375 = vmatpush1.bf16.msra.mxu0 %v1909
        %2376 = vmatprep.subr.bf16.mxu0 %v1912
        %2377 = vmatpush1.bf16.msra.mxu0 %v1911
        %2378 = vmatprep.subr.bf16.mxu0 %v1914
        %2379 = vmatpush1.bf16.msra.mxu0 %v1913
        %2380 = vmatprep.subr.bf16.mxu0 %v1916
        %2381 = vmatpush1.bf16.msra.mxu0 %v1915
        %2382 = vmatprep.subr.bf16.mxu0 %v1918
        %2383 = vmatpush1.bf16.msra.mxu0 %v1917
        %2384 = vmatprep.subr.bf16.mxu0 %v1920
        %2385 = vmatpush1.bf16.msra.mxu0 %v1919
        %2386 = vmatprep.subr.bf16.mxu0 %v1922
        %2387 = vmatpush1.bf16.msra.mxu0 %v1921
        %2388 = vmatprep.subr.bf16.mxu0 %v1924
        %2389 = vmatpush1.bf16.msra.mxu0 %v1923
        %2390 = vmatprep.subr.bf16.mxu0 %v1926
        %2391 = vmatpush1.bf16.msra.mxu0 %v1925
        %2392 = vmatprep.subr.bf16.mxu0 %v1928
        %2393 = vmatpush1.bf16.msra.mxu0 %v1927
        %2394 = vmatprep.subr.bf16.mxu0 %v1930
        %2395 = vmatpush1.bf16.msra.mxu0 %v1929
        %2396 = vmatprep.subr.bf16.mxu0 %v1932
        %2397 = vmatpush1.bf16.msra.mxu0 %v1931
        %2398 = vmatprep.mubr.bf16.mxu0 %v815
        %2399 = vmatmul.mubr.bf16.gmra.mrb[0].mxu0 %v814
        %v2400 = vpop.f32.mrb[0].mxu0
        %v2401 = vadd.f32 %v2288, %v2400
        %v2402 = vpop.f32.mrb[0].mxu0
        %v2403 = vadd.f32 %v2290, %v2402
        %v2404 = vpop.f32.mrb[0].mxu0
        %v2405 = vadd.f32 %v2292, %v2404
        %v2406 = vpop.f32.mrb[0].mxu0
        %v2407 = vadd.f32 %v2294, %v2406
        %2408 = vmatprep.mubr.bf16.mxu0 %v827
        %2409 = vmatmul.mubr.bf16.gmra.mrb[0].mxu0 %v826
        %v2410 = vpop.f32.mrb[0].mxu0
        %v2411 = vadd.f32 %v2298, %v2410
        %v2412 = vpop.f32.mrb[0].mxu0
        %v2413 = vadd.f32 %v2300, %v2412
        %v2414 = vpop.f32.mrb[0].mxu0
        %v2415 = vadd.f32 %v2302, %v2414
        %v2416 = vpop.f32.mrb[0].mxu0
        %v2417 = vadd.f32 %v2304, %v2416
        %2418 = vmatprep.mubr.bf16.mxu0 %v839
        %2419 = vmatmul.mubr.bf16.gmra.mrb[0].mxu0 %v838
        %v2420 = vpop.f32.mrb[0].mxu0
        %v2421 = vadd.f32 %v2308, %v2420
        %v2422 = vpop.f32.mrb[0].mxu0
        %v2423 = vadd.f32 %v2310, %v2422
        %v2424 = vpop.f32.mrb[0].mxu0
        %v2425 = vadd.f32 %v2312, %v2424
        %v2426 = vpop.f32.mrb[0].mxu0
        %v2427 = vadd.f32 %v2314, %v2426
        %2428 = vmatprep.mubr.bf16.mxu0 %v851
        %2429 = vmatmul.mubr.bf16.gmra.mrb[0].mxu0 %v850
        %v2430 = vpop.f32.mrb[0].mxu0
        %v2431 = vadd.f32 %v2318, %v2430
        %v2432 = vpop.f32.mrb[0].mxu0
        %v2433 = vadd.f32 %v2320, %v2432
        %v2434 = vpop.f32.mrb[0].mxu0
        %v2435 = vadd.f32 %v2322, %v2434
        %v2436 = vpop.f32.mrb[0].mxu0
        %v2437 = vadd.f32 %v2324, %v2436
        %2438 = vmatprep.mubr.bf16.mxu0 %v863
        %2439 = vmatmul.mubr.bf16.gmra.mrb[0].mxu0 %v862
        %v2440 = vpop.f32.mrb[0].mxu0
        %v2441 = vadd.f32 %v2328, %v2440
        %v2442 = vpop.f32.mrb[0].mxu0
        %v2443 = vadd.f32 %v2330, %v2442
        %v2444 = vpop.f32.mrb[0].mxu0
        %v2445 = vadd.f32 %v2332, %v2444
        %v2446 = vpop.f32.mrb[0].mxu0
        %v2447 = vadd.f32 %v2334, %v2446
        %2448 = vmatprep.mubr.bf16.mxu0 %v875
        %2449 = vmatmul.mubr.bf16.gmra.mrb[0].mxu0 %v874
        %v2450 = vpop.f32.mrb[0].mxu0
        %v2451 = vadd.f32 %v2338, %v2450
        %v2452 = vpop.f32.mrb[0].mxu0
        %v2453 = vadd.f32 %v2340, %v2452
        %v2454 = vpop.f32.mrb[0].mxu0
        %v2455 = vadd.f32 %v2342, %v2454
        %v2456 = vpop.f32.mrb[0].mxu0
        %v2457 = vadd.f32 %v2344, %v2456
        %2458 = vmatprep.mubr.bf16.mxu0 %v887
        %2459 = vmatmul.mubr.bf16.gmra.mrb[0].mxu0 %v886
        %v2460 = vpop.f32.mrb[0].mxu0
        %v2461 = vadd.f32 %v2348, %v2460
        %v2462 = vpop.f32.mrb[0].mxu0
        %v2463 = vadd.f32 %v2350, %v2462
        %v2464 = vpop.f32.mrb[0].mxu0
        %v2465 = vadd.f32 %v2352, %v2464
        %v2466 = vpop.f32.mrb[0].mxu0
        %v2467 = vadd.f32 %v2354, %v2466
        %2468 = vmatprep.mubr.bf16.mxu0 %v1091
        %2469 = vmatmul.mubr.bf16.gmra.mrb[0].mxu0 %v1090
        %v2470 = vpop.f32.mrb[0].mxu0
        %v2471 = vadd.f32 %v2358, %v2470
        %v2472 = vpop.f32.mrb[0].mxu0
        %v2473 = vadd.f32 %v2360, %v2472
        %v2474 = vpop.f32.mrb[0].mxu0
        %v2475 = vadd.f32 %v2362, %v2474
        %v2476 = vpop.f32.mrb[0].mxu0
        %v2477 = vadd.f32 %v2364, %v2476
        %2478 = vdwg.mxu0
        %2479 = vmatprep.subr.bf16.mxu0 %v1934
        %2480 = vmatpush1.bf16.msra.mxu0 %v1933
        %2481 = vmatprep.subr.bf16.mxu0 %v1936
        %2482 = vmatpush1.bf16.msra.mxu0 %v1935
        %2483 = vmatprep.subr.bf16.mxu0 %v1938
        %2484 = vmatpush1.bf16.msra.mxu0 %v1937
        %2485 = vmatprep.subr.bf16.mxu0 %v1940
        %2486 = vmatpush1.bf16.msra.mxu0 %v1939
        %2487 = vmatprep.subr.bf16.mxu0 %v1942
        %2488 = vmatpush1.bf16.msra.mxu0 %v1941
        %2489 = vmatprep.subr.bf16.mxu0 %v1944
        %2490 = vmatpush1.bf16.msra.mxu0 %v1943
        %2491 = vmatprep.subr.bf16.mxu0 %v1946
        %2492 = vmatpush1.bf16.msra.mxu0 %v1945
        %2493 = vmatprep.subr.bf16.mxu0 %v1948
        %2494 = vmatpush1.bf16.msra.mxu0 %v1947
        %2495 = vmatprep.subr.bf16.mxu0 %v1950
        %2496 = vmatpush1.bf16.msra.mxu0 %v1949
        %2497 = vmatprep.subr.bf16.mxu0 %v1952
        %2498 = vmatpush1.bf16.msra.mxu0 %v1951
        %2499 = vmatprep.subr.bf16.mxu0 %v1954
        %2500 = vmatpush1.bf16.msra.mxu0 %v1953
        %2501 = vmatprep.subr.bf16.mxu0 %v1956
        %2502 = vmatpush1.bf16.msra.mxu0 %v1955
        %2503 = vmatprep.subr.bf16.mxu0 %v1958
        %2504 = vmatpush1.bf16.msra.mxu0 %v1957
        %2505 = vmatprep.subr.bf16.mxu0 %v1960
        %2506 = vmatpush1.bf16.msra.mxu0 %v1959
        %2507 = vmatprep.subr.bf16.mxu0 %v1962
        %2508 = vmatpush1.bf16.msra.mxu0 %v1961
        %2509 = vmatprep.subr.bf16.mxu0 %v1964
        %2510 = vmatpush1.bf16.msra.mxu0 %v1963
        %2511 = vmatprep.mubr.bf16.mxu0 %v817
        %2512 = vmatmul.mubr.bf16.gmra.mrb[0].mxu0 %v816
        %v2513 = vpop.f32.mrb[0].mxu0
        %v2514 = vadd.f32 %v2401, %v2513
        %v2515 = vpop.f32.mrb[0].mxu0
        %v2516 = vadd.f32 %v2403, %v2515
        %v2517 = vpop.f32.mrb[0].mxu0
        %v2518 = vadd.f32 %v2405, %v2517
        %v2519 = vpop.f32.mrb[0].mxu0
        %v2520 = vadd.f32 %v2407, %v2519
        %2521 = vmatprep.mubr.bf16.mxu0 %v829
        %2522 = vmatmul.mubr.bf16.gmra.mrb[0].mxu0 %v828
        %v2523 = vpop.f32.mrb[0].mxu0
        %v2524 = vadd.f32 %v2411, %v2523
        %v2525 = vpop.f32.mrb[0].mxu0
        %v2526 = vadd.f32 %v2413, %v2525
        %v2527 = vpop.f32.mrb[0].mxu0
        %v2528 = vadd.f32 %v2415, %v2527
        %v2529 = vpop.f32.mrb[0].mxu0
        %v2530 = vadd.f32 %v2417, %v2529
        %2531 = vmatprep.mubr.bf16.mxu0 %v841
        %2532 = vmatmul.mubr.bf16.gmra.mrb[0].mxu0 %v840
        %v2533 = vpop.f32.mrb[0].mxu0
        %v2534 = vadd.f32 %v2421, %v2533
        %v2535 = vpop.f32.mrb[0].mxu0
        %v2536 = vadd.f32 %v2423, %v2535
        %v2537 = vpop.f32.mrb[0].mxu0
        %v2538 = vadd.f32 %v2425, %v2537
        %v2539 = vpop.f32.mrb[0].mxu0
        %v2540 = vadd.f32 %v2427, %v2539
        %2541 = vmatprep.mubr.bf16.mxu0 %v853
        %2542 = vmatmul.mubr.bf16.gmra.mrb[0].mxu0 %v852
        %v2543 = vpop.f32.mrb[0].mxu0
        %v2544 = vadd.f32 %v2431, %v2543
        %v2545 = vpop.f32.mrb[0].mxu0
        %v2546 = vadd.f32 %v2433, %v2545
        %v2547 = vpop.f32.mrb[0].mxu0
        %v2548 = vadd.f32 %v2435, %v2547
        %v2549 = vpop.f32.mrb[0].mxu0
        %v2550 = vadd.f32 %v2437, %v2549
        %2551 = vmatprep.mubr.bf16.mxu0 %v865
        %2552 = vmatmul.mubr.bf16.gmra.mrb[0].mxu0 %v864
        %v2553 = vpop.f32.mrb[0].mxu0
        %v2554 = vadd.f32 %v2441, %v2553
        %v2555 = vpop.f32.mrb[0].mxu0
        %v2556 = vadd.f32 %v2443, %v2555
        %v2557 = vpop.f32.mrb[0].mxu0
        %v2558 = vadd.f32 %v2445, %v2557
        %v2559 = vpop.f32.mrb[0].mxu0
        %v2560 = vadd.f32 %v2447, %v2559
        %2561 = vmatprep.mubr.bf16.mxu0 %v877
        %2562 = vmatmul.mubr.bf16.gmra.mrb[0].mxu0 %v876
        %v2563 = vpop.f32.mrb[0].mxu0
        %v2564 = vadd.f32 %v2451, %v2563
        %v2565 = vpop.f32.mrb[0].mxu0
        %v2566 = vadd.f32 %v2453, %v2565
        %v2567 = vpop.f32.mrb[0].mxu0
        %v2568 = vadd.f32 %v2455, %v2567
        %v2569 = vpop.f32.mrb[0].mxu0
        %v2570 = vadd.f32 %v2457, %v2569
        %2571 = vmatprep.mubr.bf16.mxu0 %v889
        %2572 = vmatmul.mubr.bf16.gmra.mrb[0].mxu0 %v888
        %v2573 = vpop.f32.mrb[0].mxu0
        %v2574 = vadd.f32 %v2461, %v2573
        %v2575 = vpop.f32.mrb[0].mxu0
        %v2576 = vadd.f32 %v2463, %v2575
        %v2577 = vpop.f32.mrb[0].mxu0
        %v2578 = vadd.f32 %v2465, %v2577
        %v2579 = vpop.f32.mrb[0].mxu0
        %v2580 = vadd.f32 %v2467, %v2579
        %2581 = vmatprep.mubr.bf16.mxu0 %v1093
        %2582 = vmatmul.mubr.bf16.gmra.mrb[0].mxu0 %v1092
        %v2583 = vpop.f32.mrb[0].mxu0
        %v2584 = vadd.f32 %v2471, %v2583
        %v2585 = vpop.f32.mrb[0].mxu0
        %v2586 = vadd.f32 %v2473, %v2585
        %v2587 = vpop.f32.mrb[0].mxu0
        %v2588 = vadd.f32 %v2475, %v2587
        %v2589 = vpop.f32.mrb[0].mxu0
        %v2590 = vadd.f32 %v2477, %v2589
        %2591 = vdwg.mxu0
        %2592 = vmatprep.subr.bf16.mxu0 %v1966
        %2593 = vmatpush1.bf16.msra.mxu0 %v1965
        %2594 = vmatprep.subr.bf16.mxu0 %v1968
        %2595 = vmatpush1.bf16.msra.mxu0 %v1967
        %2596 = vmatprep.subr.bf16.mxu0 %v1970
        %2597 = vmatpush1.bf16.msra.mxu0 %v1969
        %2598 = vmatprep.subr.bf16.mxu0 %v1972
        %2599 = vmatpush1.bf16.msra.mxu0 %v1971
        %2600 = vmatprep.subr.bf16.mxu0 %v1974
        %2601 = vmatpush1.bf16.msra.mxu0 %v1973
        %2602 = vmatprep.subr.bf16.mxu0 %v1976
        %2603 = vmatpush1.bf16.msra.mxu0 %v1975
        %2604 = vmatprep.subr.bf16.mxu0 %v1978
        %2605 = vmatpush1.bf16.msra.mxu0 %v1977
        %2606 = vmatprep.subr.bf16.mxu0 %v1980
        %2607 = vmatpush1.bf16.msra.mxu0 %v1979
        %2608 = vmatprep.subr.bf16.mxu0 %v1982
        %2609 = vmatpush1.bf16.msra.mxu0 %v1981
        %2610 = vmatprep.subr.bf16.mxu0 %v1984
        %2611 = vmatpush1.bf16.msra.mxu0 %v1983
        %2612 = vmatprep.subr.bf16.mxu0 %v1986
        %2613 = vmatpush1.bf16.msra.mxu0 %v1985
        %2614 = vmatprep.subr.bf16.mxu0 %v1988
        %2615 = vmatpush1.bf16.msra.mxu0 %v1987
        %2616 = vmatprep.subr.bf16.mxu0 %v1990
        %2617 = vmatpush1.bf16.msra.mxu0 %v1989
        %2618 = vmatprep.subr.bf16.mxu0 %v1992
        %2619 = vmatpush1.bf16.msra.mxu0 %v1991
        %2620 = vmatprep.subr.bf16.mxu0 %v1994
        %2621 = vmatpush1.bf16.msra.mxu0 %v1993
        %2622 = vmatprep.subr.bf16.mxu0 %v1996
        %2623 = vmatpush1.bf16.msra.mxu0 %v1995
        %2624 = vmatprep.mubr.bf16.mxu0 %v819
        %2625 = vmatmul.mubr.bf16.gmra.mrb[0].mxu0 %v818
        %v2626 = vpop.f32.mrb[0].mxu0
        %v2627 = vadd.f32 %v2514, %v2626
        %v2628 = vpop.f32.mrb[0].mxu0
        %v2629 = vadd.f32 %v2516, %v2628
        %v2630 = vpop.f32.mrb[0].mxu0
        %v2631 = vadd.f32 %v2518, %v2630
        %v2632 = vpop.f32.mrb[0].mxu0
        %v2633 = vadd.f32 %v2520, %v2632
        %2634 = vmatprep.mubr.bf16.mxu0 %v831
        %2635 = vmatmul.mubr.bf16.gmra.mrb[0].mxu0 %v830
        %v2636 = vpop.f32.mrb[0].mxu0
        %v2637 = vadd.f32 %v2524, %v2636
        %v2638 = vpop.f32.mrb[0].mxu0
        %v2639 = vadd.f32 %v2526, %v2638
        %v2640 = vpop.f32.mrb[0].mxu0
        %v2641 = vadd.f32 %v2528, %v2640
        %v2642 = vpop.f32.mrb[0].mxu0
        %v2643 = vadd.f32 %v2530, %v2642
        %2644 = vmatprep.mubr.bf16.mxu0 %v843
        %2645 = vmatmul.mubr.bf16.gmra.mrb[0].mxu0 %v842
        %v2646 = vpop.f32.mrb[0].mxu0
        %v2647 = vadd.f32 %v2534, %v2646
        %v2648 = vpop.f32.mrb[0].mxu0
        %v2649 = vadd.f32 %v2536, %v2648
        %v2650 = vpop.f32.mrb[0].mxu0
        %v2651 = vadd.f32 %v2538, %v2650
        %v2652 = vpop.f32.mrb[0].mxu0
        %v2653 = vadd.f32 %v2540, %v2652
        %2654 = vmatprep.mubr.bf16.mxu0 %v855
        %2655 = vmatmul.mubr.bf16.gmra.mrb[0].mxu0 %v854
        %v2656 = vpop.f32.mrb[0].mxu0
        %v2657 = vadd.f32 %v2544, %v2656
        %v2658 = vpop.f32.mrb[0].mxu0
        %v2659 = vadd.f32 %v2546, %v2658
        %v2660 = vpop.f32.mrb[0].mxu0
        %v2661 = vadd.f32 %v2548, %v2660
        %v2662 = vpop.f32.mrb[0].mxu0
        %v2663 = vadd.f32 %v2550, %v2662
        %2664 = vmatprep.mubr.bf16.mxu0 %v867
        %2665 = vmatmul.mubr.bf16.gmra.mrb[0].mxu0 %v866
        %v2666 = vpop.f32.mrb[0].mxu0
        %v2667 = vadd.f32 %v2554, %v2666
        %v2668 = vpop.f32.mrb[0].mxu0
        %v2669 = vadd.f32 %v2556, %v2668
        %v2670 = vpop.f32.mrb[0].mxu0
        %v2671 = vadd.f32 %v2558, %v2670
        %v2672 = vpop.f32.mrb[0].mxu0
        %v2673 = vadd.f32 %v2560, %v2672
        %2674 = vmatprep.mubr.bf16.mxu0 %v879
        %2675 = vmatmul.mubr.bf16.gmra.mrb[0].mxu0 %v878
        %v2676 = vpop.f32.mrb[0].mxu0
        %v2677 = vadd.f32 %v2564, %v2676
        %v2678 = vpop.f32.mrb[0].mxu0
        %v2679 = vadd.f32 %v2566, %v2678
        %v2680 = vpop.f32.mrb[0].mxu0
        %v2681 = vadd.f32 %v2568, %v2680
        %v2682 = vpop.f32.mrb[0].mxu0
        %v2683 = vadd.f32 %v2570, %v2682
        %2684 = vmatprep.mubr.bf16.mxu0 %v891
        %2685 = vmatmul.mubr.bf16.gmra.mrb[0].mxu0 %v890
        %v2686 = vpop.f32.mrb[0].mxu0
        %v2687 = vadd.f32 %v2574, %v2686
        %v2688 = vpop.f32.mrb[0].mxu0
        %v2689 = vadd.f32 %v2576, %v2688
        %v2690 = vpop.f32.mrb[0].mxu0
        %v2691 = vadd.f32 %v2578, %v2690
        %v2692 = vpop.f32.mrb[0].mxu0
        %v2693 = vadd.f32 %v2580, %v2692
        %2694 = vmatprep.mubr.bf16.mxu0 %v1095
        %2695 = vmatmul.mubr.bf16.gmra.mrb[0].mxu0 %v1094
        %v2696 = vpop.f32.mrb[0].mxu0
        %v2697 = vadd.f32 %v2584, %v2696
        %v2698 = vpop.f32.mrb[0].mxu0
        %v2699 = vadd.f32 %v2586, %v2698
        %v2700 = vpop.f32.mrb[0].mxu0
        %v2701 = vadd.f32 %v2588, %v2700
        %v2702 = vpop.f32.mrb[0].mxu0
        %v2703 = vadd.f32 %v2590, %v2702
        %2704 = vdwg.mxu0
        %2705 = vmatprep.subr.bf16.mxu0 %v1998
        %2706 = vmatpush1.bf16.msra.mxu0 %v1997
        %2707 = vmatprep.subr.bf16.mxu0 %v2000
        %2708 = vmatpush1.bf16.msra.mxu0 %v1999
        %2709 = vmatprep.subr.bf16.mxu0 %v2002
        %2710 = vmatpush1.bf16.msra.mxu0 %v2001
        %2711 = vmatprep.subr.bf16.mxu0 %v2004
        %2712 = vmatpush1.bf16.msra.mxu0 %v2003
        %2713 = vmatprep.subr.bf16.mxu0 %v2006
        %2714 = vmatpush1.bf16.msra.mxu0 %v2005
        %2715 = vmatprep.subr.bf16.mxu0 %v2008
        %2716 = vmatpush1.bf16.msra.mxu0 %v2007
        %2717 = vmatprep.subr.bf16.mxu0 %v2010
        %2718 = vmatpush1.bf16.msra.mxu0 %v2009
        %2719 = vmatprep.subr.bf16.mxu0 %v2012
        %2720 = vmatpush1.bf16.msra.mxu0 %v2011
        %2721 = vmatprep.subr.bf16.mxu0 %v2014
        %2722 = vmatpush1.bf16.msra.mxu0 %v2013
        %2723 = vmatprep.subr.bf16.mxu0 %v2016
        %2724 = vmatpush1.bf16.msra.mxu0 %v2015
        %2725 = vmatprep.subr.bf16.mxu0 %v2018
        %2726 = vmatpush1.bf16.msra.mxu0 %v2017
        %2727 = vmatprep.subr.bf16.mxu0 %v2020
        %2728 = vmatpush1.bf16.msra.mxu0 %v2019
        %2729 = vmatprep.subr.bf16.mxu0 %v2022
        %2730 = vmatpush1.bf16.msra.mxu0 %v2021
        %2731 = vmatprep.subr.bf16.mxu0 %v2024
        %2732 = vmatpush1.bf16.msra.mxu0 %v2023
        %2733 = vmatprep.subr.bf16.mxu0 %v2026
        %2734 = vmatpush1.bf16.msra.mxu0 %v2025
        %2735 = vmatprep.subr.bf16.mxu0 %v2028
        %2736 = vmatpush1.bf16.msra.mxu0 %v2027
        %2737 = vmatprep.mubr.bf16.mxu0 %v821
        %2738 = vmatmul.mubr.bf16.gmra.mrb[0].mxu0 %v820
        %v2739 = vpop.f32.mrb[0].mxu0
        %v2740 = vadd.f32 %v2627, %v2739
        %v2741 = vpop.f32.mrb[0].mxu0
        %v2742 = vadd.f32 %v2629, %v2741
        %v2743 = vpop.f32.mrb[0].mxu0
        %v2744 = vadd.f32 %v2631, %v2743
        %v2745 = vpop.f32.mrb[0].mxu0
        %v2746 = vadd.f32 %v2633, %v2745
        %2747 = vmatprep.mubr.bf16.mxu0 %v833
        %2748 = vmatmul.mubr.bf16.gmra.mrb[0].mxu0 %v832
        %v2749 = vpop.f32.mrb[0].mxu0
        %v2750 = vadd.f32 %v2637, %v2749
        %v2751 = vpop.f32.mrb[0].mxu0
        %v2752 = vadd.f32 %v2639, %v2751
        %v2753 = vpop.f32.mrb[0].mxu0
        %v2754 = vadd.f32 %v2641, %v2753
        %v2755 = vpop.f32.mrb[0].mxu0
        %v2756 = vadd.f32 %v2643, %v2755
        %2757 = vmatprep.mubr.bf16.mxu0 %v845
        %2758 = vmatmul.mubr.bf16.gmra.mrb[0].mxu0 %v844
        %v2759 = vpop.f32.mrb[0].mxu0
        %v2760 = vadd.f32 %v2647, %v2759
        %v2761 = vpop.f32.mrb[0].mxu0
        %v2762 = vadd.f32 %v2649, %v2761
        %v2763 = vpop.f32.mrb[0].mxu0
        %v2764 = vadd.f32 %v2651, %v2763
        %v2765 = vpop.f32.mrb[0].mxu0
        %v2766 = vadd.f32 %v2653, %v2765
        %2767 = vmatprep.mubr.bf16.mxu0 %v857
        %2768 = vmatmul.mubr.bf16.gmra.mrb[0].mxu0 %v856
        %v2769 = vpop.f32.mrb[0].mxu0
        %v2770 = vadd.f32 %v2657, %v2769
        %v2771 = vpop.f32.mrb[0].mxu0
        %v2772 = vadd.f32 %v2659, %v2771
        %v2773 = vpop.f32.mrb[0].mxu0
        %v2774 = vadd.f32 %v2661, %v2773
        %v2775 = vpop.f32.mrb[0].mxu0
        %v2776 = vadd.f32 %v2663, %v2775
        %2777 = vmatprep.mubr.bf16.mxu0 %v869
        %2778 = vmatmul.mubr.bf16.gmra.mrb[0].mxu0 %v868
        %v2779 = vpop.f32.mrb[0].mxu0
        %v2780 = vadd.f32 %v2667, %v2779
        %v2781 = vpop.f32.mrb[0].mxu0
        %v2782 = vadd.f32 %v2669, %v2781
        %v2783 = vpop.f32.mrb[0].mxu0
        %v2784 = vadd.f32 %v2671, %v2783
        %v2785 = vpop.f32.mrb[0].mxu0
        %v2786 = vadd.f32 %v2673, %v2785
        %2787 = vmatprep.mubr.bf16.mxu0 %v881
        %2788 = vmatmul.mubr.bf16.gmra.mrb[0].mxu0 %v880
        %v2789 = vpop.f32.mrb[0].mxu0
        %v2790 = vadd.f32 %v2677, %v2789
        %v2791 = vpop.f32.mrb[0].mxu0
        %v2792 = vadd.f32 %v2679, %v2791
        %v2793 = vpop.f32.mrb[0].mxu0
        %v2794 = vadd.f32 %v2681, %v2793
        %v2795 = vpop.f32.mrb[0].mxu0
        %v2796 = vadd.f32 %v2683, %v2795
        %2797 = vmatprep.mubr.bf16.mxu0 %v893
        %2798 = vmatmul.mubr.bf16.gmra.mrb[0].mxu0 %v892
        %v2799 = vpop.f32.mrb[0].mxu0
        %v2800 = vadd.f32 %v2687, %v2799
        %v2801 = vpop.f32.mrb[0].mxu0
        %v2802 = vadd.f32 %v2689, %v2801
        %v2803 = vpop.f32.mrb[0].mxu0
        %v2804 = vadd.f32 %v2691, %v2803
        %v2805 = vpop.f32.mrb[0].mxu0
        %v2806 = vadd.f32 %v2693, %v2805
        %2807 = vmatprep.mubr.bf16.mxu0 %v1097
        %2808 = vmatmul.mubr.bf16.gmra.mrb[0].mxu0 %v1096
        %v2809 = vpop.f32.mrb[0].mxu0
        %v2810 = vadd.f32 %v2697, %v2809
        %v2811 = vpop.f32.mrb[0].mxu0
        %v2812 = vadd.f32 %v2699, %v2811
        %v2813 = vpop.f32.mrb[0].mxu0
        %v2814 = vadd.f32 %v2701, %v2813
        %v2815 = vpop.f32.mrb[0].mxu0
        %v2816 = vadd.f32 %v2703, %v2815
        %2817 = vdwg.mxu0
        %2818 = vmatprep.subr.bf16.mxu0 %v2030
        %2819 = vmatpush1.bf16.msra.mxu0 %v2029
        %2820 = vmatprep.subr.bf16.mxu0 %v2032
        %2821 = vmatpush1.bf16.msra.mxu0 %v2031
        %2822 = vmatprep.subr.bf16.mxu0 %v2034
        %2823 = vmatpush1.bf16.msra.mxu0 %v2033
        %2824 = vmatprep.subr.bf16.mxu0 %v2036
        %2825 = vmatpush1.bf16.msra.mxu0 %v2035
        %2826 = vmatprep.subr.bf16.mxu0 %v2038
        %2827 = vmatpush1.bf16.msra.mxu0 %v2037
        %2828 = vmatprep.subr.bf16.mxu0 %v2040
        %2829 = vmatpush1.bf16.msra.mxu0 %v2039
        %2830 = vmatprep.subr.bf16.mxu0 %v2042
        %2831 = vmatpush1.bf16.msra.mxu0 %v2041
        %2832 = vmatprep.subr.bf16.mxu0 %v2044
        %2833 = vmatpush1.bf16.msra.mxu0 %v2043
        %2834 = vmatprep.subr.bf16.mxu0 %v2046
        %2835 = vmatpush1.bf16.msra.mxu0 %v2045
        %2836 = vmatprep.subr.bf16.mxu0 %v2048
        %2837 = vmatpush1.bf16.msra.mxu0 %v2047
        %2838 = vmatprep.subr.bf16.mxu0 %v2050
        %2839 = vmatpush1.bf16.msra.mxu0 %v2049
        %2840 = vmatprep.subr.bf16.mxu0 %v2052
        %2841 = vmatpush1.bf16.msra.mxu0 %v2051
        %2842 = vmatprep.subr.bf16.mxu0 %v2054
        %2843 = vmatpush1.bf16.msra.mxu0 %v2053
        %2844 = vmatprep.subr.bf16.mxu0 %v2056
        %2845 = vmatpush1.bf16.msra.mxu0 %v2055
        %2846 = vmatprep.subr.bf16.mxu0 %v2058
        %2847 = vmatpush1.bf16.msra.mxu0 %v2057
        %2848 = vmatprep.subr.bf16.mxu0 %v2060
        %2849 = vmatpush1.bf16.msra.mxu0 %v2059
        %2850 = vmatprep.mubr.bf16.mxu0 %v823
        %2851 = vmatmul.mubr.bf16.gmra.mrb[0].mxu0 %v822
        %v2852 = vpop.f32.mrb[0].mxu0
        %v2853 = vadd.f32 %v2740, %v2852
        %v2854 = vpop.f32.mrb[0].mxu0
        %v2855 = vadd.f32 %v2742, %v2854
        %v2856 = vpop.f32.mrb[0].mxu0
        %v2857 = vadd.f32 %v2744, %v2856
        %v2858 = vpop.f32.mrb[0].mxu0
        %v2859 = vadd.f32 %v2746, %v2858
        %2860 = vmatprep.mubr.bf16.mxu0 %v835
        %2861 = vmatmul.mubr.bf16.gmra.mrb[0].mxu0 %v834
        %v2862 = vpop.f32.mrb[0].mxu0
        %v2863 = vadd.f32 %v2750, %v2862
        %v2864 = vpop.f32.mrb[0].mxu0
        %v2865 = vadd.f32 %v2752, %v2864
        %v2866 = vpop.f32.mrb[0].mxu0
        %v2867 = vadd.f32 %v2754, %v2866
        %v2868 = vpop.f32.mrb[0].mxu0
        %v2869 = vadd.f32 %v2756, %v2868
        %2870 = vmatprep.mubr.bf16.mxu0 %v847
        %2871 = vmatmul.mubr.bf16.gmra.mrb[0].mxu0 %v846
        %v2872 = vpop.f32.mrb[0].mxu0
        %v2873 = vadd.f32 %v2760, %v2872
        %v2874 = vpop.f32.mrb[0].mxu0
        %v2875 = vadd.f32 %v2762, %v2874
        %v2876 = vpop.f32.mrb[0].mxu0
        %v2877 = vadd.f32 %v2764, %v2876
        %v2878 = vpop.f32.mrb[0].mxu0
        %v2879 = vadd.f32 %v2766, %v2878
        %2880 = vmatprep.mubr.bf16.mxu0 %v859
        %2881 = vmatmul.mubr.bf16.gmra.mrb[0].mxu0 %v858
        %v2882 = vpop.f32.mrb[0].mxu0
        %v2883 = vadd.f32 %v2770, %v2882
        %v2884 = vpop.f32.mrb[0].mxu0
        %v2885 = vadd.f32 %v2772, %v2884
        %v2886 = vpop.f32.mrb[0].mxu0
        %v2887 = vadd.f32 %v2774, %v2886
        %v2888 = vpop.f32.mrb[0].mxu0
        %v2889 = vadd.f32 %v2776, %v2888
        %2890 = vmatprep.mubr.bf16.mxu0 %v871
        %2891 = vmatmul.mubr.bf16.gmra.mrb[0].mxu0 %v870
        %v2892 = vpop.f32.mrb[0].mxu0
        %v2893 = vadd.f32 %v2780, %v2892
        %v2894 = vpop.f32.mrb[0].mxu0
        %v2895 = vadd.f32 %v2782, %v2894
        %v2896 = vpop.f32.mrb[0].mxu0
        %v2897 = vadd.f32 %v2784, %v2896
        %v2898 = vpop.f32.mrb[0].mxu0
        %v2899 = vadd.f32 %v2786, %v2898
        %2900 = vmatprep.mubr.bf16.mxu0 %v883
        %2901 = vmatmul.mubr.bf16.gmra.mrb[0].mxu0 %v882
        %v2902 = vpop.f32.mrb[0].mxu0
        %v2903 = vadd.f32 %v2790, %v2902
        %v2904 = vpop.f32.mrb[0].mxu0
        %v2905 = vadd.f32 %v2792, %v2904
        %v2906 = vpop.f32.mrb[0].mxu0
        %v2907 = vadd.f32 %v2794, %v2906
        %v2908 = vpop.f32.mrb[0].mxu0
        %v2909 = vadd.f32 %v2796, %v2908
        %2910 = vmatprep.mubr.bf16.mxu0 %v895
        %2911 = vmatmul.mubr.bf16.gmra.mrb[0].mxu0 %v894
        %v2912 = vpop.f32.mrb[0].mxu0
        %v2913 = vadd.f32 %v2800, %v2912
        %v2914 = vpop.f32.mrb[0].mxu0
        %v2915 = vadd.f32 %v2802, %v2914
        %v2916 = vpop.f32.mrb[0].mxu0
        %v2917 = vadd.f32 %v2804, %v2916
        %v2918 = vpop.f32.mrb[0].mxu0
        %v2919 = vadd.f32 %v2806, %v2918
        %2920 = vmatprep.mubr.bf16.mxu0 %v1099
        %2921 = vmatmul.mubr.bf16.gmra.mrb[0].mxu0 %v1098
        %v2922 = vpop.f32.mrb[0].mxu0
        %v2923 = vadd.f32 %v2810, %v2922
        %v2924 = vpop.f32.mrb[0].mxu0
        %v2925 = vadd.f32 %v2812, %v2924
        %v2926 = vpop.f32.mrb[0].mxu0
        %v2927 = vadd.f32 %v2814, %v2926
        %v2928 = vpop.f32.mrb[0].mxu0
        %v2929 = vadd.f32 %v2816, %v2928
        %2930 = vdwg.mxu0
        %v3123 = vunpack.c.l.b16 %v896
        %v3124 = vunpack.c.h.b16 %v896
        %v3125 = vunpack.c.l.b16 %v897
        %v3126 = vunpack.c.h.b16 %v897
        %v3127 = vunpack.c.l.b16 %v898
        %v3128 = vunpack.c.h.b16 %v898
        %v3129 = vunpack.c.l.b16 %v899
        %v3130 = vunpack.c.h.b16 %v899
        %v3131 = vunpack.c.l.b16 %v900
        %v3132 = vunpack.c.h.b16 %v900
        %v3133 = vunpack.c.l.b16 %v901
        %v3134 = vunpack.c.h.b16 %v901
        %v3135 = vunpack.c.l.b16 %v902
        %v3136 = vunpack.c.h.b16 %v902
        %v3137 = vunpack.c.l.b16 %v903
        %v3138 = vunpack.c.h.b16 %v903
        %v3139 = vunpack.c.l.b16 %v904
        %v3140 = vunpack.c.h.b16 %v904
        %v3141 = vunpack.c.l.b16 %v905
        %v3142 = vunpack.c.h.b16 %v905
        %v3143 = vunpack.c.l.b16 %v906
        %v3144 = vunpack.c.h.b16 %v906
        %v3145 = vunpack.c.l.b16 %v907
        %v3146 = vunpack.c.h.b16 %v907
        %v3147 = vunpack.c.l.b16 %v908
        %v3148 = vunpack.c.h.b16 %v908
        %v3149 = vunpack.c.l.b16 %v909
        %v3150 = vunpack.c.h.b16 %v909
        %v3151 = vunpack.c.l.b16 %v910
        %v3152 = vunpack.c.h.b16 %v910
        %v3153 = vunpack.c.l.b16 %v911
        %v3154 = vunpack.c.h.b16 %v911
        %v3155 = vunpack.c.l.b16 %v912
        %v3156 = vunpack.c.h.b16 %v912
        %v3157 = vunpack.c.l.b16 %v913
        %v3158 = vunpack.c.h.b16 %v913
        %v3159 = vunpack.c.l.b16 %v914
        %v3160 = vunpack.c.h.b16 %v914
        %v3161 = vunpack.c.l.b16 %v915
        %v3162 = vunpack.c.h.b16 %v915
        %v3163 = vunpack.c.l.b16 %v916
        %v3164 = vunpack.c.h.b16 %v916
        %v3165 = vunpack.c.l.b16 %v917
        %v3166 = vunpack.c.h.b16 %v917
        %v3167 = vunpack.c.l.b16 %v918
        %v3168 = vunpack.c.h.b16 %v918
        %v3169 = vunpack.c.l.b16 %v919
        %v3170 = vunpack.c.h.b16 %v919
        %v3171 = vunpack.c.l.b16 %v920
        %v3172 = vunpack.c.h.b16 %v920
        %v3173 = vunpack.c.l.b16 %v921
        %v3174 = vunpack.c.h.b16 %v921
        %v3175 = vunpack.c.l.b16 %v922
        %v3176 = vunpack.c.h.b16 %v922
        %v3177 = vunpack.c.l.b16 %v923
        %v3178 = vunpack.c.h.b16 %v923
        %v3179 = vunpack.c.l.b16 %v924
        %v3180 = vunpack.c.h.b16 %v924
        %v3181 = vunpack.c.l.b16 %v925
        %v3182 = vunpack.c.h.b16 %v925
        %v3183 = vunpack.c.l.b16 %v926
        %v3184 = vunpack.c.h.b16 %v926
        %v3185 = vunpack.c.l.b16 %v927
        %v3186 = vunpack.c.h.b16 %v927
        %v3187 = vunpack.c.l.b16 %v928
        %v3188 = vunpack.c.h.b16 %v928
        %v3189 = vunpack.c.l.b16 %v929
        %v3190 = vunpack.c.h.b16 %v929
        %v3191 = vunpack.c.l.b16 %v930
        %v3192 = vunpack.c.h.b16 %v930
        %v3193 = vunpack.c.l.b16 %v931
        %v3194 = vunpack.c.h.b16 %v931
        %v3195 = vunpack.c.l.b16 %v932
        %v3196 = vunpack.c.h.b16 %v932
        %v3197 = vunpack.c.l.b16 %v933
        %v3198 = vunpack.c.h.b16 %v933
        %v3199 = vunpack.c.l.b16 %v934
        %v3200 = vunpack.c.h.b16 %v934
        %v3201 = vunpack.c.l.b16 %v935
        %v3202 = vunpack.c.h.b16 %v935
        %v3203 = vunpack.c.l.b16 %v936
        %v3204 = vunpack.c.h.b16 %v936
        %v3205 = vunpack.c.l.b16 %v937
        %v3206 = vunpack.c.h.b16 %v937
        %v3207 = vunpack.c.l.b16 %v938
        %v3208 = vunpack.c.h.b16 %v938
        %v3209 = vunpack.c.l.b16 %v939
        %v3210 = vunpack.c.h.b16 %v939
        %v3211 = vunpack.c.l.b16 %v940
        %v3212 = vunpack.c.h.b16 %v940
        %v3213 = vunpack.c.l.b16 %v941
        %v3214 = vunpack.c.h.b16 %v941
        %v3215 = vunpack.c.l.b16 %v942
        %v3216 = vunpack.c.h.b16 %v942
        %v3217 = vunpack.c.l.b16 %v943
        %v3218 = vunpack.c.h.b16 %v943
        %v3219 = vunpack.c.l.b16 %v944
        %v3220 = vunpack.c.h.b16 %v944
        %v3221 = vunpack.c.l.b16 %v945
        %v3222 = vunpack.c.h.b16 %v945
        %v3223 = vunpack.c.l.b16 %v946
        %v3224 = vunpack.c.h.b16 %v946
        %v3225 = vunpack.c.l.b16 %v947
        %v3226 = vunpack.c.h.b16 %v947
        %v3227 = vunpack.c.l.b16 %v948
        %v3228 = vunpack.c.h.b16 %v948
        %v3229 = vunpack.c.l.b16 %v949
        %v3230 = vunpack.c.h.b16 %v949
        %v3231 = vunpack.c.l.b16 %v950
        %v3232 = vunpack.c.h.b16 %v950
        %v3233 = vunpack.c.l.b16 %v951
        %v3234 = vunpack.c.h.b16 %v951
        %v3235 = vunpack.c.l.b16 %v952
        %v3236 = vunpack.c.h.b16 %v952
        %v3237 = vunpack.c.l.b16 %v953
        %v3238 = vunpack.c.h.b16 %v953
        %v3239 = vunpack.c.l.b16 %v954
        %v3240 = vunpack.c.h.b16 %v954
        %v3241 = vunpack.c.l.b16 %v955
        %v3242 = vunpack.c.h.b16 %v955
        %v3243 = vunpack.c.l.b16 %v956
        %v3244 = vunpack.c.h.b16 %v956
        %v3245 = vunpack.c.l.b16 %v957
        %v3246 = vunpack.c.h.b16 %v957
        %v3247 = vunpack.c.l.b16 %v958
        %v3248 = vunpack.c.h.b16 %v958
        %v3249 = vunpack.c.l.b16 %v959
        %v3250 = vunpack.c.h.b16 %v959
        %v3251 = vunpack.c.l.b16 %v960
        %v3252 = vunpack.c.h.b16 %v960
        %v3253 = vunpack.c.l.b16 %v961
        %v3254 = vunpack.c.h.b16 %v961
        %v3255 = vunpack.c.l.b16 %v962
        %v3256 = vunpack.c.h.b16 %v962
        %v3257 = vunpack.c.l.b16 %v963
        %v3258 = vunpack.c.h.b16 %v963
        %v3259 = vunpack.c.l.b16 %v964
        %v3260 = vunpack.c.h.b16 %v964
        %v3261 = vunpack.c.l.b16 %v965
        %v3262 = vunpack.c.h.b16 %v965
        %v3263 = vunpack.c.l.b16 %v966
        %v3264 = vunpack.c.h.b16 %v966
        %v3265 = vunpack.c.l.b16 %v967
        %v3266 = vunpack.c.h.b16 %v967
        %v3267 = vunpack.c.l.b16 %v968
        %v3268 = vunpack.c.h.b16 %v968
        %v3269 = vunpack.c.l.b16 %v969
        %v3270 = vunpack.c.h.b16 %v969
        %v3271 = vunpack.c.l.b16 %v970
        %v3272 = vunpack.c.h.b16 %v970
        %v3273 = vunpack.c.l.b16 %v971
        %v3274 = vunpack.c.h.b16 %v971
        %v3275 = vunpack.c.l.b16 %v972
        %v3276 = vunpack.c.h.b16 %v972
        %v3277 = vunpack.c.l.b16 %v973
        %v3278 = vunpack.c.h.b16 %v973
        %v3279 = vunpack.c.l.b16 %v974
        %v3280 = vunpack.c.h.b16 %v974
        %v3281 = vunpack.c.l.b16 %v975
        %v3282 = vunpack.c.h.b16 %v975
        %v3283 = vunpack.c.l.b16 %v976
        %v3284 = vunpack.c.h.b16 %v976
        %v3285 = vunpack.c.l.b16 %v977
        %v3286 = vunpack.c.h.b16 %v977
        %v3287 = vunpack.c.l.b16 %v978
        %v3288 = vunpack.c.h.b16 %v978
        %v3289 = vunpack.c.l.b16 %v979
        %v3290 = vunpack.c.h.b16 %v979
        %v3291 = vunpack.c.l.b16 %v980
        %v3292 = vunpack.c.h.b16 %v980
        %v3293 = vunpack.c.l.b16 %v981
        %v3294 = vunpack.c.h.b16 %v981
        %v3295 = vunpack.c.l.b16 %v982
        %v3296 = vunpack.c.h.b16 %v982
        %v3297 = vunpack.c.l.b16 %v983
        %v3298 = vunpack.c.h.b16 %v983
        %v3299 = vunpack.c.l.b16 %v984
        %v3300 = vunpack.c.h.b16 %v984
        %v3301 = vunpack.c.l.b16 %v985
        %v3302 = vunpack.c.h.b16 %v985
        %v3303 = vunpack.c.l.b16 %v986
        %v3304 = vunpack.c.h.b16 %v986
        %v3305 = vunpack.c.l.b16 %v987
        %v3306 = vunpack.c.h.b16 %v987
        %v3307 = vunpack.c.l.b16 %v988
        %v3308 = vunpack.c.h.b16 %v988
        %v3309 = vunpack.c.l.b16 %v989
        %v3310 = vunpack.c.h.b16 %v989
        %v3311 = vunpack.c.l.b16 %v990
        %v3312 = vunpack.c.h.b16 %v990
        %v3313 = vunpack.c.l.b16 %v991
        %v3314 = vunpack.c.h.b16 %v991
        %v3315 = vunpack.c.l.b16 %v992
        %v3316 = vunpack.c.h.b16 %v992
        %v3317 = vunpack.c.l.b16 %v993
        %v3318 = vunpack.c.h.b16 %v993
        %v3319 = vunpack.c.l.b16 %v994
        %v3320 = vunpack.c.h.b16 %v994
        %v3321 = vunpack.c.l.b16 %v995
        %v3322 = vunpack.c.h.b16 %v995
        %v3323 = vunpack.c.l.b16 %v996
        %v3324 = vunpack.c.h.b16 %v996
        %v3325 = vunpack.c.l.b16 %v997
        %v3326 = vunpack.c.h.b16 %v997
        %v3327 = vunpack.c.l.b16 %v998
        %v3328 = vunpack.c.h.b16 %v998
        %v3329 = vunpack.c.l.b16 %v999
        %v3330 = vunpack.c.h.b16 %v999
        %v3331 = vunpack.c.l.b16 %v1000
        %v3332 = vunpack.c.h.b16 %v1000
        %v3333 = vunpack.c.l.b16 %v1001
        %v3334 = vunpack.c.h.b16 %v1001
        %v3335 = vunpack.c.l.b16 %v1002
        %v3336 = vunpack.c.h.b16 %v1002
        %v3337 = vunpack.c.l.b16 %v1003
        %v3338 = vunpack.c.h.b16 %v1003
        %v3339 = vunpack.c.l.b16 %v1004
        %v3340 = vunpack.c.h.b16 %v1004
        %v3341 = vunpack.c.l.b16 %v1005
        %v3342 = vunpack.c.h.b16 %v1005
        %v3343 = vunpack.c.l.b16 %v1006
        %v3344 = vunpack.c.h.b16 %v1006
        %v3345 = vunpack.c.l.b16 %v1007
        %v3346 = vunpack.c.h.b16 %v1007
        %v3347 = vunpack.c.l.b16 %v1008
        %v3348 = vunpack.c.h.b16 %v1008
        %v3349 = vunpack.c.l.b16 %v1009
        %v3350 = vunpack.c.h.b16 %v1009
        %v3351 = vunpack.c.l.b16 %v1010
        %v3352 = vunpack.c.h.b16 %v1010
        %v3353 = vunpack.c.l.b16 %v1011
        %v3354 = vunpack.c.h.b16 %v1011
        %v3355 = vunpack.c.l.b16 %v1012
        %v3356 = vunpack.c.h.b16 %v1012
        %v3357 = vunpack.c.l.b16 %v1013
        %v3358 = vunpack.c.h.b16 %v1013
        %v3359 = vunpack.c.l.b16 %v1014
        %v3360 = vunpack.c.h.b16 %v1014
        %v3361 = vunpack.c.l.b16 %v1015
        %v3362 = vunpack.c.h.b16 %v1015
        %v3363 = vunpack.c.l.b16 %v1016
        %v3364 = vunpack.c.h.b16 %v1016
        %v3365 = vunpack.c.l.b16 %v1017
        %v3366 = vunpack.c.h.b16 %v1017
        %v3367 = vunpack.c.l.b16 %v1018
        %v3368 = vunpack.c.h.b16 %v1018
        %v3369 = vunpack.c.l.b16 %v1019
        %v3370 = vunpack.c.h.b16 %v1019
        %v3371 = vunpack.c.l.b16 %v1020
        %v3372 = vunpack.c.h.b16 %v1020
        %v3373 = vunpack.c.l.b16 %v1021
        %v3374 = vunpack.c.h.b16 %v1021
        %v3375 = vunpack.c.l.b16 %v1022
        %v3376 = vunpack.c.h.b16 %v1022
        %v3377 = vunpack.c.l.b16 %v1023
        %v3378 = vunpack.c.h.b16 %v1023
        %v3379 = vunpack.c.l.b16 %v1024
        %v3380 = vunpack.c.h.b16 %v1024
        %v3381 = vunpack.c.l.b16 %v1025
        %v3382 = vunpack.c.h.b16 %v1025
        %v3383 = vunpack.c.l.b16 %v1026
        %v3384 = vunpack.c.h.b16 %v1026
        %v3385 = vunpack.c.l.b16 %v1027
        %v3386 = vunpack.c.h.b16 %v1027
        %v3387 = vunpack.c.l.b16 %v1028
        %v3388 = vunpack.c.h.b16 %v1028
        %v3389 = vunpack.c.l.b16 %v1029
        %v3390 = vunpack.c.h.b16 %v1029
        %v3391 = vunpack.c.l.b16 %v1030
        %v3392 = vunpack.c.h.b16 %v1030
        %v3393 = vunpack.c.l.b16 %v1031
        %v3394 = vunpack.c.h.b16 %v1031
        %v3395 = vunpack.c.l.b16 %v1032
        %v3396 = vunpack.c.h.b16 %v1032
        %v3397 = vunpack.c.l.b16 %v1033
        %v3398 = vunpack.c.h.b16 %v1033
        %v3399 = vunpack.c.l.b16 %v1034
        %v3400 = vunpack.c.h.b16 %v1034
        %v3401 = vunpack.c.l.b16 %v1035
        %v3402 = vunpack.c.h.b16 %v1035
        %v3403 = vunpack.c.l.b16 %v1036
        %v3404 = vunpack.c.h.b16 %v1036
        %v3405 = vunpack.c.l.b16 %v1037
        %v3406 = vunpack.c.h.b16 %v1037
        %v3407 = vunpack.c.l.b16 %v1038
        %v3408 = vunpack.c.h.b16 %v1038
        %v3409 = vunpack.c.l.b16 %v1039
        %v3410 = vunpack.c.h.b16 %v1039
        %v3411 = vunpack.c.l.b16 %v1040
        %v3412 = vunpack.c.h.b16 %v1040
        %v3413 = vunpack.c.l.b16 %v1041
        %v3414 = vunpack.c.h.b16 %v1041
        %v3415 = vunpack.c.l.b16 %v1042
        %v3416 = vunpack.c.h.b16 %v1042
        %v3417 = vunpack.c.l.b16 %v1043
        %v3418 = vunpack.c.h.b16 %v1043
        %v3419 = vunpack.c.l.b16 %v1044
        %v3420 = vunpack.c.h.b16 %v1044
        %v3421 = vunpack.c.l.b16 %v1045
        %v3422 = vunpack.c.h.b16 %v1045
        %v3423 = vunpack.c.l.b16 %v1046
        %v3424 = vunpack.c.h.b16 %v1046
        %v3425 = vunpack.c.l.b16 %v1047
        %v3426 = vunpack.c.h.b16 %v1047
        %v3427 = vunpack.c.l.b16 %v1048
        %v3428 = vunpack.c.h.b16 %v1048
        %v3429 = vunpack.c.l.b16 %v1049
        %v3430 = vunpack.c.h.b16 %v1049
        %v3431 = vunpack.c.l.b16 %v1050
        %v3432 = vunpack.c.h.b16 %v1050
        %v3433 = vunpack.c.l.b16 %v1051
        %v3434 = vunpack.c.h.b16 %v1051
        %v3435 = vunpack.c.l.b16 %v1052
        %v3436 = vunpack.c.h.b16 %v1052
        %v3437 = vunpack.c.l.b16 %v1053
        %v3438 = vunpack.c.h.b16 %v1053
        %v3439 = vunpack.c.l.b16 %v1054
        %v3440 = vunpack.c.h.b16 %v1054
        %v3441 = vunpack.c.l.b16 %v1055
        %v3442 = vunpack.c.h.b16 %v1055
        %v3443 = vunpack.c.l.b16 %v1056
        %v3444 = vunpack.c.h.b16 %v1056
        %v3445 = vunpack.c.l.b16 %v1057
        %v3446 = vunpack.c.h.b16 %v1057
        %v3447 = vunpack.c.l.b16 %v1058
        %v3448 = vunpack.c.h.b16 %v1058
        %v3449 = vunpack.c.l.b16 %v1059
        %v3450 = vunpack.c.h.b16 %v1059
        %v3451 = vunpack.c.l.b16 %v1060
        %v3452 = vunpack.c.h.b16 %v1060
        %v3453 = vunpack.c.l.b16 %v1061
        %v3454 = vunpack.c.h.b16 %v1061
        %v3455 = vunpack.c.l.b16 %v1062
        %v3456 = vunpack.c.h.b16 %v1062
        %v3457 = vunpack.c.l.b16 %v1063
        %v3458 = vunpack.c.h.b16 %v1063
        %v3459 = vunpack.c.l.b16 %v1064
        %v3460 = vunpack.c.h.b16 %v1064
        %v3461 = vunpack.c.l.b16 %v1065
        %v3462 = vunpack.c.h.b16 %v1065
        %v3463 = vunpack.c.l.b16 %v1066
        %v3464 = vunpack.c.h.b16 %v1066
        %v3465 = vunpack.c.l.b16 %v1067
        %v3466 = vunpack.c.h.b16 %v1067
        %v3467 = vunpack.c.l.b16 %v1068
        %v3468 = vunpack.c.h.b16 %v1068
        %v3469 = vunpack.c.l.b16 %v1069
        %v3470 = vunpack.c.h.b16 %v1069
        %v3471 = vunpack.c.l.b16 %v1070
        %v3472 = vunpack.c.h.b16 %v1070
        %v3473 = vunpack.c.l.b16 %v1071
        %v3474 = vunpack.c.h.b16 %v1071
        %v3475 = vunpack.c.l.b16 %v1072
        %v3476 = vunpack.c.h.b16 %v1072
        %v3477 = vunpack.c.l.b16 %v1073
        %v3478 = vunpack.c.h.b16 %v1073
        %v3479 = vunpack.c.l.b16 %v1074
        %v3480 = vunpack.c.h.b16 %v1074
        %v3481 = vunpack.c.l.b16 %v1075
        %v3482 = vunpack.c.h.b16 %v1075
        %v3483 = vunpack.c.l.b16 %v1076
        %v3484 = vunpack.c.h.b16 %v1076
        %v3485 = vunpack.c.l.b16 %v1077
        %v3486 = vunpack.c.h.b16 %v1077
        %v3487 = vunpack.c.l.b16 %v1078
        %v3488 = vunpack.c.h.b16 %v1078
        %v3489 = vunpack.c.l.b16 %v1079
        %v3490 = vunpack.c.h.b16 %v1079
        %v3491 = vunpack.c.l.b16 %v1080
        %v3492 = vunpack.c.h.b16 %v1080
        %v3493 = vunpack.c.l.b16 %v1081
        %v3494 = vunpack.c.h.b16 %v1081
        %v3495 = vunpack.c.l.b16 %v1082
        %v3496 = vunpack.c.h.b16 %v1082
        %v3497 = vunpack.c.l.b16 %v1083
        %v3498 = vunpack.c.h.b16 %v1083
        %v3499 = vunpack.c.l.b16 %v1084
        %v3500 = vunpack.c.h.b16 %v1084
        %v3501 = vunpack.c.l.b16 %v1085
        %v3502 = vunpack.c.h.b16 %v1085
        %v3503 = vunpack.c.l.b16 %v1086
        %v3504 = vunpack.c.h.b16 %v1086
        %v3505 = vunpack.c.l.b16 %v1087
        %v3506 = vunpack.c.h.b16 %v1087
        %v3507 = vpack.c.b16 %v3125, %v3123
        %v3508 = vpack.c.b16 %v3126, %v3124
        %v3509 = vpack.c.b16 %v3129, %v3127
        %v3510 = vpack.c.b16 %v3130, %v3128
        %v3511 = vpack.c.b16 %v3133, %v3131
        %v3512 = vpack.c.b16 %v3134, %v3132
        %v3513 = vpack.c.b16 %v3137, %v3135
        %v3514 = vpack.c.b16 %v3138, %v3136
        %v3515 = vpack.c.b16 %v3141, %v3139
        %v3516 = vpack.c.b16 %v3142, %v3140
        %v3517 = vpack.c.b16 %v3145, %v3143
        %v3518 = vpack.c.b16 %v3146, %v3144
        %v3519 = vpack.c.b16 %v3149, %v3147
        %v3520 = vpack.c.b16 %v3150, %v3148
        %v3521 = vpack.c.b16 %v3153, %v3151
        %v3522 = vpack.c.b16 %v3154, %v3152
        %v3523 = vpack.c.b16 %v3157, %v3155
        %v3524 = vpack.c.b16 %v3158, %v3156
        %v3525 = vpack.c.b16 %v3161, %v3159
        %v3526 = vpack.c.b16 %v3162, %v3160
        %v3527 = vpack.c.b16 %v3165, %v3163
        %v3528 = vpack.c.b16 %v3166, %v3164
        %v3529 = vpack.c.b16 %v3169, %v3167
        %v3530 = vpack.c.b16 %v3170, %v3168
        %v3531 = vpack.c.b16 %v3173, %v3171
        %v3532 = vpack.c.b16 %v3174, %v3172
        %v3533 = vpack.c.b16 %v3177, %v3175
        %v3534 = vpack.c.b16 %v3178, %v3176
        %v3535 = vpack.c.b16 %v3181, %v3179
        %v3536 = vpack.c.b16 %v3182, %v3180
        %v3537 = vpack.c.b16 %v3185, %v3183
        %v3538 = vpack.c.b16 %v3186, %v3184
        %v3539 = vpack.c.b16 %v3189, %v3187
        %v3540 = vpack.c.b16 %v3190, %v3188
        %v3541 = vpack.c.b16 %v3193, %v3191
        %v3542 = vpack.c.b16 %v3194, %v3192
        %v3543 = vpack.c.b16 %v3197, %v3195
        %v3544 = vpack.c.b16 %v3198, %v3196
        %v3545 = vpack.c.b16 %v3201, %v3199
        %v3546 = vpack.c.b16 %v3202, %v3200
        %v3547 = vpack.c.b16 %v3205, %v3203
        %v3548 = vpack.c.b16 %v3206, %v3204
        %v3549 = vpack.c.b16 %v3209, %v3207
        %v3550 = vpack.c.b16 %v3210, %v3208
        %v3551 = vpack.c.b16 %v3213, %v3211
        %v3552 = vpack.c.b16 %v3214, %v3212
        %v3553 = vpack.c.b16 %v3217, %v3215
        %v3554 = vpack.c.b16 %v3218, %v3216
        %v3555 = vpack.c.b16 %v3221, %v3219
        %v3556 = vpack.c.b16 %v3222, %v3220
        %v3557 = vpack.c.b16 %v3225, %v3223
        %v3558 = vpack.c.b16 %v3226, %v3224
        %v3559 = vpack.c.b16 %v3229, %v3227
        %v3560 = vpack.c.b16 %v3230, %v3228
        %v3561 = vpack.c.b16 %v3233, %v3231
        %v3562 = vpack.c.b16 %v3234, %v3232
        %v3563 = vpack.c.b16 %v3237, %v3235
        %v3564 = vpack.c.b16 %v3238, %v3236
        %v3565 = vpack.c.b16 %v3241, %v3239
        %v3566 = vpack.c.b16 %v3242, %v3240
        %v3567 = vpack.c.b16 %v3245, %v3243
        %v3568 = vpack.c.b16 %v3246, %v3244
        %v3569 = vpack.c.b16 %v3249, %v3247
        %v3570 = vpack.c.b16 %v3250, %v3248
        %v3571 = vpack.c.b16 %v3253, %v3251
        %v3572 = vpack.c.b16 %v3254, %v3252
        %v3573 = vpack.c.b16 %v3257, %v3255
        %v3574 = vpack.c.b16 %v3258, %v3256
        %v3575 = vpack.c.b16 %v3261, %v3259
        %v3576 = vpack.c.b16 %v3262, %v3260
        %v3577 = vpack.c.b16 %v3265, %v3263
        %v3578 = vpack.c.b16 %v3266, %v3264
        %v3579 = vpack.c.b16 %v3269, %v3267
        %v3580 = vpack.c.b16 %v3270, %v3268
        %v3581 = vpack.c.b16 %v3273, %v3271
        %v3582 = vpack.c.b16 %v3274, %v3272
        %v3583 = vpack.c.b16 %v3277, %v3275
        %v3584 = vpack.c.b16 %v3278, %v3276
        %v3585 = vpack.c.b16 %v3281, %v3279
        %v3586 = vpack.c.b16 %v3282, %v3280
        %v3587 = vpack.c.b16 %v3285, %v3283
        %v3588 = vpack.c.b16 %v3286, %v3284
        %v3589 = vpack.c.b16 %v3289, %v3287
        %v3590 = vpack.c.b16 %v3290, %v3288
        %v3591 = vpack.c.b16 %v3293, %v3291
        %v3592 = vpack.c.b16 %v3294, %v3292
        %v3593 = vpack.c.b16 %v3297, %v3295
        %v3594 = vpack.c.b16 %v3298, %v3296
        %v3595 = vpack.c.b16 %v3301, %v3299
        %v3596 = vpack.c.b16 %v3302, %v3300
        %v3597 = vpack.c.b16 %v3305, %v3303
        %v3598 = vpack.c.b16 %v3306, %v3304
        %v3599 = vpack.c.b16 %v3309, %v3307
        %v3600 = vpack.c.b16 %v3310, %v3308
        %v3601 = vpack.c.b16 %v3313, %v3311
        %v3602 = vpack.c.b16 %v3314, %v3312
        %v3603 = vpack.c.b16 %v3317, %v3315
        %v3604 = vpack.c.b16 %v3318, %v3316
        %v3605 = vpack.c.b16 %v3321, %v3319
        %v3606 = vpack.c.b16 %v3322, %v3320
        %v3607 = vpack.c.b16 %v3325, %v3323
        %v3608 = vpack.c.b16 %v3326, %v3324
        %v3609 = vpack.c.b16 %v3329, %v3327
        %v3610 = vpack.c.b16 %v3330, %v3328
        %v3611 = vpack.c.b16 %v3333, %v3331
        %v3612 = vpack.c.b16 %v3334, %v3332
        %v3613 = vpack.c.b16 %v3337, %v3335
        %v3614 = vpack.c.b16 %v3338, %v3336
        %v3615 = vpack.c.b16 %v3341, %v3339
        %v3616 = vpack.c.b16 %v3342, %v3340
        %v3617 = vpack.c.b16 %v3345, %v3343
        %v3618 = vpack.c.b16 %v3346, %v3344
        %v3619 = vpack.c.b16 %v3349, %v3347
        %v3620 = vpack.c.b16 %v3350, %v3348
        %v3621 = vpack.c.b16 %v3353, %v3351
        %v3622 = vpack.c.b16 %v3354, %v3352
        %v3623 = vpack.c.b16 %v3357, %v3355
        %v3624 = vpack.c.b16 %v3358, %v3356
        %v3625 = vpack.c.b16 %v3361, %v3359
        %v3626 = vpack.c.b16 %v3362, %v3360
        %v3627 = vpack.c.b16 %v3365, %v3363
        %v3628 = vpack.c.b16 %v3366, %v3364
        %v3629 = vpack.c.b16 %v3369, %v3367
        %v3630 = vpack.c.b16 %v3370, %v3368
        %v3631 = vpack.c.b16 %v3373, %v3371
        %v3632 = vpack.c.b16 %v3374, %v3372
        %v3633 = vpack.c.b16 %v3377, %v3375
        %v3634 = vpack.c.b16 %v3378, %v3376
        %v3635 = vpack.c.b16 %v3381, %v3379
        %v3636 = vpack.c.b16 %v3382, %v3380
        %v3637 = vpack.c.b16 %v3385, %v3383
        %v3638 = vpack.c.b16 %v3386, %v3384
        %v3639 = vpack.c.b16 %v3389, %v3387
        %v3640 = vpack.c.b16 %v3390, %v3388
        %v3641 = vpack.c.b16 %v3393, %v3391
        %v3642 = vpack.c.b16 %v3394, %v3392
        %v3643 = vpack.c.b16 %v3397, %v3395
        %v3644 = vpack.c.b16 %v3398, %v3396
        %v3645 = vpack.c.b16 %v3401, %v3399
        %v3646 = vpack.c.b16 %v3402, %v3400
        %v3647 = vpack.c.b16 %v3405, %v3403
        %v3648 = vpack.c.b16 %v3406, %v3404
        %v3649 = vpack.c.b16 %v3409, %v3407
        %v3650 = vpack.c.b16 %v3410, %v3408
        %v3651 = vpack.c.b16 %v3413, %v3411
        %v3652 = vpack.c.b16 %v3414, %v3412
        %v3653 = vpack.c.b16 %v3417, %v3415
        %v3654 = vpack.c.b16 %v3418, %v3416
        %v3655 = vpack.c.b16 %v3421, %v3419
        %v3656 = vpack.c.b16 %v3422, %v3420
        %v3657 = vpack.c.b16 %v3425, %v3423
        %v3658 = vpack.c.b16 %v3426, %v3424
        %v3659 = vpack.c.b16 %v3429, %v3427
        %v3660 = vpack.c.b16 %v3430, %v3428
        %v3661 = vpack.c.b16 %v3433, %v3431
        %v3662 = vpack.c.b16 %v3434, %v3432
        %v3663 = vpack.c.b16 %v3437, %v3435
        %v3664 = vpack.c.b16 %v3438, %v3436
        %v3665 = vpack.c.b16 %v3441, %v3439
        %v3666 = vpack.c.b16 %v3442, %v3440
        %v3667 = vpack.c.b16 %v3445, %v3443
        %v3668 = vpack.c.b16 %v3446, %v3444
        %v3669 = vpack.c.b16 %v3449, %v3447
        %v3670 = vpack.c.b16 %v3450, %v3448
        %v3671 = vpack.c.b16 %v3453, %v3451
        %v3672 = vpack.c.b16 %v3454, %v3452
        %v3673 = vpack.c.b16 %v3457, %v3455
        %v3674 = vpack.c.b16 %v3458, %v3456
        %v3675 = vpack.c.b16 %v3461, %v3459
        %v3676 = vpack.c.b16 %v3462, %v3460
        %v3677 = vpack.c.b16 %v3465, %v3463
        %v3678 = vpack.c.b16 %v3466, %v3464
        %v3679 = vpack.c.b16 %v3469, %v3467
        %v3680 = vpack.c.b16 %v3470, %v3468
        %v3681 = vpack.c.b16 %v3473, %v3471
        %v3682 = vpack.c.b16 %v3474, %v3472
        %v3683 = vpack.c.b16 %v3477, %v3475
        %v3684 = vpack.c.b16 %v3478, %v3476
        %v3685 = vpack.c.b16 %v3481, %v3479
        %v3686 = vpack.c.b16 %v3482, %v3480
        %v3687 = vpack.c.b16 %v3485, %v3483
        %v3688 = vpack.c.b16 %v3486, %v3484
        %v3689 = vpack.c.b16 %v3489, %v3487
        %v3690 = vpack.c.b16 %v3490, %v3488
        %v3691 = vpack.c.b16 %v3493, %v3491
        %v3692 = vpack.c.b16 %v3494, %v3492
        %v3693 = vpack.c.b16 %v3497, %v3495
        %v3694 = vpack.c.b16 %v3498, %v3496
        %v3695 = vpack.c.b16 %v3501, %v3499
        %v3696 = vpack.c.b16 %v3502, %v3500
        %v3697 = vpack.c.b16 %v3505, %v3503
        %v3698 = vpack.c.b16 %v3506, %v3504
        %3891 = vmatprep.subr.bf16.mxu0 %v3508
        %3892 = vmatpush1.bf16.msra.mxu0 %v3507
        %3893 = vmatprep.subr.bf16.mxu0 %v3510
        %3894 = vmatpush1.bf16.msra.mxu0 %v3509
        %3895 = vmatprep.subr.bf16.mxu0 %v3512
        %3896 = vmatpush1.bf16.msra.mxu0 %v3511
        %3897 = vmatprep.subr.bf16.mxu0 %v3514
        %3898 = vmatpush1.bf16.msra.mxu0 %v3513
        %3899 = vmatprep.subr.bf16.mxu0 %v3516
        %3900 = vmatpush1.bf16.msra.mxu0 %v3515
        %3901 = vmatprep.subr.bf16.mxu0 %v3518
        %3902 = vmatpush1.bf16.msra.mxu0 %v3517
        %3903 = vmatprep.subr.bf16.mxu0 %v3520
        %3904 = vmatpush1.bf16.msra.mxu0 %v3519
        %3905 = vmatprep.subr.bf16.mxu0 %v3522
        %3906 = vmatpush1.bf16.msra.mxu0 %v3521
        %3907 = vmatprep.subr.bf16.mxu0 %v3524
        %3908 = vmatpush1.bf16.msra.mxu0 %v3523
        %3909 = vmatprep.subr.bf16.mxu0 %v3526
        %3910 = vmatpush1.bf16.msra.mxu0 %v3525
        %3911 = vmatprep.subr.bf16.mxu0 %v3528
        %3912 = vmatpush1.bf16.msra.mxu0 %v3527
        %3913 = vmatprep.subr.bf16.mxu0 %v3530
        %3914 = vmatpush1.bf16.msra.mxu0 %v3529
        %3915 = vmatprep.subr.bf16.mxu0 %v3532
        %3916 = vmatpush1.bf16.msra.mxu0 %v3531
        %3917 = vmatprep.subr.bf16.mxu0 %v3534
        %3918 = vmatpush1.bf16.msra.mxu0 %v3533
        %3919 = vmatprep.subr.bf16.mxu0 %v3536
        %3920 = vmatpush1.bf16.msra.mxu0 %v3535
        %3921 = vmatprep.subr.bf16.mxu0 %v3538
        %3922 = vmatpush1.bf16.msra.mxu0 %v3537
        %3923 = vmatprep.mubr.bf16.mxu0 %v801
        %3924 = vmatmul.mubr.bf16.gmra.mrb[0].mxu0 %v800
        %v3925 = vpop.f32.mrb[0].mxu0
        %v3926 = vadd.f32 %v2853, %v3925
        %v3927 = vpop.f32.mrb[0].mxu0
        %v3928 = vadd.f32 %v2855, %v3927
        %v3929 = vpop.f32.mrb[0].mxu0
        %v3930 = vadd.f32 %v2857, %v3929
        %v3931 = vpop.f32.mrb[0].mxu0
        %v3932 = vadd.f32 %v2859, %v3931
        %3933 = vmatprep.mubr.bf16.mxu0 %v813
        %3934 = vmatmul.mubr.bf16.gmra.mrb[0].mxu0 %v812
        %v3935 = vpop.f32.mrb[0].mxu0
        %v3936 = vadd.f32 %v2863, %v3935
        %v3937 = vpop.f32.mrb[0].mxu0
        %v3938 = vadd.f32 %v2865, %v3937
        %v3939 = vpop.f32.mrb[0].mxu0
        %v3940 = vadd.f32 %v2867, %v3939
        %v3941 = vpop.f32.mrb[0].mxu0
        %v3942 = vadd.f32 %v2869, %v3941
        %3943 = vmatprep.mubr.bf16.mxu0 %v825
        %3944 = vmatmul.mubr.bf16.gmra.mrb[0].mxu0 %v824
        %v3945 = vpop.f32.mrb[0].mxu0
        %v3946 = vadd.f32 %v2873, %v3945
        %v3947 = vpop.f32.mrb[0].mxu0
        %v3948 = vadd.f32 %v2875, %v3947
        %v3949 = vpop.f32.mrb[0].mxu0
        %v3950 = vadd.f32 %v2877, %v3949
        %v3951 = vpop.f32.mrb[0].mxu0
        %v3952 = vadd.f32 %v2879, %v3951
        %3953 = vmatprep.mubr.bf16.mxu0 %v837
        %3954 = vmatmul.mubr.bf16.gmra.mrb[0].mxu0 %v836
        %v3955 = vpop.f32.mrb[0].mxu0
        %v3956 = vadd.f32 %v2883, %v3955
        %v3957 = vpop.f32.mrb[0].mxu0
        %v3958 = vadd.f32 %v2885, %v3957
        %v3959 = vpop.f32.mrb[0].mxu0
        %v3960 = vadd.f32 %v2887, %v3959
        %v3961 = vpop.f32.mrb[0].mxu0
        %v3962 = vadd.f32 %v2889, %v3961
        %3963 = vmatprep.mubr.bf16.mxu0 %v849
        %3964 = vmatmul.mubr.bf16.gmra.mrb[0].mxu0 %v848
        %v3965 = vpop.f32.mrb[0].mxu0
        %v3966 = vadd.f32 %v2893, %v3965
        %v3967 = vpop.f32.mrb[0].mxu0
        %v3968 = vadd.f32 %v2895, %v3967
        %v3969 = vpop.f32.mrb[0].mxu0
        %v3970 = vadd.f32 %v2897, %v3969
        %v3971 = vpop.f32.mrb[0].mxu0
        %v3972 = vadd.f32 %v2899, %v3971
        %3973 = vmatprep.mubr.bf16.mxu0 %v861
        %3974 = vmatmul.mubr.bf16.gmra.mrb[0].mxu0 %v860
        %v3975 = vpop.f32.mrb[0].mxu0
        %v3976 = vadd.f32 %v2903, %v3975
        %v3977 = vpop.f32.mrb[0].mxu0
        %v3978 = vadd.f32 %v2905, %v3977
        %v3979 = vpop.f32.mrb[0].mxu0
        %v3980 = vadd.f32 %v2907, %v3979
        %v3981 = vpop.f32.mrb[0].mxu0
        %v3982 = vadd.f32 %v2909, %v3981
        %3983 = vmatprep.mubr.bf16.mxu0 %v873
        %3984 = vmatmul.mubr.bf16.gmra.mrb[0].mxu0 %v872
        %v3985 = vpop.f32.mrb[0].mxu0
        %v3986 = vadd.f32 %v2913, %v3985
        %v3987 = vpop.f32.mrb[0].mxu0
        %v3988 = vadd.f32 %v2915, %v3987
        %v3989 = vpop.f32.mrb[0].mxu0
        %v3990 = vadd.f32 %v2917, %v3989
        %v3991 = vpop.f32.mrb[0].mxu0
        %v3992 = vadd.f32 %v2919, %v3991
        %3993 = vmatprep.mubr.bf16.mxu0 %v885
        %3994 = vmatmul.mubr.bf16.gmra.mrb[0].mxu0 %v884
        %v3995 = vpop.f32.mrb[0].mxu0
        %v3996 = vadd.f32 %v2923, %v3995
        %v3997 = vpop.f32.mrb[0].mxu0
        %v3998 = vadd.f32 %v2925, %v3997
        %v3999 = vpop.f32.mrb[0].mxu0
        %v4000 = vadd.f32 %v2927, %v3999
        %v4001 = vpop.f32.mrb[0].mxu0
        %v4002 = vadd.f32 %v2929, %v4001
        %4003 = vdwg.mxu0
        %4004 = vmatprep.subr.bf16.mxu0 %v3540
        %4005 = vmatpush1.bf16.msra.mxu0 %v3539
        %4006 = vmatprep.subr.bf16.mxu0 %v3542
        %4007 = vmatpush1.bf16.msra.mxu0 %v3541
        %4008 = vmatprep.subr.bf16.mxu0 %v3544
        %4009 = vmatpush1.bf16.msra.mxu0 %v3543
        %4010 = vmatprep.subr.bf16.mxu0 %v3546
        %4011 = vmatpush1.bf16.msra.mxu0 %v3545
        %4012 = vmatprep.subr.bf16.mxu0 %v3548
        %4013 = vmatpush1.bf16.msra.mxu0 %v3547
        %4014 = vmatprep.subr.bf16.mxu0 %v3550
        %4015 = vmatpush1.bf16.msra.mxu0 %v3549
        %4016 = vmatprep.subr.bf16.mxu0 %v3552
        %4017 = vmatpush1.bf16.msra.mxu0 %v3551
        %4018 = vmatprep.subr.bf16.mxu0 %v3554
        %4019 = vmatpush1.bf16.msra.mxu0 %v3553
        %4020 = vmatprep.subr.bf16.mxu0 %v3556
        %4021 = vmatpush1.bf16.msra.mxu0 %v3555
        %4022 = vmatprep.subr.bf16.mxu0 %v3558
        %4023 = vmatpush1.bf16.msra.mxu0 %v3557
        %4024 = vmatprep.subr.bf16.mxu0 %v3560
        %4025 = vmatpush1.bf16.msra.mxu0 %v3559
        %4026 = vmatprep.subr.bf16.mxu0 %v3562
        %4027 = vmatpush1.bf16.msra.mxu0 %v3561
        %4028 = vmatprep.subr.bf16.mxu0 %v3564
        %4029 = vmatpush1.bf16.msra.mxu0 %v3563
        %4030 = vmatprep.subr.bf16.mxu0 %v3566
        %4031 = vmatpush1.bf16.msra.mxu0 %v3565
        %4032 = vmatprep.subr.bf16.mxu0 %v3568
        %4033 = vmatpush1.bf16.msra.mxu0 %v3567
        %4034 = vmatprep.subr.bf16.mxu0 %v3570
        %4035 = vmatpush1.bf16.msra.mxu0 %v3569
        %4036 = vmatprep.mubr.bf16.mxu0 %v803
        %4037 = vmatmul.mubr.bf16.gmra.mrb[0].mxu0 %v802
        %v4038 = vpop.f32.mrb[0].mxu0
        %v4039 = vadd.f32 %v3926, %v4038
        %v4040 = vpop.f32.mrb[0].mxu0
        %v4041 = vadd.f32 %v3928, %v4040
        %v4042 = vpop.f32.mrb[0].mxu0
        %v4043 = vadd.f32 %v3930, %v4042
        %v4044 = vpop.f32.mrb[0].mxu0
        %v4045 = vadd.f32 %v3932, %v4044
        %4046 = vmatprep.mubr.bf16.mxu0 %v815
        %4047 = vmatmul.mubr.bf16.gmra.mrb[0].mxu0 %v814
        %v4048 = vpop.f32.mrb[0].mxu0
        %v4049 = vadd.f32 %v3936, %v4048
        %v4050 = vpop.f32.mrb[0].mxu0
        %v4051 = vadd.f32 %v3938, %v4050
        %v4052 = vpop.f32.mrb[0].mxu0
        %v4053 = vadd.f32 %v3940, %v4052
        %v4054 = vpop.f32.mrb[0].mxu0
        %v4055 = vadd.f32 %v3942, %v4054
        %4056 = vmatprep.mubr.bf16.mxu0 %v827
        %4057 = vmatmul.mubr.bf16.gmra.mrb[0].mxu0 %v826
        %v4058 = vpop.f32.mrb[0].mxu0
        %v4059 = vadd.f32 %v3946, %v4058
        %v4060 = vpop.f32.mrb[0].mxu0
        %v4061 = vadd.f32 %v3948, %v4060
        %v4062 = vpop.f32.mrb[0].mxu0
        %v4063 = vadd.f32 %v3950, %v4062
        %v4064 = vpop.f32.mrb[0].mxu0
        %v4065 = vadd.f32 %v3952, %v4064
        %4066 = vmatprep.mubr.bf16.mxu0 %v839
        %4067 = vmatmul.mubr.bf16.gmra.mrb[0].mxu0 %v838
        %v4068 = vpop.f32.mrb[0].mxu0
        %v4069 = vadd.f32 %v3956, %v4068
        %v4070 = vpop.f32.mrb[0].mxu0
        %v4071 = vadd.f32 %v3958, %v4070
        %v4072 = vpop.f32.mrb[0].mxu0
        %v4073 = vadd.f32 %v3960, %v4072
        %v4074 = vpop.f32.mrb[0].mxu0
        %v4075 = vadd.f32 %v3962, %v4074
        %4076 = vmatprep.mubr.bf16.mxu0 %v851
        %4077 = vmatmul.mubr.bf16.gmra.mrb[0].mxu0 %v850
        %v4078 = vpop.f32.mrb[0].mxu0
        %v4079 = vadd.f32 %v3966, %v4078
        %v4080 = vpop.f32.mrb[0].mxu0
        %v4081 = vadd.f32 %v3968, %v4080
        %v4082 = vpop.f32.mrb[0].mxu0
        %v4083 = vadd.f32 %v3970, %v4082
        %v4084 = vpop.f32.mrb[0].mxu0
        %v4085 = vadd.f32 %v3972, %v4084
        %4086 = vmatprep.mubr.bf16.mxu0 %v863
        %4087 = vmatmul.mubr.bf16.gmra.mrb[0].mxu0 %v862
        %v4088 = vpop.f32.mrb[0].mxu0
        %v4089 = vadd.f32 %v3976, %v4088
        %v4090 = vpop.f32.mrb[0].mxu0
        %v4091 = vadd.f32 %v3978, %v4090
        %v4092 = vpop.f32.mrb[0].mxu0
        %v4093 = vadd.f32 %v3980, %v4092
        %v4094 = vpop.f32.mrb[0].mxu0
        %v4095 = vadd.f32 %v3982, %v4094
        %4096 = vmatprep.mubr.bf16.mxu0 %v875
        %4097 = vmatmul.mubr.bf16.gmra.mrb[0].mxu0 %v874
        %v4098 = vpop.f32.mrb[0].mxu0
        %v4099 = vadd.f32 %v3986, %v4098
        %v4100 = vpop.f32.mrb[0].mxu0
        %v4101 = vadd.f32 %v3988, %v4100
        %v4102 = vpop.f32.mrb[0].mxu0
        %v4103 = vadd.f32 %v3990, %v4102
        %v4104 = vpop.f32.mrb[0].mxu0
        %v4105 = vadd.f32 %v3992, %v4104
        %4106 = vmatprep.mubr.bf16.mxu0 %v887
        %4107 = vmatmul.mubr.bf16.gmra.mrb[0].mxu0 %v886
        %v4108 = vpop.f32.mrb[0].mxu0
        %v4109 = vadd.f32 %v3996, %v4108
        %v4110 = vpop.f32.mrb[0].mxu0
        %v4111 = vadd.f32 %v3998, %v4110
        %v4112 = vpop.f32.mrb[0].mxu0
        %v4113 = vadd.f32 %v4000, %v4112
        %v4114 = vpop.f32.mrb[0].mxu0
        %v4115 = vadd.f32 %v4002, %v4114
        %4116 = vdwg.mxu0
        %4117 = vmatprep.subr.bf16.mxu0 %v3572
        %4118 = vmatpush1.bf16.msra.mxu0 %v3571
        %4119 = vmatprep.subr.bf16.mxu0 %v3574
        %4120 = vmatpush1.bf16.msra.mxu0 %v3573
        %4121 = vmatprep.subr.bf16.mxu0 %v3576
        %4122 = vmatpush1.bf16.msra.mxu0 %v3575
        %4123 = vmatprep.subr.bf16.mxu0 %v3578
        %4124 = vmatpush1.bf16.msra.mxu0 %v3577
        %4125 = vmatprep.subr.bf16.mxu0 %v3580
        %4126 = vmatpush1.bf16.msra.mxu0 %v3579
        %4127 = vmatprep.subr.bf16.mxu0 %v3582
        %4128 = vmatpush1.bf16.msra.mxu0 %v3581
        %4129 = vmatprep.subr.bf16.mxu0 %v3584
        %4130 = vmatpush1.bf16.msra.mxu0 %v3583
        %4131 = vmatprep.subr.bf16.mxu0 %v3586
        %4132 = vmatpush1.bf16.msra.mxu0 %v3585
        %4133 = vmatprep.subr.bf16.mxu0 %v3588
        %4134 = vmatpush1.bf16.msra.mxu0 %v3587
        %4135 = vmatprep.subr.bf16.mxu0 %v3590
        %4136 = vmatpush1.bf16.msra.mxu0 %v3589
        %4137 = vmatprep.subr.bf16.mxu0 %v3592
        %4138 = vmatpush1.bf16.msra.mxu0 %v3591
        %4139 = vmatprep.subr.bf16.mxu0 %v3594
        %4140 = vmatpush1.bf16.msra.mxu0 %v3593
        %4141 = vmatprep.subr.bf16.mxu0 %v3596
        %4142 = vmatpush1.bf16.msra.mxu0 %v3595
        %4143 = vmatprep.subr.bf16.mxu0 %v3598
        %4144 = vmatpush1.bf16.msra.mxu0 %v3597
        %4145 = vmatprep.subr.bf16.mxu0 %v3600
        %4146 = vmatpush1.bf16.msra.mxu0 %v3599
        %4147 = vmatprep.subr.bf16.mxu0 %v3602
        %4148 = vmatpush1.bf16.msra.mxu0 %v3601
        %4149 = vmatprep.mubr.bf16.mxu0 %v805
        %4150 = vmatmul.mubr.bf16.gmra.mrb[0].mxu0 %v804
        %v4151 = vpop.f32.mrb[0].mxu0
        %v4152 = vadd.f32 %v4039, %v4151
        %v4153 = vpop.f32.mrb[0].mxu0
        %v4154 = vadd.f32 %v4041, %v4153
        %v4155 = vpop.f32.mrb[0].mxu0
        %v4156 = vadd.f32 %v4043, %v4155
        %v4157 = vpop.f32.mrb[0].mxu0
        %v4158 = vadd.f32 %v4045, %v4157
        %4159 = vmatprep.mubr.bf16.mxu0 %v817
        %4160 = vmatmul.mubr.bf16.gmra.mrb[0].mxu0 %v816
        %v4161 = vpop.f32.mrb[0].mxu0
        %v4162 = vadd.f32 %v4049, %v4161
        %v4163 = vpop.f32.mrb[0].mxu0
        %v4164 = vadd.f32 %v4051, %v4163
        %v4165 = vpop.f32.mrb[0].mxu0
        %v4166 = vadd.f32 %v4053, %v4165
        %v4167 = vpop.f32.mrb[0].mxu0
        %v4168 = vadd.f32 %v4055, %v4167
        %4169 = vmatprep.mubr.bf16.mxu0 %v829
        %4170 = vmatmul.mubr.bf16.gmra.mrb[0].mxu0 %v828
        %v4171 = vpop.f32.mrb[0].mxu0
        %v4172 = vadd.f32 %v4059, %v4171
        %v4173 = vpop.f32.mrb[0].mxu0
        %v4174 = vadd.f32 %v4061, %v4173
        %v4175 = vpop.f32.mrb[0].mxu0
        %v4176 = vadd.f32 %v4063, %v4175
        %v4177 = vpop.f32.mrb[0].mxu0
        %v4178 = vadd.f32 %v4065, %v4177
        %4179 = vmatprep.mubr.bf16.mxu0 %v841
        %4180 = vmatmul.mubr.bf16.gmra.mrb[0].mxu0 %v840
        %v4181 = vpop.f32.mrb[0].mxu0
        %v4182 = vadd.f32 %v4069, %v4181
        %v4183 = vpop.f32.mrb[0].mxu0
        %v4184 = vadd.f32 %v4071, %v4183
        %v4185 = vpop.f32.mrb[0].mxu0
        %v4186 = vadd.f32 %v4073, %v4185
        %v4187 = vpop.f32.mrb[0].mxu0
        %v4188 = vadd.f32 %v4075, %v4187
        %4189 = vmatprep.mubr.bf16.mxu0 %v853
        %4190 = vmatmul.mubr.bf16.gmra.mrb[0].mxu0 %v852
        %v4191 = vpop.f32.mrb[0].mxu0
        %v4192 = vadd.f32 %v4079, %v4191
        %v4193 = vpop.f32.mrb[0].mxu0
        %v4194 = vadd.f32 %v4081, %v4193
        %v4195 = vpop.f32.mrb[0].mxu0
        %v4196 = vadd.f32 %v4083, %v4195
        %v4197 = vpop.f32.mrb[0].mxu0
        %v4198 = vadd.f32 %v4085, %v4197
        %4199 = vmatprep.mubr.bf16.mxu0 %v865
        %4200 = vmatmul.mubr.bf16.gmra.mrb[0].mxu0 %v864
        %v4201 = vpop.f32.mrb[0].mxu0
        %v4202 = vadd.f32 %v4089, %v4201
        %v4203 = vpop.f32.mrb[0].mxu0
        %v4204 = vadd.f32 %v4091, %v4203
        %v4205 = vpop.f32.mrb[0].mxu0
        %v4206 = vadd.f32 %v4093, %v4205
        %v4207 = vpop.f32.mrb[0].mxu0
        %v4208 = vadd.f32 %v4095, %v4207
        %4209 = vmatprep.mubr.bf16.mxu0 %v877
        %4210 = vmatmul.mubr.bf16.gmra.mrb[0].mxu0 %v876
        %v4211 = vpop.f32.mrb[0].mxu0
        %v4212 = vadd.f32 %v4099, %v4211
        %v4213 = vpop.f32.mrb[0].mxu0
        %v4214 = vadd.f32 %v4101, %v4213
        %v4215 = vpop.f32.mrb[0].mxu0
        %v4216 = vadd.f32 %v4103, %v4215
        %v4217 = vpop.f32.mrb[0].mxu0
        %v4218 = vadd.f32 %v4105, %v4217
        %4219 = vmatprep.mubr.bf16.mxu0 %v889
        %4220 = vmatmul.mubr.bf16.gmra.mrb[0].mxu0 %v888
        %v4221 = vpop.f32.mrb[0].mxu0
        %v4222 = vadd.f32 %v4109, %v4221
        %v4223 = vpop.f32.mrb[0].mxu0
        %v4224 = vadd.f32 %v4111, %v4223
        %v4225 = vpop.f32.mrb[0].mxu0
        %v4226 = vadd.f32 %v4113, %v4225
        %v4227 = vpop.f32.mrb[0].mxu0
        %v4228 = vadd.f32 %v4115, %v4227
        %4229 = vdwg.mxu0
        %4230 = vmatprep.subr.bf16.mxu0 %v3604
        %4231 = vmatpush1.bf16.msra.mxu0 %v3603
        %4232 = vmatprep.subr.bf16.mxu0 %v3606
        %4233 = vmatpush1.bf16.msra.mxu0 %v3605
        %4234 = vmatprep.subr.bf16.mxu0 %v3608
        %4235 = vmatpush1.bf16.msra.mxu0 %v3607
        %4236 = vmatprep.subr.bf16.mxu0 %v3610
        %4237 = vmatpush1.bf16.msra.mxu0 %v3609
        %4238 = vmatprep.subr.bf16.mxu0 %v3612
        %4239 = vmatpush1.bf16.msra.mxu0 %v3611
        %4240 = vmatprep.subr.bf16.mxu0 %v3614
        %4241 = vmatpush1.bf16.msra.mxu0 %v3613
        %4242 = vmatprep.subr.bf16.mxu0 %v3616
        %4243 = vmatpush1.bf16.msra.mxu0 %v3615
        %4244 = vmatprep.subr.bf16.mxu0 %v3618
        %4245 = vmatpush1.bf16.msra.mxu0 %v3617
        %4246 = vmatprep.subr.bf16.mxu0 %v3620
        %4247 = vmatpush1.bf16.msra.mxu0 %v3619
        %4248 = vmatprep.subr.bf16.mxu0 %v3622
        %4249 = vmatpush1.bf16.msra.mxu0 %v3621
        %4250 = vmatprep.subr.bf16.mxu0 %v3624
        %4251 = vmatpush1.bf16.msra.mxu0 %v3623
        %4252 = vmatprep.subr.bf16.mxu0 %v3626
        %4253 = vmatpush1.bf16.msra.mxu0 %v3625
        %4254 = vmatprep.subr.bf16.mxu0 %v3628
        %4255 = vmatpush1.bf16.msra.mxu0 %v3627
        %4256 = vmatprep.subr.bf16.mxu0 %v3630
        %4257 = vmatpush1.bf16.msra.mxu0 %v3629
        %4258 = vmatprep.subr.bf16.mxu0 %v3632
        %4259 = vmatpush1.bf16.msra.mxu0 %v3631
        %4260 = vmatprep.subr.bf16.mxu0 %v3634
        %4261 = vmatpush1.bf16.msra.mxu0 %v3633
        %4262 = vmatprep.mubr.bf16.mxu0 %v807
        %4263 = vmatmul.mubr.bf16.gmra.mrb[0].mxu0 %v806
        %v4264 = vpop.f32.mrb[0].mxu0
        %v4265 = vadd.f32 %v4152, %v4264
        %v4266 = vpop.f32.mrb[0].mxu0
        %v4267 = vadd.f32 %v4154, %v4266
        %v4268 = vpop.f32.mrb[0].mxu0
        %v4269 = vadd.f32 %v4156, %v4268
        %v4270 = vpop.f32.mrb[0].mxu0
        %v4271 = vadd.f32 %v4158, %v4270
        %4272 = vmatprep.mubr.bf16.mxu0 %v819
        %4273 = vmatmul.mubr.bf16.gmra.mrb[0].mxu0 %v818
        %v4274 = vpop.f32.mrb[0].mxu0
        %v4275 = vadd.f32 %v4162, %v4274
        %v4276 = vpop.f32.mrb[0].mxu0
        %v4277 = vadd.f32 %v4164, %v4276
        %v4278 = vpop.f32.mrb[0].mxu0
        %v4279 = vadd.f32 %v4166, %v4278
        %v4280 = vpop.f32.mrb[0].mxu0
        %v4281 = vadd.f32 %v4168, %v4280
        %4282 = vmatprep.mubr.bf16.mxu0 %v831
        %4283 = vmatmul.mubr.bf16.gmra.mrb[0].mxu0 %v830
        %v4284 = vpop.f32.mrb[0].mxu0
        %v4285 = vadd.f32 %v4172, %v4284
        %v4286 = vpop.f32.mrb[0].mxu0
        %v4287 = vadd.f32 %v4174, %v4286
        %v4288 = vpop.f32.mrb[0].mxu0
        %v4289 = vadd.f32 %v4176, %v4288
        %v4290 = vpop.f32.mrb[0].mxu0
        %v4291 = vadd.f32 %v4178, %v4290
        %4292 = vmatprep.mubr.bf16.mxu0 %v843
        %4293 = vmatmul.mubr.bf16.gmra.mrb[0].mxu0 %v842
        %v4294 = vpop.f32.mrb[0].mxu0
        %v4295 = vadd.f32 %v4182, %v4294
        %v4296 = vpop.f32.mrb[0].mxu0
        %v4297 = vadd.f32 %v4184, %v4296
        %v4298 = vpop.f32.mrb[0].mxu0
        %v4299 = vadd.f32 %v4186, %v4298
        %v4300 = vpop.f32.mrb[0].mxu0
        %v4301 = vadd.f32 %v4188, %v4300
        %4302 = vmatprep.mubr.bf16.mxu0 %v855
        %4303 = vmatmul.mubr.bf16.gmra.mrb[0].mxu0 %v854
        %v4304 = vpop.f32.mrb[0].mxu0
        %v4305 = vadd.f32 %v4192, %v4304
        %v4306 = vpop.f32.mrb[0].mxu0
        %v4307 = vadd.f32 %v4194, %v4306
        %v4308 = vpop.f32.mrb[0].mxu0
        %v4309 = vadd.f32 %v4196, %v4308
        %v4310 = vpop.f32.mrb[0].mxu0
        %v4311 = vadd.f32 %v4198, %v4310
        %4312 = vmatprep.mubr.bf16.mxu0 %v867
        %4313 = vmatmul.mubr.bf16.gmra.mrb[0].mxu0 %v866
        %v4314 = vpop.f32.mrb[0].mxu0
        %v4315 = vadd.f32 %v4202, %v4314
        %v4316 = vpop.f32.mrb[0].mxu0
        %v4317 = vadd.f32 %v4204, %v4316
        %v4318 = vpop.f32.mrb[0].mxu0
        %v4319 = vadd.f32 %v4206, %v4318
        %v4320 = vpop.f32.mrb[0].mxu0
        %v4321 = vadd.f32 %v4208, %v4320
        %4322 = vmatprep.mubr.bf16.mxu0 %v879
        %4323 = vmatmul.mubr.bf16.gmra.mrb[0].mxu0 %v878
        %v4324 = vpop.f32.mrb[0].mxu0
        %v4325 = vadd.f32 %v4212, %v4324
        %v4326 = vpop.f32.mrb[0].mxu0
        %v4327 = vadd.f32 %v4214, %v4326
        %v4328 = vpop.f32.mrb[0].mxu0
        %v4329 = vadd.f32 %v4216, %v4328
        %v4330 = vpop.f32.mrb[0].mxu0
        %v4331 = vadd.f32 %v4218, %v4330
        %4332 = vmatprep.mubr.bf16.mxu0 %v891
        %4333 = vmatmul.mubr.bf16.gmra.mrb[0].mxu0 %v890
        %v4334 = vpop.f32.mrb[0].mxu0
        %v4335 = vadd.f32 %v4222, %v4334
        %v4336 = vpop.f32.mrb[0].mxu0
        %v4337 = vadd.f32 %v4224, %v4336
        %v4338 = vpop.f32.mrb[0].mxu0
        %v4339 = vadd.f32 %v4226, %v4338
        %v4340 = vpop.f32.mrb[0].mxu0
        %v4341 = vadd.f32 %v4228, %v4340
        %4342 = vdwg.mxu0
        %4343 = vmatprep.subr.bf16.mxu0 %v3636
        %4344 = vmatpush1.bf16.msra.mxu0 %v3635
        %4345 = vmatprep.subr.bf16.mxu0 %v3638
        %4346 = vmatpush1.bf16.msra.mxu0 %v3637
        %4347 = vmatprep.subr.bf16.mxu0 %v3640
        %4348 = vmatpush1.bf16.msra.mxu0 %v3639
        %4349 = vmatprep.subr.bf16.mxu0 %v3642
        %4350 = vmatpush1.bf16.msra.mxu0 %v3641
        %4351 = vmatprep.subr.bf16.mxu0 %v3644
        %4352 = vmatpush1.bf16.msra.mxu0 %v3643
        %4353 = vmatprep.subr.bf16.mxu0 %v3646
        %4354 = vmatpush1.bf16.msra.mxu0 %v3645
        %4355 = vmatprep.subr.bf16.mxu0 %v3648
        %4356 = vmatpush1.bf16.msra.mxu0 %v3647
        %4357 = vmatprep.subr.bf16.mxu0 %v3650
        %4358 = vmatpush1.bf16.msra.mxu0 %v3649
        %4359 = vmatprep.subr.bf16.mxu0 %v3652
        %4360 = vmatpush1.bf16.msra.mxu0 %v3651
        %4361 = vmatprep.subr.bf16.mxu0 %v3654
        %4362 = vmatpush1.bf16.msra.mxu0 %v3653
        %4363 = vmatprep.subr.bf16.mxu0 %v3656
        %4364 = vmatpush1.bf16.msra.mxu0 %v3655
        %4365 = vmatprep.subr.bf16.mxu0 %v3658
        %4366 = vmatpush1.bf16.msra.mxu0 %v3657
        %4367 = vmatprep.subr.bf16.mxu0 %v3660
        %4368 = vmatpush1.bf16.msra.mxu0 %v3659
        %4369 = vmatprep.subr.bf16.mxu0 %v3662
        %4370 = vmatpush1.bf16.msra.mxu0 %v3661
        %4371 = vmatprep.subr.bf16.mxu0 %v3664
        %4372 = vmatpush1.bf16.msra.mxu0 %v3663
        %4373 = vmatprep.subr.bf16.mxu0 %v3666
        %4374 = vmatpush1.bf16.msra.mxu0 %v3665
        %4375 = vmatprep.mubr.bf16.mxu0 %v809
        %4376 = vmatmul.mubr.bf16.gmra.mrb[0].mxu0 %v808
        %v4377 = vpop.f32.mrb[0].mxu0
        %v4378 = vadd.f32 %v4265, %v4377
        %v4379 = vpop.f32.mrb[0].mxu0
        %v4380 = vadd.f32 %v4267, %v4379
        %v4381 = vpop.f32.mrb[0].mxu0
        %v4382 = vadd.f32 %v4269, %v4381
        %v4383 = vpop.f32.mrb[0].mxu0
        %v4384 = vadd.f32 %v4271, %v4383
        %4385 = vmatprep.mubr.bf16.mxu0 %v821
        %4386 = vmatmul.mubr.bf16.gmra.mrb[0].mxu0 %v820
        %v4387 = vpop.f32.mrb[0].mxu0
        %v4388 = vadd.f32 %v4275, %v4387
        %v4389 = vpop.f32.mrb[0].mxu0
        %v4390 = vadd.f32 %v4277, %v4389
        %v4391 = vpop.f32.mrb[0].mxu0
        %v4392 = vadd.f32 %v4279, %v4391
        %v4393 = vpop.f32.mrb[0].mxu0
        %v4394 = vadd.f32 %v4281, %v4393
        %4395 = vmatprep.mubr.bf16.mxu0 %v833
        %4396 = vmatmul.mubr.bf16.gmra.mrb[0].mxu0 %v832
        %v4397 = vpop.f32.mrb[0].mxu0
        %v4398 = vadd.f32 %v4285, %v4397
        %v4399 = vpop.f32.mrb[0].mxu0
        %v4400 = vadd.f32 %v4287, %v4399
        %v4401 = vpop.f32.mrb[0].mxu0
        %v4402 = vadd.f32 %v4289, %v4401
        %v4403 = vpop.f32.mrb[0].mxu0
        %v4404 = vadd.f32 %v4291, %v4403
        %4405 = vmatprep.mubr.bf16.mxu0 %v845
        %4406 = vmatmul.mubr.bf16.gmra.mrb[0].mxu0 %v844
        %v4407 = vpop.f32.mrb[0].mxu0
        %v4408 = vadd.f32 %v4295, %v4407
        %v4409 = vpop.f32.mrb[0].mxu0
        %v4410 = vadd.f32 %v4297, %v4409
        %v4411 = vpop.f32.mrb[0].mxu0
        %v4412 = vadd.f32 %v4299, %v4411
        %v4413 = vpop.f32.mrb[0].mxu0
        %v4414 = vadd.f32 %v4301, %v4413
        %4415 = vmatprep.mubr.bf16.mxu0 %v857
        %4416 = vmatmul.mubr.bf16.gmra.mrb[0].mxu0 %v856
        %v4417 = vpop.f32.mrb[0].mxu0
        %v4418 = vadd.f32 %v4305, %v4417
        %v4419 = vpop.f32.mrb[0].mxu0
        %v4420 = vadd.f32 %v4307, %v4419
        %v4421 = vpop.f32.mrb[0].mxu0
        %v4422 = vadd.f32 %v4309, %v4421
        %v4423 = vpop.f32.mrb[0].mxu0
        %v4424 = vadd.f32 %v4311, %v4423
        %4425 = vmatprep.mubr.bf16.mxu0 %v869
        %4426 = vmatmul.mubr.bf16.gmra.mrb[0].mxu0 %v868
        %v4427 = vpop.f32.mrb[0].mxu0
        %v4428 = vadd.f32 %v4315, %v4427
        %v4429 = vpop.f32.mrb[0].mxu0
        %v4430 = vadd.f32 %v4317, %v4429
        %v4431 = vpop.f32.mrb[0].mxu0
        %v4432 = vadd.f32 %v4319, %v4431
        %v4433 = vpop.f32.mrb[0].mxu0
        %v4434 = vadd.f32 %v4321, %v4433
        %4435 = vmatprep.mubr.bf16.mxu0 %v881
        %4436 = vmatmul.mubr.bf16.gmra.mrb[0].mxu0 %v880
        %v4437 = vpop.f32.mrb[0].mxu0
        %v4438 = vadd.f32 %v4325, %v4437
        %v4439 = vpop.f32.mrb[0].mxu0
        %v4440 = vadd.f32 %v4327, %v4439
        %v4441 = vpop.f32.mrb[0].mxu0
        %v4442 = vadd.f32 %v4329, %v4441
        %v4443 = vpop.f32.mrb[0].mxu0
        %v4444 = vadd.f32 %v4331, %v4443
        %4445 = vmatprep.mubr.bf16.mxu0 %v893
        %4446 = vmatmul.mubr.bf16.gmra.mrb[0].mxu0 %v892
        %v4447 = vpop.f32.mrb[0].mxu0
        %v4448 = vadd.f32 %v4335, %v4447
        %v4449 = vpop.f32.mrb[0].mxu0
        %v4450 = vadd.f32 %v4337, %v4449
        %v4451 = vpop.f32.mrb[0].mxu0
        %v4452 = vadd.f32 %v4339, %v4451
        %v4453 = vpop.f32.mrb[0].mxu0
        %v4454 = vadd.f32 %v4341, %v4453
        %4455 = vdwg.mxu0
        %4456 = vmatprep.subr.bf16.mxu0 %v3668
        %4457 = vmatpush1.bf16.msra.mxu0 %v3667
        %4458 = vmatprep.subr.bf16.mxu0 %v3670
        %4459 = vmatpush1.bf16.msra.mxu0 %v3669
        %4460 = vmatprep.subr.bf16.mxu0 %v3672
        %4461 = vmatpush1.bf16.msra.mxu0 %v3671
        %4462 = vmatprep.subr.bf16.mxu0 %v3674
        %4463 = vmatpush1.bf16.msra.mxu0 %v3673
        %4464 = vmatprep.subr.bf16.mxu0 %v3676
        %4465 = vmatpush1.bf16.msra.mxu0 %v3675
        %4466 = vmatprep.subr.bf16.mxu0 %v3678
        %4467 = vmatpush1.bf16.msra.mxu0 %v3677
        %4468 = vmatprep.subr.bf16.mxu0 %v3680
        %4469 = vmatpush1.bf16.msra.mxu0 %v3679
        %4470 = vmatprep.subr.bf16.mxu0 %v3682
        %4471 = vmatpush1.bf16.msra.mxu0 %v3681
        %4472 = vmatprep.subr.bf16.mxu0 %v3684
        %4473 = vmatpush1.bf16.msra.mxu0 %v3683
        %4474 = vmatprep.subr.bf16.mxu0 %v3686
        %4475 = vmatpush1.bf16.msra.mxu0 %v3685
        %4476 = vmatprep.subr.bf16.mxu0 %v3688
        %4477 = vmatpush1.bf16.msra.mxu0 %v3687
        %4478 = vmatprep.subr.bf16.mxu0 %v3690
        %4479 = vmatpush1.bf16.msra.mxu0 %v3689
        %4480 = vmatprep.subr.bf16.mxu0 %v3692
        %4481 = vmatpush1.bf16.msra.mxu0 %v3691
        %4482 = vmatprep.subr.bf16.mxu0 %v3694
        %4483 = vmatpush1.bf16.msra.mxu0 %v3693
        %4484 = vmatprep.subr.bf16.mxu0 %v3696
        %4485 = vmatpush1.bf16.msra.mxu0 %v3695
        %4486 = vmatprep.subr.bf16.mxu0 %v3698
        %4487 = vmatpush1.bf16.msra.mxu0 %v3697
        %4488 = vmatprep.mubr.bf16.mxu0 %v811
        %4489 = vmatmul.mubr.bf16.gmra.mrb[0].mxu0 %v810
        %v4490 = vpop.f32.mrb[0].mxu0
        %v4491 = vadd.f32 %v4378, %v4490
        %v4492 = vpop.f32.mrb[0].mxu0
        %v4493 = vadd.f32 %v4380, %v4492
        %v4494 = vpop.f32.mrb[0].mxu0
        %v4495 = vadd.f32 %v4382, %v4494
        %v4496 = vpop.f32.mrb[0].mxu0
        %v4497 = vadd.f32 %v4384, %v4496
        %4498 = vmatprep.mubr.bf16.mxu0 %v823
        %4499 = vmatmul.mubr.bf16.gmra.mrb[0].mxu0 %v822
        %v4500 = vpop.f32.mrb[0].mxu0
        %v4501 = vadd.f32 %v4388, %v4500
        %v4502 = vpop.f32.mrb[0].mxu0
        %v4503 = vadd.f32 %v4390, %v4502
        %v4504 = vpop.f32.mrb[0].mxu0
        %v4505 = vadd.f32 %v4392, %v4504
        %v4506 = vpop.f32.mrb[0].mxu0
        %v4507 = vadd.f32 %v4394, %v4506
        %4508 = vmatprep.mubr.bf16.mxu0 %v835
        %4509 = vmatmul.mubr.bf16.gmra.mrb[0].mxu0 %v834
        %v4510 = vpop.f32.mrb[0].mxu0
        %v4511 = vadd.f32 %v4398, %v4510
        %v4512 = vpop.f32.mrb[0].mxu0
        %v4513 = vadd.f32 %v4400, %v4512
        %v4514 = vpop.f32.mrb[0].mxu0
        %v4515 = vadd.f32 %v4402, %v4514
        %v4516 = vpop.f32.mrb[0].mxu0
        %v4517 = vadd.f32 %v4404, %v4516
        %4518 = vmatprep.mubr.bf16.mxu0 %v847
        %4519 = vmatmul.mubr.bf16.gmra.mrb[0].mxu0 %v846
        %v4520 = vpop.f32.mrb[0].mxu0
        %v4521 = vadd.f32 %v4408, %v4520
        %v4522 = vpop.f32.mrb[0].mxu0
        %v4523 = vadd.f32 %v4410, %v4522
        %v4524 = vpop.f32.mrb[0].mxu0
        %v4525 = vadd.f32 %v4412, %v4524
        %v4526 = vpop.f32.mrb[0].mxu0
        %v4527 = vadd.f32 %v4414, %v4526
        %4528 = vmatprep.mubr.bf16.mxu0 %v859
        %4529 = vmatmul.mubr.bf16.gmra.mrb[0].mxu0 %v858
        %v4530 = vpop.f32.mrb[0].mxu0
        %v4531 = vadd.f32 %v4418, %v4530
        %v4532 = vpop.f32.mrb[0].mxu0
        %v4533 = vadd.f32 %v4420, %v4532
        %v4534 = vpop.f32.mrb[0].mxu0
        %v4535 = vadd.f32 %v4422, %v4534
        %v4536 = vpop.f32.mrb[0].mxu0
        %v4537 = vadd.f32 %v4424, %v4536
        %4538 = vmatprep.mubr.bf16.mxu0 %v871
        %4539 = vmatmul.mubr.bf16.gmra.mrb[0].mxu0 %v870
        %v4540 = vpop.f32.mrb[0].mxu0
        %v4541 = vadd.f32 %v4428, %v4540
        %v4542 = vpop.f32.mrb[0].mxu0
        %v4543 = vadd.f32 %v4430, %v4542
        %v4544 = vpop.f32.mrb[0].mxu0
        %v4545 = vadd.f32 %v4432, %v4544
        %v4546 = vpop.f32.mrb[0].mxu0
        %v4547 = vadd.f32 %v4434, %v4546
        %4548 = vmatprep.mubr.bf16.mxu0 %v883
        %4549 = vmatmul.mubr.bf16.gmra.mrb[0].mxu0 %v882
        %v4550 = vpop.f32.mrb[0].mxu0
        %v4551 = vadd.f32 %v4438, %v4550
        %v4552 = vpop.f32.mrb[0].mxu0
        %v4553 = vadd.f32 %v4440, %v4552
        %v4554 = vpop.f32.mrb[0].mxu0
        %v4555 = vadd.f32 %v4442, %v4554
        %v4556 = vpop.f32.mrb[0].mxu0
        %v4557 = vadd.f32 %v4444, %v4556
        %4558 = vmatprep.mubr.bf16.mxu0 %v895
        %4559 = vmatmul.mubr.bf16.gmra.mrb[0].mxu0 %v894
        %v4560 = vpop.f32.mrb[0].mxu0
        %v4561 = vadd.f32 %v4448, %v4560
        %v4562 = vpop.f32.mrb[0].mxu0
        %v4563 = vadd.f32 %v4450, %v4562
        %v4564 = vpop.f32.mrb[0].mxu0
        %v4565 = vadd.f32 %v4452, %v4564
        %v4566 = vpop.f32.mrb[0].mxu0
        %v4567 = vadd.f32 %v4454, %v4566
        %4568 = vdwg.mxu0
        %v4569 = vld [vmem:[#allocation2 + $0xc0] sm:$0xff]
        %v4570 = vld [vmem:[#allocation2 + $0xc8] sm:$0xff]
        %v4571 = vld [vmem:[#allocation2 + $0xd0] sm:$0xff]
        %v4572 = vld [vmem:[#allocation2 + $0xd8] sm:$0xff]
        %v4573 = vld [vmem:[#allocation2 + $0xe0] sm:$0xff]
        %v4574 = vld [vmem:[#allocation2 + $0xe8] sm:$0xff]
        %v4575 = vld [vmem:[#allocation2 + $0xf0] sm:$0xff]
        %v4576 = vld [vmem:[#allocation2 + $0xf8] sm:$0xff]
        %v4577 = vld [vmem:[#allocation2 + $0x100] sm:$0xff]
        %v4578 = vld [vmem:[#allocation2 + $0x108] sm:$0xff]
        %v4579 = vld [vmem:[#allocation2 + $0x110] sm:$0xff]
        %v4580 = vld [vmem:[#allocation2 + $0x118] sm:$0xff]
        %v4581 = vld [vmem:[#allocation2 + $0x120] sm:$0xff]
        %v4582 = vld [vmem:[#allocation2 + $0x128] sm:$0xff]
        %v4583 = vld [vmem:[#allocation2 + $0x130] sm:$0xff]
        %v4584 = vld [vmem:[#allocation2 + $0x138] sm:$0xff]
        %v4585 = vld [vmem:[#allocation2 + $0x140] sm:$0xff]
        %v4586 = vld [vmem:[#allocation2 + $0x148] sm:$0xff]
        %v4587 = vld [vmem:[#allocation2 + $0x150] sm:$0xff]
        %v4588 = vld [vmem:[#allocation2 + $0x158] sm:$0xff]
        %v4589 = vld [vmem:[#allocation2 + $0x160] sm:$0xff]
        %v4590 = vld [vmem:[#allocation2 + $0x168] sm:$0xff]
        %v4591 = vld [vmem:[#allocation2 + $0x170] sm:$0xff]
        %v4592 = vld [vmem:[#allocation2 + $0x178] sm:$0xff]
        %v4593 = vld [vmem:[#allocation2 + $0x180] sm:$0xff]
        %v4594 = vld [vmem:[#allocation2 + $0x188] sm:$0xff]
        %v4595 = vld [vmem:[#allocation2 + $0x190] sm:$0xff]
        %v4596 = vld [vmem:[#allocation2 + $0x198] sm:$0xff]
        %v4597 = vld [vmem:[#allocation2 + $0x1a0] sm:$0xff]
        %v4598 = vld [vmem:[#allocation2 + $0x1a8] sm:$0xff]
        %v4599 = vld [vmem:[#allocation2 + $0x1b0] sm:$0xff]
        %v4600 = vld [vmem:[#allocation2 + $0x1b8] sm:$0xff]
        %v4601 = vld [vmem:[#allocation2 + $0x1c0] sm:$0xff]
        %v4602 = vld [vmem:[#allocation2 + $0x1c8] sm:$0xff]
        %v4603 = vld [vmem:[#allocation2 + $0x1d0] sm:$0xff]
        %v4604 = vld [vmem:[#allocation2 + $0x1d8] sm:$0xff]
        %v4605 = vld [vmem:[#allocation2 + $0x1e0] sm:$0xff]
        %v4606 = vld [vmem:[#allocation2 + $0x1e8] sm:$0xff]
        %v4607 = vld [vmem:[#allocation2 + $0x1f0] sm:$0xff]
        %v4608 = vld [vmem:[#allocation2 + $0x1f8] sm:$0xff]
        %v4609 = vld [vmem:[#allocation2 + $0x200] sm:$0xff]
        %v4610 = vld [vmem:[#allocation2 + $0x208] sm:$0xff]
        %v4611 = vld [vmem:[#allocation2 + $0x210] sm:$0xff]
        %v4612 = vld [vmem:[#allocation2 + $0x218] sm:$0xff]
        %v4613 = vld [vmem:[#allocation2 + $0x220] sm:$0xff]
        %v4614 = vld [vmem:[#allocation2 + $0x228] sm:$0xff]
        %v4615 = vld [vmem:[#allocation2 + $0x230] sm:$0xff]
        %v4616 = vld [vmem:[#allocation2 + $0x238] sm:$0xff]
        %v4617 = vld [vmem:[#allocation2 + $0x240] sm:$0xff]
        %v4618 = vld [vmem:[#allocation2 + $0x248] sm:$0xff]
        %v4619 = vld [vmem:[#allocation2 + $0x250] sm:$0xff]
        %v4620 = vld [vmem:[#allocation2 + $0x258] sm:$0xff]
        %v4621 = vld [vmem:[#allocation2 + $0x260] sm:$0xff]
        %v4622 = vld [vmem:[#allocation2 + $0x268] sm:$0xff]
        %v4623 = vld [vmem:[#allocation2 + $0x270] sm:$0xff]
        %v4624 = vld [vmem:[#allocation2 + $0x278] sm:$0xff]
        %v4625 = vld [vmem:[#allocation2 + $0x280] sm:$0xff]
        %v4626 = vld [vmem:[#allocation2 + $0x288] sm:$0xff]
        %v4627 = vld [vmem:[#allocation2 + $0x290] sm:$0xff]
        %v4628 = vld [vmem:[#allocation2 + $0x298] sm:$0xff]
        %v4629 = vld [vmem:[#allocation2 + $0x2a0] sm:$0xff]
        %v4630 = vld [vmem:[#allocation2 + $0x2a8] sm:$0xff]
        %v4631 = vld [vmem:[#allocation2 + $0x2b0] sm:$0xff]
        %v4632 = vld [vmem:[#allocation2 + $0x2b8] sm:$0xff]
        %v4633 = vld [vmem:[#allocation2 + $0x2c0] sm:$0xff]
        %v4634 = vld [vmem:[#allocation2 + $0x2c8] sm:$0xff]
        %v4635 = vld [vmem:[#allocation2 + $0x2d0] sm:$0xff]
        %v4636 = vld [vmem:[#allocation2 + $0x2d8] sm:$0xff]
        %v4637 = vld [vmem:[#allocation2 + $0x2e0] sm:$0xff]
        %v4638 = vld [vmem:[#allocation2 + $0x2e8] sm:$0xff]
        %v4639 = vld [vmem:[#allocation2 + $0x2f0] sm:$0xff]
        %v4640 = vld [vmem:[#allocation2 + $0x2f8] sm:$0xff]
        %v4641 = vld [vmem:[#allocation2 + $0x300] sm:$0xff]
        %v4642 = vld [vmem:[#allocation2 + $0x308] sm:$0xff]
        %v4643 = vld [vmem:[#allocation2 + $0x310] sm:$0xff]
        %v4644 = vld [vmem:[#allocation2 + $0x318] sm:$0xff]
        %v4645 = vld [vmem:[#allocation2 + $0x320] sm:$0xff]
        %v4646 = vld [vmem:[#allocation2 + $0x328] sm:$0xff]
        %v4647 = vld [vmem:[#allocation2 + $0x330] sm:$0xff]
        %v4648 = vld [vmem:[#allocation2 + $0x338] sm:$0xff]
        %v4649 = vld [vmem:[#allocation2 + $0x340] sm:$0xff]
        %v4650 = vld [vmem:[#allocation2 + $0x348] sm:$0xff]
        %v4651 = vld [vmem:[#allocation2 + $0x350] sm:$0xff]
        %v4652 = vld [vmem:[#allocation2 + $0x358] sm:$0xff]
        %v4653 = vld [vmem:[#allocation2 + $0x360] sm:$0xff]
        %v4654 = vld [vmem:[#allocation2 + $0x368] sm:$0xff]
        %v4655 = vld [vmem:[#allocation2 + $0x370] sm:$0xff]
        %v4656 = vld [vmem:[#allocation2 + $0x378] sm:$0xff]
        %v4657 = vld [vmem:[#allocation2 + $0x380] sm:$0xff]
        %v4658 = vld [vmem:[#allocation2 + $0x388] sm:$0xff]
        %v4659 = vld [vmem:[#allocation2 + $0x390] sm:$0xff]
        %v4660 = vld [vmem:[#allocation2 + $0x398] sm:$0xff]
        %v4661 = vld [vmem:[#allocation2 + $0x3a0] sm:$0xff]
        %v4662 = vld [vmem:[#allocation2 + $0x3a8] sm:$0xff]
        %v4663 = vld [vmem:[#allocation2 + $0x3b0] sm:$0xff]
        %v4664 = vld [vmem:[#allocation2 + $0x3b8] sm:$0xff]
        %s4665 = scalar_lea.vmem [#allocation11], 3072
        %v4666 = vld [vmem:[%s4665] sm:$0xff]
        %v4667 = vld [vmem:[%s4665 + $0x8] sm:$0xff]
        %v4668 = vld [vmem:[%s4665 + $0x10] sm:$0xff]
        %v4669 = vld [vmem:[%s4665 + $0x18] sm:$0xff]
        %v4670 = vld [vmem:[%s4665 + $0x20] sm:$0xff]
        %v4671 = vld [vmem:[%s4665 + $0x28] sm:$0xff]
        %v4672 = vld [vmem:[%s4665 + $0x30] sm:$0xff]
        %v4673 = vld [vmem:[%s4665 + $0x38] sm:$0xff]
        %v4674 = vld [vmem:[%s4665 + $0x40] sm:$0xff]
        %v4675 = vld [vmem:[%s4665 + $0x48] sm:$0xff]
        %v4676 = vld [vmem:[%s4665 + $0x50] sm:$0xff]
        %v4677 = vld [vmem:[%s4665 + $0x58] sm:$0xff]
        %v4678 = vld [vmem:[%s4665 + $0x60] sm:$0xff]
        %v4679 = vld [vmem:[%s4665 + $0x68] sm:$0xff]
        %v4680 = vld [vmem:[%s4665 + $0x70] sm:$0xff]
        %v4681 = vld [vmem:[%s4665 + $0x78] sm:$0xff]
        %v4682 = vld [vmem:[%s4665 + $0x80] sm:$0xff]
        %v4683 = vld [vmem:[%s4665 + $0x88] sm:$0xff]
        %v4684 = vld [vmem:[%s4665 + $0x90] sm:$0xff]
        %v4685 = vld [vmem:[%s4665 + $0x98] sm:$0xff]
        %v4686 = vld [vmem:[%s4665 + $0xa0] sm:$0xff]
        %v4687 = vld [vmem:[%s4665 + $0xa8] sm:$0xff]
        %v4688 = vld [vmem:[%s4665 + $0xb0] sm:$0xff]
        %v4689 = vld [vmem:[%s4665 + $0xb8] sm:$0xff]
        %v4690 = vld [vmem:[%s4665 + $0xc0] sm:$0xff]
        %v4691 = vld [vmem:[%s4665 + $0xc8] sm:$0xff]
        %v4692 = vld [vmem:[%s4665 + $0xd0] sm:$0xff]
        %v4693 = vld [vmem:[%s4665 + $0xd8] sm:$0xff]
        %v4694 = vld [vmem:[%s4665 + $0xe0] sm:$0xff]
        %v4695 = vld [vmem:[%s4665 + $0xe8] sm:$0xff]
        %v4696 = vld [vmem:[%s4665 + $0xf0] sm:$0xff]
        %v4697 = vld [vmem:[%s4665 + $0xf8] sm:$0xff]
        %v4698 = vld [vmem:[%s4665 + $0x100] sm:$0xff]
        %v4699 = vld [vmem:[%s4665 + $0x108] sm:$0xff]
        %v4700 = vld [vmem:[%s4665 + $0x110] sm:$0xff]
        %v4701 = vld [vmem:[%s4665 + $0x118] sm:$0xff]
        %v4702 = vld [vmem:[%s4665 + $0x120] sm:$0xff]
        %v4703 = vld [vmem:[%s4665 + $0x128] sm:$0xff]
        %v4704 = vld [vmem:[%s4665 + $0x130] sm:$0xff]
        %v4705 = vld [vmem:[%s4665 + $0x138] sm:$0xff]
        %v4706 = vld [vmem:[%s4665 + $0x140] sm:$0xff]
        %v4707 = vld [vmem:[%s4665 + $0x148] sm:$0xff]
        %v4708 = vld [vmem:[%s4665 + $0x150] sm:$0xff]
        %v4709 = vld [vmem:[%s4665 + $0x158] sm:$0xff]
        %v4710 = vld [vmem:[%s4665 + $0x160] sm:$0xff]
        %v4711 = vld [vmem:[%s4665 + $0x168] sm:$0xff]
        %v4712 = vld [vmem:[%s4665 + $0x170] sm:$0xff]
        %v4713 = vld [vmem:[%s4665 + $0x178] sm:$0xff]
        %v4714 = vld [vmem:[%s4665 + $0x180] sm:$0xff]
        %v4715 = vld [vmem:[%s4665 + $0x188] sm:$0xff]
        %v4716 = vld [vmem:[%s4665 + $0x190] sm:$0xff]
        %v4717 = vld [vmem:[%s4665 + $0x198] sm:$0xff]
        %v4718 = vld [vmem:[%s4665 + $0x1a0] sm:$0xff]
        %v4719 = vld [vmem:[%s4665 + $0x1a8] sm:$0xff]
        %v4720 = vld [vmem:[%s4665 + $0x1b0] sm:$0xff]
        %v4721 = vld [vmem:[%s4665 + $0x1b8] sm:$0xff]
        %v4722 = vld [vmem:[%s4665 + $0x1c0] sm:$0xff]
        %v4723 = vld [vmem:[%s4665 + $0x1c8] sm:$0xff]
        %v4724 = vld [vmem:[%s4665 + $0x1d0] sm:$0xff]
        %v4725 = vld [vmem:[%s4665 + $0x1d8] sm:$0xff]
        %v4726 = vld [vmem:[%s4665 + $0x1e0] sm:$0xff]
        %v4727 = vld [vmem:[%s4665 + $0x1e8] sm:$0xff]
        %v4728 = vld [vmem:[%s4665 + $0x1f0] sm:$0xff]
        %v4729 = vld [vmem:[%s4665 + $0x1f8] sm:$0xff]
        %v4730 = vld [vmem:[%s4665 + $0x200] sm:$0xff]
        %v4731 = vld [vmem:[%s4665 + $0x208] sm:$0xff]
        %v4732 = vld [vmem:[%s4665 + $0x210] sm:$0xff]
        %v4733 = vld [vmem:[%s4665 + $0x218] sm:$0xff]
        %v4734 = vld [vmem:[%s4665 + $0x220] sm:$0xff]
        %v4735 = vld [vmem:[%s4665 + $0x228] sm:$0xff]
        %v4736 = vld [vmem:[%s4665 + $0x230] sm:$0xff]
        %v4737 = vld [vmem:[%s4665 + $0x238] sm:$0xff]
        %v4738 = vld [vmem:[%s4665 + $0x240] sm:$0xff]
        %v4739 = vld [vmem:[%s4665 + $0x248] sm:$0xff]
        %v4740 = vld [vmem:[%s4665 + $0x250] sm:$0xff]
        %v4741 = vld [vmem:[%s4665 + $0x258] sm:$0xff]
        %v4742 = vld [vmem:[%s4665 + $0x260] sm:$0xff]
        %v4743 = vld [vmem:[%s4665 + $0x268] sm:$0xff]
        %v4744 = vld [vmem:[%s4665 + $0x270] sm:$0xff]
        %v4745 = vld [vmem:[%s4665 + $0x278] sm:$0xff]
        %v4746 = vld [vmem:[%s4665 + $0x280] sm:$0xff]
        %v4747 = vld [vmem:[%s4665 + $0x288] sm:$0xff]
        %v4748 = vld [vmem:[%s4665 + $0x290] sm:$0xff]
        %v4749 = vld [vmem:[%s4665 + $0x298] sm:$0xff]
        %v4750 = vld [vmem:[%s4665 + $0x2a0] sm:$0xff]
        %v4751 = vld [vmem:[%s4665 + $0x2a8] sm:$0xff]
        %v4752 = vld [vmem:[%s4665 + $0x2b0] sm:$0xff]
        %v4753 = vld [vmem:[%s4665 + $0x2b8] sm:$0xff]
        %v4754 = vld [vmem:[%s4665 + $0x2c0] sm:$0xff]
        %v4755 = vld [vmem:[%s4665 + $0x2c8] sm:$0xff]
        %v4756 = vld [vmem:[%s4665 + $0x2d0] sm:$0xff]
        %v4757 = vld [vmem:[%s4665 + $0x2d8] sm:$0xff]
        %v4758 = vld [vmem:[%s4665 + $0x2e0] sm:$0xff]
        %v4759 = vld [vmem:[%s4665 + $0x2e8] sm:$0xff]
        %v4760 = vld [vmem:[%s4665 + $0x2f0] sm:$0xff]
        %v4761 = vld [vmem:[%s4665 + $0x2f8] sm:$0xff]
        %v4762 = vld [vmem:[%s4665 + $0x300] sm:$0xff]
        %v4763 = vld [vmem:[%s4665 + $0x308] sm:$0xff]
        %v4764 = vld [vmem:[%s4665 + $0x310] sm:$0xff]
        %v4765 = vld [vmem:[%s4665 + $0x318] sm:$0xff]
        %v4766 = vld [vmem:[%s4665 + $0x320] sm:$0xff]
        %v4767 = vld [vmem:[%s4665 + $0x328] sm:$0xff]
        %v4768 = vld [vmem:[%s4665 + $0x330] sm:$0xff]
        %v4769 = vld [vmem:[%s4665 + $0x338] sm:$0xff]
        %v4770 = vld [vmem:[%s4665 + $0x340] sm:$0xff]
        %v4771 = vld [vmem:[%s4665 + $0x348] sm:$0xff]
        %v4772 = vld [vmem:[%s4665 + $0x350] sm:$0xff]
        %v4773 = vld [vmem:[%s4665 + $0x358] sm:$0xff]
        %v4774 = vld [vmem:[%s4665 + $0x360] sm:$0xff]
        %v4775 = vld [vmem:[%s4665 + $0x368] sm:$0xff]
        %v4776 = vld [vmem:[%s4665 + $0x370] sm:$0xff]
        %v4777 = vld [vmem:[%s4665 + $0x378] sm:$0xff]
        %v4778 = vld [vmem:[%s4665 + $0x380] sm:$0xff]
        %v4779 = vld [vmem:[%s4665 + $0x388] sm:$0xff]
        %v4780 = vld [vmem:[%s4665 + $0x390] sm:$0xff]
        %v4781 = vld [vmem:[%s4665 + $0x398] sm:$0xff]
        %v4782 = vld [vmem:[%s4665 + $0x3a0] sm:$0xff]
        %v4783 = vld [vmem:[%s4665 + $0x3a8] sm:$0xff]
        %v4784 = vld [vmem:[%s4665 + $0x3b0] sm:$0xff]
        %v4785 = vld [vmem:[%s4665 + $0x3b8] sm:$0xff]
        %v4786 = vld [vmem:[%s4665 + $0x3c0] sm:$0xff]
        %v4787 = vld [vmem:[%s4665 + $0x3c8] sm:$0xff]
        %v4788 = vld [vmem:[%s4665 + $0x3d0] sm:$0xff]
        %v4789 = vld [vmem:[%s4665 + $0x3d8] sm:$0xff]
        %v4790 = vld [vmem:[%s4665 + $0x3e0] sm:$0xff]
        %v4791 = vld [vmem:[%s4665 + $0x3e8] sm:$0xff]
        %v4792 = vld [vmem:[%s4665 + $0x3f0] sm:$0xff]
        %v4793 = vld [vmem:[%s4665 + $0x3f8] sm:$0xff]
        %v4794 = vld [vmem:[%s4665 + $0x400] sm:$0xff]
        %v4795 = vld [vmem:[%s4665 + $0x408] sm:$0xff]
        %v4796 = vld [vmem:[%s4665 + $0x410] sm:$0xff]
        %v4797 = vld [vmem:[%s4665 + $0x418] sm:$0xff]
        %v4798 = vld [vmem:[%s4665 + $0x420] sm:$0xff]
        %v4799 = vld [vmem:[%s4665 + $0x428] sm:$0xff]
        %v4800 = vld [vmem:[%s4665 + $0x430] sm:$0xff]
        %v4801 = vld [vmem:[%s4665 + $0x438] sm:$0xff]
        %v4802 = vld [vmem:[%s4665 + $0x440] sm:$0xff]
        %v4803 = vld [vmem:[%s4665 + $0x448] sm:$0xff]
        %v4804 = vld [vmem:[%s4665 + $0x450] sm:$0xff]
        %v4805 = vld [vmem:[%s4665 + $0x458] sm:$0xff]
        %v4806 = vld [vmem:[%s4665 + $0x460] sm:$0xff]
        %v4807 = vld [vmem:[%s4665 + $0x468] sm:$0xff]
        %v4808 = vld [vmem:[%s4665 + $0x470] sm:$0xff]
        %v4809 = vld [vmem:[%s4665 + $0x478] sm:$0xff]
        %v4810 = vld [vmem:[%s4665 + $0x480] sm:$0xff]
        %v4811 = vld [vmem:[%s4665 + $0x488] sm:$0xff]
        %v4812 = vld [vmem:[%s4665 + $0x490] sm:$0xff]
        %v4813 = vld [vmem:[%s4665 + $0x498] sm:$0xff]
        %v4814 = vld [vmem:[%s4665 + $0x4a0] sm:$0xff]
        %v4815 = vld [vmem:[%s4665 + $0x4a8] sm:$0xff]
        %v4816 = vld [vmem:[%s4665 + $0x4b0] sm:$0xff]
        %v4817 = vld [vmem:[%s4665 + $0x4b8] sm:$0xff]
        %v4818 = vld [vmem:[%s4665 + $0x4c0] sm:$0xff]
        %v4819 = vld [vmem:[%s4665 + $0x4c8] sm:$0xff]
        %v4820 = vld [vmem:[%s4665 + $0x4d0] sm:$0xff]
        %v4821 = vld [vmem:[%s4665 + $0x4d8] sm:$0xff]
        %v4822 = vld [vmem:[%s4665 + $0x4e0] sm:$0xff]
        %v4823 = vld [vmem:[%s4665 + $0x4e8] sm:$0xff]
        %v4824 = vld [vmem:[%s4665 + $0x4f0] sm:$0xff]
        %v4825 = vld [vmem:[%s4665 + $0x4f8] sm:$0xff]
        %v4826 = vld [vmem:[%s4665 + $0x500] sm:$0xff]
        %v4827 = vld [vmem:[%s4665 + $0x508] sm:$0xff]
        %v4828 = vld [vmem:[%s4665 + $0x510] sm:$0xff]
        %v4829 = vld [vmem:[%s4665 + $0x518] sm:$0xff]
        %v4830 = vld [vmem:[%s4665 + $0x520] sm:$0xff]
        %v4831 = vld [vmem:[%s4665 + $0x528] sm:$0xff]
        %v4832 = vld [vmem:[%s4665 + $0x530] sm:$0xff]
        %v4833 = vld [vmem:[%s4665 + $0x538] sm:$0xff]
        %v4834 = vld [vmem:[%s4665 + $0x540] sm:$0xff]
        %v4835 = vld [vmem:[%s4665 + $0x548] sm:$0xff]
        %v4836 = vld [vmem:[%s4665 + $0x550] sm:$0xff]
        %v4837 = vld [vmem:[%s4665 + $0x558] sm:$0xff]
        %v4838 = vld [vmem:[%s4665 + $0x560] sm:$0xff]
        %v4839 = vld [vmem:[%s4665 + $0x568] sm:$0xff]
        %v4840 = vld [vmem:[%s4665 + $0x570] sm:$0xff]
        %v4841 = vld [vmem:[%s4665 + $0x578] sm:$0xff]
        %v4842 = vld [vmem:[%s4665 + $0x580] sm:$0xff]
        %v4843 = vld [vmem:[%s4665 + $0x588] sm:$0xff]
        %v4844 = vld [vmem:[%s4665 + $0x590] sm:$0xff]
        %v4845 = vld [vmem:[%s4665 + $0x598] sm:$0xff]
        %v4846 = vld [vmem:[%s4665 + $0x5a0] sm:$0xff]
        %v4847 = vld [vmem:[%s4665 + $0x5a8] sm:$0xff]
        %v4848 = vld [vmem:[%s4665 + $0x5b0] sm:$0xff]
        %v4849 = vld [vmem:[%s4665 + $0x5b8] sm:$0xff]
        %v4850 = vld [vmem:[%s4665 + $0x5c0] sm:$0xff]
        %v4851 = vld [vmem:[%s4665 + $0x5c8] sm:$0xff]
        %v4852 = vld [vmem:[%s4665 + $0x5d0] sm:$0xff]
        %v4853 = vld [vmem:[%s4665 + $0x5d8] sm:$0xff]
        %v4854 = vld [vmem:[%s4665 + $0x5e0] sm:$0xff]
        %v4855 = vld [vmem:[%s4665 + $0x5e8] sm:$0xff]
        %v4856 = vld [vmem:[%s4665 + $0x5f0] sm:$0xff]
        %v4857 = vld [vmem:[%s4665 + $0x5f8] sm:$0xff]
        %v5050 = vunpack.c.l.b16 %v4666
        %v5051 = vunpack.c.h.b16 %v4666
        %v5052 = vunpack.c.l.b16 %v4667
        %v5053 = vunpack.c.h.b16 %v4667
        %v5054 = vunpack.c.l.b16 %v4668
        %v5055 = vunpack.c.h.b16 %v4668
        %v5056 = vunpack.c.l.b16 %v4669
        %v5057 = vunpack.c.h.b16 %v4669
        %v5058 = vunpack.c.l.b16 %v4670
        %v5059 = vunpack.c.h.b16 %v4670
        %v5060 = vunpack.c.l.b16 %v4671
        %v5061 = vunpack.c.h.b16 %v4671
        %v5062 = vunpack.c.l.b16 %v4672
        %v5063 = vunpack.c.h.b16 %v4672
        %v5064 = vunpack.c.l.b16 %v4673
        %v5065 = vunpack.c.h.b16 %v4673
        %v5066 = vunpack.c.l.b16 %v4674
        %v5067 = vunpack.c.h.b16 %v4674
        %v5068 = vunpack.c.l.b16 %v4675
        %v5069 = vunpack.c.h.b16 %v4675
        %v5070 = vunpack.c.l.b16 %v4676
        %v5071 = vunpack.c.h.b16 %v4676
        %v5072 = vunpack.c.l.b16 %v4677
        %v5073 = vunpack.c.h.b16 %v4677
        %v5074 = vunpack.c.l.b16 %v4678
        %v5075 = vunpack.c.h.b16 %v4678
        %v5076 = vunpack.c.l.b16 %v4679
        %v5077 = vunpack.c.h.b16 %v4679
        %v5078 = vunpack.c.l.b16 %v4680
        %v5079 = vunpack.c.h.b16 %v4680
        %v5080 = vunpack.c.l.b16 %v4681
        %v5081 = vunpack.c.h.b16 %v4681
        %v5082 = vunpack.c.l.b16 %v4682
        %v5083 = vunpack.c.h.b16 %v4682
        %v5084 = vunpack.c.l.b16 %v4683
        %v5085 = vunpack.c.h.b16 %v4683
        %v5086 = vunpack.c.l.b16 %v4684
        %v5087 = vunpack.c.h.b16 %v4684
        %v5088 = vunpack.c.l.b16 %v4685
        %v5089 = vunpack.c.h.b16 %v4685
        %v5090 = vunpack.c.l.b16 %v4686
        %v5091 = vunpack.c.h.b16 %v4686
        %v5092 = vunpack.c.l.b16 %v4687
        %v5093 = vunpack.c.h.b16 %v4687
        %v5094 = vunpack.c.l.b16 %v4688
        %v5095 = vunpack.c.h.b16 %v4688
        %v5096 = vunpack.c.l.b16 %v4689
        %v5097 = vunpack.c.h.b16 %v4689
        %v5098 = vunpack.c.l.b16 %v4690
        %v5099 = vunpack.c.h.b16 %v4690
        %v5100 = vunpack.c.l.b16 %v4691
        %v5101 = vunpack.c.h.b16 %v4691
        %v5102 = vunpack.c.l.b16 %v4692
        %v5103 = vunpack.c.h.b16 %v4692
        %v5104 = vunpack.c.l.b16 %v4693
        %v5105 = vunpack.c.h.b16 %v4693
        %v5106 = vunpack.c.l.b16 %v4694
        %v5107 = vunpack.c.h.b16 %v4694
        %v5108 = vunpack.c.l.b16 %v4695
        %v5109 = vunpack.c.h.b16 %v4695
        %v5110 = vunpack.c.l.b16 %v4696
        %v5111 = vunpack.c.h.b16 %v4696
        %v5112 = vunpack.c.l.b16 %v4697
        %v5113 = vunpack.c.h.b16 %v4697
        %v5114 = vunpack.c.l.b16 %v4698
        %v5115 = vunpack.c.h.b16 %v4698
        %v5116 = vunpack.c.l.b16 %v4699
        %v5117 = vunpack.c.h.b16 %v4699
        %v5118 = vunpack.c.l.b16 %v4700
        %v5119 = vunpack.c.h.b16 %v4700
        %v5120 = vunpack.c.l.b16 %v4701
        %v5121 = vunpack.c.h.b16 %v4701
        %v5122 = vunpack.c.l.b16 %v4702
        %v5123 = vunpack.c.h.b16 %v4702
        %v5124 = vunpack.c.l.b16 %v4703
        %v5125 = vunpack.c.h.b16 %v4703
        %v5126 = vunpack.c.l.b16 %v4704
        %v5127 = vunpack.c.h.b16 %v4704
        %v5128 = vunpack.c.l.b16 %v4705
        %v5129 = vunpack.c.h.b16 %v4705
        %v5130 = vunpack.c.l.b16 %v4706
        %v5131 = vunpack.c.h.b16 %v4706
        %v5132 = vunpack.c.l.b16 %v4707
        %v5133 = vunpack.c.h.b16 %v4707
        %v5134 = vunpack.c.l.b16 %v4708
        %v5135 = vunpack.c.h.b16 %v4708
        %v5136 = vunpack.c.l.b16 %v4709
        %v5137 = vunpack.c.h.b16 %v4709
        %v5138 = vunpack.c.l.b16 %v4710
        %v5139 = vunpack.c.h.b16 %v4710
        %v5140 = vunpack.c.l.b16 %v4711
        %v5141 = vunpack.c.h.b16 %v4711
        %v5142 = vunpack.c.l.b16 %v4712
        %v5143 = vunpack.c.h.b16 %v4712
        %v5144 = vunpack.c.l.b16 %v4713
        %v5145 = vunpack.c.h.b16 %v4713
        %v5146 = vunpack.c.l.b16 %v4714
        %v5147 = vunpack.c.h.b16 %v4714
        %v5148 = vunpack.c.l.b16 %v4715
        %v5149 = vunpack.c.h.b16 %v4715
        %v5150 = vunpack.c.l.b16 %v4716
        %v5151 = vunpack.c.h.b16 %v4716
        %v5152 = vunpack.c.l.b16 %v4717
        %v5153 = vunpack.c.h.b16 %v4717
        %v5154 = vunpack.c.l.b16 %v4718
        %v5155 = vunpack.c.h.b16 %v4718
        %v5156 = vunpack.c.l.b16 %v4719
        %v5157 = vunpack.c.h.b16 %v4719
        %v5158 = vunpack.c.l.b16 %v4720
        %v5159 = vunpack.c.h.b16 %v4720
        %v5160 = vunpack.c.l.b16 %v4721
        %v5161 = vunpack.c.h.b16 %v4721
        %v5162 = vunpack.c.l.b16 %v4722
        %v5163 = vunpack.c.h.b16 %v4722
        %v5164 = vunpack.c.l.b16 %v4723
        %v5165 = vunpack.c.h.b16 %v4723
        %v5166 = vunpack.c.l.b16 %v4724
        %v5167 = vunpack.c.h.b16 %v4724
        %v5168 = vunpack.c.l.b16 %v4725
        %v5169 = vunpack.c.h.b16 %v4725
        %v5170 = vunpack.c.l.b16 %v4726
        %v5171 = vunpack.c.h.b16 %v4726
        %v5172 = vunpack.c.l.b16 %v4727
        %v5173 = vunpack.c.h.b16 %v4727
        %v5174 = vunpack.c.l.b16 %v4728
        %v5175 = vunpack.c.h.b16 %v4728
        %v5176 = vunpack.c.l.b16 %v4729
        %v5177 = vunpack.c.h.b16 %v4729
        %v5178 = vunpack.c.l.b16 %v4730
        %v5179 = vunpack.c.h.b16 %v4730
        %v5180 = vunpack.c.l.b16 %v4731
        %v5181 = vunpack.c.h.b16 %v4731
        %v5182 = vunpack.c.l.b16 %v4732
        %v5183 = vunpack.c.h.b16 %v4732
        %v5184 = vunpack.c.l.b16 %v4733
        %v5185 = vunpack.c.h.b16 %v4733
        %v5186 = vunpack.c.l.b16 %v4734
        %v5187 = vunpack.c.h.b16 %v4734
        %v5188 = vunpack.c.l.b16 %v4735
        %v5189 = vunpack.c.h.b16 %v4735
        %v5190 = vunpack.c.l.b16 %v4736
        %v5191 = vunpack.c.h.b16 %v4736
        %v5192 = vunpack.c.l.b16 %v4737
        %v5193 = vunpack.c.h.b16 %v4737
        %v5194 = vunpack.c.l.b16 %v4738
        %v5195 = vunpack.c.h.b16 %v4738
        %v5196 = vunpack.c.l.b16 %v4739
        %v5197 = vunpack.c.h.b16 %v4739
        %v5198 = vunpack.c.l.b16 %v4740
        %v5199 = vunpack.c.h.b16 %v4740
        %v5200 = vunpack.c.l.b16 %v4741
        %v5201 = vunpack.c.h.b16 %v4741
        %v5202 = vunpack.c.l.b16 %v4742
        %v5203 = vunpack.c.h.b16 %v4742
        %v5204 = vunpack.c.l.b16 %v4743
        %v5205 = vunpack.c.h.b16 %v4743
        %v5206 = vunpack.c.l.b16 %v4744
        %v5207 = vunpack.c.h.b16 %v4744
        %v5208 = vunpack.c.l.b16 %v4745
        %v5209 = vunpack.c.h.b16 %v4745
        %v5210 = vunpack.c.l.b16 %v4746
        %v5211 = vunpack.c.h.b16 %v4746
        %v5212 = vunpack.c.l.b16 %v4747
        %v5213 = vunpack.c.h.b16 %v4747
        %v5214 = vunpack.c.l.b16 %v4748
        %v5215 = vunpack.c.h.b16 %v4748
        %v5216 = vunpack.c.l.b16 %v4749
        %v5217 = vunpack.c.h.b16 %v4749
        %v5218 = vunpack.c.l.b16 %v4750
        %v5219 = vunpack.c.h.b16 %v4750
        %v5220 = vunpack.c.l.b16 %v4751
        %v5221 = vunpack.c.h.b16 %v4751
        %v5222 = vunpack.c.l.b16 %v4752
        %v5223 = vunpack.c.h.b16 %v4752
        %v5224 = vunpack.c.l.b16 %v4753
        %v5225 = vunpack.c.h.b16 %v4753
        %v5226 = vunpack.c.l.b16 %v4754
        %v5227 = vunpack.c.h.b16 %v4754
        %v5228 = vunpack.c.l.b16 %v4755
        %v5229 = vunpack.c.h.b16 %v4755
        %v5230 = vunpack.c.l.b16 %v4756
        %v5231 = vunpack.c.h.b16 %v4756
        %v5232 = vunpack.c.l.b16 %v4757
        %v5233 = vunpack.c.h.b16 %v4757
        %v5234 = vunpack.c.l.b16 %v4758
        %v5235 = vunpack.c.h.b16 %v4758
        %v5236 = vunpack.c.l.b16 %v4759
        %v5237 = vunpack.c.h.b16 %v4759
        %v5238 = vunpack.c.l.b16 %v4760
        %v5239 = vunpack.c.h.b16 %v4760
        %v5240 = vunpack.c.l.b16 %v4761
        %v5241 = vunpack.c.h.b16 %v4761
        %v5242 = vunpack.c.l.b16 %v4762
        %v5243 = vunpack.c.h.b16 %v4762
        %v5244 = vunpack.c.l.b16 %v4763
        %v5245 = vunpack.c.h.b16 %v4763
        %v5246 = vunpack.c.l.b16 %v4764
        %v5247 = vunpack.c.h.b16 %v4764
        %v5248 = vunpack.c.l.b16 %v4765
        %v5249 = vunpack.c.h.b16 %v4765
        %v5250 = vunpack.c.l.b16 %v4766
        %v5251 = vunpack.c.h.b16 %v4766
        %v5252 = vunpack.c.l.b16 %v4767
        %v5253 = vunpack.c.h.b16 %v4767
        %v5254 = vunpack.c.l.b16 %v4768
        %v5255 = vunpack.c.h.b16 %v4768
        %v5256 = vunpack.c.l.b16 %v4769
        %v5257 = vunpack.c.h.b16 %v4769
        %v5258 = vunpack.c.l.b16 %v4770
        %v5259 = vunpack.c.h.b16 %v4770
        %v5260 = vunpack.c.l.b16 %v4771
        %v5261 = vunpack.c.h.b16 %v4771
        %v5262 = vunpack.c.l.b16 %v4772
        %v5263 = vunpack.c.h.b16 %v4772
        %v5264 = vunpack.c.l.b16 %v4773
        %v5265 = vunpack.c.h.b16 %v4773
        %v5266 = vunpack.c.l.b16 %v4774
        %v5267 = vunpack.c.h.b16 %v4774
        %v5268 = vunpack.c.l.b16 %v4775
        %v5269 = vunpack.c.h.b16 %v4775
        %v5270 = vunpack.c.l.b16 %v4776
        %v5271 = vunpack.c.h.b16 %v4776
        %v5272 = vunpack.c.l.b16 %v4777
        %v5273 = vunpack.c.h.b16 %v4777
        %v5274 = vunpack.c.l.b16 %v4778
        %v5275 = vunpack.c.h.b16 %v4778
        %v5276 = vunpack.c.l.b16 %v4779
        %v5277 = vunpack.c.h.b16 %v4779
        %v5278 = vunpack.c.l.b16 %v4780
        %v5279 = vunpack.c.h.b16 %v4780
        %v5280 = vunpack.c.l.b16 %v4781
        %v5281 = vunpack.c.h.b16 %v4781
        %v5282 = vunpack.c.l.b16 %v4782
        %v5283 = vunpack.c.h.b16 %v4782
        %v5284 = vunpack.c.l.b16 %v4783
        %v5285 = vunpack.c.h.b16 %v4783
        %v5286 = vunpack.c.l.b16 %v4784
        %v5287 = vunpack.c.h.b16 %v4784
        %v5288 = vunpack.c.l.b16 %v4785
        %v5289 = vunpack.c.h.b16 %v4785
        %v5290 = vunpack.c.l.b16 %v4786
        %v5291 = vunpack.c.h.b16 %v4786
        %v5292 = vunpack.c.l.b16 %v4787
        %v5293 = vunpack.c.h.b16 %v4787
        %v5294 = vunpack.c.l.b16 %v4788
        %v5295 = vunpack.c.h.b16 %v4788
        %v5296 = vunpack.c.l.b16 %v4789
        %v5297 = vunpack.c.h.b16 %v4789
        %v5298 = vunpack.c.l.b16 %v4790
        %v5299 = vunpack.c.h.b16 %v4790
        %v5300 = vunpack.c.l.b16 %v4791
        %v5301 = vunpack.c.h.b16 %v4791
        %v5302 = vunpack.c.l.b16 %v4792
        %v5303 = vunpack.c.h.b16 %v4792
        %v5304 = vunpack.c.l.b16 %v4793
        %v5305 = vunpack.c.h.b16 %v4793
        %v5306 = vunpack.c.l.b16 %v4794
        %v5307 = vunpack.c.h.b16 %v4794
        %v5308 = vunpack.c.l.b16 %v4795
        %v5309 = vunpack.c.h.b16 %v4795
        %v5310 = vunpack.c.l.b16 %v4796
        %v5311 = vunpack.c.h.b16 %v4796
        %v5312 = vunpack.c.l.b16 %v4797
        %v5313 = vunpack.c.h.b16 %v4797
        %v5314 = vunpack.c.l.b16 %v4798
        %v5315 = vunpack.c.h.b16 %v4798
        %v5316 = vunpack.c.l.b16 %v4799
        %v5317 = vunpack.c.h.b16 %v4799
        %v5318 = vunpack.c.l.b16 %v4800
        %v5319 = vunpack.c.h.b16 %v4800
        %v5320 = vunpack.c.l.b16 %v4801
        %v5321 = vunpack.c.h.b16 %v4801
        %v5322 = vunpack.c.l.b16 %v4802
        %v5323 = vunpack.c.h.b16 %v4802
        %v5324 = vunpack.c.l.b16 %v4803
        %v5325 = vunpack.c.h.b16 %v4803
        %v5326 = vunpack.c.l.b16 %v4804
        %v5327 = vunpack.c.h.b16 %v4804
        %v5328 = vunpack.c.l.b16 %v4805
        %v5329 = vunpack.c.h.b16 %v4805
        %v5330 = vunpack.c.l.b16 %v4806
        %v5331 = vunpack.c.h.b16 %v4806
        %v5332 = vunpack.c.l.b16 %v4807
        %v5333 = vunpack.c.h.b16 %v4807
        %v5334 = vunpack.c.l.b16 %v4808
        %v5335 = vunpack.c.h.b16 %v4808
        %v5336 = vunpack.c.l.b16 %v4809
        %v5337 = vunpack.c.h.b16 %v4809
        %v5338 = vunpack.c.l.b16 %v4810
        %v5339 = vunpack.c.h.b16 %v4810
        %v5340 = vunpack.c.l.b16 %v4811
        %v5341 = vunpack.c.h.b16 %v4811
        %v5342 = vunpack.c.l.b16 %v4812
        %v5343 = vunpack.c.h.b16 %v4812
        %v5344 = vunpack.c.l.b16 %v4813
        %v5345 = vunpack.c.h.b16 %v4813
        %v5346 = vunpack.c.l.b16 %v4814
        %v5347 = vunpack.c.h.b16 %v4814
        %v5348 = vunpack.c.l.b16 %v4815
        %v5349 = vunpack.c.h.b16 %v4815
        %v5350 = vunpack.c.l.b16 %v4816
        %v5351 = vunpack.c.h.b16 %v4816
        %v5352 = vunpack.c.l.b16 %v4817
        %v5353 = vunpack.c.h.b16 %v4817
        %v5354 = vunpack.c.l.b16 %v4818
        %v5355 = vunpack.c.h.b16 %v4818
        %v5356 = vunpack.c.l.b16 %v4819
        %v5357 = vunpack.c.h.b16 %v4819
        %v5358 = vunpack.c.l.b16 %v4820
        %v5359 = vunpack.c.h.b16 %v4820
        %v5360 = vunpack.c.l.b16 %v4821
        %v5361 = vunpack.c.h.b16 %v4821
        %v5362 = vunpack.c.l.b16 %v4822
        %v5363 = vunpack.c.h.b16 %v4822
        %v5364 = vunpack.c.l.b16 %v4823
        %v5365 = vunpack.c.h.b16 %v4823
        %v5366 = vunpack.c.l.b16 %v4824
        %v5367 = vunpack.c.h.b16 %v4824
        %v5368 = vunpack.c.l.b16 %v4825
        %v5369 = vunpack.c.h.b16 %v4825
        %v5370 = vunpack.c.l.b16 %v4826
        %v5371 = vunpack.c.h.b16 %v4826
        %v5372 = vunpack.c.l.b16 %v4827
        %v5373 = vunpack.c.h.b16 %v4827
        %v5374 = vunpack.c.l.b16 %v4828
        %v5375 = vunpack.c.h.b16 %v4828
        %v5376 = vunpack.c.l.b16 %v4829
        %v5377 = vunpack.c.h.b16 %v4829
        %v5378 = vunpack.c.l.b16 %v4830
        %v5379 = vunpack.c.h.b16 %v4830
        %v5380 = vunpack.c.l.b16 %v4831
        %v5381 = vunpack.c.h.b16 %v4831
        %v5382 = vunpack.c.l.b16 %v4832
        %v5383 = vunpack.c.h.b16 %v4832
        %v5384 = vunpack.c.l.b16 %v4833
        %v5385 = vunpack.c.h.b16 %v4833
        %v5386 = vunpack.c.l.b16 %v4834
        %v5387 = vunpack.c.h.b16 %v4834
        %v5388 = vunpack.c.l.b16 %v4835
        %v5389 = vunpack.c.h.b16 %v4835
        %v5390 = vunpack.c.l.b16 %v4836
        %v5391 = vunpack.c.h.b16 %v4836
        %v5392 = vunpack.c.l.b16 %v4837
        %v5393 = vunpack.c.h.b16 %v4837
        %v5394 = vunpack.c.l.b16 %v4838
        %v5395 = vunpack.c.h.b16 %v4838
        %v5396 = vunpack.c.l.b16 %v4839
        %v5397 = vunpack.c.h.b16 %v4839
        %v5398 = vunpack.c.l.b16 %v4840
        %v5399 = vunpack.c.h.b16 %v4840
        %v5400 = vunpack.c.l.b16 %v4841
        %v5401 = vunpack.c.h.b16 %v4841
        %v5402 = vunpack.c.l.b16 %v4842
        %v5403 = vunpack.c.h.b16 %v4842
        %v5404 = vunpack.c.l.b16 %v4843
        %v5405 = vunpack.c.h.b16 %v4843
        %v5406 = vunpack.c.l.b16 %v4844
        %v5407 = vunpack.c.h.b16 %v4844
        %v5408 = vunpack.c.l.b16 %v4845
        %v5409 = vunpack.c.h.b16 %v4845
        %v5410 = vunpack.c.l.b16 %v4846
        %v5411 = vunpack.c.h.b16 %v4846
        %v5412 = vunpack.c.l.b16 %v4847
        %v5413 = vunpack.c.h.b16 %v4847
        %v5414 = vunpack.c.l.b16 %v4848
        %v5415 = vunpack.c.h.b16 %v4848
        %v5416 = vunpack.c.l.b16 %v4849
        %v5417 = vunpack.c.h.b16 %v4849
        %v5418 = vunpack.c.l.b16 %v4850
        %v5419 = vunpack.c.h.b16 %v4850
        %v5420 = vunpack.c.l.b16 %v4851
        %v5421 = vunpack.c.h.b16 %v4851
        %v5422 = vunpack.c.l.b16 %v4852
        %v5423 = vunpack.c.h.b16 %v4852
        %v5424 = vunpack.c.l.b16 %v4853
        %v5425 = vunpack.c.h.b16 %v4853
        %v5426 = vunpack.c.l.b16 %v4854
        %v5427 = vunpack.c.h.b16 %v4854
        %v5428 = vunpack.c.l.b16 %v4855
        %v5429 = vunpack.c.h.b16 %v4855
        %v5430 = vunpack.c.l.b16 %v4856
        %v5431 = vunpack.c.h.b16 %v4856
        %v5432 = vunpack.c.l.b16 %v4857
        %v5433 = vunpack.c.h.b16 %v4857
        %v5434 = vpack.c.b16 %v5052, %v5050
        %v5435 = vpack.c.b16 %v5053, %v5051
        %v5436 = vpack.c.b16 %v5056, %v5054
        %v5437 = vpack.c.b16 %v5057, %v5055
        %v5438 = vpack.c.b16 %v5060, %v5058
        %v5439 = vpack.c.b16 %v5061, %v5059
        %v5440 = vpack.c.b16 %v5064, %v5062
        %v5441 = vpack.c.b16 %v5065, %v5063
        %v5442 = vpack.c.b16 %v5068, %v5066
        %v5443 = vpack.c.b16 %v5069, %v5067
        %v5444 = vpack.c.b16 %v5072, %v5070
        %v5445 = vpack.c.b16 %v5073, %v5071
        %v5446 = vpack.c.b16 %v5076, %v5074
        %v5447 = vpack.c.b16 %v5077, %v5075
        %v5448 = vpack.c.b16 %v5080, %v5078
        %v5449 = vpack.c.b16 %v5081, %v5079
        %v5450 = vpack.c.b16 %v5084, %v5082
        %v5451 = vpack.c.b16 %v5085, %v5083
        %v5452 = vpack.c.b16 %v5088, %v5086
        %v5453 = vpack.c.b16 %v5089, %v5087
        %v5454 = vpack.c.b16 %v5092, %v5090
        %v5455 = vpack.c.b16 %v5093, %v5091
        %v5456 = vpack.c.b16 %v5096, %v5094
        %v5457 = vpack.c.b16 %v5097, %v5095
        %v5458 = vpack.c.b16 %v5100, %v5098
        %v5459 = vpack.c.b16 %v5101, %v5099
        %v5460 = vpack.c.b16 %v5104, %v5102
        %v5461 = vpack.c.b16 %v5105, %v5103
        %v5462 = vpack.c.b16 %v5108, %v5106
        %v5463 = vpack.c.b16 %v5109, %v5107
        %v5464 = vpack.c.b16 %v5112, %v5110
        %v5465 = vpack.c.b16 %v5113, %v5111
        %v5466 = vpack.c.b16 %v5116, %v5114
        %v5467 = vpack.c.b16 %v5117, %v5115
        %v5468 = vpack.c.b16 %v5120, %v5118
        %v5469 = vpack.c.b16 %v5121, %v5119
        %v5470 = vpack.c.b16 %v5124, %v5122
        %v5471 = vpack.c.b16 %v5125, %v5123
        %v5472 = vpack.c.b16 %v5128, %v5126
        %v5473 = vpack.c.b16 %v5129, %v5127
        %v5474 = vpack.c.b16 %v5132, %v5130
        %v5475 = vpack.c.b16 %v5133, %v5131
        %v5476 = vpack.c.b16 %v5136, %v5134
        %v5477 = vpack.c.b16 %v5137, %v5135
        %v5478 = vpack.c.b16 %v5140, %v5138
        %v5479 = vpack.c.b16 %v5141, %v5139
        %v5480 = vpack.c.b16 %v5144, %v5142
        %v5481 = vpack.c.b16 %v5145, %v5143
        %v5482 = vpack.c.b16 %v5148, %v5146
        %v5483 = vpack.c.b16 %v5149, %v5147
        %v5484 = vpack.c.b16 %v5152, %v5150
        %v5485 = vpack.c.b16 %v5153, %v5151
        %v5486 = vpack.c.b16 %v5156, %v5154
        %v5487 = vpack.c.b16 %v5157, %v5155
        %v5488 = vpack.c.b16 %v5160, %v5158
        %v5489 = vpack.c.b16 %v5161, %v5159
        %v5490 = vpack.c.b16 %v5164, %v5162
        %v5491 = vpack.c.b16 %v5165, %v5163
        %v5492 = vpack.c.b16 %v5168, %v5166
        %v5493 = vpack.c.b16 %v5169, %v5167
        %v5494 = vpack.c.b16 %v5172, %v5170
        %v5495 = vpack.c.b16 %v5173, %v5171
        %v5496 = vpack.c.b16 %v5176, %v5174
        %v5497 = vpack.c.b16 %v5177, %v5175
        %v5498 = vpack.c.b16 %v5180, %v5178
        %v5499 = vpack.c.b16 %v5181, %v5179
        %v5500 = vpack.c.b16 %v5184, %v5182
        %v5501 = vpack.c.b16 %v5185, %v5183
        %v5502 = vpack.c.b16 %v5188, %v5186
        %v5503 = vpack.c.b16 %v5189, %v5187
        %v5504 = vpack.c.b16 %v5192, %v5190
        %v5505 = vpack.c.b16 %v5193, %v5191
        %v5506 = vpack.c.b16 %v5196, %v5194
        %v5507 = vpack.c.b16 %v5197, %v5195
        %v5508 = vpack.c.b16 %v5200, %v5198
        %v5509 = vpack.c.b16 %v5201, %v5199
        %v5510 = vpack.c.b16 %v5204, %v5202
        %v5511 = vpack.c.b16 %v5205, %v5203
        %v5512 = vpack.c.b16 %v5208, %v5206
        %v5513 = vpack.c.b16 %v5209, %v5207
        %v5514 = vpack.c.b16 %v5212, %v5210
        %v5515 = vpack.c.b16 %v5213, %v5211
        %v5516 = vpack.c.b16 %v5216, %v5214
        %v5517 = vpack.c.b16 %v5217, %v5215
        %v5518 = vpack.c.b16 %v5220, %v5218
        %v5519 = vpack.c.b16 %v5221, %v5219
        %v5520 = vpack.c.b16 %v5224, %v5222
        %v5521 = vpack.c.b16 %v5225, %v5223
        %v5522 = vpack.c.b16 %v5228, %v5226
        %v5523 = vpack.c.b16 %v5229, %v5227
        %v5524 = vpack.c.b16 %v5232, %v5230
        %v5525 = vpack.c.b16 %v5233, %v5231
        %v5526 = vpack.c.b16 %v5236, %v5234
        %v5527 = vpack.c.b16 %v5237, %v5235
        %v5528 = vpack.c.b16 %v5240, %v5238
        %v5529 = vpack.c.b16 %v5241, %v5239
        %v5530 = vpack.c.b16 %v5244, %v5242
        %v5531 = vpack.c.b16 %v5245, %v5243
        %v5532 = vpack.c.b16 %v5248, %v5246
        %v5533 = vpack.c.b16 %v5249, %v5247
        %v5534 = vpack.c.b16 %v5252, %v5250
        %v5535 = vpack.c.b16 %v5253, %v5251
        %v5536 = vpack.c.b16 %v5256, %v5254
        %v5537 = vpack.c.b16 %v5257, %v5255
        %v5538 = vpack.c.b16 %v5260, %v5258
        %v5539 = vpack.c.b16 %v5261, %v5259
        %v5540 = vpack.c.b16 %v5264, %v5262
        %v5541 = vpack.c.b16 %v5265, %v5263
        %v5542 = vpack.c.b16 %v5268, %v5266
        %v5543 = vpack.c.b16 %v5269, %v5267
        %v5544 = vpack.c.b16 %v5272, %v5270
        %v5545 = vpack.c.b16 %v5273, %v5271
        %v5546 = vpack.c.b16 %v5276, %v5274
        %v5547 = vpack.c.b16 %v5277, %v5275
        %v5548 = vpack.c.b16 %v5280, %v5278
        %v5549 = vpack.c.b16 %v5281, %v5279
        %v5550 = vpack.c.b16 %v5284, %v5282
        %v5551 = vpack.c.b16 %v5285, %v5283
        %v5552 = vpack.c.b16 %v5288, %v5286
        %v5553 = vpack.c.b16 %v5289, %v5287
        %v5554 = vpack.c.b16 %v5292, %v5290
        %v5555 = vpack.c.b16 %v5293, %v5291
        %v5556 = vpack.c.b16 %v5296, %v5294
        %v5557 = vpack.c.b16 %v5297, %v5295
        %v5558 = vpack.c.b16 %v5300, %v5298
        %v5559 = vpack.c.b16 %v5301, %v5299
        %v5560 = vpack.c.b16 %v5304, %v5302
        %v5561 = vpack.c.b16 %v5305, %v5303
        %v5562 = vpack.c.b16 %v5308, %v5306
        %v5563 = vpack.c.b16 %v5309, %v5307
        %v5564 = vpack.c.b16 %v5312, %v5310
        %v5565 = vpack.c.b16 %v5313, %v5311
        %v5566 = vpack.c.b16 %v5316, %v5314
        %v5567 = vpack.c.b16 %v5317, %v5315
        %v5568 = vpack.c.b16 %v5320, %v5318
        %v5569 = vpack.c.b16 %v5321, %v5319
        %v5570 = vpack.c.b16 %v5324, %v5322
        %v5571 = vpack.c.b16 %v5325, %v5323
        %v5572 = vpack.c.b16 %v5328, %v5326
        %v5573 = vpack.c.b16 %v5329, %v5327
        %v5574 = vpack.c.b16 %v5332, %v5330
        %v5575 = vpack.c.b16 %v5333, %v5331
        %v5576 = vpack.c.b16 %v5336, %v5334
        %v5577 = vpack.c.b16 %v5337, %v5335
        %v5578 = vpack.c.b16 %v5340, %v5338
        %v5579 = vpack.c.b16 %v5341, %v5339
        %v5580 = vpack.c.b16 %v5344, %v5342
        %v5581 = vpack.c.b16 %v5345, %v5343
        %v5582 = vpack.c.b16 %v5348, %v5346
        %v5583 = vpack.c.b16 %v5349, %v5347
        %v5584 = vpack.c.b16 %v5352, %v5350
        %v5585 = vpack.c.b16 %v5353, %v5351
        %v5586 = vpack.c.b16 %v5356, %v5354
        %v5587 = vpack.c.b16 %v5357, %v5355
        %v5588 = vpack.c.b16 %v5360, %v5358
        %v5589 = vpack.c.b16 %v5361, %v5359
        %v5590 = vpack.c.b16 %v5364, %v5362
        %v5591 = vpack.c.b16 %v5365, %v5363
        %v5592 = vpack.c.b16 %v5368, %v5366
        %v5593 = vpack.c.b16 %v5369, %v5367
        %v5594 = vpack.c.b16 %v5372, %v5370
        %v5595 = vpack.c.b16 %v5373, %v5371
        %v5596 = vpack.c.b16 %v5376, %v5374
        %v5597 = vpack.c.b16 %v5377, %v5375
        %v5598 = vpack.c.b16 %v5380, %v5378
        %v5599 = vpack.c.b16 %v5381, %v5379
        %v5600 = vpack.c.b16 %v5384, %v5382
        %v5601 = vpack.c.b16 %v5385, %v5383
        %v5602 = vpack.c.b16 %v5388, %v5386
        %v5603 = vpack.c.b16 %v5389, %v5387
        %v5604 = vpack.c.b16 %v5392, %v5390
        %v5605 = vpack.c.b16 %v5393, %v5391
        %v5606 = vpack.c.b16 %v5396, %v5394
        %v5607 = vpack.c.b16 %v5397, %v5395
        %v5608 = vpack.c.b16 %v5400, %v5398
        %v5609 = vpack.c.b16 %v5401, %v5399
        %v5610 = vpack.c.b16 %v5404, %v5402
        %v5611 = vpack.c.b16 %v5405, %v5403
        %v5612 = vpack.c.b16 %v5408, %v5406
        %v5613 = vpack.c.b16 %v5409, %v5407
        %v5614 = vpack.c.b16 %v5412, %v5410
        %v5615 = vpack.c.b16 %v5413, %v5411
        %v5616 = vpack.c.b16 %v5416, %v5414
        %v5617 = vpack.c.b16 %v5417, %v5415
        %v5618 = vpack.c.b16 %v5420, %v5418
        %v5619 = vpack.c.b16 %v5421, %v5419
        %v5620 = vpack.c.b16 %v5424, %v5422
        %v5621 = vpack.c.b16 %v5425, %v5423
        %v5622 = vpack.c.b16 %v5428, %v5426
        %v5623 = vpack.c.b16 %v5429, %v5427
        %v5624 = vpack.c.b16 %v5432, %v5430
        %v5625 = vpack.c.b16 %v5433, %v5431
        %5818 = vmatprep.subr.bf16.mxu0 %v5435
        %5819 = vmatpush1.bf16.msra.mxu0 %v5434
        %5820 = vmatprep.subr.bf16.mxu0 %v5437
        %5821 = vmatpush1.bf16.msra.mxu0 %v5436
        %5822 = vmatprep.subr.bf16.mxu0 %v5439
        %5823 = vmatpush1.bf16.msra.mxu0 %v5438
        %5824 = vmatprep.subr.bf16.mxu0 %v5441
        %5825 = vmatpush1.bf16.msra.mxu0 %v5440
        %5826 = vmatprep.subr.bf16.mxu0 %v5443
        %5827 = vmatpush1.bf16.msra.mxu0 %v5442
        %5828 = vmatprep.subr.bf16.mxu0 %v5445
        %5829 = vmatpush1.bf16.msra.mxu0 %v5444
        %5830 = vmatprep.subr.bf16.mxu0 %v5447
        %5831 = vmatpush1.bf16.msra.mxu0 %v5446
        %5832 = vmatprep.subr.bf16.mxu0 %v5449
        %5833 = vmatpush1.bf16.msra.mxu0 %v5448
        %5834 = vmatprep.subr.bf16.mxu0 %v5451
        %5835 = vmatpush1.bf16.msra.mxu0 %v5450
        %5836 = vmatprep.subr.bf16.mxu0 %v5453
        %5837 = vmatpush1.bf16.msra.mxu0 %v5452
        %5838 = vmatprep.subr.bf16.mxu0 %v5455
        %5839 = vmatpush1.bf16.msra.mxu0 %v5454
        %5840 = vmatprep.subr.bf16.mxu0 %v5457
        %5841 = vmatpush1.bf16.msra.mxu0 %v5456
        %5842 = vmatprep.subr.bf16.mxu0 %v5459
        %5843 = vmatpush1.bf16.msra.mxu0 %v5458
        %5844 = vmatprep.subr.bf16.mxu0 %v5461
        %5845 = vmatpush1.bf16.msra.mxu0 %v5460
        %5846 = vmatprep.subr.bf16.mxu0 %v5463
        %5847 = vmatpush1.bf16.msra.mxu0 %v5462
        %5848 = vmatprep.subr.bf16.mxu0 %v5465
        %5849 = vmatpush1.bf16.msra.mxu0 %v5464
        %5850 = vmatprep.mubr.bf16.mxu0 %v4570
        %5851 = vmatmul.mubr.bf16.gmra.mrb[0].mxu0 %v4569
        %v5852 = vpop.f32.mrb[0].mxu0
        %v5853 = vadd.f32 0.0, %v5852
        %v5854 = vpop.f32.mrb[0].mxu0
        %v5855 = vadd.f32 0.0, %v5854
        %v5856 = vpop.f32.mrb[0].mxu0
        %v5857 = vadd.f32 0.0, %v5856
        %v5858 = vpop.f32.mrb[0].mxu0
        %v5859 = vadd.f32 0.0, %v5858
        %5860 = vmatprep.mubr.bf16.mxu0 %v4582
        %5861 = vmatmul.mubr.bf16.gmra.mrb[0].mxu0 %v4581
        %v5862 = vpop.f32.mrb[0].mxu0
        %v5863 = vadd.f32 0.0, %v5862
        %v5864 = vpop.f32.mrb[0].mxu0
        %v5865 = vadd.f32 0.0, %v5864
        %v5866 = vpop.f32.mrb[0].mxu0
        %v5867 = vadd.f32 0.0, %v5866
        %v5868 = vpop.f32.mrb[0].mxu0
        %v5869 = vadd.f32 0.0, %v5868
        %5870 = vmatprep.mubr.bf16.mxu0 %v4594
        %5871 = vmatmul.mubr.bf16.gmra.mrb[0].mxu0 %v4593
        %v5872 = vpop.f32.mrb[0].mxu0
        %v5873 = vadd.f32 0.0, %v5872
        %v5874 = vpop.f32.mrb[0].mxu0
        %v5875 = vadd.f32 0.0, %v5874
        %v5876 = vpop.f32.mrb[0].mxu0
        %v5877 = vadd.f32 0.0, %v5876
        %v5878 = vpop.f32.mrb[0].mxu0
        %v5879 = vadd.f32 0.0, %v5878
        %5880 = vmatprep.mubr.bf16.mxu0 %v4606
        %5881 = vmatmul.mubr.bf16.gmra.mrb[0].mxu0 %v4605
        %v5882 = vpop.f32.mrb[0].mxu0
        %v5883 = vadd.f32 0.0, %v5882
        %v5884 = vpop.f32.mrb[0].mxu0
        %v5885 = vadd.f32 0.0, %v5884
        %v5886 = vpop.f32.mrb[0].mxu0
        %v5887 = vadd.f32 0.0, %v5886
        %v5888 = vpop.f32.mrb[0].mxu0
        %v5889 = vadd.f32 0.0, %v5888
        %5890 = vmatprep.mubr.bf16.mxu0 %v4618
        %5891 = vmatmul.mubr.bf16.gmra.mrb[0].mxu0 %v4617
        %v5892 = vpop.f32.mrb[0].mxu0
        %v5893 = vadd.f32 0.0, %v5892
        %v5894 = vpop.f32.mrb[0].mxu0
        %v5895 = vadd.f32 0.0, %v5894
        %v5896 = vpop.f32.mrb[0].mxu0
        %v5897 = vadd.f32 0.0, %v5896
        %v5898 = vpop.f32.mrb[0].mxu0
        %v5899 = vadd.f32 0.0, %v5898
        %5900 = vmatprep.mubr.bf16.mxu0 %v4630
        %5901 = vmatmul.mubr.bf16.gmra.mrb[0].mxu0 %v4629
        %v5902 = vpop.f32.mrb[0].mxu0
        %v5903 = vadd.f32 0.0, %v5902
        %v5904 = vpop.f32.mrb[0].mxu0
        %v5905 = vadd.f32 0.0, %v5904
        %v5906 = vpop.f32.mrb[0].mxu0
        %v5907 = vadd.f32 0.0, %v5906
        %v5908 = vpop.f32.mrb[0].mxu0
        %v5909 = vadd.f32 0.0, %v5908
        %5910 = vmatprep.mubr.bf16.mxu0 %v4642
        %5911 = vmatmul.mubr.bf16.gmra.mrb[0].mxu0 %v4641
        %v5912 = vpop.f32.mrb[0].mxu0
        %v5913 = vadd.f32 0.0, %v5912
        %v5914 = vpop.f32.mrb[0].mxu0
        %v5915 = vadd.f32 0.0, %v5914
        %v5916 = vpop.f32.mrb[0].mxu0
        %v5917 = vadd.f32 0.0, %v5916
        %v5918 = vpop.f32.mrb[0].mxu0
        %v5919 = vadd.f32 0.0, %v5918
        %5920 = vmatprep.mubr.bf16.mxu0 %v4654
        %5921 = vmatmul.mubr.bf16.gmra.mrb[0].mxu0 %v4653
        %v5922 = vpop.f32.mrb[0].mxu0
        %v5923 = vadd.f32 0.0, %v5922
        %v5924 = vpop.f32.mrb[0].mxu0
        %v5925 = vadd.f32 0.0, %v5924
        %v5926 = vpop.f32.mrb[0].mxu0
        %v5927 = vadd.f32 0.0, %v5926
        %v5928 = vpop.f32.mrb[0].mxu0
        %v5929 = vadd.f32 0.0, %v5928
        %5930 = vdwg.mxu0
        %5931 = vmatprep.subr.bf16.mxu0 %v5467
        %5932 = vmatpush1.bf16.msra.mxu0 %v5466
        %5933 = vmatprep.subr.bf16.mxu0 %v5469
        %5934 = vmatpush1.bf16.msra.mxu0 %v5468
        %5935 = vmatprep.subr.bf16.mxu0 %v5471
        %5936 = vmatpush1.bf16.msra.mxu0 %v5470
        %5937 = vmatprep.subr.bf16.mxu0 %v5473
        %5938 = vmatpush1.bf16.msra.mxu0 %v5472
        %5939 = vmatprep.subr.bf16.mxu0 %v5475
        %5940 = vmatpush1.bf16.msra.mxu0 %v5474
        %5941 = vmatprep.subr.bf16.mxu0 %v5477
        %5942 = vmatpush1.bf16.msra.mxu0 %v5476
        %5943 = vmatprep.subr.bf16.mxu0 %v5479
        %5944 = vmatpush1.bf16.msra.mxu0 %v5478
        %5945 = vmatprep.subr.bf16.mxu0 %v5481
        %5946 = vmatpush1.bf16.msra.mxu0 %v5480
        %5947 = vmatprep.subr.bf16.mxu0 %v5483
        %5948 = vmatpush1.bf16.msra.mxu0 %v5482
        %5949 = vmatprep.subr.bf16.mxu0 %v5485
        %5950 = vmatpush1.bf16.msra.mxu0 %v5484
        %5951 = vmatprep.subr.bf16.mxu0 %v5487
        %5952 = vmatpush1.bf16.msra.mxu0 %v5486
        %5953 = vmatprep.subr.bf16.mxu0 %v5489
        %5954 = vmatpush1.bf16.msra.mxu0 %v5488
        %5955 = vmatprep.subr.bf16.mxu0 %v5491
        %5956 = vmatpush1.bf16.msra.mxu0 %v5490
        %5957 = vmatprep.subr.bf16.mxu0 %v5493
        %5958 = vmatpush1.bf16.msra.mxu0 %v5492
        %5959 = vmatprep.subr.bf16.mxu0 %v5495
        %5960 = vmatpush1.bf16.msra.mxu0 %v5494
        %5961 = vmatprep.subr.bf16.mxu0 %v5497
        %5962 = vmatpush1.bf16.msra.mxu0 %v5496
        %5963 = vmatprep.mubr.bf16.mxu0 %v4572
        %5964 = vmatmul.mubr.bf16.gmra.mrb[0].mxu0 %v4571
        %v5965 = vpop.f32.mrb[0].mxu0
        %v5966 = vadd.f32 %v5853, %v5965
        %v5967 = vpop.f32.mrb[0].mxu0
        %v5968 = vadd.f32 %v5855, %v5967
        %v5969 = vpop.f32.mrb[0].mxu0
        %v5970 = vadd.f32 %v5857, %v5969
        %v5971 = vpop.f32.mrb[0].mxu0
        %v5972 = vadd.f32 %v5859, %v5971
        %5973 = vmatprep.mubr.bf16.mxu0 %v4584
        %5974 = vmatmul.mubr.bf16.gmra.mrb[0].mxu0 %v4583
        %v5975 = vpop.f32.mrb[0].mxu0
        %v5976 = vadd.f32 %v5863, %v5975
        %v5977 = vpop.f32.mrb[0].mxu0
        %v5978 = vadd.f32 %v5865, %v5977
        %v5979 = vpop.f32.mrb[0].mxu0
        %v5980 = vadd.f32 %v5867, %v5979
        %v5981 = vpop.f32.mrb[0].mxu0
        %v5982 = vadd.f32 %v5869, %v5981
        %5983 = vmatprep.mubr.bf16.mxu0 %v4596
        %5984 = vmatmul.mubr.bf16.gmra.mrb[0].mxu0 %v4595
        %v5985 = vpop.f32.mrb[0].mxu0
        %v5986 = vadd.f32 %v5873, %v5985
        %v5987 = vpop.f32.mrb[0].mxu0
        %v5988 = vadd.f32 %v5875, %v5987
        %v5989 = vpop.f32.mrb[0].mxu0
        %v5990 = vadd.f32 %v5877, %v5989
        %v5991 = vpop.f32.mrb[0].mxu0
        %v5992 = vadd.f32 %v5879, %v5991
        %5993 = vmatprep.mubr.bf16.mxu0 %v4608
        %5994 = vmatmul.mubr.bf16.gmra.mrb[0].mxu0 %v4607
        %v5995 = vpop.f32.mrb[0].mxu0
        %v5996 = vadd.f32 %v5883, %v5995
        %v5997 = vpop.f32.mrb[0].mxu0
        %v5998 = vadd.f32 %v5885, %v5997
        %v5999 = vpop.f32.mrb[0].mxu0
        %v6000 = vadd.f32 %v5887, %v5999
        %v6001 = vpop.f32.mrb[0].mxu0
        %v6002 = vadd.f32 %v5889, %v6001
        %6003 = vmatprep.mubr.bf16.mxu0 %v4620
        %6004 = vmatmul.mubr.bf16.gmra.mrb[0].mxu0 %v4619
        %v6005 = vpop.f32.mrb[0].mxu0
        %v6006 = vadd.f32 %v5893, %v6005
        %v6007 = vpop.f32.mrb[0].mxu0
        %v6008 = vadd.f32 %v5895, %v6007
        %v6009 = vpop.f32.mrb[0].mxu0
        %v6010 = vadd.f32 %v5897, %v6009
        %v6011 = vpop.f32.mrb[0].mxu0
        %v6012 = vadd.f32 %v5899, %v6011
        %6013 = vmatprep.mubr.bf16.mxu0 %v4632
        %6014 = vmatmul.mubr.bf16.gmra.mrb[0].mxu0 %v4631
        %v6015 = vpop.f32.mrb[0].mxu0
        %v6016 = vadd.f32 %v5903, %v6015
        %v6017 = vpop.f32.mrb[0].mxu0
        %v6018 = vadd.f32 %v5905, %v6017
        %v6019 = vpop.f32.mrb[0].mxu0
        %v6020 = vadd.f32 %v5907, %v6019
        %v6021 = vpop.f32.mrb[0].mxu0
        %v6022 = vadd.f32 %v5909, %v6021
        %6023 = vmatprep.mubr.bf16.mxu0 %v4644
        %6024 = vmatmul.mubr.bf16.gmra.mrb[0].mxu0 %v4643
        %v6025 = vpop.f32.mrb[0].mxu0
        %v6026 = vadd.f32 %v5913, %v6025
        %v6027 = vpop.f32.mrb[0].mxu0
        %v6028 = vadd.f32 %v5915, %v6027
        %v6029 = vpop.f32.mrb[0].mxu0
        %v6030 = vadd.f32 %v5917, %v6029
        %v6031 = vpop.f32.mrb[0].mxu0
        %v6032 = vadd.f32 %v5919, %v6031
        %6033 = vmatprep.mubr.bf16.mxu0 %v4656
        %6034 = vmatmul.mubr.bf16.gmra.mrb[0].mxu0 %v4655
        %v6035 = vpop.f32.mrb[0].mxu0
        %v6036 = vadd.f32 %v5923, %v6035
        %v6037 = vpop.f32.mrb[0].mxu0
        %v6038 = vadd.f32 %v5925, %v6037
        %v6039 = vpop.f32.mrb[0].mxu0
        %v6040 = vadd.f32 %v5927, %v6039
        %v6041 = vpop.f32.mrb[0].mxu0
        %v6042 = vadd.f32 %v5929, %v6041
        %6043 = vdwg.mxu0
        %6044 = vmatprep.subr.bf16.mxu0 %v5499
        %6045 = vmatpush1.bf16.msra.mxu0 %v5498
        %6046 = vmatprep.subr.bf16.mxu0 %v5501
        %6047 = vmatpush1.bf16.msra.mxu0 %v5500
        %6048 = vmatprep.subr.bf16.mxu0 %v5503
        %6049 = vmatpush1.bf16.msra.mxu0 %v5502
        %6050 = vmatprep.subr.bf16.mxu0 %v5505
        %6051 = vmatpush1.bf16.msra.mxu0 %v5504
        %6052 = vmatprep.subr.bf16.mxu0 %v5507
        %6053 = vmatpush1.bf16.msra.mxu0 %v5506
        %6054 = vmatprep.subr.bf16.mxu0 %v5509
        %6055 = vmatpush1.bf16.msra.mxu0 %v5508
        %6056 = vmatprep.subr.bf16.mxu0 %v5511
        %6057 = vmatpush1.bf16.msra.mxu0 %v5510
        %6058 = vmatprep.subr.bf16.mxu0 %v5513
        %6059 = vmatpush1.bf16.msra.mxu0 %v5512
        %6060 = vmatprep.subr.bf16.mxu0 %v5515
        %6061 = vmatpush1.bf16.msra.mxu0 %v5514
        %6062 = vmatprep.subr.bf16.mxu0 %v5517
        %6063 = vmatpush1.bf16.msra.mxu0 %v5516
        %6064 = vmatprep.subr.bf16.mxu0 %v5519
        %6065 = vmatpush1.bf16.msra.mxu0 %v5518
        %6066 = vmatprep.subr.bf16.mxu0 %v5521
        %6067 = vmatpush1.bf16.msra.mxu0 %v5520
        %6068 = vmatprep.subr.bf16.mxu0 %v5523
        %6069 = vmatpush1.bf16.msra.mxu0 %v5522
        %6070 = vmatprep.subr.bf16.mxu0 %v5525
        %6071 = vmatpush1.bf16.msra.mxu0 %v5524
        %6072 = vmatprep.subr.bf16.mxu0 %v5527
        %6073 = vmatpush1.bf16.msra.mxu0 %v5526
        %6074 = vmatprep.subr.bf16.mxu0 %v5529
        %6075 = vmatpush1.bf16.msra.mxu0 %v5528
        %6076 = vmatprep.mubr.bf16.mxu0 %v4574
        %6077 = vmatmul.mubr.bf16.gmra.mrb[0].mxu0 %v4573
        %v6078 = vpop.f32.mrb[0].mxu0
        %v6079 = vadd.f32 %v5966, %v6078
        %v6080 = vpop.f32.mrb[0].mxu0
        %v6081 = vadd.f32 %v5968, %v6080
        %v6082 = vpop.f32.mrb[0].mxu0
        %v6083 = vadd.f32 %v5970, %v6082
        %v6084 = vpop.f32.mrb[0].mxu0
        %v6085 = vadd.f32 %v5972, %v6084
        %6086 = vmatprep.mubr.bf16.mxu0 %v4586
        %6087 = vmatmul.mubr.bf16.gmra.mrb[0].mxu0 %v4585
        %v6088 = vpop.f32.mrb[0].mxu0
        %v6089 = vadd.f32 %v5976, %v6088
        %v6090 = vpop.f32.mrb[0].mxu0
        %v6091 = vadd.f32 %v5978, %v6090
        %v6092 = vpop.f32.mrb[0].mxu0
        %v6093 = vadd.f32 %v5980, %v6092
        %v6094 = vpop.f32.mrb[0].mxu0
        %v6095 = vadd.f32 %v5982, %v6094
        %6096 = vmatprep.mubr.bf16.mxu0 %v4598
        %6097 = vmatmul.mubr.bf16.gmra.mrb[0].mxu0 %v4597
        %v6098 = vpop.f32.mrb[0].mxu0
        %v6099 = vadd.f32 %v5986, %v6098
        %v6100 = vpop.f32.mrb[0].mxu0
        %v6101 = vadd.f32 %v5988, %v6100
        %v6102 = vpop.f32.mrb[0].mxu0
        %v6103 = vadd.f32 %v5990, %v6102
        %v6104 = vpop.f32.mrb[0].mxu0
        %v6105 = vadd.f32 %v5992, %v6104
        %6106 = vmatprep.mubr.bf16.mxu0 %v4610
        %6107 = vmatmul.mubr.bf16.gmra.mrb[0].mxu0 %v4609
        %v6108 = vpop.f32.mrb[0].mxu0
        %v6109 = vadd.f32 %v5996, %v6108
        %v6110 = vpop.f32.mrb[0].mxu0
        %v6111 = vadd.f32 %v5998, %v6110
        %v6112 = vpop.f32.mrb[0].mxu0
        %v6113 = vadd.f32 %v6000, %v6112
        %v6114 = vpop.f32.mrb[0].mxu0
        %v6115 = vadd.f32 %v6002, %v6114
        %6116 = vmatprep.mubr.bf16.mxu0 %v4622
        %6117 = vmatmul.mubr.bf16.gmra.mrb[0].mxu0 %v4621
        %v6118 = vpop.f32.mrb[0].mxu0
        %v6119 = vadd.f32 %v6006, %v6118
        %v6120 = vpop.f32.mrb[0].mxu0
        %v6121 = vadd.f32 %v6008, %v6120
        %v6122 = vpop.f32.mrb[0].mxu0
        %v6123 = vadd.f32 %v6010, %v6122
        %v6124 = vpop.f32.mrb[0].mxu0
        %v6125 = vadd.f32 %v6012, %v6124
        %6126 = vmatprep.mubr.bf16.mxu0 %v4634
        %6127 = vmatmul.mubr.bf16.gmra.mrb[0].mxu0 %v4633
        %v6128 = vpop.f32.mrb[0].mxu0
        %v6129 = vadd.f32 %v6016, %v6128
        %v6130 = vpop.f32.mrb[0].mxu0
        %v6131 = vadd.f32 %v6018, %v6130
        %v6132 = vpop.f32.mrb[0].mxu0
        %v6133 = vadd.f32 %v6020, %v6132
        %v6134 = vpop.f32.mrb[0].mxu0
        %v6135 = vadd.f32 %v6022, %v6134
        %6136 = vmatprep.mubr.bf16.mxu0 %v4646
        %6137 = vmatmul.mubr.bf16.gmra.mrb[0].mxu0 %v4645
        %v6138 = vpop.f32.mrb[0].mxu0
        %v6139 = vadd.f32 %v6026, %v6138
        %v6140 = vpop.f32.mrb[0].mxu0
        %v6141 = vadd.f32 %v6028, %v6140
        %v6142 = vpop.f32.mrb[0].mxu0
        %v6143 = vadd.f32 %v6030, %v6142
        %v6144 = vpop.f32.mrb[0].mxu0
        %v6145 = vadd.f32 %v6032, %v6144
        %6146 = vmatprep.mubr.bf16.mxu0 %v4658
        %6147 = vmatmul.mubr.bf16.gmra.mrb[0].mxu0 %v4657
        %v6148 = vpop.f32.mrb[0].mxu0
        %v6149 = vadd.f32 %v6036, %v6148
        %v6150 = vpop.f32.mrb[0].mxu0
        %v6151 = vadd.f32 %v6038, %v6150
        %v6152 = vpop.f32.mrb[0].mxu0
        %v6153 = vadd.f32 %v6040, %v6152
        %v6154 = vpop.f32.mrb[0].mxu0
        %v6155 = vadd.f32 %v6042, %v6154
        %6156 = vdwg.mxu0
        %6157 = vmatprep.subr.bf16.mxu0 %v5531
        %6158 = vmatpush1.bf16.msra.mxu0 %v5530
        %6159 = vmatprep.subr.bf16.mxu0 %v5533
        %6160 = vmatpush1.bf16.msra.mxu0 %v5532
        %6161 = vmatprep.subr.bf16.mxu0 %v5535
        %6162 = vmatpush1.bf16.msra.mxu0 %v5534
        %6163 = vmatprep.subr.bf16.mxu0 %v5537
        %6164 = vmatpush1.bf16.msra.mxu0 %v5536
        %6165 = vmatprep.subr.bf16.mxu0 %v5539
        %6166 = vmatpush1.bf16.msra.mxu0 %v5538
        %6167 = vmatprep.subr.bf16.mxu0 %v5541
        %6168 = vmatpush1.bf16.msra.mxu0 %v5540
        %6169 = vmatprep.subr.bf16.mxu0 %v5543
        %6170 = vmatpush1.bf16.msra.mxu0 %v5542
        %6171 = vmatprep.subr.bf16.mxu0 %v5545
        %6172 = vmatpush1.bf16.msra.mxu0 %v5544
        %6173 = vmatprep.subr.bf16.mxu0 %v5547
        %6174 = vmatpush1.bf16.msra.mxu0 %v5546
        %6175 = vmatprep.subr.bf16.mxu0 %v5549
        %6176 = vmatpush1.bf16.msra.mxu0 %v5548
        %6177 = vmatprep.subr.bf16.mxu0 %v5551
        %6178 = vmatpush1.bf16.msra.mxu0 %v5550
        %6179 = vmatprep.subr.bf16.mxu0 %v5553
        %6180 = vmatpush1.bf16.msra.mxu0 %v5552
        %6181 = vmatprep.subr.bf16.mxu0 %v5555
        %6182 = vmatpush1.bf16.msra.mxu0 %v5554
        %6183 = vmatprep.subr.bf16.mxu0 %v5557
        %6184 = vmatpush1.bf16.msra.mxu0 %v5556
        %6185 = vmatprep.subr.bf16.mxu0 %v5559
        %6186 = vmatpush1.bf16.msra.mxu0 %v5558
        %6187 = vmatprep.subr.bf16.mxu0 %v5561
        %6188 = vmatpush1.bf16.msra.mxu0 %v5560
        %6189 = vmatprep.mubr.bf16.mxu0 %v4576
        %6190 = vmatmul.mubr.bf16.gmra.mrb[0].mxu0 %v4575
        %v6191 = vpop.f32.mrb[0].mxu0
        %v6192 = vadd.f32 %v6079, %v6191
        %v6193 = vpop.f32.mrb[0].mxu0
        %v6194 = vadd.f32 %v6081, %v6193
        %v6195 = vpop.f32.mrb[0].mxu0
        %v6196 = vadd.f32 %v6083, %v6195
        %v6197 = vpop.f32.mrb[0].mxu0
        %v6198 = vadd.f32 %v6085, %v6197
        %6199 = vmatprep.mubr.bf16.mxu0 %v4588
        %6200 = vmatmul.mubr.bf16.gmra.mrb[0].mxu0 %v4587
        %v6201 = vpop.f32.mrb[0].mxu0
        %v6202 = vadd.f32 %v6089, %v6201
        %v6203 = vpop.f32.mrb[0].mxu0
        %v6204 = vadd.f32 %v6091, %v6203
        %v6205 = vpop.f32.mrb[0].mxu0
        %v6206 = vadd.f32 %v6093, %v6205
        %v6207 = vpop.f32.mrb[0].mxu0
        %v6208 = vadd.f32 %v6095, %v6207
        %6209 = vmatprep.mubr.bf16.mxu0 %v4600
        %6210 = vmatmul.mubr.bf16.gmra.mrb[0].mxu0 %v4599
        %v6211 = vpop.f32.mrb[0].mxu0
        %v6212 = vadd.f32 %v6099, %v6211
        %v6213 = vpop.f32.mrb[0].mxu0
        %v6214 = vadd.f32 %v6101, %v6213
        %v6215 = vpop.f32.mrb[0].mxu0
        %v6216 = vadd.f32 %v6103, %v6215
        %v6217 = vpop.f32.mrb[0].mxu0
        %v6218 = vadd.f32 %v6105, %v6217
        %6219 = vmatprep.mubr.bf16.mxu0 %v4612
        %6220 = vmatmul.mubr.bf16.gmra.mrb[0].mxu0 %v4611
        %v6221 = vpop.f32.mrb[0].mxu0
        %v6222 = vadd.f32 %v6109, %v6221
        %v6223 = vpop.f32.mrb[0].mxu0
        %v6224 = vadd.f32 %v6111, %v6223
        %v6225 = vpop.f32.mrb[0].mxu0
        %v6226 = vadd.f32 %v6113, %v6225
        %v6227 = vpop.f32.mrb[0].mxu0
        %v6228 = vadd.f32 %v6115, %v6227
        %6229 = vmatprep.mubr.bf16.mxu0 %v4624
        %6230 = vmatmul.mubr.bf16.gmra.mrb[0].mxu0 %v4623
        %v6231 = vpop.f32.mrb[0].mxu0
        %v6232 = vadd.f32 %v6119, %v6231
        %v6233 = vpop.f32.mrb[0].mxu0
        %v6234 = vadd.f32 %v6121, %v6233
        %v6235 = vpop.f32.mrb[0].mxu0
        %v6236 = vadd.f32 %v6123, %v6235
        %v6237 = vpop.f32.mrb[0].mxu0
        %v6238 = vadd.f32 %v6125, %v6237
        %6239 = vmatprep.mubr.bf16.mxu0 %v4636
        %6240 = vmatmul.mubr.bf16.gmra.mrb[0].mxu0 %v4635
        %v6241 = vpop.f32.mrb[0].mxu0
        %v6242 = vadd.f32 %v6129, %v6241
        %v6243 = vpop.f32.mrb[0].mxu0
        %v6244 = vadd.f32 %v6131, %v6243
        %v6245 = vpop.f32.mrb[0].mxu0
        %v6246 = vadd.f32 %v6133, %v6245
        %v6247 = vpop.f32.mrb[0].mxu0
        %v6248 = vadd.f32 %v6135, %v6247
        %6249 = vmatprep.mubr.bf16.mxu0 %v4648
        %6250 = vmatmul.mubr.bf16.gmra.mrb[0].mxu0 %v4647
        %v6251 = vpop.f32.mrb[0].mxu0
        %v6252 = vadd.f32 %v6139, %v6251
        %v6253 = vpop.f32.mrb[0].mxu0
        %v6254 = vadd.f32 %v6141, %v6253
        %v6255 = vpop.f32.mrb[0].mxu0
        %v6256 = vadd.f32 %v6143, %v6255
        %v6257 = vpop.f32.mrb[0].mxu0
        %v6258 = vadd.f32 %v6145, %v6257
        %6259 = vmatprep.mubr.bf16.mxu0 %v4660
        %6260 = vmatmul.mubr.bf16.gmra.mrb[0].mxu0 %v4659
        %v6261 = vpop.f32.mrb[0].mxu0
        %v6262 = vadd.f32 %v6149, %v6261
        %v6263 = vpop.f32.mrb[0].mxu0
        %v6264 = vadd.f32 %v6151, %v6263
        %v6265 = vpop.f32.mrb[0].mxu0
        %v6266 = vadd.f32 %v6153, %v6265
        %v6267 = vpop.f32.mrb[0].mxu0
        %v6268 = vadd.f32 %v6155, %v6267
        %6269 = vdwg.mxu0
        %6270 = vmatprep.subr.bf16.mxu0 %v5563
        %6271 = vmatpush1.bf16.msra.mxu0 %v5562
        %6272 = vmatprep.subr.bf16.mxu0 %v5565
        %6273 = vmatpush1.bf16.msra.mxu0 %v5564
        %6274 = vmatprep.subr.bf16.mxu0 %v5567
        %6275 = vmatpush1.bf16.msra.mxu0 %v5566
        %6276 = vmatprep.subr.bf16.mxu0 %v5569
        %6277 = vmatpush1.bf16.msra.mxu0 %v5568
        %6278 = vmatprep.subr.bf16.mxu0 %v5571
        %6279 = vmatpush1.bf16.msra.mxu0 %v5570
        %6280 = vmatprep.subr.bf16.mxu0 %v5573
        %6281 = vmatpush1.bf16.msra.mxu0 %v5572
        %6282 = vmatprep.subr.bf16.mxu0 %v5575
        %6283 = vmatpush1.bf16.msra.mxu0 %v5574
        %6284 = vmatprep.subr.bf16.mxu0 %v5577
        %6285 = vmatpush1.bf16.msra.mxu0 %v5576
        %6286 = vmatprep.subr.bf16.mxu0 %v5579
        %6287 = vmatpush1.bf16.msra.mxu0 %v5578
        %6288 = vmatprep.subr.bf16.mxu0 %v5581
        %6289 = vmatpush1.bf16.msra.mxu0 %v5580
        %6290 = vmatprep.subr.bf16.mxu0 %v5583
        %6291 = vmatpush1.bf16.msra.mxu0 %v5582
        %6292 = vmatprep.subr.bf16.mxu0 %v5585
        %6293 = vmatpush1.bf16.msra.mxu0 %v5584
        %6294 = vmatprep.subr.bf16.mxu0 %v5587
        %6295 = vmatpush1.bf16.msra.mxu0 %v5586
        %6296 = vmatprep.subr.bf16.mxu0 %v5589
        %6297 = vmatpush1.bf16.msra.mxu0 %v5588
        %6298 = vmatprep.subr.bf16.mxu0 %v5591
        %6299 = vmatpush1.bf16.msra.mxu0 %v5590
        %6300 = vmatprep.subr.bf16.mxu0 %v5593
        %6301 = vmatpush1.bf16.msra.mxu0 %v5592
        %6302 = vmatprep.mubr.bf16.mxu0 %v4578
        %6303 = vmatmul.mubr.bf16.gmra.mrb[0].mxu0 %v4577
        %v6304 = vpop.f32.mrb[0].mxu0
        %v6305 = vadd.f32 %v6192, %v6304
        %v6306 = vpop.f32.mrb[0].mxu0
        %v6307 = vadd.f32 %v6194, %v6306
        %v6308 = vpop.f32.mrb[0].mxu0
        %v6309 = vadd.f32 %v6196, %v6308
        %v6310 = vpop.f32.mrb[0].mxu0
        %v6311 = vadd.f32 %v6198, %v6310
        %6312 = vmatprep.mubr.bf16.mxu0 %v4590
        %6313 = vmatmul.mubr.bf16.gmra.mrb[0].mxu0 %v4589
        %v6314 = vpop.f32.mrb[0].mxu0
        %v6315 = vadd.f32 %v6202, %v6314
        %v6316 = vpop.f32.mrb[0].mxu0
        %v6317 = vadd.f32 %v6204, %v6316
        %v6318 = vpop.f32.mrb[0].mxu0
        %v6319 = vadd.f32 %v6206, %v6318
        %v6320 = vpop.f32.mrb[0].mxu0
        %v6321 = vadd.f32 %v6208, %v6320
        %6322 = vmatprep.mubr.bf16.mxu0 %v4602
        %6323 = vmatmul.mubr.bf16.gmra.mrb[0].mxu0 %v4601
        %v6324 = vpop.f32.mrb[0].mxu0
        %v6325 = vadd.f32 %v6212, %v6324
        %v6326 = vpop.f32.mrb[0].mxu0
        %v6327 = vadd.f32 %v6214, %v6326
        %v6328 = vpop.f32.mrb[0].mxu0
        %v6329 = vadd.f32 %v6216, %v6328
        %v6330 = vpop.f32.mrb[0].mxu0
        %v6331 = vadd.f32 %v6218, %v6330
        %6332 = vmatprep.mubr.bf16.mxu0 %v4614
        %6333 = vmatmul.mubr.bf16.gmra.mrb[0].mxu0 %v4613
        %v6334 = vpop.f32.mrb[0].mxu0
        %v6335 = vadd.f32 %v6222, %v6334
        %v6336 = vpop.f32.mrb[0].mxu0
        %v6337 = vadd.f32 %v6224, %v6336
        %v6338 = vpop.f32.mrb[0].mxu0
        %v6339 = vadd.f32 %v6226, %v6338
        %v6340 = vpop.f32.mrb[0].mxu0
        %v6341 = vadd.f32 %v6228, %v6340
        %6342 = vmatprep.mubr.bf16.mxu0 %v4626
        %6343 = vmatmul.mubr.bf16.gmra.mrb[0].mxu0 %v4625
        %v6344 = vpop.f32.mrb[0].mxu0
        %v6345 = vadd.f32 %v6232, %v6344
        %v6346 = vpop.f32.mrb[0].mxu0
        %v6347 = vadd.f32 %v6234, %v6346
        %v6348 = vpop.f32.mrb[0].mxu0
        %v6349 = vadd.f32 %v6236, %v6348
        %v6350 = vpop.f32.mrb[0].mxu0
        %v6351 = vadd.f32 %v6238, %v6350
        %6352 = vmatprep.mubr.bf16.mxu0 %v4638
        %6353 = vmatmul.mubr.bf16.gmra.mrb[0].mxu0 %v4637
        %v6354 = vpop.f32.mrb[0].mxu0
        %v6355 = vadd.f32 %v6242, %v6354
        %v6356 = vpop.f32.mrb[0].mxu0
        %v6357 = vadd.f32 %v6244, %v6356
        %v6358 = vpop.f32.mrb[0].mxu0
        %v6359 = vadd.f32 %v6246, %v6358
        %v6360 = vpop.f32.mrb[0].mxu0
        %v6361 = vadd.f32 %v6248, %v6360
        %6362 = vmatprep.mubr.bf16.mxu0 %v4650
        %6363 = vmatmul.mubr.bf16.gmra.mrb[0].mxu0 %v4649
        %v6364 = vpop.f32.mrb[0].mxu0
        %v6365 = vadd.f32 %v6252, %v6364
        %v6366 = vpop.f32.mrb[0].mxu0
        %v6367 = vadd.f32 %v6254, %v6366
        %v6368 = vpop.f32.mrb[0].mxu0
        %v6369 = vadd.f32 %v6256, %v6368
        %v6370 = vpop.f32.mrb[0].mxu0
        %v6371 = vadd.f32 %v6258, %v6370
        %6372 = vmatprep.mubr.bf16.mxu0 %v4662
        %6373 = vmatmul.mubr.bf16.gmra.mrb[0].mxu0 %v4661
        %v6374 = vpop.f32.mrb[0].mxu0
        %v6375 = vadd.f32 %v6262, %v6374
        %v6376 = vpop.f32.mrb[0].mxu0
        %v6377 = vadd.f32 %v6264, %v6376
        %v6378 = vpop.f32.mrb[0].mxu0
        %v6379 = vadd.f32 %v6266, %v6378
        %v6380 = vpop.f32.mrb[0].mxu0
        %v6381 = vadd.f32 %v6268, %v6380
        %6382 = vdwg.mxu0
        %6383 = vmatprep.subr.bf16.mxu0 %v5595
        %6384 = vmatpush1.bf16.msra.mxu0 %v5594
        %6385 = vmatprep.subr.bf16.mxu0 %v5597
        %6386 = vmatpush1.bf16.msra.mxu0 %v5596
        %6387 = vmatprep.subr.bf16.mxu0 %v5599
        %6388 = vmatpush1.bf16.msra.mxu0 %v5598
        %6389 = vmatprep.subr.bf16.mxu0 %v5601
        %6390 = vmatpush1.bf16.msra.mxu0 %v5600
        %6391 = vmatprep.subr.bf16.mxu0 %v5603
        %6392 = vmatpush1.bf16.msra.mxu0 %v5602
        %6393 = vmatprep.subr.bf16.mxu0 %v5605
        %6394 = vmatpush1.bf16.msra.mxu0 %v5604
        %6395 = vmatprep.subr.bf16.mxu0 %v5607
        %6396 = vmatpush1.bf16.msra.mxu0 %v5606
        %6397 = vmatprep.subr.bf16.mxu0 %v5609
        %6398 = vmatpush1.bf16.msra.mxu0 %v5608
        %6399 = vmatprep.subr.bf16.mxu0 %v5611
        %6400 = vmatpush1.bf16.msra.mxu0 %v5610
        %6401 = vmatprep.subr.bf16.mxu0 %v5613
        %6402 = vmatpush1.bf16.msra.mxu0 %v5612
        %6403 = vmatprep.subr.bf16.mxu0 %v5615
        %6404 = vmatpush1.bf16.msra.mxu0 %v5614
        %6405 = vmatprep.subr.bf16.mxu0 %v5617
        %6406 = vmatpush1.bf16.msra.mxu0 %v5616
        %6407 = vmatprep.subr.bf16.mxu0 %v5619
        %6408 = vmatpush1.bf16.msra.mxu0 %v5618
        %6409 = vmatprep.subr.bf16.mxu0 %v5621
        %6410 = vmatpush1.bf16.msra.mxu0 %v5620
        %6411 = vmatprep.subr.bf16.mxu0 %v5623
        %6412 = vmatpush1.bf16.msra.mxu0 %v5622
        %6413 = vmatprep.subr.bf16.mxu0 %v5625
        %6414 = vmatpush1.bf16.msra.mxu0 %v5624
        %6415 = vmatprep.mubr.bf16.mxu0 %v4580
        %6416 = vmatmul.mubr.bf16.gmra.mrb[0].mxu0 %v4579
        %v6417 = vpop.f32.mrb[0].mxu0
        %v6418 = vadd.f32 %v6305, %v6417
        %v6419 = vpop.f32.mrb[0].mxu0
        %v6420 = vadd.f32 %v6307, %v6419
        %v6421 = vpop.f32.mrb[0].mxu0
        %v6422 = vadd.f32 %v6309, %v6421
        %v6423 = vpop.f32.mrb[0].mxu0
        %v6424 = vadd.f32 %v6311, %v6423
        %6425 = vmatprep.mubr.bf16.mxu0 %v4592
        %6426 = vmatmul.mubr.bf16.gmra.mrb[0].mxu0 %v4591
        %v6427 = vpop.f32.mrb[0].mxu0
        %v6428 = vadd.f32 %v6315, %v6427
        %v6429 = vpop.f32.mrb[0].mxu0
        %v6430 = vadd.f32 %v6317, %v6429
        %v6431 = vpop.f32.mrb[0].mxu0
        %v6432 = vadd.f32 %v6319, %v6431
        %v6433 = vpop.f32.mrb[0].mxu0
        %v6434 = vadd.f32 %v6321, %v6433
        %6435 = vmatprep.mubr.bf16.mxu0 %v4604
        %6436 = vmatmul.mubr.bf16.gmra.mrb[0].mxu0 %v4603
        %v6437 = vpop.f32.mrb[0].mxu0
        %v6438 = vadd.f32 %v6325, %v6437
        %v6439 = vpop.f32.mrb[0].mxu0
        %v6440 = vadd.f32 %v6327, %v6439
        %v6441 = vpop.f32.mrb[0].mxu0
        %v6442 = vadd.f32 %v6329, %v6441
        %v6443 = vpop.f32.mrb[0].mxu0
        %v6444 = vadd.f32 %v6331, %v6443
        %6445 = vmatprep.mubr.bf16.mxu0 %v4616
        %6446 = vmatmul.mubr.bf16.gmra.mrb[0].mxu0 %v4615
        %v6447 = vpop.f32.mrb[0].mxu0
        %v6448 = vadd.f32 %v6335, %v6447
        %v6449 = vpop.f32.mrb[0].mxu0
        %v6450 = vadd.f32 %v6337, %v6449
        %v6451 = vpop.f32.mrb[0].mxu0
        %v6452 = vadd.f32 %v6339, %v6451
        %v6453 = vpop.f32.mrb[0].mxu0
        %v6454 = vadd.f32 %v6341, %v6453
        %6455 = vmatprep.mubr.bf16.mxu0 %v4628
        %6456 = vmatmul.mubr.bf16.gmra.mrb[0].mxu0 %v4627
        %v6457 = vpop.f32.mrb[0].mxu0
        %v6458 = vadd.f32 %v6345, %v6457
        %v6459 = vpop.f32.mrb[0].mxu0
        %v6460 = vadd.f32 %v6347, %v6459
        %v6461 = vpop.f32.mrb[0].mxu0
        %v6462 = vadd.f32 %v6349, %v6461
        %v6463 = vpop.f32.mrb[0].mxu0
        %v6464 = vadd.f32 %v6351, %v6463
        %6465 = vmatprep.mubr.bf16.mxu0 %v4640
        %6466 = vmatmul.mubr.bf16.gmra.mrb[0].mxu0 %v4639
        %v6467 = vpop.f32.mrb[0].mxu0
        %v6468 = vadd.f32 %v6355, %v6467
        %v6469 = vpop.f32.mrb[0].mxu0
        %v6470 = vadd.f32 %v6357, %v6469
        %v6471 = vpop.f32.mrb[0].mxu0
        %v6472 = vadd.f32 %v6359, %v6471
        %v6473 = vpop.f32.mrb[0].mxu0
        %v6474 = vadd.f32 %v6361, %v6473
        %6475 = vmatprep.mubr.bf16.mxu0 %v4652
        %6476 = vmatmul.mubr.bf16.gmra.mrb[0].mxu0 %v4651
        %v6477 = vpop.f32.mrb[0].mxu0
        %v6478 = vadd.f32 %v6365, %v6477
        %v6479 = vpop.f32.mrb[0].mxu0
        %v6480 = vadd.f32 %v6367, %v6479
        %v6481 = vpop.f32.mrb[0].mxu0
        %v6482 = vadd.f32 %v6369, %v6481
        %v6483 = vpop.f32.mrb[0].mxu0
        %v6484 = vadd.f32 %v6371, %v6483
        %6485 = vmatprep.mubr.bf16.mxu0 %v4664
        %6486 = vmatmul.mubr.bf16.gmra.mrb[0].mxu0 %v4663
        %v6487 = vpop.f32.mrb[0].mxu0
        %v6488 = vadd.f32 %v6375, %v6487
        %v6489 = vpop.f32.mrb[0].mxu0
        %v6490 = vadd.f32 %v6377, %v6489
        %v6491 = vpop.f32.mrb[0].mxu0
        %v6492 = vadd.f32 %v6379, %v6491
        %v6493 = vpop.f32.mrb[0].mxu0
        %v6494 = vadd.f32 %v6381, %v6493
        %6495 = vdwg.mxu0
        %v6496 = vadd.f32 %v4491, %v6418
        %v6497 = vadd.f32 %v4493, %v6420
        %v6498 = vadd.f32 %v4495, %v6422
        %v6499 = vadd.f32 %v4497, %v6424
        %v6500 = vadd.f32 %v4501, %v6428
        %v6501 = vadd.f32 %v4503, %v6430
        %v6502 = vadd.f32 %v4505, %v6432
        %v6503 = vadd.f32 %v4507, %v6434
        %v6504 = vadd.f32 %v4511, %v6438
        %v6505 = vadd.f32 %v4513, %v6440
        %v6506 = vadd.f32 %v4515, %v6442
        %v6507 = vadd.f32 %v4517, %v6444
        %v6508 = vadd.f32 %v4521, %v6448
        %v6509 = vadd.f32 %v4523, %v6450
        %v6510 = vadd.f32 %v4525, %v6452
        %v6511 = vadd.f32 %v4527, %v6454
        %v6512 = vadd.f32 %v4531, %v6458
        %v6513 = vadd.f32 %v4533, %v6460
        %v6514 = vadd.f32 %v4535, %v6462
        %v6515 = vadd.f32 %v4537, %v6464
        %v6516 = vadd.f32 %v4541, %v6468
        %v6517 = vadd.f32 %v4543, %v6470
        %v6518 = vadd.f32 %v4545, %v6472
        %v6519 = vadd.f32 %v4547, %v6474
        %v6520 = vadd.f32 %v4551, %v6478
        %v6521 = vadd.f32 %v4553, %v6480
        %v6522 = vadd.f32 %v4555, %v6482
        %v6523 = vadd.f32 %v4557, %v6484
        %v6524 = vadd.f32 %v4561, %v6488
        %v6525 = vadd.f32 %v4563, %v6490
        %v6526 = vadd.f32 %v4565, %v6492
        %v6527 = vadd.f32 %v4567, %v6494
        %v6528 = vld [vmem:[#allocation13] sm:$0x3]
        %v6530 = vlaneseq
        %v6531 = vshrl.u32 %v6530, 7
        %v6532 = vsub.s32 0, %v6531
        %v6533 = vrot.slane %v6528, %v6532
        %v6534 = vlaneseq
        %v6535 = vshrl.u32 %v6534, 7
        %v6536 = vsub.s32 1, %v6535
        %v6537 = vrot.slane %v6528, %v6536
        %v6540 = vadd.f32 %v6496, %v6533
        %v6541 = vadd.f32 %v6497, %v6537
        %v6542 = vadd.f32 %v6498, %v6533
        %v6543 = vadd.f32 %v6499, %v6537
        %v6544 = vadd.f32 %v6500, %v6533
        %v6545 = vadd.f32 %v6501, %v6537
        %v6546 = vadd.f32 %v6502, %v6533
        %v6547 = vadd.f32 %v6503, %v6537
        %v6548 = vadd.f32 %v6504, %v6533
        %v6549 = vadd.f32 %v6505, %v6537
        %v6550 = vadd.f32 %v6506, %v6533
        %v6551 = vadd.f32 %v6507, %v6537
        %v6552 = vadd.f32 %v6508, %v6533
        %v6553 = vadd.f32 %v6509, %v6537
        %v6554 = vadd.f32 %v6510, %v6533
        %v6555 = vadd.f32 %v6511, %v6537
        %v6556 = vadd.f32 %v6512, %v6533
        %v6557 = vadd.f32 %v6513, %v6537
        %v6558 = vadd.f32 %v6514, %v6533
        %v6559 = vadd.f32 %v6515, %v6537
        %v6560 = vadd.f32 %v6516, %v6533
        %v6561 = vadd.f32 %v6517, %v6537
        %v6562 = vadd.f32 %v6518, %v6533
        %v6563 = vadd.f32 %v6519, %v6537
        %v6564 = vadd.f32 %v6520, %v6533
        %v6565 = vadd.f32 %v6521, %v6537
        %v6566 = vadd.f32 %v6522, %v6533
        %v6567 = vadd.f32 %v6523, %v6537
        %v6568 = vadd.f32 %v6524, %v6533
        %v6569 = vadd.f32 %v6525, %v6537
        %v6570 = vadd.f32 %v6526, %v6533
        %v6571 = vadd.f32 %v6527, %v6537
        %v6572 = vmax.f32 %v6540, 0.0
        %v6573 = vmax.f32 %v6541, 0.0
        %v6574 = vmax.f32 %v6542, 0.0
        %v6575 = vmax.f32 %v6543, 0.0
        %v6576 = vmax.f32 %v6544, 0.0
        %v6577 = vmax.f32 %v6545, 0.0
        %v6578 = vmax.f32 %v6546, 0.0
        %v6579 = vmax.f32 %v6547, 0.0
        %v6580 = vmax.f32 %v6548, 0.0
        %v6581 = vmax.f32 %v6549, 0.0
        %v6582 = vmax.f32 %v6550, 0.0
        %v6583 = vmax.f32 %v6551, 0.0
        %v6584 = vmax.f32 %v6552, 0.0
        %v6585 = vmax.f32 %v6553, 0.0
        %v6586 = vmax.f32 %v6554, 0.0
        %v6587 = vmax.f32 %v6555, 0.0
        %v6588 = vmax.f32 %v6556, 0.0
        %v6589 = vmax.f32 %v6557, 0.0
        %v6590 = vmax.f32 %v6558, 0.0
        %v6591 = vmax.f32 %v6559, 0.0
        %v6592 = vmax.f32 %v6560, 0.0
        %v6593 = vmax.f32 %v6561, 0.0
        %v6594 = vmax.f32 %v6562, 0.0
        %v6595 = vmax.f32 %v6563, 0.0
        %v6596 = vmax.f32 %v6564, 0.0
        %v6597 = vmax.f32 %v6565, 0.0
        %v6598 = vmax.f32 %v6566, 0.0
        %v6599 = vmax.f32 %v6567, 0.0
        %v6600 = vmax.f32 %v6568, 0.0
        %v6601 = vmax.f32 %v6569, 0.0
        %v6602 = vmax.f32 %v6570, 0.0
        %v6603 = vmax.f32 %v6571, 0.0
        %v6604 = vld [vmem:[%s5] sm:$0xff]
        %v6605 = vld [vmem:[%s5 + $0x8] sm:$0xff]
        %v6606 = vld [vmem:[%s5 + $0x10] sm:$0xff]
        %v6607 = vld [vmem:[%s5 + $0x18] sm:$0xff]
        %v6608 = vld [vmem:[%s5 + $0x20] sm:$0xff]
        %v6609 = vld [vmem:[%s5 + $0x28] sm:$0xff]
        %v6610 = vld [vmem:[%s5 + $0x30] sm:$0xff]
        %v6611 = vld [vmem:[%s5 + $0x38] sm:$0xff]
        %v6612 = vld [vmem:[%s5 + $0x40] sm:$0xff]
        %v6613 = vld [vmem:[%s5 + $0x48] sm:$0xff]
        %v6614 = vld [vmem:[%s5 + $0x50] sm:$0xff]
        %v6615 = vld [vmem:[%s5 + $0x58] sm:$0xff]
        %v6616 = vld [vmem:[%s5 + $0x60] sm:$0xff]
        %v6617 = vld [vmem:[%s5 + $0x68] sm:$0xff]
        %v6618 = vld [vmem:[%s5 + $0x70] sm:$0xff]
        %v6619 = vld [vmem:[%s5 + $0x78] sm:$0xff]
        %6621 = vset.pattern.permute.xlu0 0
        %6622 = vperm.xlu0 %6621, %v6604
        %v6623 = vpop.permute.xlu0 %6622
        %6626 = vset.pattern.permute.xlu0 0
        %6627 = vperm.xlu0 %6626, %v6605
        %v6628 = vpop.permute.xlu0 %6627
        %6631 = vset.pattern.permute.xlu0 0
        %6632 = vperm.xlu0 %6631, %v6606
        %v6633 = vpop.permute.xlu0 %6632
        %6636 = vset.pattern.permute.xlu0 0
        %6637 = vperm.xlu0 %6636, %v6607
        %v6638 = vpop.permute.xlu0 %6637
        %6641 = vset.pattern.permute.xlu0 0
        %6642 = vperm.xlu0 %6641, %v6608
        %v6643 = vpop.permute.xlu0 %6642
        %6646 = vset.pattern.permute.xlu0 0
        %6647 = vperm.xlu0 %6646, %v6609
        %v6648 = vpop.permute.xlu0 %6647
        %6651 = vset.pattern.permute.xlu0 0
        %6652 = vperm.xlu0 %6651, %v6610
        %v6653 = vpop.permute.xlu0 %6652
        %6656 = vset.pattern.permute.xlu0 0
        %6657 = vperm.xlu0 %6656, %v6611
        %v6658 = vpop.permute.xlu0 %6657
        %6661 = vset.pattern.permute.xlu0 0
        %6662 = vperm.xlu0 %6661, %v6612
        %v6663 = vpop.permute.xlu0 %6662
        %6666 = vset.pattern.permute.xlu0 0
        %6667 = vperm.xlu0 %6666, %v6613
        %v6668 = vpop.permute.xlu0 %6667
        %6671 = vset.pattern.permute.xlu0 0
        %6672 = vperm.xlu0 %6671, %v6614
        %v6673 = vpop.permute.xlu0 %6672
        %6676 = vset.pattern.permute.xlu0 0
        %6677 = vperm.xlu0 %6676, %v6615
        %v6678 = vpop.permute.xlu0 %6677
        %6681 = vset.pattern.permute.xlu0 0
        %6682 = vperm.xlu0 %6681, %v6616
        %v6683 = vpop.permute.xlu0 %6682
        %6686 = vset.pattern.permute.xlu0 0
        %6687 = vperm.xlu0 %6686, %v6617
        %v6688 = vpop.permute.xlu0 %6687
        %6691 = vset.pattern.permute.xlu0 0
        %6692 = vperm.xlu0 %6691, %v6618
        %v6693 = vpop.permute.xlu0 %6692
        %6696 = vset.pattern.permute.xlu0 0
        %6697 = vperm.xlu0 %6696, %v6619
        %v6698 = vpop.permute.xlu0 %6697
        %v6700 = vmul.f32 %v6572, %v6623
        %v6701 = vmul.f32 %v6573, %v6623
        %v6702 = vmul.f32 %v6574, %v6628
        %v6703 = vmul.f32 %v6575, %v6628
        %v6704 = vmul.f32 %v6576, %v6633
        %v6705 = vmul.f32 %v6577, %v6633
        %v6706 = vmul.f32 %v6578, %v6638
        %v6707 = vmul.f32 %v6579, %v6638
        %v6708 = vmul.f32 %v6580, %v6643
        %v6709 = vmul.f32 %v6581, %v6643
        %v6710 = vmul.f32 %v6582, %v6648
        %v6711 = vmul.f32 %v6583, %v6648
        %v6712 = vmul.f32 %v6584, %v6653
        %v6713 = vmul.f32 %v6585, %v6653
        %v6714 = vmul.f32 %v6586, %v6658
        %v6715 = vmul.f32 %v6587, %v6658
        %v6716 = vmul.f32 %v6588, %v6663
        %v6717 = vmul.f32 %v6589, %v6663
        %v6718 = vmul.f32 %v6590, %v6668
        %v6719 = vmul.f32 %v6591, %v6668
        %v6720 = vmul.f32 %v6592, %v6673
        %v6721 = vmul.f32 %v6593, %v6673
        %v6722 = vmul.f32 %v6594, %v6678
        %v6723 = vmul.f32 %v6595, %v6678
        %v6724 = vmul.f32 %v6596, %v6683
        %v6725 = vmul.f32 %v6597, %v6683
        %v6726 = vmul.f32 %v6598, %v6688
        %v6727 = vmul.f32 %v6599, %v6688
        %v6728 = vmul.f32 %v6600, %v6693
        %v6729 = vmul.f32 %v6601, %v6693
        %v6730 = vmul.f32 %v6602, %v6698
        %v6731 = vmul.f32 %v6603, %v6698
        %v6732 = vpack.c.bf16 %v6702, %v6700
        %v6733 = vpack.c.bf16 %v6703, %v6701
        %v6734 = vpack.c.bf16 %v6706, %v6704
        %v6735 = vpack.c.bf16 %v6707, %v6705
        %v6736 = vpack.c.bf16 %v6710, %v6708
        %v6737 = vpack.c.bf16 %v6711, %v6709
        %v6738 = vpack.c.bf16 %v6714, %v6712
        %v6739 = vpack.c.bf16 %v6715, %v6713
        %v6740 = vpack.c.bf16 %v6718, %v6716
        %v6741 = vpack.c.bf16 %v6719, %v6717
        %v6742 = vpack.c.bf16 %v6722, %v6720
        %v6743 = vpack.c.bf16 %v6723, %v6721
        %v6744 = vpack.c.bf16 %v6726, %v6724
        %v6745 = vpack.c.bf16 %v6727, %v6725
        %v6746 = vpack.c.bf16 %v6730, %v6728
        %v6747 = vpack.c.bf16 %v6731, %v6729
        %6748 = vst [vmem:[#allocation3 + $0x40] sm:$0xff] %v6732
        %6749 = vst [vmem:[#allocation3 + $0x48] sm:$0xff] %v6733
        %6750 = vst [vmem:[#allocation3 + $0x70] sm:$0xff] %v6734
        %6751 = vst [vmem:[#allocation3 + $0x78] sm:$0xff] %v6735
        %6752 = vst [vmem:[#allocation3 + $0xa0] sm:$0xff] %v6736
        %6753 = vst [vmem:[#allocation3 + $0xa8] sm:$0xff] %v6737
        %6754 = vst [vmem:[#allocation3 + $0xd0] sm:$0xff] %v6738
        %6755 = vst [vmem:[#allocation3 + $0xd8] sm:$0xff] %v6739
        %6756 = vst [vmem:[#allocation3 + $0x100] sm:$0xff] %v6740
        %6757 = vst [vmem:[#allocation3 + $0x108] sm:$0xff] %v6741
        %6758 = vst [vmem:[#allocation3 + $0x130] sm:$0xff] %v6742
        %6759 = vst [vmem:[#allocation3 + $0x138] sm:$0xff] %v6743
        %6760 = vst [vmem:[#allocation3 + $0x160] sm:$0xff] %v6744
        %6761 = vst [vmem:[#allocation3 + $0x168] sm:$0xff] %v6745
        %6762 = vst [vmem:[#allocation3 + $0x190] sm:$0xff] %v6746
        %6763 = vst [vmem:[#allocation3 + $0x198] sm:$0xff] %v6747
        %v6764 = vld [vmem:[%s4] sm:$0xf]
        %v6765 = vld [vmem:[%s4 + $0x4] sm:$0xf]
        %v6766 = vld [vmem:[%s4 + $0x8] sm:$0xf]
        %v6767 = vld [vmem:[%s4 + $0xc] sm:$0xf]
        loop: start=0, step=1, limit=8
        $region108: #{tpu_custom_call.1} parent=67 // loop_pre_header
          _
        $region109: #{tpu_custom_call.1} parent=67 // loop_header
          %s6769 = sphi 0, %s6773
          %p6770 = scmp.ge.s32.totalorder %s6769, 8
        $region110: #{tpu_custom_call.1} parent=67 // loop_header_branch
          %6772 = sbr.rel (%p6770) target = $region114
        $region111: #{tpu_custom_call.1} parent=67 // loop_body
          %s6774 = sadd.s32 %s6769, 1
          %s6775 = smul.u32 %s6774, 16
          %s6776 = sshra.s32 %s6775, 4
          %s6777 = sand.u32 %s6775, 15
          %s6778 = smul.u32 %s6776, 6
          %s6779 = smul.addr %s6778, 8
          %s6780 = scalar_lea.vmem [#allocation3], %s6779
          %v6781 = vld [vmem:[%s6780 + $0x10] sm:$0xff]
          %v6782 = vld [vmem:[%s6780 + $0x18] sm:$0xff]
          %v6787 = vunpack.c.l.b16 %v6764
          %v6788 = vunpack.c.l.b16 %v6765
          %v6789 = vunpack.c.l.b16 %v6766
          %v6790 = vunpack.c.l.b16 %v6767
          %v6791 = vpack.c.b16 %v6788, %v6787
          %v6792 = vpack.c.b16 %v6790, %v6789
          %vm6793 = vcmask 130048
          %v6795 = vsel %vm6793, %v6791, 0
          %v6798 = vsel %vm6793, %v6792, 0
          %6800 = vmatprep.subr.bf16.mxu0 %v6782
          %6801 = vmatpush1.bf16.msra.mxu0 %v6781
          %6802 = vmatprep.subr.bf16.mxu0 0
          %6803 = vmatpush1.bf16.msra.mxu0 0
          %6804 = vmatprep.subr.bf16.mxu0 0
          %6805 = vmatpush1.bf16.msra.mxu0 0
          %6806 = vmatprep.subr.bf16.mxu0 0
          %6807 = vmatpush1.bf16.msra.mxu0 0
          %6808 = vmatprep.subr.bf16.mxu0 0
          %6809 = vmatpush1.bf16.msra.mxu0 0
          %6810 = vmatprep.subr.bf16.mxu0 0
          %6811 = vmatpush1.bf16.msra.mxu0 0
          %6812 = vmatprep.subr.bf16.mxu0 0
          %6813 = vmatpush1.bf16.msra.mxu0 0
          %6814 = vmatprep.subr.bf16.mxu0 0
          %6815 = vmatpush1.bf16.msra.mxu0 0
          %6816 = vmatprep.subr.bf16.mxu0 0
          %6817 = vmatpush1.bf16.msra.mxu0 0
          %6818 = vmatprep.subr.bf16.mxu0 0
          %6819 = vmatpush1.bf16.msra.mxu0 0
          %6820 = vmatprep.subr.bf16.mxu0 0
          %6821 = vmatpush1.bf16.msra.mxu0 0
          %6822 = vmatprep.subr.bf16.mxu0 0
          %6823 = vmatpush1.bf16.msra.mxu0 0
          %6824 = vmatprep.subr.bf16.mxu0 0
          %6825 = vmatpush1.bf16.msra.mxu0 0
          %6826 = vmatprep.subr.bf16.mxu0 0
          %6827 = vmatpush1.bf16.msra.mxu0 0
          %6828 = vmatprep.subr.bf16.mxu0 0
          %6829 = vmatpush1.bf16.msra.mxu0 0
          %6830 = vmatprep.subr.bf16.mxu0 0
          %6831 = vmatpush1.bf16.msra.mxu0 0
          %6832 = vmatprep.mubr.bf16.mxu0 0
          %6833 = vmatmul.mubr.bf16.gmra.mrb[0].mxu0 %v6795
          %v6834 = vpop.f32.mrb[0].mxu0
          %v6835 = vadd.f32 0.0, %v6834
          %v6836 = vpop.f32.mrb[0].mxu0
          %v6837 = vadd.f32 0.0, %v6836
          %v6838 = vpop.f32.mrb[0].mxu0
          %v6839 = vadd.f32 0.0, %v6838
          %v6840 = vpop.f32.mrb[0].mxu0
          %v6841 = vadd.f32 0.0, %v6840
          %6842 = vmatprep.mubr.bf16.mxu0 0
          %6843 = vmatmul.mubr.bf16.gmra.mrb[0].mxu0 %v6798
          %v6844 = vpop.f32.mrb[0].mxu0
          %v6845 = vadd.f32 0.0, %v6844
          %v6846 = vpop.f32.mrb[0].mxu0
          %v6847 = vadd.f32 0.0, %v6846
          %v6848 = vpop.f32.mrb[0].mxu0
          %v6849 = vadd.f32 0.0, %v6848
          %v6850 = vpop.f32.mrb[0].mxu0
          %v6851 = vadd.f32 0.0, %v6850
          %6852 = vdwg.mxu0
          %v6853 = vpack.c.bf16 %v6839, %v6835
          %v6854 = vpack.c.bf16 %v6841, %v6837
          %v6855 = vpack.c.bf16 %v6849, %v6845
          %v6856 = vpack.c.bf16 %v6851, %v6847
          %6857 = vst [vmem:[%s6780] sm:$0xff] %v6853
          %6858 = vst [vmem:[%s6780 + $0x8] sm:$0xff] %v6854
          %6859 = vst [vmem:[%s6780 + $0x20] sm:$0xff] %v6855
          %6860 = vst [vmem:[%s6780 + $0x28] sm:$0xff] %v6856
        $region112: #{tpu_custom_call.1} parent=67 // loop_footer
          %s6773 = sadd.s32 1, %s6769
        $region113: #{tpu_custom_call.1} parent=67 // loop_footer_branch
          %6768 = sbr.rel target = $region109
        $region114: #{tpu_custom_call.1} parent=67 // loop_exit
          _
        %v6861 = vld [vmem:[#allocation3] sm:$0xff]
        %v6862 = vld [vmem:[#allocation3 + $0x8] sm:$0xff]
        %v6863 = vld [vmem:[#allocation3 + $0x10] sm:$0xff]
        %v6864 = vld [vmem:[#allocation3 + $0x18] sm:$0xff]
        %v6865 = vld [vmem:[#allocation3 + $0x20] sm:$0xff]
        %v6866 = vld [vmem:[#allocation3 + $0x28] sm:$0xff]
        %v6867 = vld [vmem:[#allocation3 + $0x30] sm:$0xff]
        %v6868 = vld [vmem:[#allocation3 + $0x38] sm:$0xff]
        %v6869 = vld [vmem:[#allocation3 + $0x40] sm:$0xff]
        %v6870 = vld [vmem:[#allocation3 + $0x48] sm:$0xff]
        %v6871 = vld [vmem:[#allocation3 + $0x50] sm:$0xff]
        %v6872 = vld [vmem:[#allocation3 + $0x58] sm:$0xff]
        %v6873 = vld [vmem:[#allocation3 + $0x60] sm:$0xff]
        %v6874 = vld [vmem:[#allocation3 + $0x68] sm:$0xff]
        %v6875 = vld [vmem:[#allocation3 + $0x70] sm:$0xff]
        %v6876 = vld [vmem:[#allocation3 + $0x78] sm:$0xff]
        %v6877 = vld [vmem:[#allocation3 + $0x80] sm:$0xff]
        %v6878 = vld [vmem:[#allocation3 + $0x88] sm:$0xff]
        %v6879 = vld [vmem:[#allocation3 + $0x90] sm:$0xff]
        %v6880 = vld [vmem:[#allocation3 + $0x98] sm:$0xff]
        %v6881 = vld [vmem:[#allocation3 + $0xa0] sm:$0xff]
        %v6882 = vld [vmem:[#allocation3 + $0xa8] sm:$0xff]
        %v6883 = vld [vmem:[#allocation3 + $0xb0] sm:$0xff]
        %v6884 = vld [vmem:[#allocation3 + $0xb8] sm:$0xff]
        %v6885 = vld [vmem:[#allocation3 + $0xc0] sm:$0xff]
        %v6886 = vld [vmem:[#allocation3 + $0xc8] sm:$0xff]
        %v6887 = vld [vmem:[#allocation3 + $0xd0] sm:$0xff]
        %v6888 = vld [vmem:[#allocation3 + $0xd8] sm:$0xff]
        %v6889 = vld [vmem:[#allocation3 + $0xe0] sm:$0xff]
        %v6890 = vld [vmem:[#allocation3 + $0xe8] sm:$0xff]
        %v6891 = vld [vmem:[#allocation3 + $0xf0] sm:$0xff]
        %v6892 = vld [vmem:[#allocation3 + $0xf8] sm:$0xff]
        %v6893 = vld [vmem:[#allocation3 + $0x100] sm:$0xff]
        %v6894 = vld [vmem:[#allocation3 + $0x108] sm:$0xff]
        %v6895 = vld [vmem:[#allocation3 + $0x110] sm:$0xff]
        %v6896 = vld [vmem:[#allocation3 + $0x118] sm:$0xff]
        %v6897 = vld [vmem:[#allocation3 + $0x120] sm:$0xff]
        %v6898 = vld [vmem:[#allocation3 + $0x128] sm:$0xff]
        %v6899 = vld [vmem:[#allocation3 + $0x130] sm:$0xff]
        %v6900 = vld [vmem:[#allocation3 + $0x138] sm:$0xff]
        %v6901 = vld [vmem:[#allocation3 + $0x140] sm:$0xff]
        %v6902 = vld [vmem:[#allocation3 + $0x148] sm:$0xff]
        %v6903 = vld [vmem:[#allocation3 + $0x150] sm:$0xff]
        %v6904 = vld [vmem:[#allocation3 + $0x158] sm:$0xff]
        %v6905 = vld [vmem:[#allocation3 + $0x160] sm:$0xff]
        %v6906 = vld [vmem:[#allocation3 + $0x168] sm:$0xff]
        %v6907 = vld [vmem:[#allocation3 + $0x170] sm:$0xff]
        %v6908 = vld [vmem:[#allocation3 + $0x178] sm:$0xff]
        %v6909 = vld [vmem:[#allocation14] sm:$0xf]
        %v6910 = vld [vmem:[#allocation14 + $0x4] sm:$0xf]
        %v6911 = vld [vmem:[#allocation14 + $0x8] sm:$0xf]
        %v6912 = vld [vmem:[#allocation14 + $0xc] sm:$0xf]
        %v6913 = vld [vmem:[#allocation14 + $0x10] sm:$0xf]
        %v6914 = vld [vmem:[#allocation14 + $0x14] sm:$0xf]
        %v6915 = vld [vmem:[#allocation14 + $0x18] sm:$0xf]
        %v6916 = vld [vmem:[#allocation14 + $0x1c] sm:$0xf]
        %v6917 = vld [vmem:[#allocation14 + $0x20] sm:$0xf]
        %v6918 = vld [vmem:[#allocation14 + $0x24] sm:$0xf]
        %v6919 = vld [vmem:[#allocation14 + $0x28] sm:$0xf]
        %v6920 = vld [vmem:[#allocation14 + $0x2c] sm:$0xf]
        %v6921 = vld [vmem:[#allocation14 + $0x30] sm:$0xf]
        %v6922 = vld [vmem:[#allocation14 + $0x34] sm:$0xf]
        %v6923 = vld [vmem:[#allocation14 + $0x38] sm:$0xf]
        %v6924 = vld [vmem:[#allocation14 + $0x3c] sm:$0xf]
        %v6925 = vld [vmem:[#allocation14 + $0x40] sm:$0xf]
        %v6926 = vld [vmem:[#allocation14 + $0x44] sm:$0xf]
        %v6927 = vld [vmem:[#allocation14 + $0x48] sm:$0xf]
        %v6928 = vld [vmem:[#allocation14 + $0x4c] sm:$0xf]
        %v6929 = vld [vmem:[#allocation14 + $0x50] sm:$0xf]
        %v6930 = vld [vmem:[#allocation14 + $0x54] sm:$0xf]
        %v6931 = vld [vmem:[#allocation14 + $0x58] sm:$0xf]
        %v6932 = vld [vmem:[#allocation14 + $0x5c] sm:$0xf]
        %v6933 = vld [vmem:[#allocation14 + $0x60] sm:$0xf]
        %v6934 = vld [vmem:[#allocation14 + $0x64] sm:$0xf]
        %v6935 = vld [vmem:[#allocation14 + $0x68] sm:$0xf]
        %v6936 = vld [vmem:[#allocation14 + $0x6c] sm:$0xf]
        %v6937 = vld [vmem:[#allocation14 + $0x70] sm:$0xf]
        %v6938 = vld [vmem:[#allocation14 + $0x74] sm:$0xf]
        %v6939 = vld [vmem:[#allocation14 + $0x78] sm:$0xf]
        %v6940 = vld [vmem:[#allocation14 + $0x7c] sm:$0xf]
        %v6941 = vld [vmem:[#allocation14 + $0x80] sm:$0xf]
        %v6942 = vld [vmem:[#allocation14 + $0x84] sm:$0xf]
        %v6943 = vld [vmem:[#allocation14 + $0x88] sm:$0xf]
        %v6944 = vld [vmem:[#allocation14 + $0x8c] sm:$0xf]
        %v6945 = vld [vmem:[#allocation14 + $0x90] sm:$0xf]
        %v6946 = vld [vmem:[#allocation14 + $0x94] sm:$0xf]
        %v6947 = vld [vmem:[#allocation14 + $0x98] sm:$0xf]
        %v6948 = vld [vmem:[#allocation14 + $0x9c] sm:$0xf]
        %v6949 = vld [vmem:[#allocation14 + $0xa0] sm:$0xf]
        %v6950 = vld [vmem:[#allocation14 + $0xa4] sm:$0xf]
        %v6951 = vld [vmem:[#allocation14 + $0xa8] sm:$0xf]
        %v6952 = vld [vmem:[#allocation14 + $0xac] sm:$0xf]
        %v6953 = vld [vmem:[#allocation14 + $0xb0] sm:$0xf]
        %v6954 = vld [vmem:[#allocation14 + $0xb4] sm:$0xf]
        %v6955 = vld [vmem:[#allocation14 + $0xb8] sm:$0xf]
        %v6956 = vld [vmem:[#allocation14 + $0xbc] sm:$0xf]
        %v6957 = vld [vmem:[#allocation14 + $0xc0] sm:$0xf]
        %v6958 = vld [vmem:[#allocation14 + $0xc4] sm:$0xf]
        %v6959 = vld [vmem:[#allocation14 + $0xc8] sm:$0xf]
        %v6960 = vld [vmem:[#allocation14 + $0xcc] sm:$0xf]
        %v6961 = vld [vmem:[#allocation14 + $0xd0] sm:$0xf]
        %v6962 = vld [vmem:[#allocation14 + $0xd4] sm:$0xf]
        %v6963 = vld [vmem:[#allocation14 + $0xd8] sm:$0xf]
        %v6964 = vld [vmem:[#allocation14 + $0xdc] sm:$0xf]
        %v6965 = vld [vmem:[#allocation14 + $0xe0] sm:$0xf]
        %v6966 = vld [vmem:[#allocation14 + $0xe4] sm:$0xf]
        %v6967 = vld [vmem:[#allocation14 + $0xe8] sm:$0xf]
        %v6968 = vld [vmem:[#allocation14 + $0xec] sm:$0xf]
        %v6969 = vld [vmem:[#allocation14 + $0xf0] sm:$0xf]
        %v6970 = vld [vmem:[#allocation14 + $0xf4] sm:$0xf]
        %v6971 = vld [vmem:[#allocation14 + $0xf8] sm:$0xf]
        %v6972 = vld [vmem:[#allocation14 + $0xfc] sm:$0xf]
        %v6973 = vld [vmem:[#allocation14 + $0x100] sm:$0xf]
        %v6974 = vld [vmem:[#allocation14 + $0x104] sm:$0xf]
        %v6975 = vld [vmem:[#allocation14 + $0x108] sm:$0xf]
        %v6976 = vld [vmem:[#allocation14 + $0x10c] sm:$0xf]
        %v6977 = vld [vmem:[#allocation14 + $0x110] sm:$0xf]
        %v6978 = vld [vmem:[#allocation14 + $0x114] sm:$0xf]
        %v6979 = vld [vmem:[#allocation14 + $0x118] sm:$0xf]
        %v6980 = vld [vmem:[#allocation14 + $0x11c] sm:$0xf]
        %v6981 = vld [vmem:[#allocation14 + $0x120] sm:$0xf]
        %v6982 = vld [vmem:[#allocation14 + $0x124] sm:$0xf]
        %v6983 = vld [vmem:[#allocation14 + $0x128] sm:$0xf]
        %v6984 = vld [vmem:[#allocation14 + $0x12c] sm:$0xf]
        %v6985 = vld [vmem:[#allocation14 + $0x130] sm:$0xf]
        %v6986 = vld [vmem:[#allocation14 + $0x134] sm:$0xf]
        %v6987 = vld [vmem:[#allocation14 + $0x138] sm:$0xf]
        %v6988 = vld [vmem:[#allocation14 + $0x13c] sm:$0xf]
        %v6989 = vld [vmem:[#allocation14 + $0x140] sm:$0xf]
        %v6990 = vld [vmem:[#allocation14 + $0x144] sm:$0xf]
        %v6991 = vld [vmem:[#allocation14 + $0x148] sm:$0xf]
        %v6992 = vld [vmem:[#allocation14 + $0x14c] sm:$0xf]
        %v6993 = vld [vmem:[#allocation14 + $0x150] sm:$0xf]
        %v6994 = vld [vmem:[#allocation14 + $0x154] sm:$0xf]
        %v6995 = vld [vmem:[#allocation14 + $0x158] sm:$0xf]
        %v6996 = vld [vmem:[#allocation14 + $0x15c] sm:$0xf]
        %v6997 = vld [vmem:[#allocation14 + $0x160] sm:$0xf]
        %v6998 = vld [vmem:[#allocation14 + $0x164] sm:$0xf]
        %v6999 = vld [vmem:[#allocation14 + $0x168] sm:$0xf]
        %v7000 = vld [vmem:[#allocation14 + $0x16c] sm:$0xf]
        %v7001 = vld [vmem:[#allocation14 + $0x170] sm:$0xf]
        %v7002 = vld [vmem:[#allocation14 + $0x174] sm:$0xf]
        %v7003 = vld [vmem:[#allocation14 + $0x178] sm:$0xf]
        %v7004 = vld [vmem:[#allocation14 + $0x17c] sm:$0xf]
        %v7005 = vld [vmem:[#allocation3 + $0x180] sm:$0xff]
        %v7006 = vld [vmem:[#allocation3 + $0x188] sm:$0xff]
        %v7007 = vld [vmem:[#allocation3 + $0x190] sm:$0xff]
        %v7008 = vld [vmem:[#allocation3 + $0x198] sm:$0xff]
        %v7009 = vld [vmem:[#allocation3 + $0x1a0] sm:$0xff]
        %v7010 = vld [vmem:[#allocation3 + $0x1a8] sm:$0xff]
        %s7011 = scalar_lea.vmem [#allocation14], 384
        %v7012 = vld [vmem:[%s7011] sm:$0xf]
        %v7013 = vld [vmem:[%s7011 + $0x4] sm:$0xf]
        %v7014 = vld [vmem:[%s7011 + $0x8] sm:$0xf]
        %v7015 = vld [vmem:[%s7011 + $0xc] sm:$0xf]
        %v7016 = vld [vmem:[%s7011 + $0x10] sm:$0xf]
        %v7017 = vld [vmem:[%s7011 + $0x14] sm:$0xf]
        %v7018 = vld [vmem:[%s7011 + $0x18] sm:$0xf]
        %v7019 = vld [vmem:[%s7011 + $0x1c] sm:$0xf]
        %v7020 = vld [vmem:[%s7011 + $0x20] sm:$0xf]
        %v7021 = vld [vmem:[%s7011 + $0x24] sm:$0xf]
        %v7022 = vld [vmem:[%s7011 + $0x28] sm:$0xf]
        %v7023 = vld [vmem:[%s7011 + $0x2c] sm:$0xf]
        %v7024 = vld [vmem:[%s7011 + $0x30] sm:$0xf]
        %v7025 = vld [vmem:[%s7011 + $0x34] sm:$0xf]
        %v7026 = vld [vmem:[%s7011 + $0x38] sm:$0xf]
        %v7027 = vld [vmem:[%s7011 + $0x3c] sm:$0xf]
        %v7028 = vld [vmem:[%s7011 + $0x40] sm:$0xf]
        %v7029 = vld [vmem:[%s7011 + $0x44] sm:$0xf]
        %v7030 = vld [vmem:[%s7011 + $0x48] sm:$0xf]
        %v7031 = vld [vmem:[%s7011 + $0x4c] sm:$0xf]
        %v7032 = vld [vmem:[%s7011 + $0x50] sm:$0xf]
        %v7033 = vld [vmem:[%s7011 + $0x54] sm:$0xf]
        %v7034 = vld [vmem:[%s7011 + $0x58] sm:$0xf]
        %v7035 = vld [vmem:[%s7011 + $0x5c] sm:$0xf]
        %v7036 = vld [vmem:[%s7011 + $0x60] sm:$0xf]
        %v7037 = vld [vmem:[%s7011 + $0x64] sm:$0xf]
        %v7038 = vld [vmem:[%s7011 + $0x68] sm:$0xf]
        %v7039 = vld [vmem:[%s7011 + $0x6c] sm:$0xf]
        %v7040 = vld [vmem:[%s7011 + $0x70] sm:$0xf]
        %v7041 = vld [vmem:[%s7011 + $0x74] sm:$0xf]
        %v7042 = vld [vmem:[%s7011 + $0x78] sm:$0xf]
        %v7043 = vld [vmem:[%s7011 + $0x7c] sm:$0xf]
        %v7044 = vld [vmem:[%s7011 + $0x80] sm:$0xf]
        %v7045 = vld [vmem:[%s7011 + $0x84] sm:$0xf]
        %v7046 = vld [vmem:[%s7011 + $0x88] sm:$0xf]
        %v7047 = vld [vmem:[%s7011 + $0x8c] sm:$0xf]
        %v7048 = vld [vmem:[%s7011 + $0x90] sm:$0xf]
        %v7049 = vld [vmem:[%s7011 + $0x94] sm:$0xf]
        %v7050 = vld [vmem:[%s7011 + $0x98] sm:$0xf]
        %v7051 = vld [vmem:[%s7011 + $0x9c] sm:$0xf]
        %v7052 = vld [vmem:[%s7011 + $0xa0] sm:$0xf]
        %v7053 = vld [vmem:[%s7011 + $0xa4] sm:$0xf]
        %v7054 = vld [vmem:[%s7011 + $0xa8] sm:$0xf]
        %v7055 = vld [vmem:[%s7011 + $0xac] sm:$0xf]
        %v7056 = vld [vmem:[%s7011 + $0xb0] sm:$0xf]
        %v7057 = vld [vmem:[%s7011 + $0xb4] sm:$0xf]
        %v7058 = vld [vmem:[%s7011 + $0xb8] sm:$0xf]
        %v7059 = vld [vmem:[%s7011 + $0xbc] sm:$0xf]
        %v7060 = vld [vmem:[%s7011 + $0xc0] sm:$0xf]
        %v7061 = vld [vmem:[%s7011 + $0xc4] sm:$0xf]
        %v7062 = vld [vmem:[%s7011 + $0xc8] sm:$0xf]
        %v7063 = vld [vmem:[%s7011 + $0xcc] sm:$0xf]
        %v7064 = vld [vmem:[%s7011 + $0xd0] sm:$0xf]
        %v7065 = vld [vmem:[%s7011 + $0xd4] sm:$0xf]
        %v7066 = vld [vmem:[%s7011 + $0xd8] sm:$0xf]
        %v7067 = vld [vmem:[%s7011 + $0xdc] sm:$0xf]
        %v7068 = vld [vmem:[%s7011 + $0xe0] sm:$0xf]
        %v7069 = vld [vmem:[%s7011 + $0xe4] sm:$0xf]
        %v7070 = vld [vmem:[%s7011 + $0xe8] sm:$0xf]
        %v7071 = vld [vmem:[%s7011 + $0xec] sm:$0xf]
        %v7072 = vld [vmem:[%s7011 + $0xf0] sm:$0xf]
        %v7073 = vld [vmem:[%s7011 + $0xf4] sm:$0xf]
        %v7074 = vld [vmem:[%s7011 + $0xf8] sm:$0xf]
        %v7075 = vld [vmem:[%s7011 + $0xfc] sm:$0xf]
        %v7076 = vld [vmem:[%s7011 + $0x100] sm:$0xf]
        %v7077 = vld [vmem:[%s7011 + $0x104] sm:$0xf]
        %v7078 = vld [vmem:[%s7011 + $0x108] sm:$0xf]
        %v7079 = vld [vmem:[%s7011 + $0x10c] sm:$0xf]
        %v7080 = vld [vmem:[%s7011 + $0x110] sm:$0xf]
        %v7081 = vld [vmem:[%s7011 + $0x114] sm:$0xf]
        %v7082 = vld [vmem:[%s7011 + $0x118] sm:$0xf]
        %v7083 = vld [vmem:[%s7011 + $0x11c] sm:$0xf]
        %v7084 = vld [vmem:[%s7011 + $0x120] sm:$0xf]
        %v7085 = vld [vmem:[%s7011 + $0x124] sm:$0xf]
        %v7086 = vld [vmem:[%s7011 + $0x128] sm:$0xf]
        %v7087 = vld [vmem:[%s7011 + $0x12c] sm:$0xf]
        %v7088 = vld [vmem:[%s7011 + $0x130] sm:$0xf]
        %v7089 = vld [vmem:[%s7011 + $0x134] sm:$0xf]
        %v7090 = vld [vmem:[%s7011 + $0x138] sm:$0xf]
        %v7091 = vld [vmem:[%s7011 + $0x13c] sm:$0xf]
        %v7092 = vld [vmem:[%s7011 + $0x140] sm:$0xf]
        %v7093 = vld [vmem:[%s7011 + $0x144] sm:$0xf]
        %v7094 = vld [vmem:[%s7011 + $0x148] sm:$0xf]
        %v7095 = vld [vmem:[%s7011 + $0x14c] sm:$0xf]
        %v7096 = vld [vmem:[%s7011 + $0x150] sm:$0xf]
        %v7097 = vld [vmem:[%s7011 + $0x154] sm:$0xf]
        %v7098 = vld [vmem:[%s7011 + $0x158] sm:$0xf]
        %v7099 = vld [vmem:[%s7011 + $0x15c] sm:$0xf]
        %v7100 = vld [vmem:[%s7011 + $0x160] sm:$0xf]
        %v7101 = vld [vmem:[%s7011 + $0x164] sm:$0xf]
        %v7102 = vld [vmem:[%s7011 + $0x168] sm:$0xf]
        %v7103 = vld [vmem:[%s7011 + $0x16c] sm:$0xf]
        %v7104 = vld [vmem:[%s7011 + $0x170] sm:$0xf]
        %v7105 = vld [vmem:[%s7011 + $0x174] sm:$0xf]
        %v7106 = vld [vmem:[%s7011 + $0x178] sm:$0xf]
        %v7107 = vld [vmem:[%s7011 + $0x17c] sm:$0xf]
        %v7204 = vunpack.c.l.b16 %v7012
        %v7205 = vunpack.c.l.b16 %v7013
        %v7206 = vunpack.c.l.b16 %v7014
        %v7207 = vunpack.c.l.b16 %v7015
        %v7208 = vunpack.c.l.b16 %v7016
        %v7209 = vunpack.c.l.b16 %v7017
        %v7210 = vunpack.c.l.b16 %v7018
        %v7211 = vunpack.c.l.b16 %v7019
        %v7212 = vunpack.c.l.b16 %v7020
        %v7213 = vunpack.c.l.b16 %v7021
        %v7214 = vunpack.c.l.b16 %v7022
        %v7215 = vunpack.c.l.b16 %v7023
        %v7216 = vunpack.c.l.b16 %v7024
        %v7217 = vunpack.c.l.b16 %v7025
        %v7218 = vunpack.c.l.b16 %v7026
        %v7219 = vunpack.c.l.b16 %v7027
        %v7220 = vunpack.c.l.b16 %v7028
        %v7221 = vunpack.c.l.b16 %v7029
        %v7222 = vunpack.c.l.b16 %v7030
        %v7223 = vunpack.c.l.b16 %v7031
        %v7224 = vunpack.c.l.b16 %v7032
        %v7225 = vunpack.c.l.b16 %v7033
        %v7226 = vunpack.c.l.b16 %v7034
        %v7227 = vunpack.c.l.b16 %v7035
        %v7228 = vunpack.c.l.b16 %v7036
        %v7229 = vunpack.c.l.b16 %v7037
        %v7230 = vunpack.c.l.b16 %v7038
        %v7231 = vunpack.c.l.b16 %v7039
        %v7232 = vunpack.c.l.b16 %v7040
        %v7233 = vunpack.c.l.b16 %v7041
        %v7234 = vunpack.c.l.b16 %v7042
        %v7235 = vunpack.c.l.b16 %v7043
        %v7236 = vunpack.c.l.b16 %v7044
        %v7237 = vunpack.c.l.b16 %v7045
        %v7238 = vunpack.c.l.b16 %v7046
        %v7239 = vunpack.c.l.b16 %v7047
        %v7240 = vunpack.c.l.b16 %v7048
        %v7241 = vunpack.c.l.b16 %v7049
        %v7242 = vunpack.c.l.b16 %v7050
        %v7243 = vunpack.c.l.b16 %v7051
        %v7244 = vunpack.c.l.b16 %v7052
        %v7245 = vunpack.c.l.b16 %v7053
        %v7246 = vunpack.c.l.b16 %v7054
        %v7247 = vunpack.c.l.b16 %v7055
        %v7248 = vunpack.c.l.b16 %v7056
        %v7249 = vunpack.c.l.b16 %v7057
        %v7250 = vunpack.c.l.b16 %v7058
        %v7251 = vunpack.c.l.b16 %v7059
        %v7252 = vunpack.c.l.b16 %v7060
        %v7253 = vunpack.c.l.b16 %v7061
        %v7254 = vunpack.c.l.b16 %v7062
        %v7255 = vunpack.c.l.b16 %v7063
        %v7256 = vunpack.c.l.b16 %v7064
        %v7257 = vunpack.c.l.b16 %v7065
        %v7258 = vunpack.c.l.b16 %v7066
        %v7259 = vunpack.c.l.b16 %v7067
        %v7260 = vunpack.c.l.b16 %v7068
        %v7261 = vunpack.c.l.b16 %v7069
        %v7262 = vunpack.c.l.b16 %v7070
        %v7263 = vunpack.c.l.b16 %v7071
        %v7264 = vunpack.c.l.b16 %v7072
        %v7265 = vunpack.c.l.b16 %v7073
        %v7266 = vunpack.c.l.b16 %v7074
        %v7267 = vunpack.c.l.b16 %v7075
        %v7268 = vunpack.c.l.b16 %v7076
        %v7269 = vunpack.c.l.b16 %v7077
        %v7270 = vunpack.c.l.b16 %v7078
        %v7271 = vunpack.c.l.b16 %v7079
        %v7272 = vunpack.c.l.b16 %v7080
        %v7273 = vunpack.c.l.b16 %v7081
        %v7274 = vunpack.c.l.b16 %v7082
        %v7275 = vunpack.c.l.b16 %v7083
        %v7276 = vunpack.c.l.b16 %v7084
        %v7277 = vunpack.c.l.b16 %v7085
        %v7278 = vunpack.c.l.b16 %v7086
        %v7279 = vunpack.c.l.b16 %v7087
        %v7280 = vunpack.c.l.b16 %v7088
        %v7281 = vunpack.c.l.b16 %v7089
        %v7282 = vunpack.c.l.b16 %v7090
        %v7283 = vunpack.c.l.b16 %v7091
        %v7284 = vunpack.c.l.b16 %v7092
        %v7285 = vunpack.c.l.b16 %v7093
        %v7286 = vunpack.c.l.b16 %v7094
        %v7287 = vunpack.c.l.b16 %v7095
        %v7288 = vunpack.c.l.b16 %v7096
        %v7289 = vunpack.c.l.b16 %v7097
        %v7290 = vunpack.c.l.b16 %v7098
        %v7291 = vunpack.c.l.b16 %v7099
        %v7292 = vunpack.c.l.b16 %v7100
        %v7293 = vunpack.c.l.b16 %v7101
        %v7294 = vunpack.c.l.b16 %v7102
        %v7295 = vunpack.c.l.b16 %v7103
        %v7296 = vunpack.c.l.b16 %v7104
        %v7297 = vunpack.c.l.b16 %v7105
        %v7298 = vunpack.c.l.b16 %v7106
        %v7299 = vunpack.c.l.b16 %v7107
        %v7300 = vpack.c.b16 %v7205, %v7204
        %v7301 = vpack.c.b16 %v7207, %v7206
        %v7302 = vpack.c.b16 %v7209, %v7208
        %v7303 = vpack.c.b16 %v7211, %v7210
        %v7304 = vpack.c.b16 %v7213, %v7212
        %v7305 = vpack.c.b16 %v7215, %v7214
        %v7306 = vpack.c.b16 %v7217, %v7216
        %v7307 = vpack.c.b16 %v7219, %v7218
        %v7308 = vpack.c.b16 %v7221, %v7220
        %v7309 = vpack.c.b16 %v7223, %v7222
        %v7310 = vpack.c.b16 %v7225, %v7224
        %v7311 = vpack.c.b16 %v7227, %v7226
        %v7312 = vpack.c.b16 %v7229, %v7228
        %v7313 = vpack.c.b16 %v7231, %v7230
        %v7314 = vpack.c.b16 %v7233, %v7232
        %v7315 = vpack.c.b16 %v7235, %v7234
        %v7316 = vpack.c.b16 %v7237, %v7236
        %v7317 = vpack.c.b16 %v7239, %v7238
        %v7318 = vpack.c.b16 %v7241, %v7240
        %v7319 = vpack.c.b16 %v7243, %v7242
        %v7320 = vpack.c.b16 %v7245, %v7244
        %v7321 = vpack.c.b16 %v7247, %v7246
        %v7322 = vpack.c.b16 %v7249, %v7248
        %v7323 = vpack.c.b16 %v7251, %v7250
        %v7324 = vpack.c.b16 %v7253, %v7252
        %v7325 = vpack.c.b16 %v7255, %v7254
        %v7326 = vpack.c.b16 %v7257, %v7256
        %v7327 = vpack.c.b16 %v7259, %v7258
        %v7328 = vpack.c.b16 %v7261, %v7260
        %v7329 = vpack.c.b16 %v7263, %v7262
        %v7330 = vpack.c.b16 %v7265, %v7264
        %v7331 = vpack.c.b16 %v7267, %v7266
        %v7332 = vpack.c.b16 %v7269, %v7268
        %v7333 = vpack.c.b16 %v7271, %v7270
        %v7334 = vpack.c.b16 %v7273, %v7272
        %v7335 = vpack.c.b16 %v7275, %v7274
        %v7336 = vpack.c.b16 %v7277, %v7276
        %v7337 = vpack.c.b16 %v7279, %v7278
        %v7338 = vpack.c.b16 %v7281, %v7280
        %v7339 = vpack.c.b16 %v7283, %v7282
        %v7340 = vpack.c.b16 %v7285, %v7284
        %v7341 = vpack.c.b16 %v7287, %v7286
        %v7342 = vpack.c.b16 %v7289, %v7288
        %v7343 = vpack.c.b16 %v7291, %v7290
        %v7344 = vpack.c.b16 %v7293, %v7292
        %v7345 = vpack.c.b16 %v7295, %v7294
        %v7346 = vpack.c.b16 %v7297, %v7296
        %v7347 = vpack.c.b16 %v7299, %v7298
        %7396 = vmatprep.subr.bf16.mxu0 0
        %7397 = vmatpush1.bf16.msra.mxu0 %v7300
        %7398 = vmatprep.subr.bf16.mxu0 0
        %7399 = vmatpush1.bf16.msra.mxu0 %v7301
        %7400 = vmatprep.subr.bf16.mxu0 0
        %7401 = vmatpush1.bf16.msra.mxu0 %v7302
        %7402 = vmatprep.subr.bf16.mxu0 0
        %7403 = vmatpush1.bf16.msra.mxu0 %v7303
        %7404 = vmatprep.subr.bf16.mxu0 0
        %7405 = vmatpush1.bf16.msra.mxu0 %v7304
        %7406 = vmatprep.subr.bf16.mxu0 0
        %7407 = vmatpush1.bf16.msra.mxu0 %v7305
        %7408 = vmatprep.subr.bf16.mxu0 0
        %7409 = vmatpush1.bf16.msra.mxu0 %v7306
        %7410 = vmatprep.subr.bf16.mxu0 0
        %7411 = vmatpush1.bf16.msra.mxu0 %v7307
        %7412 = vmatprep.subr.bf16.mxu0 0
        %7413 = vmatpush1.bf16.msra.mxu0 %v7308
        %7414 = vmatprep.subr.bf16.mxu0 0
        %7415 = vmatpush1.bf16.msra.mxu0 %v7309
        %7416 = vmatprep.subr.bf16.mxu0 0
        %7417 = vmatpush1.bf16.msra.mxu0 %v7310
        %7418 = vmatprep.subr.bf16.mxu0 0
        %7419 = vmatpush1.bf16.msra.mxu0 %v7311
        %7420 = vmatprep.subr.bf16.mxu0 0
        %7421 = vmatpush1.bf16.msra.mxu0 %v7312
        %7422 = vmatprep.subr.bf16.mxu0 0
        %7423 = vmatpush1.bf16.msra.mxu0 %v7313
        %7424 = vmatprep.subr.bf16.mxu0 0
        %7425 = vmatpush1.bf16.msra.mxu0 %v7314
        %7426 = vmatprep.subr.bf16.mxu0 0
        %7427 = vmatpush1.bf16.msra.mxu0 %v7315
        %7428 = vmatprep.mubr.bf16.mxu0 %v6868
        %7429 = vmatmul.mubr.bf16.gmra.mrb[0].mxu0 %v6867
        %v7430 = vpop.f32.mrb[0].mxu0
        %v7431 = vadd.f32 0.0, %v7430
        %v7432 = vpop.f32.mrb[0].mxu0
        %v7433 = vpop.f32.mrb[0].mxu0
        %v7434 = vadd.f32 0.0, %v7433
        %v7435 = vpop.f32.mrb[0].mxu0
        %7436 = vmatprep.mubr.bf16.mxu0 %v6874
        %7437 = vmatmul.mubr.bf16.gmra.mrb[0].mxu0 %v6873
        %v7438 = vpop.f32.mrb[0].mxu0
        %v7439 = vadd.f32 0.0, %v7438
        %v7440 = vpop.f32.mrb[0].mxu0
        %v7441 = vpop.f32.mrb[0].mxu0
        %v7442 = vadd.f32 0.0, %v7441
        %v7443 = vpop.f32.mrb[0].mxu0
        %7444 = vmatprep.mubr.bf16.mxu0 %v6880
        %7445 = vmatmul.mubr.bf16.gmra.mrb[0].mxu0 %v6879
        %v7446 = vpop.f32.mrb[0].mxu0
        %v7447 = vadd.f32 0.0, %v7446
        %v7448 = vpop.f32.mrb[0].mxu0
        %v7449 = vpop.f32.mrb[0].mxu0
        %v7450 = vadd.f32 0.0, %v7449
        %v7451 = vpop.f32.mrb[0].mxu0
        %7452 = vmatprep.mubr.bf16.mxu0 %v6886
        %7453 = vmatmul.mubr.bf16.gmra.mrb[0].mxu0 %v6885
        %v7454 = vpop.f32.mrb[0].mxu0
        %v7455 = vadd.f32 0.0, %v7454
        %v7456 = vpop.f32.mrb[0].mxu0
        %v7457 = vpop.f32.mrb[0].mxu0
        %v7458 = vadd.f32 0.0, %v7457
        %v7459 = vpop.f32.mrb[0].mxu0
        %7460 = vmatprep.mubr.bf16.mxu0 %v6892
        %7461 = vmatmul.mubr.bf16.gmra.mrb[0].mxu0 %v6891
        %v7462 = vpop.f32.mrb[0].mxu0
        %v7463 = vadd.f32 0.0, %v7462
        %v7464 = vpop.f32.mrb[0].mxu0
        %v7465 = vpop.f32.mrb[0].mxu0
        %v7466 = vadd.f32 0.0, %v7465
        %v7467 = vpop.f32.mrb[0].mxu0
        %7468 = vmatprep.mubr.bf16.mxu0 %v6898
        %7469 = vmatmul.mubr.bf16.gmra.mrb[0].mxu0 %v6897
        %v7470 = vpop.f32.mrb[0].mxu0
        %v7471 = vadd.f32 0.0, %v7470
        %v7472 = vpop.f32.mrb[0].mxu0
        %v7473 = vpop.f32.mrb[0].mxu0
        %v7474 = vadd.f32 0.0, %v7473
        %v7475 = vpop.f32.mrb[0].mxu0
        %7476 = vmatprep.mubr.bf16.mxu0 %v6904
        %7477 = vmatmul.mubr.bf16.gmra.mrb[0].mxu0 %v6903
        %v7478 = vpop.f32.mrb[0].mxu0
        %v7479 = vadd.f32 0.0, %v7478
        %v7480 = vpop.f32.mrb[0].mxu0
        %v7481 = vpop.f32.mrb[0].mxu0
        %v7482 = vadd.f32 0.0, %v7481
        %v7483 = vpop.f32.mrb[0].mxu0
        %7484 = vmatprep.mubr.bf16.mxu0 %v7006
        %7485 = vmatmul.mubr.bf16.gmra.mrb[0].mxu0 %v7005
        %v7486 = vpop.f32.mrb[0].mxu0
        %v7487 = vadd.f32 0.0, %v7486
        %v7488 = vpop.f32.mrb[0].mxu0
        %v7489 = vpop.f32.mrb[0].mxu0
        %v7490 = vadd.f32 0.0, %v7489
        %v7491 = vpop.f32.mrb[0].mxu0
        %7492 = vdwg.mxu0
        %7493 = vmatprep.subr.bf16.mxu0 0
        %7494 = vmatpush1.bf16.msra.mxu0 %v7316
        %7495 = vmatprep.subr.bf16.mxu0 0
        %7496 = vmatpush1.bf16.msra.mxu0 %v7317
        %7497 = vmatprep.subr.bf16.mxu0 0
        %7498 = vmatpush1.bf16.msra.mxu0 %v7318
        %7499 = vmatprep.subr.bf16.mxu0 0
        %7500 = vmatpush1.bf16.msra.mxu0 %v7319
        %7501 = vmatprep.subr.bf16.mxu0 0
        %7502 = vmatpush1.bf16.msra.mxu0 %v7320
        %7503 = vmatprep.subr.bf16.mxu0 0
        %7504 = vmatpush1.bf16.msra.mxu0 %v7321
        %7505 = vmatprep.subr.bf16.mxu0 0
        %7506 = vmatpush1.bf16.msra.mxu0 %v7322
        %7507 = vmatprep.subr.bf16.mxu0 0
        %7508 = vmatpush1.bf16.msra.mxu0 %v7323
        %7509 = vmatprep.subr.bf16.mxu0 0
        %7510 = vmatpush1.bf16.msra.mxu0 %v7324
        %7511 = vmatprep.subr.bf16.mxu0 0
        %7512 = vmatpush1.bf16.msra.mxu0 %v7325
        %7513 = vmatprep.subr.bf16.mxu0 0
        %7514 = vmatpush1.bf16.msra.mxu0 %v7326
        %7515 = vmatprep.subr.bf16.mxu0 0
        %7516 = vmatpush1.bf16.msra.mxu0 %v7327
        %7517 = vmatprep.subr.bf16.mxu0 0
        %7518 = vmatpush1.bf16.msra.mxu0 %v7328
        %7519 = vmatprep.subr.bf16.mxu0 0
        %7520 = vmatpush1.bf16.msra.mxu0 %v7329
        %7521 = vmatprep.subr.bf16.mxu0 0
        %7522 = vmatpush1.bf16.msra.mxu0 %v7330
        %7523 = vmatprep.subr.bf16.mxu0 0
        %7524 = vmatpush1.bf16.msra.mxu0 %v7331
        %7525 = vmatprep.mubr.bf16.mxu0 %v6870
        %7526 = vmatmul.mubr.bf16.gmra.mrb[0].mxu0 %v6869
        %v7527 = vpop.f32.mrb[0].mxu0
        %v7528 = vadd.f32 %v7431, %v7527
        %v7529 = vpop.f32.mrb[0].mxu0
        %v7530 = vpop.f32.mrb[0].mxu0
        %v7531 = vadd.f32 %v7434, %v7530
        %v7532 = vpop.f32.mrb[0].mxu0
        %7533 = vmatprep.mubr.bf16.mxu0 %v6876
        %7534 = vmatmul.mubr.bf16.gmra.mrb[0].mxu0 %v6875
        %v7535 = vpop.f32.mrb[0].mxu0
        %v7536 = vadd.f32 %v7439, %v7535
        %v7537 = vpop.f32.mrb[0].mxu0
        %v7538 = vpop.f32.mrb[0].mxu0
        %v7539 = vadd.f32 %v7442, %v7538
        %v7540 = vpop.f32.mrb[0].mxu0
        %7541 = vmatprep.mubr.bf16.mxu0 %v6882
        %7542 = vmatmul.mubr.bf16.gmra.mrb[0].mxu0 %v6881
        %v7543 = vpop.f32.mrb[0].mxu0
        %v7544 = vadd.f32 %v7447, %v7543
        %v7545 = vpop.f32.mrb[0].mxu0
        %v7546 = vpop.f32.mrb[0].mxu0
        %v7547 = vadd.f32 %v7450, %v7546
        %v7548 = vpop.f32.mrb[0].mxu0
        %7549 = vmatprep.mubr.bf16.mxu0 %v6888
        %7550 = vmatmul.mubr.bf16.gmra.mrb[0].mxu0 %v6887
        %v7551 = vpop.f32.mrb[0].mxu0
        %v7552 = vadd.f32 %v7455, %v7551
        %v7553 = vpop.f32.mrb[0].mxu0
        %v7554 = vpop.f32.mrb[0].mxu0
        %v7555 = vadd.f32 %v7458, %v7554
        %v7556 = vpop.f32.mrb[0].mxu0
        %7557 = vmatprep.mubr.bf16.mxu0 %v6894
        %7558 = vmatmul.mubr.bf16.gmra.mrb[0].mxu0 %v6893
        %v7559 = vpop.f32.mrb[0].mxu0
        %v7560 = vadd.f32 %v7463, %v7559
        %v7561 = vpop.f32.mrb[0].mxu0
        %v7562 = vpop.f32.mrb[0].mxu0
        %v7563 = vadd.f32 %v7466, %v7562
        %v7564 = vpop.f32.mrb[0].mxu0
        %7565 = vmatprep.mubr.bf16.mxu0 %v6900
        %7566 = vmatmul.mubr.bf16.gmra.mrb[0].mxu0 %v6899
        %v7567 = vpop.f32.mrb[0].mxu0
        %v7568 = vadd.f32 %v7471, %v7567
        %v7569 = vpop.f32.mrb[0].mxu0
        %v7570 = vpop.f32.mrb[0].mxu0
        %v7571 = vadd.f32 %v7474, %v7570
        %v7572 = vpop.f32.mrb[0].mxu0
        %7573 = vmatprep.mubr.bf16.mxu0 %v6906
        %7574 = vmatmul.mubr.bf16.gmra.mrb[0].mxu0 %v6905
        %v7575 = vpop.f32.mrb[0].mxu0
        %v7576 = vadd.f32 %v7479, %v7575
        %v7577 = vpop.f32.mrb[0].mxu0
        %v7578 = vpop.f32.mrb[0].mxu0
        %v7579 = vadd.f32 %v7482, %v7578
        %v7580 = vpop.f32.mrb[0].mxu0
        %7581 = vmatprep.mubr.bf16.mxu0 %v7008
        %7582 = vmatmul.mubr.bf16.gmra.mrb[0].mxu0 %v7007
        %v7583 = vpop.f32.mrb[0].mxu0
        %v7584 = vadd.f32 %v7487, %v7583
        %v7585 = vpop.f32.mrb[0].mxu0
        %v7586 = vpop.f32.mrb[0].mxu0
        %v7587 = vadd.f32 %v7490, %v7586
        %v7588 = vpop.f32.mrb[0].mxu0
        %7589 = vdwg.mxu0
        %7590 = vmatprep.subr.bf16.mxu0 0
        %7591 = vmatpush1.bf16.msra.mxu0 %v7332
        %7592 = vmatprep.subr.bf16.mxu0 0
        %7593 = vmatpush1.bf16.msra.mxu0 %v7333
        %7594 = vmatprep.subr.bf16.mxu0 0
        %7595 = vmatpush1.bf16.msra.mxu0 %v7334
        %7596 = vmatprep.subr.bf16.mxu0 0
        %7597 = vmatpush1.bf16.msra.mxu0 %v7335
        %7598 = vmatprep.subr.bf16.mxu0 0
        %7599 = vmatpush1.bf16.msra.mxu0 %v7336
        %7600 = vmatprep.subr.bf16.mxu0 0
        %7601 = vmatpush1.bf16.msra.mxu0 %v7337
        %7602 = vmatprep.subr.bf16.mxu0 0
        %7603 = vmatpush1.bf16.msra.mxu0 %v7338
        %7604 = vmatprep.subr.bf16.mxu0 0
        %7605 = vmatpush1.bf16.msra.mxu0 %v7339
        %7606 = vmatprep.subr.bf16.mxu0 0
        %7607 = vmatpush1.bf16.msra.mxu0 %v7340
        %7608 = vmatprep.subr.bf16.mxu0 0
        %7609 = vmatpush1.bf16.msra.mxu0 %v7341
        %7610 = vmatprep.subr.bf16.mxu0 0
        %7611 = vmatpush1.bf16.msra.mxu0 %v7342
        %7612 = vmatprep.subr.bf16.mxu0 0
        %7613 = vmatpush1.bf16.msra.mxu0 %v7343
        %7614 = vmatprep.subr.bf16.mxu0 0
        %7615 = vmatpush1.bf16.msra.mxu0 %v7344
        %7616 = vmatprep.subr.bf16.mxu0 0
        %7617 = vmatpush1.bf16.msra.mxu0 %v7345
        %7618 = vmatprep.subr.bf16.mxu0 0
        %7619 = vmatpush1.bf16.msra.mxu0 %v7346
        %7620 = vmatprep.subr.bf16.mxu0 0
        %7621 = vmatpush1.bf16.msra.mxu0 %v7347
        %7622 = vmatprep.mubr.bf16.mxu0 %v6872
        %7623 = vmatmul.mubr.bf16.gmra.mrb[0].mxu0 %v6871
        %v7624 = vpop.f32.mrb[0].mxu0
        %v7625 = vadd.f32 %v7528, %v7624
        %v7626 = vpop.f32.mrb[0].mxu0
        %v7627 = vpop.f32.mrb[0].mxu0
        %v7628 = vadd.f32 %v7531, %v7627
        %v7629 = vpop.f32.mrb[0].mxu0
        %7630 = vmatprep.mubr.bf16.mxu0 %v6878
        %7631 = vmatmul.mubr.bf16.gmra.mrb[0].mxu0 %v6877
        %v7632 = vpop.f32.mrb[0].mxu0
        %v7633 = vadd.f32 %v7536, %v7632
        %v7634 = vpop.f32.mrb[0].mxu0
        %v7635 = vpop.f32.mrb[0].mxu0
        %v7636 = vadd.f32 %v7539, %v7635
        %v7637 = vpop.f32.mrb[0].mxu0
        %7638 = vmatprep.mubr.bf16.mxu0 %v6884
        %7639 = vmatmul.mubr.bf16.gmra.mrb[0].mxu0 %v6883
        %v7640 = vpop.f32.mrb[0].mxu0
        %v7641 = vadd.f32 %v7544, %v7640
        %v7642 = vpop.f32.mrb[0].mxu0
        %v7643 = vpop.f32.mrb[0].mxu0
        %v7644 = vadd.f32 %v7547, %v7643
        %v7645 = vpop.f32.mrb[0].mxu0
        %7646 = vmatprep.mubr.bf16.mxu0 %v6890
        %7647 = vmatmul.mubr.bf16.gmra.mrb[0].mxu0 %v6889
        %v7648 = vpop.f32.mrb[0].mxu0
        %v7649 = vadd.f32 %v7552, %v7648
        %v7650 = vpop.f32.mrb[0].mxu0
        %v7651 = vpop.f32.mrb[0].mxu0
        %v7652 = vadd.f32 %v7555, %v7651
        %v7653 = vpop.f32.mrb[0].mxu0
        %7654 = vmatprep.mubr.bf16.mxu0 %v6896
        %7655 = vmatmul.mubr.bf16.gmra.mrb[0].mxu0 %v6895
        %v7656 = vpop.f32.mrb[0].mxu0
        %v7657 = vadd.f32 %v7560, %v7656
        %v7658 = vpop.f32.mrb[0].mxu0
        %v7659 = vpop.f32.mrb[0].mxu0
        %v7660 = vadd.f32 %v7563, %v7659
        %v7661 = vpop.f32.mrb[0].mxu0
        %7662 = vmatprep.mubr.bf16.mxu0 %v6902
        %7663 = vmatmul.mubr.bf16.gmra.mrb[0].mxu0 %v6901
        %v7664 = vpop.f32.mrb[0].mxu0
        %v7665 = vadd.f32 %v7568, %v7664
        %v7666 = vpop.f32.mrb[0].mxu0
        %v7667 = vpop.f32.mrb[0].mxu0
        %v7668 = vadd.f32 %v7571, %v7667
        %v7669 = vpop.f32.mrb[0].mxu0
        %7670 = vmatprep.mubr.bf16.mxu0 %v6908
        %7671 = vmatmul.mubr.bf16.gmra.mrb[0].mxu0 %v6907
        %v7672 = vpop.f32.mrb[0].mxu0
        %v7673 = vadd.f32 %v7576, %v7672
        %v7674 = vpop.f32.mrb[0].mxu0
        %v7675 = vpop.f32.mrb[0].mxu0
        %v7676 = vadd.f32 %v7579, %v7675
        %v7677 = vpop.f32.mrb[0].mxu0
        %7678 = vmatprep.mubr.bf16.mxu0 %v7010
        %7679 = vmatmul.mubr.bf16.gmra.mrb[0].mxu0 %v7009
        %v7680 = vpop.f32.mrb[0].mxu0
        %v7681 = vadd.f32 %v7584, %v7680
        %v7682 = vpop.f32.mrb[0].mxu0
        %v7683 = vpop.f32.mrb[0].mxu0
        %v7684 = vadd.f32 %v7587, %v7683
        %v7685 = vpop.f32.mrb[0].mxu0
        %7686 = vdwg.mxu0
        %v7783 = vunpack.c.l.b16 %v6909
        %v7784 = vunpack.c.l.b16 %v6910
        %v7785 = vunpack.c.l.b16 %v6911
        %v7786 = vunpack.c.l.b16 %v6912
        %v7787 = vunpack.c.l.b16 %v6913
        %v7788 = vunpack.c.l.b16 %v6914
        %v7789 = vunpack.c.l.b16 %v6915
        %v7790 = vunpack.c.l.b16 %v6916
        %v7791 = vunpack.c.l.b16 %v6917
        %v7792 = vunpack.c.l.b16 %v6918
        %v7793 = vunpack.c.l.b16 %v6919
        %v7794 = vunpack.c.l.b16 %v6920
        %v7795 = vunpack.c.l.b16 %v6921
        %v7796 = vunpack.c.l.b16 %v6922
        %v7797 = vunpack.c.l.b16 %v6923
        %v7798 = vunpack.c.l.b16 %v6924
        %v7799 = vunpack.c.l.b16 %v6925
        %v7800 = vunpack.c.l.b16 %v6926
        %v7801 = vunpack.c.l.b16 %v6927
        %v7802 = vunpack.c.l.b16 %v6928
        %v7803 = vunpack.c.l.b16 %v6929
        %v7804 = vunpack.c.l.b16 %v6930
        %v7805 = vunpack.c.l.b16 %v6931
        %v7806 = vunpack.c.l.b16 %v6932
        %v7807 = vunpack.c.l.b16 %v6933
        %v7808 = vunpack.c.l.b16 %v6934
        %v7809 = vunpack.c.l.b16 %v6935
        %v7810 = vunpack.c.l.b16 %v6936
        %v7811 = vunpack.c.l.b16 %v6937
        %v7812 = vunpack.c.l.b16 %v6938
        %v7813 = vunpack.c.l.b16 %v6939
        %v7814 = vunpack.c.l.b16 %v6940
        %v7815 = vunpack.c.l.b16 %v6941
        %v7816 = vunpack.c.l.b16 %v6942
        %v7817 = vunpack.c.l.b16 %v6943
        %v7818 = vunpack.c.l.b16 %v6944
        %v7819 = vunpack.c.l.b16 %v6945
        %v7820 = vunpack.c.l.b16 %v6946
        %v7821 = vunpack.c.l.b16 %v6947
        %v7822 = vunpack.c.l.b16 %v6948
        %v7823 = vunpack.c.l.b16 %v6949
        %v7824 = vunpack.c.l.b16 %v6950
        %v7825 = vunpack.c.l.b16 %v6951
        %v7826 = vunpack.c.l.b16 %v6952
        %v7827 = vunpack.c.l.b16 %v6953
        %v7828 = vunpack.c.l.b16 %v6954
        %v7829 = vunpack.c.l.b16 %v6955
        %v7830 = vunpack.c.l.b16 %v6956
        %v7831 = vunpack.c.l.b16 %v6957
        %v7832 = vunpack.c.l.b16 %v6958
        %v7833 = vunpack.c.l.b16 %v6959
        %v7834 = vunpack.c.l.b16 %v6960
        %v7835 = vunpack.c.l.b16 %v6961
        %v7836 = vunpack.c.l.b16 %v6962
        %v7837 = vunpack.c.l.b16 %v6963
        %v7838 = vunpack.c.l.b16 %v6964
        %v7839 = vunpack.c.l.b16 %v6965
        %v7840 = vunpack.c.l.b16 %v6966
        %v7841 = vunpack.c.l.b16 %v6967
        %v7842 = vunpack.c.l.b16 %v6968
        %v7843 = vunpack.c.l.b16 %v6969
        %v7844 = vunpack.c.l.b16 %v6970
        %v7845 = vunpack.c.l.b16 %v6971
        %v7846 = vunpack.c.l.b16 %v6972
        %v7847 = vunpack.c.l.b16 %v6973
        %v7848 = vunpack.c.l.b16 %v6974
        %v7849 = vunpack.c.l.b16 %v6975
        %v7850 = vunpack.c.l.b16 %v6976
        %v7851 = vunpack.c.l.b16 %v6977
        %v7852 = vunpack.c.l.b16 %v6978
        %v7853 = vunpack.c.l.b16 %v6979
        %v7854 = vunpack.c.l.b16 %v6980
        %v7855 = vunpack.c.l.b16 %v6981
        %v7856 = vunpack.c.l.b16 %v6982
        %v7857 = vunpack.c.l.b16 %v6983
        %v7858 = vunpack.c.l.b16 %v6984
        %v7859 = vunpack.c.l.b16 %v6985
        %v7860 = vunpack.c.l.b16 %v6986
        %v7861 = vunpack.c.l.b16 %v6987
        %v7862 = vunpack.c.l.b16 %v6988
        %v7863 = vunpack.c.l.b16 %v6989
        %v7864 = vunpack.c.l.b16 %v6990
        %v7865 = vunpack.c.l.b16 %v6991
        %v7866 = vunpack.c.l.b16 %v6992
        %v7867 = vunpack.c.l.b16 %v6993
        %v7868 = vunpack.c.l.b16 %v6994
        %v7869 = vunpack.c.l.b16 %v6995
        %v7870 = vunpack.c.l.b16 %v6996
        %v7871 = vunpack.c.l.b16 %v6997
        %v7872 = vunpack.c.l.b16 %v6998
        %v7873 = vunpack.c.l.b16 %v6999
        %v7874 = vunpack.c.l.b16 %v7000
        %v7875 = vunpack.c.l.b16 %v7001
        %v7876 = vunpack.c.l.b16 %v7002
        %v7877 = vunpack.c.l.b16 %v7003
        %v7878 = vunpack.c.l.b16 %v7004
        %v7879 = vpack.c.b16 %v7784, %v7783
        %v7880 = vpack.c.b16 %v7786, %v7785
        %v7881 = vpack.c.b16 %v7788, %v7787
        %v7882 = vpack.c.b16 %v7790, %v7789
        %v7883 = vpack.c.b16 %v7792, %v7791
        %v7884 = vpack.c.b16 %v7794, %v7793
        %v7885 = vpack.c.b16 %v7796, %v7795
        %v7886 = vpack.c.b16 %v7798, %v7797
        %v7887 = vpack.c.b16 %v7800, %v7799
        %v7888 = vpack.c.b16 %v7802, %v7801
        %v7889 = vpack.c.b16 %v7804, %v7803
        %v7890 = vpack.c.b16 %v7806, %v7805
        %v7891 = vpack.c.b16 %v7808, %v7807
        %v7892 = vpack.c.b16 %v7810, %v7809
        %v7893 = vpack.c.b16 %v7812, %v7811
        %v7894 = vpack.c.b16 %v7814, %v7813
        %v7895 = vpack.c.b16 %v7816, %v7815
        %v7896 = vpack.c.b16 %v7818, %v7817
        %v7897 = vpack.c.b16 %v7820, %v7819
        %v7898 = vpack.c.b16 %v7822, %v7821
        %v7899 = vpack.c.b16 %v7824, %v7823
        %v7900 = vpack.c.b16 %v7826, %v7825
        %v7901 = vpack.c.b16 %v7828, %v7827
        %v7902 = vpack.c.b16 %v7830, %v7829
        %v7903 = vpack.c.b16 %v7832, %v7831
        %v7904 = vpack.c.b16 %v7834, %v7833
        %v7905 = vpack.c.b16 %v7836, %v7835
        %v7906 = vpack.c.b16 %v7838, %v7837
        %v7907 = vpack.c.b16 %v7840, %v7839
        %v7908 = vpack.c.b16 %v7842, %v7841
        %v7909 = vpack.c.b16 %v7844, %v7843
        %v7910 = vpack.c.b16 %v7846, %v7845
        %v7911 = vpack.c.b16 %v7848, %v7847
        %v7912 = vpack.c.b16 %v7850, %v7849
        %v7913 = vpack.c.b16 %v7852, %v7851
        %v7914 = vpack.c.b16 %v7854, %v7853
        %v7915 = vpack.c.b16 %v7856, %v7855
        %v7916 = vpack.c.b16 %v7858, %v7857
        %v7917 = vpack.c.b16 %v7860, %v7859
        %v7918 = vpack.c.b16 %v7862, %v7861
        %v7919 = vpack.c.b16 %v7864, %v7863
        %v7920 = vpack.c.b16 %v7866, %v7865
        %v7921 = vpack.c.b16 %v7868, %v7867
        %v7922 = vpack.c.b16 %v7870, %v7869
        %v7923 = vpack.c.b16 %v7872, %v7871
        %v7924 = vpack.c.b16 %v7874, %v7873
        %v7925 = vpack.c.b16 %v7876, %v7875
        %v7926 = vpack.c.b16 %v7878, %v7877
        %7975 = vmatprep.subr.bf16.mxu0 0
        %7976 = vmatpush1.bf16.msra.mxu0 %v7879
        %7977 = vmatprep.subr.bf16.mxu0 0
        %7978 = vmatpush1.bf16.msra.mxu0 %v7880
        %7979 = vmatprep.subr.bf16.mxu0 0
        %7980 = vmatpush1.bf16.msra.mxu0 %v7881
        %7981 = vmatprep.subr.bf16.mxu0 0
        %7982 = vmatpush1.bf16.msra.mxu0 %v7882
        %7983 = vmatprep.subr.bf16.mxu0 0
        %7984 = vmatpush1.bf16.msra.mxu0 %v7883
        %7985 = vmatprep.subr.bf16.mxu0 0
        %7986 = vmatpush1.bf16.msra.mxu0 %v7884
        %7987 = vmatprep.subr.bf16.mxu0 0
        %7988 = vmatpush1.bf16.msra.mxu0 %v7885
        %7989 = vmatprep.subr.bf16.mxu0 0
        %7990 = vmatpush1.bf16.msra.mxu0 %v7886
        %7991 = vmatprep.subr.bf16.mxu0 0
        %7992 = vmatpush1.bf16.msra.mxu0 %v7887
        %7993 = vmatprep.subr.bf16.mxu0 0
        %7994 = vmatpush1.bf16.msra.mxu0 %v7888
        %7995 = vmatprep.subr.bf16.mxu0 0
        %7996 = vmatpush1.bf16.msra.mxu0 %v7889
        %7997 = vmatprep.subr.bf16.mxu0 0
        %7998 = vmatpush1.bf16.msra.mxu0 %v7890
        %7999 = vmatprep.subr.bf16.mxu0 0
        %8000 = vmatpush1.bf16.msra.mxu0 %v7891
        %8001 = vmatprep.subr.bf16.mxu0 0
        %8002 = vmatpush1.bf16.msra.mxu0 %v7892
        %8003 = vmatprep.subr.bf16.mxu0 0
        %8004 = vmatpush1.bf16.msra.mxu0 %v7893
        %8005 = vmatprep.subr.bf16.mxu0 0
        %8006 = vmatpush1.bf16.msra.mxu0 %v7894
        %8007 = vmatprep.mubr.bf16.mxu0 %v6862
        %8008 = vmatmul.mubr.bf16.gmra.mrb[0].mxu0 %v6861
        %v8009 = vpop.f32.mrb[0].mxu0
        %v8010 = vadd.f32 %v7625, %v8009
        %v8011 = vpop.f32.mrb[0].mxu0
        %v8012 = vpop.f32.mrb[0].mxu0
        %v8013 = vadd.f32 %v7628, %v8012
        %v8014 = vpop.f32.mrb[0].mxu0
        %8015 = vmatprep.mubr.bf16.mxu0 %v6868
        %8016 = vmatmul.mubr.bf16.gmra.mrb[0].mxu0 %v6867
        %v8017 = vpop.f32.mrb[0].mxu0
        %v8018 = vadd.f32 %v7633, %v8017
        %v8019 = vpop.f32.mrb[0].mxu0
        %v8020 = vpop.f32.mrb[0].mxu0
        %v8021 = vadd.f32 %v7636, %v8020
        %v8022 = vpop.f32.mrb[0].mxu0
        %8023 = vmatprep.mubr.bf16.mxu0 %v6874
        %8024 = vmatmul.mubr.bf16.gmra.mrb[0].mxu0 %v6873
        %v8025 = vpop.f32.mrb[0].mxu0
        %v8026 = vadd.f32 %v7641, %v8025
        %v8027 = vpop.f32.mrb[0].mxu0
        %v8028 = vpop.f32.mrb[0].mxu0
        %v8029 = vadd.f32 %v7644, %v8028
        %v8030 = vpop.f32.mrb[0].mxu0
        %8031 = vmatprep.mubr.bf16.mxu0 %v6880
        %8032 = vmatmul.mubr.bf16.gmra.mrb[0].mxu0 %v6879
        %v8033 = vpop.f32.mrb[0].mxu0
        %v8034 = vadd.f32 %v7649, %v8033
        %v8035 = vpop.f32.mrb[0].mxu0
        %v8036 = vpop.f32.mrb[0].mxu0
        %v8037 = vadd.f32 %v7652, %v8036
        %v8038 = vpop.f32.mrb[0].mxu0
        %8039 = vmatprep.mubr.bf16.mxu0 %v6886
        %8040 = vmatmul.mubr.bf16.gmra.mrb[0].mxu0 %v6885
        %v8041 = vpop.f32.mrb[0].mxu0
        %v8042 = vadd.f32 %v7657, %v8041
        %v8043 = vpop.f32.mrb[0].mxu0
        %v8044 = vpop.f32.mrb[0].mxu0
        %v8045 = vadd.f32 %v7660, %v8044
        %v8046 = vpop.f32.mrb[0].mxu0
        %8047 = vmatprep.mubr.bf16.mxu0 %v6892
        %8048 = vmatmul.mubr.bf16.gmra.mrb[0].mxu0 %v6891
        %v8049 = vpop.f32.mrb[0].mxu0
        %v8050 = vadd.f32 %v7665, %v8049
        %v8051 = vpop.f32.mrb[0].mxu0
        %v8052 = vpop.f32.mrb[0].mxu0
        %v8053 = vadd.f32 %v7668, %v8052
        %v8054 = vpop.f32.mrb[0].mxu0
        %8055 = vmatprep.mubr.bf16.mxu0 %v6898
        %8056 = vmatmul.mubr.bf16.gmra.mrb[0].mxu0 %v6897
        %v8057 = vpop.f32.mrb[0].mxu0
        %v8058 = vadd.f32 %v7673, %v8057
        %v8059 = vpop.f32.mrb[0].mxu0
        %v8060 = vpop.f32.mrb[0].mxu0
        %v8061 = vadd.f32 %v7676, %v8060
        %v8062 = vpop.f32.mrb[0].mxu0
        %8063 = vmatprep.mubr.bf16.mxu0 %v6904
        %8064 = vmatmul.mubr.bf16.gmra.mrb[0].mxu0 %v6903
        %v8065 = vpop.f32.mrb[0].mxu0
        %v8066 = vadd.f32 %v7681, %v8065
        %v8067 = vpop.f32.mrb[0].mxu0
        %v8068 = vpop.f32.mrb[0].mxu0
        %v8069 = vadd.f32 %v7684, %v8068
        %v8070 = vpop.f32.mrb[0].mxu0
        %8071 = vdwg.mxu0
        %8072 = vmatprep.subr.bf16.mxu0 0
        %8073 = vmatpush1.bf16.msra.mxu0 %v7895
        %8074 = vmatprep.subr.bf16.mxu0 0
        %8075 = vmatpush1.bf16.msra.mxu0 %v7896
        %8076 = vmatprep.subr.bf16.mxu0 0
        %8077 = vmatpush1.bf16.msra.mxu0 %v7897
        %8078 = vmatprep.subr.bf16.mxu0 0
        %8079 = vmatpush1.bf16.msra.mxu0 %v7898
        %8080 = vmatprep.subr.bf16.mxu0 0
        %8081 = vmatpush1.bf16.msra.mxu0 %v7899
        %8082 = vmatprep.subr.bf16.mxu0 0
        %8083 = vmatpush1.bf16.msra.mxu0 %v7900
        %8084 = vmatprep.subr.bf16.mxu0 0
        %8085 = vmatpush1.bf16.msra.mxu0 %v7901
        %8086 = vmatprep.subr.bf16.mxu0 0
        %8087 = vmatpush1.bf16.msra.mxu0 %v7902
        %8088 = vmatprep.subr.bf16.mxu0 0
        %8089 = vmatpush1.bf16.msra.mxu0 %v7903
        %8090 = vmatprep.subr.bf16.mxu0 0
        %8091 = vmatpush1.bf16.msra.mxu0 %v7904
        %8092 = vmatprep.subr.bf16.mxu0 0
        %8093 = vmatpush1.bf16.msra.mxu0 %v7905
        %8094 = vmatprep.subr.bf16.mxu0 0
        %8095 = vmatpush1.bf16.msra.mxu0 %v7906
        %8096 = vmatprep.subr.bf16.mxu0 0
        %8097 = vmatpush1.bf16.msra.mxu0 %v7907
        %8098 = vmatprep.subr.bf16.mxu0 0
        %8099 = vmatpush1.bf16.msra.mxu0 %v7908
        %8100 = vmatprep.subr.bf16.mxu0 0
        %8101 = vmatpush1.bf16.msra.mxu0 %v7909
        %8102 = vmatprep.subr.bf16.mxu0 0
        %8103 = vmatpush1.bf16.msra.mxu0 %v7910
        %8104 = vmatprep.mubr.bf16.mxu0 %v6864
        %8105 = vmatmul.mubr.bf16.gmra.mrb[0].mxu0 %v6863
        %v8106 = vpop.f32.mrb[0].mxu0
        %v8107 = vadd.f32 %v8010, %v8106
        %v8108 = vpop.f32.mrb[0].mxu0
        %v8109 = vpop.f32.mrb[0].mxu0
        %v8110 = vadd.f32 %v8013, %v8109
        %v8111 = vpop.f32.mrb[0].mxu0
        %8112 = vmatprep.mubr.bf16.mxu0 %v6870
        %8113 = vmatmul.mubr.bf16.gmra.mrb[0].mxu0 %v6869
        %v8114 = vpop.f32.mrb[0].mxu0
        %v8115 = vadd.f32 %v8018, %v8114
        %v8116 = vpop.f32.mrb[0].mxu0
        %v8117 = vpop.f32.mrb[0].mxu0
        %v8118 = vadd.f32 %v8021, %v8117
        %v8119 = vpop.f32.mrb[0].mxu0
        %8120 = vmatprep.mubr.bf16.mxu0 %v6876
        %8121 = vmatmul.mubr.bf16.gmra.mrb[0].mxu0 %v6875
        %v8122 = vpop.f32.mrb[0].mxu0
        %v8123 = vadd.f32 %v8026, %v8122
        %v8124 = vpop.f32.mrb[0].mxu0
        %v8125 = vpop.f32.mrb[0].mxu0
        %v8126 = vadd.f32 %v8029, %v8125
        %v8127 = vpop.f32.mrb[0].mxu0
        %8128 = vmatprep.mubr.bf16.mxu0 %v6882
        %8129 = vmatmul.mubr.bf16.gmra.mrb[0].mxu0 %v6881
        %v8130 = vpop.f32.mrb[0].mxu0
        %v8131 = vadd.f32 %v8034, %v8130
        %v8132 = vpop.f32.mrb[0].mxu0
        %v8133 = vpop.f32.mrb[0].mxu0
        %v8134 = vadd.f32 %v8037, %v8133
        %v8135 = vpop.f32.mrb[0].mxu0
        %8136 = vmatprep.mubr.bf16.mxu0 %v6888
        %8137 = vmatmul.mubr.bf16.gmra.mrb[0].mxu0 %v6887
        %v8138 = vpop.f32.mrb[0].mxu0
        %v8139 = vadd.f32 %v8042, %v8138
        %v8140 = vpop.f32.mrb[0].mxu0
        %v8141 = vpop.f32.mrb[0].mxu0
        %v8142 = vadd.f32 %v8045, %v8141
        %v8143 = vpop.f32.mrb[0].mxu0
        %8144 = vmatprep.mubr.bf16.mxu0 %v6894
        %8145 = vmatmul.mubr.bf16.gmra.mrb[0].mxu0 %v6893
        %v8146 = vpop.f32.mrb[0].mxu0
        %v8147 = vadd.f32 %v8050, %v8146
        %v8148 = vpop.f32.mrb[0].mxu0
        %v8149 = vpop.f32.mrb[0].mxu0
        %v8150 = vadd.f32 %v8053, %v8149
        %v8151 = vpop.f32.mrb[0].mxu0
        %8152 = vmatprep.mubr.bf16.mxu0 %v6900
        %8153 = vmatmul.mubr.bf16.gmra.mrb[0].mxu0 %v6899
        %v8154 = vpop.f32.mrb[0].mxu0
        %v8155 = vadd.f32 %v8058, %v8154
        %v8156 = vpop.f32.mrb[0].mxu0
        %v8157 = vpop.f32.mrb[0].mxu0
        %v8158 = vadd.f32 %v8061, %v8157
        %v8159 = vpop.f32.mrb[0].mxu0
        %8160 = vmatprep.mubr.bf16.mxu0 %v6906
        %8161 = vmatmul.mubr.bf16.gmra.mrb[0].mxu0 %v6905
        %v8162 = vpop.f32.mrb[0].mxu0
        %v8163 = vadd.f32 %v8066, %v8162
        %v8164 = vpop.f32.mrb[0].mxu0
        %v8165 = vpop.f32.mrb[0].mxu0
        %v8166 = vadd.f32 %v8069, %v8165
        %v8167 = vpop.f32.mrb[0].mxu0
        %8168 = vdwg.mxu0
        %8169 = vmatprep.subr.bf16.mxu0 0
        %8170 = vmatpush1.bf16.msra.mxu0 %v7911
        %8171 = vmatprep.subr.bf16.mxu0 0
        %8172 = vmatpush1.bf16.msra.mxu0 %v7912
        %8173 = vmatprep.subr.bf16.mxu0 0
        %8174 = vmatpush1.bf16.msra.mxu0 %v7913
        %8175 = vmatprep.subr.bf16.mxu0 0
        %8176 = vmatpush1.bf16.msra.mxu0 %v7914
        %8177 = vmatprep.subr.bf16.mxu0 0
        %8178 = vmatpush1.bf16.msra.mxu0 %v7915
        %8179 = vmatprep.subr.bf16.mxu0 0
        %8180 = vmatpush1.bf16.msra.mxu0 %v7916
        %8181 = vmatprep.subr.bf16.mxu0 0
        %8182 = vmatpush1.bf16.msra.mxu0 %v7917
        %8183 = vmatprep.subr.bf16.mxu0 0
        %8184 = vmatpush1.bf16.msra.mxu0 %v7918
        %8185 = vmatprep.subr.bf16.mxu0 0
        %8186 = vmatpush1.bf16.msra.mxu0 %v7919
        %8187 = vmatprep.subr.bf16.mxu0 0
        %8188 = vmatpush1.bf16.msra.mxu0 %v7920
        %8189 = vmatprep.subr.bf16.mxu0 0
        %8190 = vmatpush1.bf16.msra.mxu0 %v7921
        %8191 = vmatprep.subr.bf16.mxu0 0
        %8192 = vmatpush1.bf16.msra.mxu0 %v7922
        %8193 = vmatprep.subr.bf16.mxu0 0
        %8194 = vmatpush1.bf16.msra.mxu0 %v7923
        %8195 = vmatprep.subr.bf16.mxu0 0
        %8196 = vmatpush1.bf16.msra.mxu0 %v7924
        %8197 = vmatprep.subr.bf16.mxu0 0
        %8198 = vmatpush1.bf16.msra.mxu0 %v7925
        %8199 = vmatprep.subr.bf16.mxu0 0
        %8200 = vmatpush1.bf16.msra.mxu0 %v7926
        %8201 = vmatprep.mubr.bf16.mxu0 %v6866
        %8202 = vmatmul.mubr.bf16.gmra.mrb[0].mxu0 %v6865
        %v8203 = vpop.f32.mrb[0].mxu0
        %v8204 = vadd.f32 %v8107, %v8203
        %v8205 = vpop.f32.mrb[0].mxu0
        %v8206 = vpop.f32.mrb[0].mxu0
        %v8207 = vadd.f32 %v8110, %v8206
        %v8208 = vpop.f32.mrb[0].mxu0
        %8209 = vmatprep.mubr.bf16.mxu0 %v6872
        %8210 = vmatmul.mubr.bf16.gmra.mrb[0].mxu0 %v6871
        %v8211 = vpop.f32.mrb[0].mxu0
        %v8212 = vadd.f32 %v8115, %v8211
        %v8213 = vpop.f32.mrb[0].mxu0
        %v8214 = vpop.f32.mrb[0].mxu0
        %v8215 = vadd.f32 %v8118, %v8214
        %v8216 = vpop.f32.mrb[0].mxu0
        %8217 = vmatprep.mubr.bf16.mxu0 %v6878
        %8218 = vmatmul.mubr.bf16.gmra.mrb[0].mxu0 %v6877
        %v8219 = vpop.f32.mrb[0].mxu0
        %v8220 = vadd.f32 %v8123, %v8219
        %v8221 = vpop.f32.mrb[0].mxu0
        %v8222 = vpop.f32.mrb[0].mxu0
        %v8223 = vadd.f32 %v8126, %v8222
        %v8224 = vpop.f32.mrb[0].mxu0
        %8225 = vmatprep.mubr.bf16.mxu0 %v6884
        %8226 = vmatmul.mubr.bf16.gmra.mrb[0].mxu0 %v6883
        %v8227 = vpop.f32.mrb[0].mxu0
        %v8228 = vadd.f32 %v8131, %v8227
        %v8229 = vpop.f32.mrb[0].mxu0
        %v8230 = vpop.f32.mrb[0].mxu0
        %v8231 = vadd.f32 %v8134, %v8230
        %v8232 = vpop.f32.mrb[0].mxu0
        %8233 = vmatprep.mubr.bf16.mxu0 %v6890
        %8234 = vmatmul.mubr.bf16.gmra.mrb[0].mxu0 %v6889
        %v8235 = vpop.f32.mrb[0].mxu0
        %v8236 = vadd.f32 %v8139, %v8235
        %v8237 = vpop.f32.mrb[0].mxu0
        %v8238 = vpop.f32.mrb[0].mxu0
        %v8239 = vadd.f32 %v8142, %v8238
        %v8240 = vpop.f32.mrb[0].mxu0
        %8241 = vmatprep.mubr.bf16.mxu0 %v6896
        %8242 = vmatmul.mubr.bf16.gmra.mrb[0].mxu0 %v6895
        %v8243 = vpop.f32.mrb[0].mxu0
        %v8244 = vadd.f32 %v8147, %v8243
        %v8245 = vpop.f32.mrb[0].mxu0
        %v8246 = vpop.f32.mrb[0].mxu0
        %v8247 = vadd.f32 %v8150, %v8246
        %v8248 = vpop.f32.mrb[0].mxu0
        %8249 = vmatprep.mubr.bf16.mxu0 %v6902
        %8250 = vmatmul.mubr.bf16.gmra.mrb[0].mxu0 %v6901
        %v8251 = vpop.f32.mrb[0].mxu0
        %v8252 = vadd.f32 %v8155, %v8251
        %v8253 = vpop.f32.mrb[0].mxu0
        %v8254 = vpop.f32.mrb[0].mxu0
        %v8255 = vadd.f32 %v8158, %v8254
        %v8256 = vpop.f32.mrb[0].mxu0
        %8257 = vmatprep.mubr.bf16.mxu0 %v6908
        %8258 = vmatmul.mubr.bf16.gmra.mrb[0].mxu0 %v6907
        %v8259 = vpop.f32.mrb[0].mxu0
        %v8260 = vadd.f32 %v8163, %v8259
        %v8261 = vpop.f32.mrb[0].mxu0
        %v8262 = vpop.f32.mrb[0].mxu0
        %v8263 = vadd.f32 %v8166, %v8262
        %v8264 = vpop.f32.mrb[0].mxu0
        %8265 = vdwg.mxu0
        %v8266 = vld [vmem:[#allocation3 + $0x60] sm:$0xff]
        %v8267 = vld [vmem:[#allocation3 + $0x68] sm:$0xff]
        %v8268 = vld [vmem:[#allocation3 + $0x70] sm:$0xff]
        %v8269 = vld [vmem:[#allocation3 + $0x78] sm:$0xff]
        %v8270 = vld [vmem:[#allocation3 + $0x80] sm:$0xff]
        %v8271 = vld [vmem:[#allocation3 + $0x88] sm:$0xff]
        %v8272 = vld [vmem:[#allocation3 + $0x90] sm:$0xff]
        %v8273 = vld [vmem:[#allocation3 + $0x98] sm:$0xff]
        %v8274 = vld [vmem:[#allocation3 + $0xa0] sm:$0xff]
        %v8275 = vld [vmem:[#allocation3 + $0xa8] sm:$0xff]
        %v8276 = vld [vmem:[#allocation3 + $0xb0] sm:$0xff]
        %v8277 = vld [vmem:[#allocation3 + $0xb8] sm:$0xff]
        %v8278 = vld [vmem:[#allocation3 + $0xc0] sm:$0xff]
        %v8279 = vld [vmem:[#allocation3 + $0xc8] sm:$0xff]
        %v8280 = vld [vmem:[#allocation3 + $0xd0] sm:$0xff]
        %v8281 = vld [vmem:[#allocation3 + $0xd8] sm:$0xff]
        %v8282 = vld [vmem:[#allocation3 + $0xe0] sm:$0xff]
        %v8283 = vld [vmem:[#allocation3 + $0xe8] sm:$0xff]
        %v8284 = vld [vmem:[#allocation3 + $0xf0] sm:$0xff]
        %v8285 = vld [vmem:[#allocation3 + $0xf8] sm:$0xff]
        %v8286 = vld [vmem:[#allocation3 + $0x100] sm:$0xff]
        %v8287 = vld [vmem:[#allocation3 + $0x108] sm:$0xff]
        %v8288 = vld [vmem:[#allocation3 + $0x110] sm:$0xff]
        %v8289 = vld [vmem:[#allocation3 + $0x118] sm:$0xff]
        %v8290 = vld [vmem:[#allocation3 + $0x120] sm:$0xff]
        %v8291 = vld [vmem:[#allocation3 + $0x128] sm:$0xff]
        %v8292 = vld [vmem:[#allocation3 + $0x130] sm:$0xff]
        %v8293 = vld [vmem:[#allocation3 + $0x138] sm:$0xff]
        %v8294 = vld [vmem:[#allocation3 + $0x140] sm:$0xff]
        %v8295 = vld [vmem:[#allocation3 + $0x148] sm:$0xff]
        %v8296 = vld [vmem:[#allocation3 + $0x150] sm:$0xff]
        %v8297 = vld [vmem:[#allocation3 + $0x158] sm:$0xff]
        %v8298 = vld [vmem:[#allocation3 + $0x160] sm:$0xff]
        %v8299 = vld [vmem:[#allocation3 + $0x168] sm:$0xff]
        %v8300 = vld [vmem:[#allocation3 + $0x170] sm:$0xff]
        %v8301 = vld [vmem:[#allocation3 + $0x178] sm:$0xff]
        %v8302 = vld [vmem:[#allocation3 + $0x180] sm:$0xff]
        %v8303 = vld [vmem:[#allocation3 + $0x188] sm:$0xff]
        %v8304 = vld [vmem:[#allocation3 + $0x190] sm:$0xff]
        %v8305 = vld [vmem:[#allocation3 + $0x198] sm:$0xff]
        %v8306 = vld [vmem:[#allocation3 + $0x1a0] sm:$0xff]
        %v8307 = vld [vmem:[#allocation3 + $0x1a8] sm:$0xff]
        %v8308 = vld [vmem:[#allocation3 + $0x1b0] sm:$0xff]
        %v8309 = vld [vmem:[#allocation3 + $0x1b8] sm:$0xff]
        %v8310 = vld [vmem:[#allocation3 + $0x1c0] sm:$0xff]
        %v8311 = vld [vmem:[#allocation3 + $0x1c8] sm:$0xff]
        %v8312 = vld [vmem:[#allocation3 + $0x1d0] sm:$0xff]
        %v8313 = vld [vmem:[#allocation3 + $0x1d8] sm:$0xff]
        %s8314 = scalar_lea.vmem [#allocation14], 768
        %v8315 = vld [vmem:[%s8314] sm:$0xf]
        %v8316 = vld [vmem:[%s8314 + $0x4] sm:$0xf]
        %v8317 = vld [vmem:[%s8314 + $0x8] sm:$0xf]
        %v8318 = vld [vmem:[%s8314 + $0xc] sm:$0xf]
        %v8319 = vld [vmem:[%s8314 + $0x10] sm:$0xf]
        %v8320 = vld [vmem:[%s8314 + $0x14] sm:$0xf]
        %v8321 = vld [vmem:[%s8314 + $0x18] sm:$0xf]
        %v8322 = vld [vmem:[%s8314 + $0x1c] sm:$0xf]
        %v8323 = vld [vmem:[%s8314 + $0x20] sm:$0xf]
        %v8324 = vld [vmem:[%s8314 + $0x24] sm:$0xf]
        %v8325 = vld [vmem:[%s8314 + $0x28] sm:$0xf]
        %v8326 = vld [vmem:[%s8314 + $0x2c] sm:$0xf]
        %v8327 = vld [vmem:[%s8314 + $0x30] sm:$0xf]
        %v8328 = vld [vmem:[%s8314 + $0x34] sm:$0xf]
        %v8329 = vld [vmem:[%s8314 + $0x38] sm:$0xf]
        %v8330 = vld [vmem:[%s8314 + $0x3c] sm:$0xf]
        %v8331 = vld [vmem:[%s8314 + $0x40] sm:$0xf]
        %v8332 = vld [vmem:[%s8314 + $0x44] sm:$0xf]
        %v8333 = vld [vmem:[%s8314 + $0x48] sm:$0xf]
        %v8334 = vld [vmem:[%s8314 + $0x4c] sm:$0xf]
        %v8335 = vld [vmem:[%s8314 + $0x50] sm:$0xf]
        %v8336 = vld [vmem:[%s8314 + $0x54] sm:$0xf]
        %v8337 = vld [vmem:[%s8314 + $0x58] sm:$0xf]
        %v8338 = vld [vmem:[%s8314 + $0x5c] sm:$0xf]
        %v8339 = vld [vmem:[%s8314 + $0x60] sm:$0xf]
        %v8340 = vld [vmem:[%s8314 + $0x64] sm:$0xf]
        %v8341 = vld [vmem:[%s8314 + $0x68] sm:$0xf]
        %v8342 = vld [vmem:[%s8314 + $0x6c] sm:$0xf]
        %v8343 = vld [vmem:[%s8314 + $0x70] sm:$0xf]
        %v8344 = vld [vmem:[%s8314 + $0x74] sm:$0xf]
        %v8345 = vld [vmem:[%s8314 + $0x78] sm:$0xf]
        %v8346 = vld [vmem:[%s8314 + $0x7c] sm:$0xf]
        %v8347 = vld [vmem:[%s8314 + $0x80] sm:$0xf]
        %v8348 = vld [vmem:[%s8314 + $0x84] sm:$0xf]
        %v8349 = vld [vmem:[%s8314 + $0x88] sm:$0xf]
        %v8350 = vld [vmem:[%s8314 + $0x8c] sm:$0xf]
        %v8351 = vld [vmem:[%s8314 + $0x90] sm:$0xf]
        %v8352 = vld [vmem:[%s8314 + $0x94] sm:$0xf]
        %v8353 = vld [vmem:[%s8314 + $0x98] sm:$0xf]
        %v8354 = vld [vmem:[%s8314 + $0x9c] sm:$0xf]
        %v8355 = vld [vmem:[%s8314 + $0xa0] sm:$0xf]
        %v8356 = vld [vmem:[%s8314 + $0xa4] sm:$0xf]
        %v8357 = vld [vmem:[%s8314 + $0xa8] sm:$0xf]
        %v8358 = vld [vmem:[%s8314 + $0xac] sm:$0xf]
        %v8359 = vld [vmem:[%s8314 + $0xb0] sm:$0xf]
        %v8360 = vld [vmem:[%s8314 + $0xb4] sm:$0xf]
        %v8361 = vld [vmem:[%s8314 + $0xb8] sm:$0xf]
        %v8362 = vld [vmem:[%s8314 + $0xbc] sm:$0xf]
        %v8363 = vld [vmem:[%s8314 + $0xc0] sm:$0xf]
        %v8364 = vld [vmem:[%s8314 + $0xc4] sm:$0xf]
        %v8365 = vld [vmem:[%s8314 + $0xc8] sm:$0xf]
        %v8366 = vld [vmem:[%s8314 + $0xcc] sm:$0xf]
        %v8367 = vld [vmem:[%s8314 + $0xd0] sm:$0xf]
        %v8368 = vld [vmem:[%s8314 + $0xd4] sm:$0xf]
        %v8369 = vld [vmem:[%s8314 + $0xd8] sm:$0xf]
        %v8370 = vld [vmem:[%s8314 + $0xdc] sm:$0xf]
        %v8371 = vld [vmem:[%s8314 + $0xe0] sm:$0xf]
        %v8372 = vld [vmem:[%s8314 + $0xe4] sm:$0xf]
        %v8373 = vld [vmem:[%s8314 + $0xe8] sm:$0xf]
        %v8374 = vld [vmem:[%s8314 + $0xec] sm:$0xf]
        %v8375 = vld [vmem:[%s8314 + $0xf0] sm:$0xf]
        %v8376 = vld [vmem:[%s8314 + $0xf4] sm:$0xf]
        %v8377 = vld [vmem:[%s8314 + $0xf8] sm:$0xf]
        %v8378 = vld [vmem:[%s8314 + $0xfc] sm:$0xf]
        %v8379 = vld [vmem:[%s8314 + $0x100] sm:$0xf]
        %v8380 = vld [vmem:[%s8314 + $0x104] sm:$0xf]
        %v8381 = vld [vmem:[%s8314 + $0x108] sm:$0xf]
        %v8382 = vld [vmem:[%s8314 + $0x10c] sm:$0xf]
        %v8383 = vld [vmem:[%s8314 + $0x110] sm:$0xf]
        %v8384 = vld [vmem:[%s8314 + $0x114] sm:$0xf]
        %v8385 = vld [vmem:[%s8314 + $0x118] sm:$0xf]
        %v8386 = vld [vmem:[%s8314 + $0x11c] sm:$0xf]
        %v8387 = vld [vmem:[%s8314 + $0x120] sm:$0xf]
        %v8388 = vld [vmem:[%s8314 + $0x124] sm:$0xf]
        %v8389 = vld [vmem:[%s8314 + $0x128] sm:$0xf]
        %v8390 = vld [vmem:[%s8314 + $0x12c] sm:$0xf]
        %v8391 = vld [vmem:[%s8314 + $0x130] sm:$0xf]
        %v8392 = vld [vmem:[%s8314 + $0x134] sm:$0xf]
        %v8393 = vld [vmem:[%s8314 + $0x138] sm:$0xf]
        %v8394 = vld [vmem:[%s8314 + $0x13c] sm:$0xf]
        %v8395 = vld [vmem:[%s8314 + $0x140] sm:$0xf]
        %v8396 = vld [vmem:[%s8314 + $0x144] sm:$0xf]
        %v8397 = vld [vmem:[%s8314 + $0x148] sm:$0xf]
        %v8398 = vld [vmem:[%s8314 + $0x14c] sm:$0xf]
        %v8399 = vld [vmem:[%s8314 + $0x150] sm:$0xf]
        %v8400 = vld [vmem:[%s8314 + $0x154] sm:$0xf]
        %v8401 = vld [vmem:[%s8314 + $0x158] sm:$0xf]
        %v8402 = vld [vmem:[%s8314 + $0x15c] sm:$0xf]
        %v8403 = vld [vmem:[%s8314 + $0x160] sm:$0xf]
        %v8404 = vld [vmem:[%s8314 + $0x164] sm:$0xf]
        %v8405 = vld [vmem:[%s8314 + $0x168] sm:$0xf]
        %v8406 = vld [vmem:[%s8314 + $0x16c] sm:$0xf]
        %v8407 = vld [vmem:[%s8314 + $0x170] sm:$0xf]
        %v8408 = vld [vmem:[%s8314 + $0x174] sm:$0xf]
        %v8409 = vld [vmem:[%s8314 + $0x178] sm:$0xf]
        %v8410 = vld [vmem:[%s8314 + $0x17c] sm:$0xf]
        %v8507 = vunpack.c.l.b16 %v8315
        %v8508 = vunpack.c.l.b16 %v8316
        %v8509 = vunpack.c.l.b16 %v8317
        %v8510 = vunpack.c.l.b16 %v8318
        %v8511 = vunpack.c.l.b16 %v8319
        %v8512 = vunpack.c.l.b16 %v8320
        %v8513 = vunpack.c.l.b16 %v8321
        %v8514 = vunpack.c.l.b16 %v8322
        %v8515 = vunpack.c.l.b16 %v8323
        %v8516 = vunpack.c.l.b16 %v8324
        %v8517 = vunpack.c.l.b16 %v8325
        %v8518 = vunpack.c.l.b16 %v8326
        %v8519 = vunpack.c.l.b16 %v8327
        %v8520 = vunpack.c.l.b16 %v8328
        %v8521 = vunpack.c.l.b16 %v8329
        %v8522 = vunpack.c.l.b16 %v8330
        %v8523 = vunpack.c.l.b16 %v8331
        %v8524 = vunpack.c.l.b16 %v8332
        %v8525 = vunpack.c.l.b16 %v8333
        %v8526 = vunpack.c.l.b16 %v8334
        %v8527 = vunpack.c.l.b16 %v8335
        %v8528 = vunpack.c.l.b16 %v8336
        %v8529 = vunpack.c.l.b16 %v8337
        %v8530 = vunpack.c.l.b16 %v8338
        %v8531 = vunpack.c.l.b16 %v8339
        %v8532 = vunpack.c.l.b16 %v8340
        %v8533 = vunpack.c.l.b16 %v8341
        %v8534 = vunpack.c.l.b16 %v8342
        %v8535 = vunpack.c.l.b16 %v8343
        %v8536 = vunpack.c.l.b16 %v8344
        %v8537 = vunpack.c.l.b16 %v8345
        %v8538 = vunpack.c.l.b16 %v8346
        %v8539 = vunpack.c.l.b16 %v8347
        %v8540 = vunpack.c.l.b16 %v8348
        %v8541 = vunpack.c.l.b16 %v8349
        %v8542 = vunpack.c.l.b16 %v8350
        %v8543 = vunpack.c.l.b16 %v8351
        %v8544 = vunpack.c.l.b16 %v8352
        %v8545 = vunpack.c.l.b16 %v8353
        %v8546 = vunpack.c.l.b16 %v8354
        %v8547 = vunpack.c.l.b16 %v8355
        %v8548 = vunpack.c.l.b16 %v8356
        %v8549 = vunpack.c.l.b16 %v8357
        %v8550 = vunpack.c.l.b16 %v8358
        %v8551 = vunpack.c.l.b16 %v8359
        %v8552 = vunpack.c.l.b16 %v8360
        %v8553 = vunpack.c.l.b16 %v8361
        %v8554 = vunpack.c.l.b16 %v8362
        %v8555 = vunpack.c.l.b16 %v8363
        %v8556 = vunpack.c.l.b16 %v8364
        %v8557 = vunpack.c.l.b16 %v8365
        %v8558 = vunpack.c.l.b16 %v8366
        %v8559 = vunpack.c.l.b16 %v8367
        %v8560 = vunpack.c.l.b16 %v8368
        %v8561 = vunpack.c.l.b16 %v8369
        %v8562 = vunpack.c.l.b16 %v8370
        %v8563 = vunpack.c.l.b16 %v8371
        %v8564 = vunpack.c.l.b16 %v8372
        %v8565 = vunpack.c.l.b16 %v8373
        %v8566 = vunpack.c.l.b16 %v8374
        %v8567 = vunpack.c.l.b16 %v8375
        %v8568 = vunpack.c.l.b16 %v8376
        %v8569 = vunpack.c.l.b16 %v8377
        %v8570 = vunpack.c.l.b16 %v8378
        %v8571 = vunpack.c.l.b16 %v8379
        %v8572 = vunpack.c.l.b16 %v8380
        %v8573 = vunpack.c.l.b16 %v8381
        %v8574 = vunpack.c.l.b16 %v8382
        %v8575 = vunpack.c.l.b16 %v8383
        %v8576 = vunpack.c.l.b16 %v8384
        %v8577 = vunpack.c.l.b16 %v8385
        %v8578 = vunpack.c.l.b16 %v8386
        %v8579 = vunpack.c.l.b16 %v8387
        %v8580 = vunpack.c.l.b16 %v8388
        %v8581 = vunpack.c.l.b16 %v8389
        %v8582 = vunpack.c.l.b16 %v8390
        %v8583 = vunpack.c.l.b16 %v8391
        %v8584 = vunpack.c.l.b16 %v8392
        %v8585 = vunpack.c.l.b16 %v8393
        %v8586 = vunpack.c.l.b16 %v8394
        %v8587 = vunpack.c.l.b16 %v8395
        %v8588 = vunpack.c.l.b16 %v8396
        %v8589 = vunpack.c.l.b16 %v8397
        %v8590 = vunpack.c.l.b16 %v8398
        %v8591 = vunpack.c.l.b16 %v8399
        %v8592 = vunpack.c.l.b16 %v8400
        %v8593 = vunpack.c.l.b16 %v8401
        %v8594 = vunpack.c.l.b16 %v8402
        %v8595 = vunpack.c.l.b16 %v8403
        %v8596 = vunpack.c.l.b16 %v8404
        %v8597 = vunpack.c.l.b16 %v8405
        %v8598 = vunpack.c.l.b16 %v8406
        %v8599 = vunpack.c.l.b16 %v8407
        %v8600 = vunpack.c.l.b16 %v8408
        %v8601 = vunpack.c.l.b16 %v8409
        %v8602 = vunpack.c.l.b16 %v8410
        %v8603 = vpack.c.b16 %v8508, %v8507
        %v8604 = vpack.c.b16 %v8510, %v8509
        %v8605 = vpack.c.b16 %v8512, %v8511
        %v8606 = vpack.c.b16 %v8514, %v8513
        %v8607 = vpack.c.b16 %v8516, %v8515
        %v8608 = vpack.c.b16 %v8518, %v8517
        %v8609 = vpack.c.b16 %v8520, %v8519
        %v8610 = vpack.c.b16 %v8522, %v8521
        %v8611 = vpack.c.b16 %v8524, %v8523
        %v8612 = vpack.c.b16 %v8526, %v8525
        %v8613 = vpack.c.b16 %v8528, %v8527
        %v8614 = vpack.c.b16 %v8530, %v8529
        %v8615 = vpack.c.b16 %v8532, %v8531
        %v8616 = vpack.c.b16 %v8534, %v8533
        %v8617 = vpack.c.b16 %v8536, %v8535
        %v8618 = vpack.c.b16 %v8538, %v8537
        %v8619 = vpack.c.b16 %v8540, %v8539
        %v8620 = vpack.c.b16 %v8542, %v8541
        %v8621 = vpack.c.b16 %v8544, %v8543
        %v8622 = vpack.c.b16 %v8546, %v8545
        %v8623 = vpack.c.b16 %v8548, %v8547
        %v8624 = vpack.c.b16 %v8550, %v8549
        %v8625 = vpack.c.b16 %v8552, %v8551
        %v8626 = vpack.c.b16 %v8554, %v8553
        %v8627 = vpack.c.b16 %v8556, %v8555
        %v8628 = vpack.c.b16 %v8558, %v8557
        %v8629 = vpack.c.b16 %v8560, %v8559
        %v8630 = vpack.c.b16 %v8562, %v8561
        %v8631 = vpack.c.b16 %v8564, %v8563
        %v8632 = vpack.c.b16 %v8566, %v8565
        %v8633 = vpack.c.b16 %v8568, %v8567
        %v8634 = vpack.c.b16 %v8570, %v8569
        %v8635 = vpack.c.b16 %v8572, %v8571
        %v8636 = vpack.c.b16 %v8574, %v8573
        %v8637 = vpack.c.b16 %v8576, %v8575
        %v8638 = vpack.c.b16 %v8578, %v8577
        %v8639 = vpack.c.b16 %v8580, %v8579
        %v8640 = vpack.c.b16 %v8582, %v8581
        %v8641 = vpack.c.b16 %v8584, %v8583
        %v8642 = vpack.c.b16 %v8586, %v8585
        %v8643 = vpack.c.b16 %v8588, %v8587
        %v8644 = vpack.c.b16 %v8590, %v8589
        %v8645 = vpack.c.b16 %v8592, %v8591
        %v8646 = vpack.c.b16 %v8594, %v8593
        %v8647 = vpack.c.b16 %v8596, %v8595
        %v8648 = vpack.c.b16 %v8598, %v8597
        %v8649 = vpack.c.b16 %v8600, %v8599
        %v8650 = vpack.c.b16 %v8602, %v8601
        %8699 = vmatprep.subr.bf16.mxu0 0
        %8700 = vmatpush1.bf16.msra.mxu0 %v8603
        %8701 = vmatprep.subr.bf16.mxu0 0
        %8702 = vmatpush1.bf16.msra.mxu0 %v8604
        %8703 = vmatprep.subr.bf16.mxu0 0
        %8704 = vmatpush1.bf16.msra.mxu0 %v8605
        %8705 = vmatprep.subr.bf16.mxu0 0
        %8706 = vmatpush1.bf16.msra.mxu0 %v8606
        %8707 = vmatprep.subr.bf16.mxu0 0
        %8708 = vmatpush1.bf16.msra.mxu0 %v8607
        %8709 = vmatprep.subr.bf16.mxu0 0
        %8710 = vmatpush1.bf16.msra.mxu0 %v8608
        %8711 = vmatprep.subr.bf16.mxu0 0
        %8712 = vmatpush1.bf16.msra.mxu0 %v8609
        %8713 = vmatprep.subr.bf16.mxu0 0
        %8714 = vmatpush1.bf16.msra.mxu0 %v8610
        %8715 = vmatprep.subr.bf16.mxu0 0
        %8716 = vmatpush1.bf16.msra.mxu0 %v8611
        %8717 = vmatprep.subr.bf16.mxu0 0
        %8718 = vmatpush1.bf16.msra.mxu0 %v8612
        %8719 = vmatprep.subr.bf16.mxu0 0
        %8720 = vmatpush1.bf16.msra.mxu0 %v8613
        %8721 = vmatprep.subr.bf16.mxu0 0
        %8722 = vmatpush1.bf16.msra.mxu0 %v8614
        %8723 = vmatprep.subr.bf16.mxu0 0
        %8724 = vmatpush1.bf16.msra.mxu0 %v8615
        %8725 = vmatprep.subr.bf16.mxu0 0
        %8726 = vmatpush1.bf16.msra.mxu0 %v8616
        %8727 = vmatprep.subr.bf16.mxu0 0
        %8728 = vmatpush1.bf16.msra.mxu0 %v8617
        %8729 = vmatprep.subr.bf16.mxu0 0
        %8730 = vmatpush1.bf16.msra.mxu0 %v8618
        %8731 = vmatprep.mubr.bf16.mxu0 %v8267
        %8732 = vmatmul.mubr.bf16.gmra.mrb[0].mxu0 %v8266
        %v8733 = vpop.f32.mrb[0].mxu0
        %v8734 = vadd.f32 0.0, %v8733
        %v8735 = vpop.f32.mrb[0].mxu0
        %v8736 = vpop.f32.mrb[0].mxu0
        %v8737 = vadd.f32 0.0, %v8736
        %v8738 = vpop.f32.mrb[0].mxu0
        %8739 = vmatprep.mubr.bf16.mxu0 %v8273
        %8740 = vmatmul.mubr.bf16.gmra.mrb[0].mxu0 %v8272
        %v8741 = vpop.f32.mrb[0].mxu0
        %v8742 = vadd.f32 0.0, %v8741
        %v8743 = vpop.f32.mrb[0].mxu0
        %v8744 = vpop.f32.mrb[0].mxu0
        %v8745 = vadd.f32 0.0, %v8744
        %v8746 = vpop.f32.mrb[0].mxu0
        %8747 = vmatprep.mubr.bf16.mxu0 %v8279
        %8748 = vmatmul.mubr.bf16.gmra.mrb[0].mxu0 %v8278
        %v8749 = vpop.f32.mrb[0].mxu0
        %v8750 = vadd.f32 0.0, %v8749
        %v8751 = vpop.f32.mrb[0].mxu0
        %v8752 = vpop.f32.mrb[0].mxu0
        %v8753 = vadd.f32 0.0, %v8752
        %v8754 = vpop.f32.mrb[0].mxu0
        %8755 = vmatprep.mubr.bf16.mxu0 %v8285
        %8756 = vmatmul.mubr.bf16.gmra.mrb[0].mxu0 %v8284
        %v8757 = vpop.f32.mrb[0].mxu0
        %v8758 = vadd.f32 0.0, %v8757
        %v8759 = vpop.f32.mrb[0].mxu0
        %v8760 = vpop.f32.mrb[0].mxu0
        %v8761 = vadd.f32 0.0, %v8760
        %v8762 = vpop.f32.mrb[0].mxu0
        %8763 = vmatprep.mubr.bf16.mxu0 %v8291
        %8764 = vmatmul.mubr.bf16.gmra.mrb[0].mxu0 %v8290
        %v8765 = vpop.f32.mrb[0].mxu0
        %v8766 = vadd.f32 0.0, %v8765
        %v8767 = vpop.f32.mrb[0].mxu0
        %v8768 = vpop.f32.mrb[0].mxu0
        %v8769 = vadd.f32 0.0, %v8768
        %v8770 = vpop.f32.mrb[0].mxu0
        %8771 = vmatprep.mubr.bf16.mxu0 %v8297
        %8772 = vmatmul.mubr.bf16.gmra.mrb[0].mxu0 %v8296
        %v8773 = vpop.f32.mrb[0].mxu0
        %v8774 = vadd.f32 0.0, %v8773
        %v8775 = vpop.f32.mrb[0].mxu0
        %v8776 = vpop.f32.mrb[0].mxu0
        %v8777 = vadd.f32 0.0, %v8776
        %v8778 = vpop.f32.mrb[0].mxu0
        %8779 = vmatprep.mubr.bf16.mxu0 %v8303
        %8780 = vmatmul.mubr.bf16.gmra.mrb[0].mxu0 %v8302
        %v8781 = vpop.f32.mrb[0].mxu0
        %v8782 = vadd.f32 0.0, %v8781
        %v8783 = vpop.f32.mrb[0].mxu0
        %v8784 = vpop.f32.mrb[0].mxu0
        %v8785 = vadd.f32 0.0, %v8784
        %v8786 = vpop.f32.mrb[0].mxu0
        %8787 = vmatprep.mubr.bf16.mxu0 %v8309
        %8788 = vmatmul.mubr.bf16.gmra.mrb[0].mxu0 %v8308
        %v8789 = vpop.f32.mrb[0].mxu0
        %v8790 = vadd.f32 0.0, %v8789
        %v8791 = vpop.f32.mrb[0].mxu0
        %v8792 = vpop.f32.mrb[0].mxu0
        %v8793 = vadd.f32 0.0, %v8792
        %v8794 = vpop.f32.mrb[0].mxu0
        %8795 = vdwg.mxu0
        %8796 = vmatprep.subr.bf16.mxu0 0
        %8797 = vmatpush1.bf16.msra.mxu0 %v8619
        %8798 = vmatprep.subr.bf16.mxu0 0
        %8799 = vmatpush1.bf16.msra.mxu0 %v8620
        %8800 = vmatprep.subr.bf16.mxu0 0
        %8801 = vmatpush1.bf16.msra.mxu0 %v8621
        %8802 = vmatprep.subr.bf16.mxu0 0
        %8803 = vmatpush1.bf16.msra.mxu0 %v8622
        %8804 = vmatprep.subr.bf16.mxu0 0
        %8805 = vmatpush1.bf16.msra.mxu0 %v8623
        %8806 = vmatprep.subr.bf16.mxu0 0
        %8807 = vmatpush1.bf16.msra.mxu0 %v8624
        %8808 = vmatprep.subr.bf16.mxu0 0
        %8809 = vmatpush1.bf16.msra.mxu0 %v8625
        %8810 = vmatprep.subr.bf16.mxu0 0
        %8811 = vmatpush1.bf16.msra.mxu0 %v8626
        %8812 = vmatprep.subr.bf16.mxu0 0
        %8813 = vmatpush1.bf16.msra.mxu0 %v8627
        %8814 = vmatprep.subr.bf16.mxu0 0
        %8815 = vmatpush1.bf16.msra.mxu0 %v8628
        %8816 = vmatprep.subr.bf16.mxu0 0
        %8817 = vmatpush1.bf16.msra.mxu0 %v8629
        %8818 = vmatprep.subr.bf16.mxu0 0
        %8819 = vmatpush1.bf16.msra.mxu0 %v8630
        %8820 = vmatprep.subr.bf16.mxu0 0
        %8821 = vmatpush1.bf16.msra.mxu0 %v8631
        %8822 = vmatprep.subr.bf16.mxu0 0
        %8823 = vmatpush1.bf16.msra.mxu0 %v8632
        %8824 = vmatprep.subr.bf16.mxu0 0
        %8825 = vmatpush1.bf16.msra.mxu0 %v8633
        %8826 = vmatprep.subr.bf16.mxu0 0
        %8827 = vmatpush1.bf16.msra.mxu0 %v8634
        %8828 = vmatprep.mubr.bf16.mxu0 %v8269
        %8829 = vmatmul.mubr.bf16.gmra.mrb[0].mxu0 %v8268
        %v8830 = vpop.f32.mrb[0].mxu0
        %v8831 = vadd.f32 %v8734, %v8830
        %v8832 = vpop.f32.mrb[0].mxu0
        %v8833 = vpop.f32.mrb[0].mxu0
        %v8834 = vadd.f32 %v8737, %v8833
        %v8835 = vpop.f32.mrb[0].mxu0
        %8836 = vmatprep.mubr.bf16.mxu0 %v8275
        %8837 = vmatmul.mubr.bf16.gmra.mrb[0].mxu0 %v8274
        %v8838 = vpop.f32.mrb[0].mxu0
        %v8839 = vadd.f32 %v8742, %v8838
        %v8840 = vpop.f32.mrb[0].mxu0
        %v8841 = vpop.f32.mrb[0].mxu0
        %v8842 = vadd.f32 %v8745, %v8841
        %v8843 = vpop.f32.mrb[0].mxu0
        %8844 = vmatprep.mubr.bf16.mxu0 %v8281
        %8845 = vmatmul.mubr.bf16.gmra.mrb[0].mxu0 %v8280
        %v8846 = vpop.f32.mrb[0].mxu0
        %v8847 = vadd.f32 %v8750, %v8846
        %v8848 = vpop.f32.mrb[0].mxu0
        %v8849 = vpop.f32.mrb[0].mxu0
        %v8850 = vadd.f32 %v8753, %v8849
        %v8851 = vpop.f32.mrb[0].mxu0
        %8852 = vmatprep.mubr.bf16.mxu0 %v8287
        %8853 = vmatmul.mubr.bf16.gmra.mrb[0].mxu0 %v8286
        %v8854 = vpop.f32.mrb[0].mxu0
        %v8855 = vadd.f32 %v8758, %v8854
        %v8856 = vpop.f32.mrb[0].mxu0
        %v8857 = vpop.f32.mrb[0].mxu0
        %v8858 = vadd.f32 %v8761, %v8857
        %v8859 = vpop.f32.mrb[0].mxu0
        %8860 = vmatprep.mubr.bf16.mxu0 %v8293
        %8861 = vmatmul.mubr.bf16.gmra.mrb[0].mxu0 %v8292
        %v8862 = vpop.f32.mrb[0].mxu0
        %v8863 = vadd.f32 %v8766, %v8862
        %v8864 = vpop.f32.mrb[0].mxu0
        %v8865 = vpop.f32.mrb[0].mxu0
        %v8866 = vadd.f32 %v8769, %v8865
        %v8867 = vpop.f32.mrb[0].mxu0
        %8868 = vmatprep.mubr.bf16.mxu0 %v8299
        %8869 = vmatmul.mubr.bf16.gmra.mrb[0].mxu0 %v8298
        %v8870 = vpop.f32.mrb[0].mxu0
        %v8871 = vadd.f32 %v8774, %v8870
        %v8872 = vpop.f32.mrb[0].mxu0
        %v8873 = vpop.f32.mrb[0].mxu0
        %v8874 = vadd.f32 %v8777, %v8873
        %v8875 = vpop.f32.mrb[0].mxu0
        %8876 = vmatprep.mubr.bf16.mxu0 %v8305
        %8877 = vmatmul.mubr.bf16.gmra.mrb[0].mxu0 %v8304
        %v8878 = vpop.f32.mrb[0].mxu0
        %v8879 = vadd.f32 %v8782, %v8878
        %v8880 = vpop.f32.mrb[0].mxu0
        %v8881 = vpop.f32.mrb[0].mxu0
        %v8882 = vadd.f32 %v8785, %v8881
        %v8883 = vpop.f32.mrb[0].mxu0
        %8884 = vmatprep.mubr.bf16.mxu0 %v8311
        %8885 = vmatmul.mubr.bf16.gmra.mrb[0].mxu0 %v8310
        %v8886 = vpop.f32.mrb[0].mxu0
        %v8887 = vadd.f32 %v8790, %v8886
        %v8888 = vpop.f32.mrb[0].mxu0
        %v8889 = vpop.f32.mrb[0].mxu0
        %v8890 = vadd.f32 %v8793, %v8889
        %v8891 = vpop.f32.mrb[0].mxu0
        %8892 = vdwg.mxu0
        %8893 = vmatprep.subr.bf16.mxu0 0
        %8894 = vmatpush1.bf16.msra.mxu0 %v8635
        %8895 = vmatprep.subr.bf16.mxu0 0
        %8896 = vmatpush1.bf16.msra.mxu0 %v8636
        %8897 = vmatprep.subr.bf16.mxu0 0
        %8898 = vmatpush1.bf16.msra.mxu0 %v8637
        %8899 = vmatprep.subr.bf16.mxu0 0
        %8900 = vmatpush1.bf16.msra.mxu0 %v8638
        %8901 = vmatprep.subr.bf16.mxu0 0
        %8902 = vmatpush1.bf16.msra.mxu0 %v8639
        %8903 = vmatprep.subr.bf16.mxu0 0
        %8904 = vmatpush1.bf16.msra.mxu0 %v8640
        %8905 = vmatprep.subr.bf16.mxu0 0
        %8906 = vmatpush1.bf16.msra.mxu0 %v8641
        %8907 = vmatprep.subr.bf16.mxu0 0
        %8908 = vmatpush1.bf16.msra.mxu0 %v8642
        %8909 = vmatprep.subr.bf16.mxu0 0
        %8910 = vmatpush1.bf16.msra.mxu0 %v8643
        %8911 = vmatprep.subr.bf16.mxu0 0
        %8912 = vmatpush1.bf16.msra.mxu0 %v8644
        %8913 = vmatprep.subr.bf16.mxu0 0
        %8914 = vmatpush1.bf16.msra.mxu0 %v8645
        %8915 = vmatprep.subr.bf16.mxu0 0
        %8916 = vmatpush1.bf16.msra.mxu0 %v8646
        %8917 = vmatprep.subr.bf16.mxu0 0
        %8918 = vmatpush1.bf16.msra.mxu0 %v8647
        %8919 = vmatprep.subr.bf16.mxu0 0
        %8920 = vmatpush1.bf16.msra.mxu0 %v8648
        %8921 = vmatprep.subr.bf16.mxu0 0
        %8922 = vmatpush1.bf16.msra.mxu0 %v8649
        %8923 = vmatprep.subr.bf16.mxu0 0
        %8924 = vmatpush1.bf16.msra.mxu0 %v8650
        %8925 = vmatprep.mubr.bf16.mxu0 %v8271
        %8926 = vmatmul.mubr.bf16.gmra.mrb[0].mxu0 %v8270
        %v8927 = vpop.f32.mrb[0].mxu0
        %v8928 = vadd.f32 %v8831, %v8927
        %v8929 = vpop.f32.mrb[0].mxu0
        %v8930 = vpop.f32.mrb[0].mxu0
        %v8931 = vadd.f32 %v8834, %v8930
        %v8932 = vpop.f32.mrb[0].mxu0
        %8933 = vmatprep.mubr.bf16.mxu0 %v8277
        %8934 = vmatmul.mubr.bf16.gmra.mrb[0].mxu0 %v8276
        %v8935 = vpop.f32.mrb[0].mxu0
        %v8936 = vadd.f32 %v8839, %v8935
        %v8937 = vpop.f32.mrb[0].mxu0
        %v8938 = vpop.f32.mrb[0].mxu0
        %v8939 = vadd.f32 %v8842, %v8938
        %v8940 = vpop.f32.mrb[0].mxu0
        %8941 = vmatprep.mubr.bf16.mxu0 %v8283
        %8942 = vmatmul.mubr.bf16.gmra.mrb[0].mxu0 %v8282
        %v8943 = vpop.f32.mrb[0].mxu0
        %v8944 = vadd.f32 %v8847, %v8943
        %v8945 = vpop.f32.mrb[0].mxu0
        %v8946 = vpop.f32.mrb[0].mxu0
        %v8947 = vadd.f32 %v8850, %v8946
        %v8948 = vpop.f32.mrb[0].mxu0
        %8949 = vmatprep.mubr.bf16.mxu0 %v8289
        %8950 = vmatmul.mubr.bf16.gmra.mrb[0].mxu0 %v8288
        %v8951 = vpop.f32.mrb[0].mxu0
        %v8952 = vadd.f32 %v8855, %v8951
        %v8953 = vpop.f32.mrb[0].mxu0
        %v8954 = vpop.f32.mrb[0].mxu0
        %v8955 = vadd.f32 %v8858, %v8954
        %v8956 = vpop.f32.mrb[0].mxu0
        %8957 = vmatprep.mubr.bf16.mxu0 %v8295
        %8958 = vmatmul.mubr.bf16.gmra.mrb[0].mxu0 %v8294
        %v8959 = vpop.f32.mrb[0].mxu0
        %v8960 = vadd.f32 %v8863, %v8959
        %v8961 = vpop.f32.mrb[0].mxu0
        %v8962 = vpop.f32.mrb[0].mxu0
        %v8963 = vadd.f32 %v8866, %v8962
        %v8964 = vpop.f32.mrb[0].mxu0
        %8965 = vmatprep.mubr.bf16.mxu0 %v8301
        %8966 = vmatmul.mubr.bf16.gmra.mrb[0].mxu0 %v8300
        %v8967 = vpop.f32.mrb[0].mxu0
        %v8968 = vadd.f32 %v8871, %v8967
        %v8969 = vpop.f32.mrb[0].mxu0
        %v8970 = vpop.f32.mrb[0].mxu0
        %v8971 = vadd.f32 %v8874, %v8970
        %v8972 = vpop.f32.mrb[0].mxu0
        %8973 = vmatprep.mubr.bf16.mxu0 %v8307
        %8974 = vmatmul.mubr.bf16.gmra.mrb[0].mxu0 %v8306
        %v8975 = vpop.f32.mrb[0].mxu0
        %v8976 = vadd.f32 %v8879, %v8975
        %v8977 = vpop.f32.mrb[0].mxu0
        %v8978 = vpop.f32.mrb[0].mxu0
        %v8979 = vadd.f32 %v8882, %v8978
        %v8980 = vpop.f32.mrb[0].mxu0
        %8981 = vmatprep.mubr.bf16.mxu0 %v8313
        %8982 = vmatmul.mubr.bf16.gmra.mrb[0].mxu0 %v8312
        %v8983 = vpop.f32.mrb[0].mxu0
        %v8984 = vadd.f32 %v8887, %v8983
        %v8985 = vpop.f32.mrb[0].mxu0
        %v8986 = vpop.f32.mrb[0].mxu0
        %v8987 = vadd.f32 %v8890, %v8986
        %v8988 = vpop.f32.mrb[0].mxu0
        %8989 = vdwg.mxu0
        %v8990 = vadd.f32 %v8204, %v8928
        %v8991 = vadd.f32 %v8207, %v8931
        %v8992 = vadd.f32 %v8212, %v8936
        %v8993 = vadd.f32 %v8215, %v8939
        %v8994 = vadd.f32 %v8220, %v8944
        %v8995 = vadd.f32 %v8223, %v8947
        %v8996 = vadd.f32 %v8228, %v8952
        %v8997 = vadd.f32 %v8231, %v8955
        %v8998 = vadd.f32 %v8236, %v8960
        %v8999 = vadd.f32 %v8239, %v8963
        %v9000 = vadd.f32 %v8244, %v8968
        %v9001 = vadd.f32 %v8247, %v8971
        %v9002 = vadd.f32 %v8252, %v8976
        %v9003 = vadd.f32 %v8255, %v8979
        %v9004 = vadd.f32 %v8260, %v8984
        %v9005 = vadd.f32 %v8263, %v8987
        %v9006 = vld [vmem:[#allocation16] sm:$0x1]
        %v9008 = vlaneseq
        %v9009 = vshrl.u32 %v9008, 7
        %v9010 = vsub.s32 0, %v9009
        %v9011 = vrot.slane %v9006, %v9010
        %v9013 = vadd.f32 %v8990, %v9011
        %v9014 = vadd.f32 %v8991, %v9011
        %v9015 = vadd.f32 %v8992, %v9011
        %v9016 = vadd.f32 %v8993, %v9011
        %v9017 = vadd.f32 %v8994, %v9011
        %v9018 = vadd.f32 %v8995, %v9011
        %v9019 = vadd.f32 %v8996, %v9011
        %v9020 = vadd.f32 %v8997, %v9011
        %v9021 = vadd.f32 %v8998, %v9011
        %v9022 = vadd.f32 %v8999, %v9011
        %v9023 = vadd.f32 %v9000, %v9011
        %v9024 = vadd.f32 %v9001, %v9011
        %v9025 = vadd.f32 %v9002, %v9011
        %v9026 = vadd.f32 %v9003, %v9011
        %v9027 = vadd.f32 %v9004, %v9011
        %v9028 = vadd.f32 %v9005, %v9011
        %v9029 = vmax.f32 %v9013, 0.0
        %v9030 = vmax.f32 %v9014, 0.0
        %v9031 = vmax.f32 %v9015, 0.0
        %v9032 = vmax.f32 %v9016, 0.0
        %v9033 = vmax.f32 %v9017, 0.0
        %v9034 = vmax.f32 %v9018, 0.0
        %v9035 = vmax.f32 %v9019, 0.0
        %v9036 = vmax.f32 %v9020, 0.0
        %v9037 = vmax.f32 %v9021, 0.0
        %v9038 = vmax.f32 %v9022, 0.0
        %v9039 = vmax.f32 %v9023, 0.0
        %v9040 = vmax.f32 %v9024, 0.0
        %v9041 = vmax.f32 %v9025, 0.0
        %v9042 = vmax.f32 %v9026, 0.0
        %v9043 = vmax.f32 %v9027, 0.0
        %v9044 = vmax.f32 %v9028, 0.0
        %v9045 = vld [vmem:[#allocation17] sm:$0x1]
        %v9046 = vpack.c.bf16 %v9030, %v9029
        %v9047 = vpack.c.bf16 %v9032, %v9031
        %v9048 = vpack.c.bf16 %v9034, %v9033
        %v9049 = vpack.c.bf16 %v9036, %v9035
        %v9050 = vpack.c.bf16 %v9038, %v9037
        %v9051 = vpack.c.bf16 %v9040, %v9039
        %v9052 = vpack.c.bf16 %v9042, %v9041
        %v9053 = vpack.c.bf16 %v9044, %v9043
        %v9054 = vld [vmem:[%s11] sm:$0x3]
        %9056 = vset.pattern.permute.xlu0 0
        %9057 = vperm.xlu0 %9056, %v9054
        %v9058 = vpop.permute.xlu0 %9057
        %9060 = vmatprep.subr.bf16.mxu0 0
        %9061 = vmatpush1.bf16.xpose.msra.mxu0 %v9046
        %9062 = vmatprep.subr.bf16.mxu0 0
        %9063 = vmatpush1.bf16.xpose.msra.mxu0 %v9047
        %9064 = vmatprep.subr.bf16.mxu0 0
        %9065 = vmatpush1.bf16.xpose.msra.mxu0 %v9048
        %9066 = vmatprep.subr.bf16.mxu0 0
        %9067 = vmatpush1.bf16.xpose.msra.mxu0 %v9049
        %9068 = vmatprep.subr.bf16.mxu0 0
        %9069 = vmatpush1.bf16.xpose.msra.mxu0 %v9050
        %9070 = vmatprep.subr.bf16.mxu0 0
        %9071 = vmatpush1.bf16.xpose.msra.mxu0 %v9051
        %9072 = vmatprep.subr.bf16.mxu0 0
        %9073 = vmatpush1.bf16.xpose.msra.mxu0 %v9052
        %9074 = vmatprep.subr.bf16.mxu0 0
        %9075 = vmatpush1.bf16.xpose.msra.mxu0 %v9053
        %9076 = vmatprep.subr.bf16.mxu0 0
        %9077 = vmatpush1.bf16.xpose.msra.mxu0 0
        %9078 = vmatprep.subr.bf16.mxu0 0
        %9079 = vmatpush1.bf16.xpose.msra.mxu0 0
        %9080 = vmatprep.subr.bf16.mxu0 0
        %9081 = vmatpush1.bf16.xpose.msra.mxu0 0
        %9082 = vmatprep.subr.bf16.mxu0 0
        %9083 = vmatpush1.bf16.xpose.msra.mxu0 0
        %9084 = vmatprep.subr.bf16.mxu0 0
        %9085 = vmatpush1.bf16.xpose.msra.mxu0 0
        %9086 = vmatprep.subr.bf16.mxu0 0
        %9087 = vmatpush1.bf16.xpose.msra.mxu0 0
        %9088 = vmatprep.subr.bf16.mxu0 0
        %9089 = vmatpush1.bf16.xpose.msra.mxu0 0
        %9090 = vmatprep.subr.bf16.mxu0 0
        %9091 = vmatpush1.bf16.xpose.msra.mxu0 0
        %9092 = vmatprep.mubr.bf16.mxu0 0
        %9093 = vmatmul.mubr.bf16.gmra.mrb[0].mxu0 %v9045
        %v9094 = vpop.f32.mrb[0].mxu0
        %v9095 = vadd.f32 %v9058, %v9094
        %v9096 = vpop.f32.mrb[0].mxu0
        %v9097 = vpop.f32.mrb[0].mxu0
        %v9098 = vpop.f32.mrb[0].mxu0
        %9099 = vdwg.mxu0
        %v9100 = vand.u32 2147483647, %v9095
        %v9101 = vmax.f32 %v9095, 0.0
        %v9102 = vsub.f32 0.0, %v9100
        %v9103 = vmul.f32 %v9102, 1.442695
        %v9104 = vpow.pop %v9103
        %v9105 = vadd.f32 %v9104, 1.0
        %v9106 = vlog2.pop %v9105
        %v9107 = vmul.f32 %v9106, 0.6931472
        %v9108 = vadd.f32 %v9101, %v9107
        %9109 = vst [vmem:[%s521] sm:$0x1] %v9100
        %9110 = vst [vmem:[%s521] sm:$0x2] %v9108
        %s9111 = sand.u32 %s299, 1
        %s9112 = scalar_lea.sflag [#allocation6], %s9111
        %s9113 = sand.u32 %s299, 1
        %s9114 = smul.addr %s9113, 2
        %s9115 = scalar_lea.vmem [#allocation19], %s9114
        // Predicated region
        $region115: #{tpu_custom_call.1} parent=67 // pred_check
          %p9116 = pneg %p309
        $region116: #{tpu_custom_call.1} parent=67 // pred_check_branch
          %9118 = sbr.rel (%p9116) target = $region118
        $region117: #{tpu_custom_call.1} parent=67 // pred_region
          %s9120 = ssub.s32 32, 32
          %9121 = vsyncadd %s9112, %s9120
          %s9122 = smul.addr %s34, 32
          %s9123 = scalar_lea.hbm %s12, %s9122
          %s9125 = sshll.u32 %s9115, 4
          %s9126 = int_to_ptr.vmem [resolvable:$true] %s9125
          %9128 = dma.vmem_to_hbm [thread:$0]  %s9126, 32, %s9123, %s9112
        $region118: #{tpu_custom_call.1} parent=67 // pred_fallthru
          _
      $region68: #{tpu_custom_call.1} parent=5 // pred_fallthru
        _
      %p9129 = scmp.le.s32.totalorder 2, %s29
      // Predicated region
      $region119: #{tpu_custom_call.1} parent=5 // pred_check
        %p9130 = pneg %p9129
      $region120: #{tpu_custom_call.1} parent=5 // pred_check_branch
        %9132 = sbr.rel (%p9130) target = $region122
      $region121: #{tpu_custom_call.1} parent=5 // pred_region
        %s9133 = ssub.s32 %s29, 2
        // Predicated region
        $region123: #{tpu_custom_call.1} parent=121 // pred_check
          %p9134 = pneg %p315
        $region124: #{tpu_custom_call.1} parent=121 // pred_check_branch
          %9136 = sbr.rel (%p9134) target = $region126
        $region125: #{tpu_custom_call.1} parent=121 // pred_region
          %s9137 = sand.u32 %s300, 1
          %s9138 = scalar_lea.sflag [#allocation6], %s9137
          %s9139 = sand.u32 %s300, 1
          %s9140 = smul.addr %s9139, 2
          %s9141 = scalar_lea.vmem [#allocation19], %s9140
          %9142 = dma.done %s9138, 32
        $region126: #{tpu_custom_call.1} parent=121 // pred_fallthru
          _
      $region122: #{tpu_custom_call.1} parent=5 // pred_fallthru
        _
    $region6: #{tpu_custom_call.1} parent=1 // loop_footer
      %s33 = sadd.s32 1, %s29
    $region7: #{tpu_custom_call.1} parent=1 // loop_footer_branch
      %28 = sbr.rel target = $region3
    $region8: #{tpu_custom_call.1} parent=1 // loop_exit
      _
    %9143 = vsyncpa [#allocation5], 1
    %s9144 = scalar_lea.sflag [#allocation5], 1
    %9145 = vsyncpa %s9144, 1
    %9146 = vsyncpa [#allocation12], 1
    %9147 = vsyncpa [#allocation15], 1
    %9148 = vsyncpa [#allocation18], 1
    %9149 = vsyncpa [#allocation6], 1
    %s9150 = scalar_lea.sflag [#allocation6], 1
    %9151 = vsyncpa %s9150, 1
    %9152 = vsyncpa [#allocation7], 1
    %s9153 = scalar_lea.sflag [#allocation7], 1
    %9154 = vsyncpa %s9153, 1
    %9155 = vsyncpa [#allocation9], 1

</llo_original>
